<compile_context>
chip_gen: v7x
topology: tpu7x:2x2x1
jax: 0.10.0
libtpu: 0.0.40
codegen_flags: <defaults>
</compile_context>

<pallas_src>
import numpy as np
import jax
import jax.numpy as jnp
from jax.experimental import pallas as pl
from jax.experimental.pallas import tpu as pltpu


CHANNELS = [32, 64, 128, 64, 32]          # ultra_light config (racing @ 16x16)
NUM_CLASSES = 4
H = W = 16
CIN_PAD = 8                               # RGB 3 -> 8 channels (sublane aligned)

_CONV_DEFS = [                            # (name, Cin_raw, Cout) in forward order
    ("bb1", 3, CHANNELS[0]),
    ("bb2", CHANNELS[0], CHANNELS[1]),
    ("bb3", CHANNELS[1], CHANNELS[2]),
    ("feat", CHANNELS[2], CHANNELS[2]),   # single feature layer (ultra_light)
    ("dec1", CHANNELS[2], CHANNELS[3]),
    ("dec2", CHANNELS[3], CHANNELS[4]),
    ("cls1", CHANNELS[4], CHANNELS[4] // 2),
]


# ----------------------------------------------------------------------------
# In-kernel building blocks
# ----------------------------------------------------------------------------
def _shift_lane(x, k):
    """out[:, p] = x[:, p + k], zero-filled where p + k falls outside [0, P)."""
    c, p = x.shape
    if k == 0:
        return x
    z = jnp.zeros((c, abs(k)), x.dtype)
    if k > 0:
        return jnp.concatenate([x[:, k:], z], axis=1)
    return jnp.concatenate([z, x[:, : p + k]], axis=1)


def _conv3x3(x, w_ref, s_ref, m_ref, ww, d_ref=None):
    """3x3 conv (pad=1) + folded-BN shift + ReLU via in-register im2col.

    x:     (Cin, P)        f32 activation, channels x flattened pixels (row-major, width ww)
    w_ref: (Cout, 9*Cin)   bf16 BN-folded im2col weights (tap-major columns, t = dy*3+dx)
    s_ref: (Cout, 1)       f32 folded BN shift
    m_ref: (9, 1, P)       f32 per-tap zero-padding masks (indexed by output pixel)
    d_ref: optional (P, P//4) bf16 0/1 downsample matrix -> stride-2 conv
    """
    pieces = []
    for dy in range(3):
        for dx in range(3):
            t = dy * 3 + dx
            k = (dy - 1) * ww + (dx - 1)
            pieces.append(_shift_lane(x, k) * m_ref[t])          # (Cin, P) f32
    stack = jnp.concatenate(pieces, axis=0).astype(jnp.bfloat16)  # (9*Cin, P)
    if d_ref is not None:                                         # stride 2: keep even pixels
        stack = jnp.dot(stack, d_ref[...],
                        preferred_element_type=jnp.float32).astype(jnp.bfloat16)
    out = jnp.dot(w_ref[...], stack, preferred_element_type=jnp.float32)
    return jnp.maximum(out + s_ref[...], 0.0)


def _bisenet_kernel(x_ref, m16_ref, m8_ref, m4_ref, d16_ref, d8_ref, up_ref,
                    w_bb1, s_bb1, w_bb2, s_bb2, w_bb3, s_bb3,
                    w_feat, s_feat, w_dec1, s_dec1, w_dec2, s_dec2,
                    w_cls1, s_cls1, w_cls2, b_cls2, o_ref):
    x = x_ref[0]                                             # (8, 256) f32
    # ---- backbone ----------------------------------------------------------
    h = _conv3x3(x, w_bb1, s_bb1, m16_ref, 16)               # (32, 256)
    h = _conv3x3(h, w_bb2, s_bb2, m16_ref, 16, d16_ref)      # (64, 64)   stride 2
    # nn.Dropout2d -> identity (eval mode)
    h = _conv3x3(h, w_bb3, s_bb3, m8_ref, 8, d8_ref)         # (128, 16)  stride 2
    h = _conv3x3(h, w_feat, s_feat, m4_ref, 4)               # (128, 16)  feature layer
    # ---- decoder -----------------------------------------------------------
    h = _conv3x3(h, w_dec1, s_dec1, m4_ref, 4)               # (64, 16)
    # nn.Dropout2d -> identity (eval mode)
    h = _conv3x3(h, w_dec2, s_dec2, m4_ref, 4)               # (32, 16)
    # ---- F.interpolate(..., (16,16), bilinear, align_corners=False) --------
    h = jnp.dot(h.astype(jnp.bfloat16), up_ref[...],
                preferred_element_type=jnp.float32)          # (32, 256)
    # ---- classifier ---------------------------------------------------------
    h = _conv3x3(h, w_cls1, s_cls1, m16_ref, 16)             # (16, 256)
    out = jnp.dot(w_cls2[...], h.astype(jnp.bfloat16),
                  preferred_element_type=jnp.float32) + b_cls2[...]   # (4, 256)
    o_ref[0] = out.astype(o_ref.dtype)


# ----------------------------------------------------------------------------
# Host-side constant construction (masks / downsample / interp matrices)
# ----------------------------------------------------------------------------
def _tap_masks(hh, ww):
    """(9, 1, P) f32: 1 where tap (dy,dx) reads an in-bounds pixel for output p."""
    m = np.zeros((9, 1, hh * ww), np.float32)
    for dy in range(3):
        for dx in range(3):
            t = dy * 3 + dx
            for yo in range(hh):
                yi = yo + dy - 1
                for xo in range(ww):
                    xi = xo + dx - 1
                    if 0 <= yi < hh and 0 <= xi < ww:
                        m[t, 0, yo * ww + xo] = 1.0
    return m


def _downsample_matrix(hh, ww):
    """(P_in, P_out) 0/1 matrix selecting even (row, col) pixels (stride-2 output)."""
    ho, wo = hh // 2, ww // 2
    d = np.zeros((hh * ww, ho * wo), np.float32)
    for yo in range(ho):
        for xo in range(wo):
            d[(2 * yo) * ww + 2 * xo, yo * wo + xo] = 1.0
    return d


def _interp_matrix(n_out, n_in):
    """Row-stochastic bilinear matrix, PyTorch align_corners=False semantics."""
    m = np.zeros((n_out, n_in), dtype=np.float32)
    scale = n_in / n_out
    for i in range(n_out):
        s = (i + 0.5) * scale - 0.5
        s = min(max(s, 0.0), n_in - 1)
        i0 = int(np.floor(s))
        i1 = min(i0 + 1, n_in - 1)
        w1 = s - i0
        m[i, i0] += 1.0 - w1
        m[i, i1] += w1
    return m


def make_geometry_constants():
    m16 = jnp.asarray(_tap_masks(16, 16), jnp.float32)            # (9,1,256)
    m8 = jnp.asarray(_tap_masks(8, 8), jnp.float32)               # (9,1,64)
    m4 = jnp.asarray(_tap_masks(4, 4), jnp.float32)               # (9,1,16)
    d16 = jnp.asarray(_downsample_matrix(16, 16), jnp.bfloat16)   # (256,64)
    d8 = jnp.asarray(_downsample_matrix(8, 8), jnp.bfloat16)      # (64,16)
    up = np.kron(_interp_matrix(16, 4), _interp_matrix(16, 4))    # (256,16), eighths: exact bf16
    up = jnp.asarray(up.T, jnp.bfloat16)                          # (16,256)
    return (m16, m8, m4, d16, d8, up)


# ----------------------------------------------------------------------------
# Parameter construction + one-time packing (BN folded, im2col layout, bf16)
# ----------------------------------------------------------------------------
def _fold_bn(gamma, beta, mean, var, eps=1e-5):
    scale = gamma / jnp.sqrt(var + eps)
    shift = beta - mean * scale
    return scale, shift


def _pack_conv(w_oihw, gamma, beta, mean, var, cin_pad=None):
    cout, cin = w_oihw.shape[0], w_oihw.shape[1]
    scale, shift = _fold_bn(gamma, beta, mean, var)
    w = w_oihw * scale[:, None, None, None]                       # fold BN scale
    if cin_pad is not None and cin_pad > cin:
        w = jnp.pad(w, ((0, 0), (0, cin_pad - cin), (0, 0), (0, 0)))
        cin = cin_pad
    # (Cout,Cin,3,3) -> (Cout,dy,dx,Cin) -> (Cout, 9*Cin); column = (dy*3+dx)*Cin + ci
    w_im2col = jnp.transpose(w, (0, 2, 3, 1)).reshape(cout, 9 * cin)
    return w_im2col.astype(jnp.bfloat16), shift.reshape(cout, 1).astype(jnp.float32)


def init_packed_params(key, num_classes=NUM_CLASSES):
    packed = []
    for name, cin, cout in _CONV_DEFS:
        key, kw, kg, kb, km, kv = jax.random.split(key, 6)
        w = jax.random.normal(kw, (cout, cin, 3, 3), jnp.float32) * 0.05
        gamma = 1.0 + 0.01 * jax.random.normal(kg, (cout,), jnp.float32)
        beta = 0.01 * jax.random.normal(kb, (cout,), jnp.float32)
        mean = 0.01 * jax.random.normal(km, (cout,), jnp.float32)
        var = 1.0 + 0.1 * jnp.abs(jax.random.normal(kv, (cout,), jnp.float32))
        packed.extend(_pack_conv(w, gamma, beta, mean, var,
                                 cin_pad=CIN_PAD if name == "bb1" else None))
    key, kw, kb = jax.random.split(key, 3)
    w2 = jax.random.normal(kw, (num_classes, CHANNELS[4] // 2, 1, 1),
                           jnp.float32) * 0.05
    b2 = 0.01 * jax.random.normal(kb, (num_classes,), jnp.float32)
    packed.append(w2.reshape(num_classes, CHANNELS[4] // 2).astype(jnp.bfloat16))
    packed.append(b2.reshape(num_classes, 1).astype(jnp.float32))
    return tuple(packed)


# ----------------------------------------------------------------------------
# Forward pass: one pallas_call for the whole network
# ----------------------------------------------------------------------------
def bisenet_forward(x_nchw, geom, packed, num_classes=NUM_CLASSES):
    n, cin, h, w = x_nchw.shape
    p = h * w
    x2 = x_nchw.reshape(n, cin, p).astype(jnp.float32)     # channels x pixels / image
    if cin < CIN_PAD:                                      # pad RGB 3 -> 8 (zeros)
        x2 = jnp.pad(x2, ((0, 0), (0, CIN_PAD - cin), (0, 0)))
    consts = tuple(geom) + tuple(packed)

    def _const_spec(a):
        nd = a.ndim
        return pl.BlockSpec(a.shape, lambda i, _nd=nd: (0,) * _nd)

    out = pl.pallas_call(
        _bisenet_kernel,
        out_shape=jax.ShapeDtypeStruct((n, num_classes, p), jnp.float32),
        grid=(n,),
        in_specs=[pl.BlockSpec((1, CIN_PAD, p), lambda i: (i, 0, 0))]
                 + [_const_spec(a) for a in consts],
        out_specs=pl.BlockSpec((1, num_classes, p), lambda i: (i, 0, 0)),
        compiler_params=pltpu.CompilerParams(
            dimension_semantics=("parallel",)),
    )(x2, *consts)
    # (N, num_classes, H*W) is already NCHW order -> free reshape.
    return out.reshape(n, num_classes, h, w)


if __name__ == "__main__":
    key = jax.random.PRNGKey(0)
    key, kx = jax.random.split(key)
    # batch=2, RGB input, spatial 16x16 (racing / ultra_light config)
    x = jax.random.normal(kx, (2, 3, 16, 16), jnp.float32)

    geom = make_geometry_constants()
    packed = init_packed_params(key, num_classes=NUM_CLASSES)

    fwd = jax.jit(bisenet_forward)
    out = fwd(x, geom, packed)
    out = jax.block_until_ready(out)

    assert out.shape == (2, 4, 16, 16), out.shape
    assert bool(jnp.all(jnp.isfinite(out)))
    print("KERNEL_OK")
</pallas_src>

<mosaic_0001>
module attributes {stable_mosaic.version = 11 : i64} {
  func.func @_bisenet_kernel(%arg0: i32, %arg1: memref<1x8x256xf32, #tpu.memory_space<vmem>>, %arg2: memref<9x1x256xf32, #tpu.memory_space<vmem>>, %arg3: memref<9x1x64xf32, #tpu.memory_space<vmem>>, %arg4: memref<9x1x16xf32, #tpu.memory_space<vmem>>, %arg5: memref<256x64xbf16, #tpu.memory_space<vmem>>, %arg6: memref<64x16xbf16, #tpu.memory_space<vmem>>, %arg7: memref<16x256xbf16, #tpu.memory_space<vmem>>, %arg8: memref<32x72xbf16, #tpu.memory_space<vmem>>, %arg9: memref<32x1xf32, #tpu.memory_space<vmem>>, %arg10: memref<64x288xbf16, #tpu.memory_space<vmem>>, %arg11: memref<64x1xf32, #tpu.memory_space<vmem>>, %arg12: memref<128x576xbf16, #tpu.memory_space<vmem>>, %arg13: memref<128x1xf32, #tpu.memory_space<vmem>>, %arg14: memref<128x1152xbf16, #tpu.memory_space<vmem>>, %arg15: memref<128x1xf32, #tpu.memory_space<vmem>>, %arg16: memref<64x1152xbf16, #tpu.memory_space<vmem>>, %arg17: memref<64x1xf32, #tpu.memory_space<vmem>>, %arg18: memref<32x576xbf16, #tpu.memory_space<vmem>>, %arg19: memref<32x1xf32, #tpu.memory_space<vmem>>, %arg20: memref<16x288xbf16, #tpu.memory_space<vmem>>, %arg21: memref<16x1xf32, #tpu.memory_space<vmem>>, %arg22: memref<4x16xbf16, #tpu.memory_space<vmem>>, %arg23: memref<4x1xf32, #tpu.memory_space<vmem>>, %arg24: memref<1x4x256xf32, #tpu.memory_space<vmem>>) attributes {dimension_semantics = [#tpu.dimension_semantics<parallel>], iteration_bounds = array<i64: 2>, scalar_prefetch = 0 : i64, scratch_operands = 0 : i64, tpu.core_type = #tpu.core_type<tc>, window_params = [{transform_indices = @transform_0, window_bounds = array<i64: 1, 8, 256>}, {pipeline_mode = #tpu.pipeline_mode<synchronous>, transform_indices = @transform_1, window_bounds = array<i64: 9, 1, 256>}, {pipeline_mode = #tpu.pipeline_mode<synchronous>, transform_indices = @transform_2, window_bounds = array<i64: 9, 1, 64>}, {pipeline_mode = #tpu.pipeline_mode<synchronous>, transform_indices = @transform_3, window_bounds = array<i64: 9, 1, 16>}, {pipeline_mode = #tpu.pipeline_mode<synchronous>, transform_indices = @transform_4, window_bounds = array<i64: 256, 64>}, {pipeline_mode = #tpu.pipeline_mode<synchronous>, transform_indices = @transform_5, window_bounds = array<i64: 64, 16>}, {pipeline_mode = #tpu.pipeline_mode<synchronous>, transform_indices = @transform_6, window_bounds = array<i64: 16, 256>}, {pipeline_mode = #tpu.pipeline_mode<synchronous>, transform_indices = @transform_7, window_bounds = array<i64: 32, 72>}, {pipeline_mode = #tpu.pipeline_mode<synchronous>, transform_indices = @transform_8, window_bounds = array<i64: 32, 1>}, {pipeline_mode = #tpu.pipeline_mode<synchronous>, transform_indices = @transform_9, window_bounds = array<i64: 64, 288>}, {pipeline_mode = #tpu.pipeline_mode<synchronous>, transform_indices = @transform_10, window_bounds = array<i64: 64, 1>}, {pipeline_mode = #tpu.pipeline_mode<synchronous>, transform_indices = @transform_11, window_bounds = array<i64: 128, 576>}, {pipeline_mode = #tpu.pipeline_mode<synchronous>, transform_indices = @transform_12, window_bounds = array<i64: 128, 1>}, {pipeline_mode = #tpu.pipeline_mode<synchronous>, transform_indices = @transform_13, window_bounds = array<i64: 128, 1152>}, {pipeline_mode = #tpu.pipeline_mode<synchronous>, transform_indices = @transform_14, window_bounds = array<i64: 128, 1>}, {pipeline_mode = #tpu.pipeline_mode<synchronous>, transform_indices = @transform_15, window_bounds = array<i64: 64, 1152>}, {pipeline_mode = #tpu.pipeline_mode<synchronous>, transform_indices = @transform_16, window_bounds = array<i64: 64, 1>}, {pipeline_mode = #tpu.pipeline_mode<synchronous>, transform_indices = @transform_17, window_bounds = array<i64: 32, 576>}, {pipeline_mode = #tpu.pipeline_mode<synchronous>, transform_indices = @transform_18, window_bounds = array<i64: 32, 1>}, {pipeline_mode = #tpu.pipeline_mode<synchronous>, transform_indices = @transform_19, window_bounds = array<i64: 16, 288>}, {pipeline_mode = #tpu.pipeline_mode<synchronous>, transform_indices = @transform_20, window_bounds = array<i64: 16, 1>}, {pipeline_mode = #tpu.pipeline_mode<synchronous>, transform_indices = @transform_21, window_bounds = array<i64: 4, 16>}, {pipeline_mode = #tpu.pipeline_mode<synchronous>, transform_indices = @transform_22, window_bounds = array<i64: 4, 1>}, {transform_indices = @transform_23, window_bounds = array<i64: 1, 4, 256>}]} {
    %c0 = arith.constant 0 : index
    %c0_0 = arith.constant 0 : index
    %c0_1 = arith.constant 0 : index
    %0 = vector.load %arg1[%c0, %c0_0, %c0_1] : memref<1x8x256xf32, #tpu.memory_space<vmem>>, vector<1x8x256xf32>
    %1 = vector.shape_cast %0 : vector<1x8x256xf32> to vector<8x256xf32>
    %cst = arith.constant 0.000000e+00 : f32
    %2 = vector.broadcast %cst : f32 to vector<8x17xf32>
    %3 = vector.extract_strided_slice %1 {offsets = [0, 0], sizes = [8, 239], strides = [1, 1]} : vector<8x256xf32> to vector<8x239xf32>
    %4 = tpu.concatenate %2, %3 in 1 : vector<8x17xf32>, vector<8x239xf32> -> vector<8x256xf32>
    %c0_2 = arith.constant 0 : index
    %c0_3 = arith.constant 0 : index
    %c0_4 = arith.constant 0 : index
    %5 = vector.load %arg2[%c0_2, %c0_3, %c0_4] : memref<9x1x256xf32, #tpu.memory_space<vmem>>, vector<1x1x256xf32>
    %6 = vector.shape_cast %5 : vector<1x1x256xf32> to vector<1x256xf32>
    %7 = vector.broadcast %6 : vector<1x256xf32> to vector<8x256xf32>
    %8 = arith.mulf %4, %7 : vector<8x256xf32>
    %cst_5 = arith.constant 0.000000e+00 : f32
    %9 = vector.broadcast %cst_5 : f32 to vector<8x16xf32>
    %10 = vector.extract_strided_slice %1 {offsets = [0, 0], sizes = [8, 240], strides = [1, 1]} : vector<8x256xf32> to vector<8x240xf32>
    %11 = tpu.concatenate %9, %10 in 1 : vector<8x16xf32>, vector<8x240xf32> -> vector<8x256xf32>
    %c1 = arith.constant 1 : index
    %c0_6 = arith.constant 0 : index
    %c0_7 = arith.constant 0 : index
    %12 = vector.load %arg2[%c1, %c0_6, %c0_7] : memref<9x1x256xf32, #tpu.memory_space<vmem>>, vector<1x1x256xf32>
    %13 = vector.shape_cast %12 : vector<1x1x256xf32> to vector<1x256xf32>
    %14 = vector.broadcast %13 : vector<1x256xf32> to vector<8x256xf32>
    %15 = arith.mulf %11, %14 : vector<8x256xf32>
    %cst_8 = arith.constant 0.000000e+00 : f32
    %16 = vector.broadcast %cst_8 : f32 to vector<8x15xf32>
    %17 = vector.extract_strided_slice %1 {offsets = [0, 0], sizes = [8, 241], strides = [1, 1]} : vector<8x256xf32> to vector<8x241xf32>
    %18 = tpu.concatenate %16, %17 in 1 : vector<8x15xf32>, vector<8x241xf32> -> vector<8x256xf32>
    %c2 = arith.constant 2 : index
    %c0_9 = arith.constant 0 : index
    %c0_10 = arith.constant 0 : index
    %19 = vector.load %arg2[%c2, %c0_9, %c0_10] : memref<9x1x256xf32, #tpu.memory_space<vmem>>, vector<1x1x256xf32>
    %20 = vector.shape_cast %19 : vector<1x1x256xf32> to vector<1x256xf32>
    %21 = vector.broadcast %20 : vector<1x256xf32> to vector<8x256xf32>
    %22 = arith.mulf %18, %21 : vector<8x256xf32>
    %cst_11 = arith.constant 0.000000e+00 : f32
    %23 = vector.broadcast %cst_11 : f32 to vector<8x1xf32>
    %24 = vector.extract_strided_slice %1 {offsets = [0, 0], sizes = [8, 255], strides = [1, 1]} : vector<8x256xf32> to vector<8x255xf32>
    %25 = tpu.concatenate %23, %24 in 1 : vector<8x1xf32>, vector<8x255xf32> -> vector<8x256xf32>
    %c3 = arith.constant 3 : index
    %c0_12 = arith.constant 0 : index
    %c0_13 = arith.constant 0 : index
    %26 = vector.load %arg2[%c3, %c0_12, %c0_13] : memref<9x1x256xf32, #tpu.memory_space<vmem>>, vector<1x1x256xf32>
    %27 = vector.shape_cast %26 : vector<1x1x256xf32> to vector<1x256xf32>
    %28 = vector.broadcast %27 : vector<1x256xf32> to vector<8x256xf32>
    %29 = arith.mulf %25, %28 : vector<8x256xf32>
    %c4 = arith.constant 4 : index
    %c0_14 = arith.constant 0 : index
    %c0_15 = arith.constant 0 : index
    %30 = vector.load %arg2[%c4, %c0_14, %c0_15] : memref<9x1x256xf32, #tpu.memory_space<vmem>>, vector<1x1x256xf32>
    %31 = vector.shape_cast %30 : vector<1x1x256xf32> to vector<1x256xf32>
    %32 = vector.broadcast %31 : vector<1x256xf32> to vector<8x256xf32>
    %33 = arith.mulf %1, %32 : vector<8x256xf32>
    %cst_16 = arith.constant 0.000000e+00 : f32
    %34 = vector.broadcast %cst_16 : f32 to vector<8x1xf32>
    %35 = vector.extract_strided_slice %1 {offsets = [0, 1], sizes = [8, 255], strides = [1, 1]} : vector<8x256xf32> to vector<8x255xf32>
    %36 = tpu.concatenate %35, %34 in 1 : vector<8x255xf32>, vector<8x1xf32> -> vector<8x256xf32>
    %c5 = arith.constant 5 : index
    %c0_17 = arith.constant 0 : index
    %c0_18 = arith.constant 0 : index
    %37 = vector.load %arg2[%c5, %c0_17, %c0_18] : memref<9x1x256xf32, #tpu.memory_space<vmem>>, vector<1x1x256xf32>
    %38 = vector.shape_cast %37 : vector<1x1x256xf32> to vector<1x256xf32>
    %39 = vector.broadcast %38 : vector<1x256xf32> to vector<8x256xf32>
    %40 = arith.mulf %36, %39 : vector<8x256xf32>
    %cst_19 = arith.constant 0.000000e+00 : f32
    %41 = vector.broadcast %cst_19 : f32 to vector<8x15xf32>
    %42 = vector.extract_strided_slice %1 {offsets = [0, 15], sizes = [8, 241], strides = [1, 1]} : vector<8x256xf32> to vector<8x241xf32>
    %43 = tpu.concatenate %42, %41 in 1 : vector<8x241xf32>, vector<8x15xf32> -> vector<8x256xf32>
    %c6 = arith.constant 6 : index
    %c0_20 = arith.constant 0 : index
    %c0_21 = arith.constant 0 : index
    %44 = vector.load %arg2[%c6, %c0_20, %c0_21] : memref<9x1x256xf32, #tpu.memory_space<vmem>>, vector<1x1x256xf32>
    %45 = vector.shape_cast %44 : vector<1x1x256xf32> to vector<1x256xf32>
    %46 = vector.broadcast %45 : vector<1x256xf32> to vector<8x256xf32>
    %47 = arith.mulf %43, %46 : vector<8x256xf32>
    %cst_22 = arith.constant 0.000000e+00 : f32
    %48 = vector.broadcast %cst_22 : f32 to vector<8x16xf32>
    %49 = vector.extract_strided_slice %1 {offsets = [0, 16], sizes = [8, 240], strides = [1, 1]} : vector<8x256xf32> to vector<8x240xf32>
    %50 = tpu.concatenate %49, %48 in 1 : vector<8x240xf32>, vector<8x16xf32> -> vector<8x256xf32>
    %c7 = arith.constant 7 : index
    %c0_23 = arith.constant 0 : index
    %c0_24 = arith.constant 0 : index
    %51 = vector.load %arg2[%c7, %c0_23, %c0_24] : memref<9x1x256xf32, #tpu.memory_space<vmem>>, vector<1x1x256xf32>
    %52 = vector.shape_cast %51 : vector<1x1x256xf32> to vector<1x256xf32>
    %53 = vector.broadcast %52 : vector<1x256xf32> to vector<8x256xf32>
    %54 = arith.mulf %50, %53 : vector<8x256xf32>
    %cst_25 = arith.constant 0.000000e+00 : f32
    %55 = vector.broadcast %cst_25 : f32 to vector<8x17xf32>
    %56 = vector.extract_strided_slice %1 {offsets = [0, 17], sizes = [8, 239], strides = [1, 1]} : vector<8x256xf32> to vector<8x239xf32>
    %57 = tpu.concatenate %56, %55 in 1 : vector<8x239xf32>, vector<8x17xf32> -> vector<8x256xf32>
    %c8 = arith.constant 8 : index
    %c0_26 = arith.constant 0 : index
    %c0_27 = arith.constant 0 : index
    %58 = vector.load %arg2[%c8, %c0_26, %c0_27] : memref<9x1x256xf32, #tpu.memory_space<vmem>>, vector<1x1x256xf32>
    %59 = vector.shape_cast %58 : vector<1x1x256xf32> to vector<1x256xf32>
    %60 = vector.broadcast %59 : vector<1x256xf32> to vector<8x256xf32>
    %61 = arith.mulf %57, %60 : vector<8x256xf32>
    %62 = tpu.concatenate %8, %15, %22, %29, %33, %40, %47, %54, %61 in 0 : vector<8x256xf32>, vector<8x256xf32>, vector<8x256xf32>, vector<8x256xf32>, vector<8x256xf32>, vector<8x256xf32>, vector<8x256xf32>, vector<8x256xf32>, vector<8x256xf32> -> vector<72x256xf32>
    %63 = arith.truncf %62 : vector<72x256xf32> to vector<72x256xbf16>
    %c0_28 = arith.constant 0 : index
    %c0_29 = arith.constant 0 : index
    %64 = vector.load %arg8[%c0_28, %c0_29] : memref<32x72xbf16, #tpu.memory_space<vmem>>, vector<32x72xbf16>
    %cst_30 = arith.constant dense<0.000000e+00> : vector<32x256xf32>
    %65 = tpu.matmul %64, %63, %cst_30 {dimension_numbers = #tpu.dot_dimension_numbers<[1], [0], [0], [1], [0, 0, 1, 1], [], []>} : vector<32x72xbf16>, vector<72x256xbf16>, vector<32x256xf32> -> vector<32x256xf32>
    %c0_31 = arith.constant 0 : index
    %c0_32 = arith.constant 0 : index
    %66 = vector.load %arg9[%c0_31, %c0_32] : memref<32x1xf32, #tpu.memory_space<vmem>>, vector<32x1xf32>
    %67 = vector.broadcast %66 : vector<32x1xf32> to vector<32x256xf32>
    %68 = arith.addf %65, %67 : vector<32x256xf32>
    %cst_33 = arith.constant 0.000000e+00 : f32
    %69 = vector.broadcast %cst_33 : f32 to vector<32x256xf32>
    %70 = arith.maximumf %68, %69 : vector<32x256xf32>
    %cst_34 = arith.constant 0.000000e+00 : f32
    %71 = vector.broadcast %cst_34 : f32 to vector<32x17xf32>
    %72 = vector.extract_strided_slice %70 {offsets = [0, 0], sizes = [32, 239], strides = [1, 1]} : vector<32x256xf32> to vector<32x239xf32>
    %73 = tpu.concatenate %71, %72 in 1 : vector<32x17xf32>, vector<32x239xf32> -> vector<32x256xf32>
    %c0_35 = arith.constant 0 : index
    %c0_36 = arith.constant 0 : index
    %c0_37 = arith.constant 0 : index
    %74 = vector.load %arg2[%c0_35, %c0_36, %c0_37] : memref<9x1x256xf32, #tpu.memory_space<vmem>>, vector<1x1x256xf32>
    %75 = vector.shape_cast %74 : vector<1x1x256xf32> to vector<1x256xf32>
    %76 = vector.broadcast %75 : vector<1x256xf32> to vector<32x256xf32>
    %77 = arith.mulf %73, %76 : vector<32x256xf32>
    %cst_38 = arith.constant 0.000000e+00 : f32
    %78 = vector.broadcast %cst_38 : f32 to vector<32x16xf32>
    %79 = vector.extract_strided_slice %70 {offsets = [0, 0], sizes = [32, 240], strides = [1, 1]} : vector<32x256xf32> to vector<32x240xf32>
    %80 = tpu.concatenate %78, %79 in 1 : vector<32x16xf32>, vector<32x240xf32> -> vector<32x256xf32>
    %c1_39 = arith.constant 1 : index
    %c0_40 = arith.constant 0 : index
    %c0_41 = arith.constant 0 : index
    %81 = vector.load %arg2[%c1_39, %c0_40, %c0_41] : memref<9x1x256xf32, #tpu.memory_space<vmem>>, vector<1x1x256xf32>
    %82 = vector.shape_cast %81 : vector<1x1x256xf32> to vector<1x256xf32>
    %83 = vector.broadcast %82 : vector<1x256xf32> to vector<32x256xf32>
    %84 = arith.mulf %80, %83 : vector<32x256xf32>
    %cst_42 = arith.constant 0.000000e+00 : f32
    %85 = vector.broadcast %cst_42 : f32 to vector<32x15xf32>
    %86 = vector.extract_strided_slice %70 {offsets = [0, 0], sizes = [32, 241], strides = [1, 1]} : vector<32x256xf32> to vector<32x241xf32>
    %87 = tpu.concatenate %85, %86 in 1 : vector<32x15xf32>, vector<32x241xf32> -> vector<32x256xf32>
    %c2_43 = arith.constant 2 : index
    %c0_44 = arith.constant 0 : index
    %c0_45 = arith.constant 0 : index
    %88 = vector.load %arg2[%c2_43, %c0_44, %c0_45] : memref<9x1x256xf32, #tpu.memory_space<vmem>>, vector<1x1x256xf32>
    %89 = vector.shape_cast %88 : vector<1x1x256xf32> to vector<1x256xf32>
    %90 = vector.broadcast %89 : vector<1x256xf32> to vector<32x256xf32>
    %91 = arith.mulf %87, %90 : vector<32x256xf32>
    %cst_46 = arith.constant 0.000000e+00 : f32
    %92 = vector.broadcast %cst_46 : f32 to vector<32x1xf32>
    %93 = vector.extract_strided_slice %70 {offsets = [0, 0], sizes = [32, 255], strides = [1, 1]} : vector<32x256xf32> to vector<32x255xf32>
    %94 = tpu.concatenate %92, %93 in 1 : vector<32x1xf32>, vector<32x255xf32> -> vector<32x256xf32>
    %c3_47 = arith.constant 3 : index
    %c0_48 = arith.constant 0 : index
    %c0_49 = arith.constant 0 : index
    %95 = vector.load %arg2[%c3_47, %c0_48, %c0_49] : memref<9x1x256xf32, #tpu.memory_space<vmem>>, vector<1x1x256xf32>
    %96 = vector.shape_cast %95 : vector<1x1x256xf32> to vector<1x256xf32>
    %97 = vector.broadcast %96 : vector<1x256xf32> to vector<32x256xf32>
    %98 = arith.mulf %94, %97 : vector<32x256xf32>
    %c4_50 = arith.constant 4 : index
    %c0_51 = arith.constant 0 : index
    %c0_52 = arith.constant 0 : index
    %99 = vector.load %arg2[%c4_50, %c0_51, %c0_52] : memref<9x1x256xf32, #tpu.memory_space<vmem>>, vector<1x1x256xf32>
    %100 = vector.shape_cast %99 : vector<1x1x256xf32> to vector<1x256xf32>
    %101 = vector.broadcast %100 : vector<1x256xf32> to vector<32x256xf32>
    %102 = arith.mulf %70, %101 : vector<32x256xf32>
    %cst_53 = arith.constant 0.000000e+00 : f32
    %103 = vector.broadcast %cst_53 : f32 to vector<32x1xf32>
    %104 = vector.extract_strided_slice %70 {offsets = [0, 1], sizes = [32, 255], strides = [1, 1]} : vector<32x256xf32> to vector<32x255xf32>
    %105 = tpu.concatenate %104, %103 in 1 : vector<32x255xf32>, vector<32x1xf32> -> vector<32x256xf32>
    %c5_54 = arith.constant 5 : index
    %c0_55 = arith.constant 0 : index
    %c0_56 = arith.constant 0 : index
    %106 = vector.load %arg2[%c5_54, %c0_55, %c0_56] : memref<9x1x256xf32, #tpu.memory_space<vmem>>, vector<1x1x256xf32>
    %107 = vector.shape_cast %106 : vector<1x1x256xf32> to vector<1x256xf32>
    %108 = vector.broadcast %107 : vector<1x256xf32> to vector<32x256xf32>
    %109 = arith.mulf %105, %108 : vector<32x256xf32>
    %cst_57 = arith.constant 0.000000e+00 : f32
    %110 = vector.broadcast %cst_57 : f32 to vector<32x15xf32>
    %111 = vector.extract_strided_slice %70 {offsets = [0, 15], sizes = [32, 241], strides = [1, 1]} : vector<32x256xf32> to vector<32x241xf32>
    %112 = tpu.concatenate %111, %110 in 1 : vector<32x241xf32>, vector<32x15xf32> -> vector<32x256xf32>
    %c6_58 = arith.constant 6 : index
    %c0_59 = arith.constant 0 : index
    %c0_60 = arith.constant 0 : index
    %113 = vector.load %arg2[%c6_58, %c0_59, %c0_60] : memref<9x1x256xf32, #tpu.memory_space<vmem>>, vector<1x1x256xf32>
    %114 = vector.shape_cast %113 : vector<1x1x256xf32> to vector<1x256xf32>
    %115 = vector.broadcast %114 : vector<1x256xf32> to vector<32x256xf32>
    %116 = arith.mulf %112, %115 : vector<32x256xf32>
    %cst_61 = arith.constant 0.000000e+00 : f32
    %117 = vector.broadcast %cst_61 : f32 to vector<32x16xf32>
    %118 = vector.extract_strided_slice %70 {offsets = [0, 16], sizes = [32, 240], strides = [1, 1]} : vector<32x256xf32> to vector<32x240xf32>
    %119 = tpu.concatenate %118, %117 in 1 : vector<32x240xf32>, vector<32x16xf32> -> vector<32x256xf32>
    %c7_62 = arith.constant 7 : index
    %c0_63 = arith.constant 0 : index
    %c0_64 = arith.constant 0 : index
    %120 = vector.load %arg2[%c7_62, %c0_63, %c0_64] : memref<9x1x256xf32, #tpu.memory_space<vmem>>, vector<1x1x256xf32>
    %121 = vector.shape_cast %120 : vector<1x1x256xf32> to vector<1x256xf32>
    %122 = vector.broadcast %121 : vector<1x256xf32> to vector<32x256xf32>
    %123 = arith.mulf %119, %122 : vector<32x256xf32>
    %cst_65 = arith.constant 0.000000e+00 : f32
    %124 = vector.broadcast %cst_65 : f32 to vector<32x17xf32>
    %125 = vector.extract_strided_slice %70 {offsets = [0, 17], sizes = [32, 239], strides = [1, 1]} : vector<32x256xf32> to vector<32x239xf32>
    %126 = tpu.concatenate %125, %124 in 1 : vector<32x239xf32>, vector<32x17xf32> -> vector<32x256xf32>
    %c8_66 = arith.constant 8 : index
    %c0_67 = arith.constant 0 : index
    %c0_68 = arith.constant 0 : index
    %127 = vector.load %arg2[%c8_66, %c0_67, %c0_68] : memref<9x1x256xf32, #tpu.memory_space<vmem>>, vector<1x1x256xf32>
    %128 = vector.shape_cast %127 : vector<1x1x256xf32> to vector<1x256xf32>
    %129 = vector.broadcast %128 : vector<1x256xf32> to vector<32x256xf32>
    %130 = arith.mulf %126, %129 : vector<32x256xf32>
    %131 = tpu.concatenate %77, %84, %91, %98, %102, %109, %116, %123, %130 in 0 : vector<32x256xf32>, vector<32x256xf32>, vector<32x256xf32>, vector<32x256xf32>, vector<32x256xf32>, vector<32x256xf32>, vector<32x256xf32>, vector<32x256xf32>, vector<32x256xf32> -> vector<288x256xf32>
    %132 = arith.truncf %131 : vector<288x256xf32> to vector<288x256xbf16>
    %c0_69 = arith.constant 0 : index
    %c0_70 = arith.constant 0 : index
    %133 = vector.load %arg5[%c0_69, %c0_70] : memref<256x64xbf16, #tpu.memory_space<vmem>>, vector<256x64xbf16>
    %cst_71 = arith.constant dense<0.000000e+00> : vector<288x64xf32>
    %134 = tpu.matmul %132, %133, %cst_71 {dimension_numbers = #tpu.dot_dimension_numbers<[1], [0], [0], [1], [0, 0, 1, 1], [], []>} : vector<288x256xbf16>, vector<256x64xbf16>, vector<288x64xf32> -> vector<288x64xf32>
    %135 = arith.truncf %134 : vector<288x64xf32> to vector<288x64xbf16>
    %c0_72 = arith.constant 0 : index
    %c0_73 = arith.constant 0 : index
    %136 = vector.load %arg10[%c0_72, %c0_73] : memref<64x288xbf16, #tpu.memory_space<vmem>>, vector<64x288xbf16>
    %cst_74 = arith.constant dense<0.000000e+00> : vector<64x64xf32>
    %137 = tpu.matmul %136, %135, %cst_74 {dimension_numbers = #tpu.dot_dimension_numbers<[1], [0], [0], [1], [0, 0, 1, 1], [], []>} : vector<64x288xbf16>, vector<288x64xbf16>, vector<64x64xf32> -> vector<64x64xf32>
    %c0_75 = arith.constant 0 : index
    %c0_76 = arith.constant 0 : index
    %138 = vector.load %arg11[%c0_75, %c0_76] : memref<64x1xf32, #tpu.memory_space<vmem>>, vector<64x1xf32>
    %139 = vector.broadcast %138 : vector<64x1xf32> to vector<64x64xf32>
    %140 = arith.addf %137, %139 : vector<64x64xf32>
    %cst_77 = arith.constant 0.000000e+00 : f32
    %141 = vector.broadcast %cst_77 : f32 to vector<64x64xf32>
    %142 = arith.maximumf %140, %141 : vector<64x64xf32>
    %cst_78 = arith.constant 0.000000e+00 : f32
    %143 = vector.broadcast %cst_78 : f32 to vector<64x9xf32>
    %144 = vector.extract_strided_slice %142 {offsets = [0, 0], sizes = [64, 55], strides = [1, 1]} : vector<64x64xf32> to vector<64x55xf32>
    %145 = tpu.concatenate %143, %144 in 1 : vector<64x9xf32>, vector<64x55xf32> -> vector<64x64xf32>
    %c0_79 = arith.constant 0 : index
    %c0_80 = arith.constant 0 : index
    %c0_81 = arith.constant 0 : index
    %146 = vector.load %arg3[%c0_79, %c0_80, %c0_81] : memref<9x1x64xf32, #tpu.memory_space<vmem>>, vector<1x1x64xf32>
    %147 = vector.shape_cast %146 : vector<1x1x64xf32> to vector<1x64xf32>
    %148 = vector.broadcast %147 : vector<1x64xf32> to vector<64x64xf32>
    %149 = arith.mulf %145, %148 : vector<64x64xf32>
    %cst_82 = arith.constant 0.000000e+00 : f32
    %150 = vector.broadcast %cst_82 : f32 to vector<64x8xf32>
    %151 = vector.extract_strided_slice %142 {offsets = [0, 0], sizes = [64, 56], strides = [1, 1]} : vector<64x64xf32> to vector<64x56xf32>
    %152 = tpu.concatenate %150, %151 in 1 : vector<64x8xf32>, vector<64x56xf32> -> vector<64x64xf32>
    %c1_83 = arith.constant 1 : index
    %c0_84 = arith.constant 0 : index
    %c0_85 = arith.constant 0 : index
    %153 = vector.load %arg3[%c1_83, %c0_84, %c0_85] : memref<9x1x64xf32, #tpu.memory_space<vmem>>, vector<1x1x64xf32>
    %154 = vector.shape_cast %153 : vector<1x1x64xf32> to vector<1x64xf32>
    %155 = vector.broadcast %154 : vector<1x64xf32> to vector<64x64xf32>
    %156 = arith.mulf %152, %155 : vector<64x64xf32>
    %cst_86 = arith.constant 0.000000e+00 : f32
    %157 = vector.broadcast %cst_86 : f32 to vector<64x7xf32>
    %158 = vector.extract_strided_slice %142 {offsets = [0, 0], sizes = [64, 57], strides = [1, 1]} : vector<64x64xf32> to vector<64x57xf32>
    %159 = tpu.concatenate %157, %158 in 1 : vector<64x7xf32>, vector<64x57xf32> -> vector<64x64xf32>
    %c2_87 = arith.constant 2 : index
    %c0_88 = arith.constant 0 : index
    %c0_89 = arith.constant 0 : index
    %160 = vector.load %arg3[%c2_87, %c0_88, %c0_89] : memref<9x1x64xf32, #tpu.memory_space<vmem>>, vector<1x1x64xf32>
    %161 = vector.shape_cast %160 : vector<1x1x64xf32> to vector<1x64xf32>
    %162 = vector.broadcast %161 : vector<1x64xf32> to vector<64x64xf32>
    %163 = arith.mulf %159, %162 : vector<64x64xf32>
    %cst_90 = arith.constant 0.000000e+00 : f32
    %164 = vector.broadcast %cst_90 : f32 to vector<64x1xf32>
    %165 = vector.extract_strided_slice %142 {offsets = [0, 0], sizes = [64, 63], strides = [1, 1]} : vector<64x64xf32> to vector<64x63xf32>
    %166 = tpu.concatenate %164, %165 in 1 : vector<64x1xf32>, vector<64x63xf32> -> vector<64x64xf32>
    %c3_91 = arith.constant 3 : index
    %c0_92 = arith.constant 0 : index
    %c0_93 = arith.constant 0 : index
    %167 = vector.load %arg3[%c3_91, %c0_92, %c0_93] : memref<9x1x64xf32, #tpu.memory_space<vmem>>, vector<1x1x64xf32>
    %168 = vector.shape_cast %167 : vector<1x1x64xf32> to vector<1x64xf32>
    %169 = vector.broadcast %168 : vector<1x64xf32> to vector<64x64xf32>
    %170 = arith.mulf %166, %169 : vector<64x64xf32>
    %c4_94 = arith.constant 4 : index
    %c0_95 = arith.constant 0 : index
    %c0_96 = arith.constant 0 : index
    %171 = vector.load %arg3[%c4_94, %c0_95, %c0_96] : memref<9x1x64xf32, #tpu.memory_space<vmem>>, vector<1x1x64xf32>
    %172 = vector.shape_cast %171 : vector<1x1x64xf32> to vector<1x64xf32>
    %173 = vector.broadcast %172 : vector<1x64xf32> to vector<64x64xf32>
    %174 = arith.mulf %142, %173 : vector<64x64xf32>
    %cst_97 = arith.constant 0.000000e+00 : f32
    %175 = vector.broadcast %cst_97 : f32 to vector<64x1xf32>
    %176 = vector.extract_strided_slice %142 {offsets = [0, 1], sizes = [64, 63], strides = [1, 1]} : vector<64x64xf32> to vector<64x63xf32>
    %177 = tpu.concatenate %176, %175 in 1 : vector<64x63xf32>, vector<64x1xf32> -> vector<64x64xf32>
    %c5_98 = arith.constant 5 : index
    %c0_99 = arith.constant 0 : index
    %c0_100 = arith.constant 0 : index
    %178 = vector.load %arg3[%c5_98, %c0_99, %c0_100] : memref<9x1x64xf32, #tpu.memory_space<vmem>>, vector<1x1x64xf32>
    %179 = vector.shape_cast %178 : vector<1x1x64xf32> to vector<1x64xf32>
    %180 = vector.broadcast %179 : vector<1x64xf32> to vector<64x64xf32>
    %181 = arith.mulf %177, %180 : vector<64x64xf32>
    %cst_101 = arith.constant 0.000000e+00 : f32
    %182 = vector.broadcast %cst_101 : f32 to vector<64x7xf32>
    %183 = vector.extract_strided_slice %142 {offsets = [0, 7], sizes = [64, 57], strides = [1, 1]} : vector<64x64xf32> to vector<64x57xf32>
    %184 = tpu.concatenate %183, %182 in 1 : vector<64x57xf32>, vector<64x7xf32> -> vector<64x64xf32>
    %c6_102 = arith.constant 6 : index
    %c0_103 = arith.constant 0 : index
    %c0_104 = arith.constant 0 : index
    %185 = vector.load %arg3[%c6_102, %c0_103, %c0_104] : memref<9x1x64xf32, #tpu.memory_space<vmem>>, vector<1x1x64xf32>
    %186 = vector.shape_cast %185 : vector<1x1x64xf32> to vector<1x64xf32>
    %187 = vector.broadcast %186 : vector<1x64xf32> to vector<64x64xf32>
    %188 = arith.mulf %184, %187 : vector<64x64xf32>
    %cst_105 = arith.constant 0.000000e+00 : f32
    %189 = vector.broadcast %cst_105 : f32 to vector<64x8xf32>
    %190 = vector.extract_strided_slice %142 {offsets = [0, 8], sizes = [64, 56], strides = [1, 1]} : vector<64x64xf32> to vector<64x56xf32>
    %191 = tpu.concatenate %190, %189 in 1 : vector<64x56xf32>, vector<64x8xf32> -> vector<64x64xf32>
    %c7_106 = arith.constant 7 : index
    %c0_107 = arith.constant 0 : index
    %c0_108 = arith.constant 0 : index
    %192 = vector.load %arg3[%c7_106, %c0_107, %c0_108] : memref<9x1x64xf32, #tpu.memory_space<vmem>>, vector<1x1x64xf32>
    %193 = vector.shape_cast %192 : vector<1x1x64xf32> to vector<1x64xf32>
    %194 = vector.broadcast %193 : vector<1x64xf32> to vector<64x64xf32>
    %195 = arith.mulf %191, %194 : vector<64x64xf32>
    %cst_109 = arith.constant 0.000000e+00 : f32
    %196 = vector.broadcast %cst_109 : f32 to vector<64x9xf32>
    %197 = vector.extract_strided_slice %142 {offsets = [0, 9], sizes = [64, 55], strides = [1, 1]} : vector<64x64xf32> to vector<64x55xf32>
    %198 = tpu.concatenate %197, %196 in 1 : vector<64x55xf32>, vector<64x9xf32> -> vector<64x64xf32>
    %c8_110 = arith.constant 8 : index
    %c0_111 = arith.constant 0 : index
    %c0_112 = arith.constant 0 : index
    %199 = vector.load %arg3[%c8_110, %c0_111, %c0_112] : memref<9x1x64xf32, #tpu.memory_space<vmem>>, vector<1x1x64xf32>
    %200 = vector.shape_cast %199 : vector<1x1x64xf32> to vector<1x64xf32>
    %201 = vector.broadcast %200 : vector<1x64xf32> to vector<64x64xf32>
    %202 = arith.mulf %198, %201 : vector<64x64xf32>
    %203 = tpu.concatenate %149, %156, %163, %170, %174, %181, %188, %195, %202 in 0 : vector<64x64xf32>, vector<64x64xf32>, vector<64x64xf32>, vector<64x64xf32>, vector<64x64xf32>, vector<64x64xf32>, vector<64x64xf32>, vector<64x64xf32>, vector<64x64xf32> -> vector<576x64xf32>
    %204 = arith.truncf %203 : vector<576x64xf32> to vector<576x64xbf16>
    %c0_113 = arith.constant 0 : index
    %c0_114 = arith.constant 0 : index
    %205 = vector.load %arg6[%c0_113, %c0_114] : memref<64x16xbf16, #tpu.memory_space<vmem>>, vector<64x16xbf16>
    %cst_115 = arith.constant dense<0.000000e+00> : vector<576x16xf32>
    %206 = tpu.matmul %204, %205, %cst_115 {dimension_numbers = #tpu.dot_dimension_numbers<[1], [0], [0], [1], [0, 0, 1, 1], [], []>} : vector<576x64xbf16>, vector<64x16xbf16>, vector<576x16xf32> -> vector<576x16xf32>
    %207 = arith.truncf %206 : vector<576x16xf32> to vector<576x16xbf16>
    %c0_116 = arith.constant 0 : index
    %c0_117 = arith.constant 0 : index
    %208 = vector.load %arg12[%c0_116, %c0_117] : memref<128x576xbf16, #tpu.memory_space<vmem>>, vector<128x576xbf16>
    %cst_118 = arith.constant dense<0.000000e+00> : vector<128x16xf32>
    %209 = tpu.matmul %208, %207, %cst_118 {dimension_numbers = #tpu.dot_dimension_numbers<[1], [0], [0], [1], [0, 0, 1, 1], [], []>} : vector<128x576xbf16>, vector<576x16xbf16>, vector<128x16xf32> -> vector<128x16xf32>
    %c0_119 = arith.constant 0 : index
    %c0_120 = arith.constant 0 : index
    %210 = vector.load %arg13[%c0_119, %c0_120] : memref<128x1xf32, #tpu.memory_space<vmem>>, vector<128x1xf32>
    %211 = vector.broadcast %210 : vector<128x1xf32> to vector<128x16xf32>
    %212 = arith.addf %209, %211 : vector<128x16xf32>
    %cst_121 = arith.constant 0.000000e+00 : f32
    %213 = vector.broadcast %cst_121 : f32 to vector<128x16xf32>
    %214 = arith.maximumf %212, %213 : vector<128x16xf32>
    %cst_122 = arith.constant 0.000000e+00 : f32
    %215 = vector.broadcast %cst_122 : f32 to vector<128x5xf32>
    %216 = vector.extract_strided_slice %214 {offsets = [0, 0], sizes = [128, 11], strides = [1, 1]} : vector<128x16xf32> to vector<128x11xf32>
    %217 = tpu.concatenate %215, %216 in 1 : vector<128x5xf32>, vector<128x11xf32> -> vector<128x16xf32>
    %c0_123 = arith.constant 0 : index
    %c0_124 = arith.constant 0 : index
    %c0_125 = arith.constant 0 : index
    %218 = vector.load %arg4[%c0_123, %c0_124, %c0_125] : memref<9x1x16xf32, #tpu.memory_space<vmem>>, vector<1x1x16xf32>
    %219 = vector.shape_cast %218 : vector<1x1x16xf32> to vector<1x16xf32>
    %220 = vector.broadcast %219 : vector<1x16xf32> to vector<128x16xf32>
    %221 = arith.mulf %217, %220 : vector<128x16xf32>
    %cst_126 = arith.constant 0.000000e+00 : f32
    %222 = vector.broadcast %cst_126 : f32 to vector<128x4xf32>
    %223 = vector.extract_strided_slice %214 {offsets = [0, 0], sizes = [128, 12], strides = [1, 1]} : vector<128x16xf32> to vector<128x12xf32>
    %224 = tpu.concatenate %222, %223 in 1 : vector<128x4xf32>, vector<128x12xf32> -> vector<128x16xf32>
    %c1_127 = arith.constant 1 : index
    %c0_128 = arith.constant 0 : index
    %c0_129 = arith.constant 0 : index
    %225 = vector.load %arg4[%c1_127, %c0_128, %c0_129] : memref<9x1x16xf32, #tpu.memory_space<vmem>>, vector<1x1x16xf32>
    %226 = vector.shape_cast %225 : vector<1x1x16xf32> to vector<1x16xf32>
    %227 = vector.broadcast %226 : vector<1x16xf32> to vector<128x16xf32>
    %228 = arith.mulf %224, %227 : vector<128x16xf32>
    %cst_130 = arith.constant 0.000000e+00 : f32
    %229 = vector.broadcast %cst_130 : f32 to vector<128x3xf32>
    %230 = vector.extract_strided_slice %214 {offsets = [0, 0], sizes = [128, 13], strides = [1, 1]} : vector<128x16xf32> to vector<128x13xf32>
    %231 = tpu.concatenate %229, %230 in 1 : vector<128x3xf32>, vector<128x13xf32> -> vector<128x16xf32>
    %c2_131 = arith.constant 2 : index
    %c0_132 = arith.constant 0 : index
    %c0_133 = arith.constant 0 : index
    %232 = vector.load %arg4[%c2_131, %c0_132, %c0_133] : memref<9x1x16xf32, #tpu.memory_space<vmem>>, vector<1x1x16xf32>
    %233 = vector.shape_cast %232 : vector<1x1x16xf32> to vector<1x16xf32>
    %234 = vector.broadcast %233 : vector<1x16xf32> to vector<128x16xf32>
    %235 = arith.mulf %231, %234 : vector<128x16xf32>
    %cst_134 = arith.constant 0.000000e+00 : f32
    %236 = vector.broadcast %cst_134 : f32 to vector<128x1xf32>
    %237 = vector.extract_strided_slice %214 {offsets = [0, 0], sizes = [128, 15], strides = [1, 1]} : vector<128x16xf32> to vector<128x15xf32>
    %238 = tpu.concatenate %236, %237 in 1 : vector<128x1xf32>, vector<128x15xf32> -> vector<128x16xf32>
    %c3_135 = arith.constant 3 : index
    %c0_136 = arith.constant 0 : index
    %c0_137 = arith.constant 0 : index
    %239 = vector.load %arg4[%c3_135, %c0_136, %c0_137] : memref<9x1x16xf32, #tpu.memory_space<vmem>>, vector<1x1x16xf32>
    %240 = vector.shape_cast %239 : vector<1x1x16xf32> to vector<1x16xf32>
    %241 = vector.broadcast %240 : vector<1x16xf32> to vector<128x16xf32>
    %242 = arith.mulf %238, %241 : vector<128x16xf32>
    %c4_138 = arith.constant 4 : index
    %c0_139 = arith.constant 0 : index
    %c0_140 = arith.constant 0 : index
    %243 = vector.load %arg4[%c4_138, %c0_139, %c0_140] : memref<9x1x16xf32, #tpu.memory_space<vmem>>, vector<1x1x16xf32>
    %244 = vector.shape_cast %243 : vector<1x1x16xf32> to vector<1x16xf32>
    %245 = vector.broadcast %244 : vector<1x16xf32> to vector<128x16xf32>
    %246 = arith.mulf %214, %245 : vector<128x16xf32>
    %cst_141 = arith.constant 0.000000e+00 : f32
    %247 = vector.broadcast %cst_141 : f32 to vector<128x1xf32>
    %248 = vector.extract_strided_slice %214 {offsets = [0, 1], sizes = [128, 15], strides = [1, 1]} : vector<128x16xf32> to vector<128x15xf32>
    %249 = tpu.concatenate %248, %247 in 1 : vector<128x15xf32>, vector<128x1xf32> -> vector<128x16xf32>
    %c5_142 = arith.constant 5 : index
    %c0_143 = arith.constant 0 : index
    %c0_144 = arith.constant 0 : index
    %250 = vector.load %arg4[%c5_142, %c0_143, %c0_144] : memref<9x1x16xf32, #tpu.memory_space<vmem>>, vector<1x1x16xf32>
    %251 = vector.shape_cast %250 : vector<1x1x16xf32> to vector<1x16xf32>
    %252 = vector.broadcast %251 : vector<1x16xf32> to vector<128x16xf32>
    %253 = arith.mulf %249, %252 : vector<128x16xf32>
    %cst_145 = arith.constant 0.000000e+00 : f32
    %254 = vector.broadcast %cst_145 : f32 to vector<128x3xf32>
    %255 = vector.extract_strided_slice %214 {offsets = [0, 3], sizes = [128, 13], strides = [1, 1]} : vector<128x16xf32> to vector<128x13xf32>
    %256 = tpu.concatenate %255, %254 in 1 : vector<128x13xf32>, vector<128x3xf32> -> vector<128x16xf32>
    %c6_146 = arith.constant 6 : index
    %c0_147 = arith.constant 0 : index
    %c0_148 = arith.constant 0 : index
    %257 = vector.load %arg4[%c6_146, %c0_147, %c0_148] : memref<9x1x16xf32, #tpu.memory_space<vmem>>, vector<1x1x16xf32>
    %258 = vector.shape_cast %257 : vector<1x1x16xf32> to vector<1x16xf32>
    %259 = vector.broadcast %258 : vector<1x16xf32> to vector<128x16xf32>
    %260 = arith.mulf %256, %259 : vector<128x16xf32>
    %cst_149 = arith.constant 0.000000e+00 : f32
    %261 = vector.broadcast %cst_149 : f32 to vector<128x4xf32>
    %262 = vector.extract_strided_slice %214 {offsets = [0, 4], sizes = [128, 12], strides = [1, 1]} : vector<128x16xf32> to vector<128x12xf32>
    %263 = tpu.concatenate %262, %261 in 1 : vector<128x12xf32>, vector<128x4xf32> -> vector<128x16xf32>
    %c7_150 = arith.constant 7 : index
    %c0_151 = arith.constant 0 : index
    %c0_152 = arith.constant 0 : index
    %264 = vector.load %arg4[%c7_150, %c0_151, %c0_152] : memref<9x1x16xf32, #tpu.memory_space<vmem>>, vector<1x1x16xf32>
    %265 = vector.shape_cast %264 : vector<1x1x16xf32> to vector<1x16xf32>
    %266 = vector.broadcast %265 : vector<1x16xf32> to vector<128x16xf32>
    %267 = arith.mulf %263, %266 : vector<128x16xf32>
    %cst_153 = arith.constant 0.000000e+00 : f32
    %268 = vector.broadcast %cst_153 : f32 to vector<128x5xf32>
    %269 = vector.extract_strided_slice %214 {offsets = [0, 5], sizes = [128, 11], strides = [1, 1]} : vector<128x16xf32> to vector<128x11xf32>
    %270 = tpu.concatenate %269, %268 in 1 : vector<128x11xf32>, vector<128x5xf32> -> vector<128x16xf32>
    %c8_154 = arith.constant 8 : index
    %c0_155 = arith.constant 0 : index
    %c0_156 = arith.constant 0 : index
    %271 = vector.load %arg4[%c8_154, %c0_155, %c0_156] : memref<9x1x16xf32, #tpu.memory_space<vmem>>, vector<1x1x16xf32>
    %272 = vector.shape_cast %271 : vector<1x1x16xf32> to vector<1x16xf32>
    %273 = vector.broadcast %272 : vector<1x16xf32> to vector<128x16xf32>
    %274 = arith.mulf %270, %273 : vector<128x16xf32>
    %275 = tpu.concatenate %221, %228, %235, %242, %246, %253, %260, %267, %274 in 0 : vector<128x16xf32>, vector<128x16xf32>, vector<128x16xf32>, vector<128x16xf32>, vector<128x16xf32>, vector<128x16xf32>, vector<128x16xf32>, vector<128x16xf32>, vector<128x16xf32> -> vector<1152x16xf32>
    %276 = arith.truncf %275 : vector<1152x16xf32> to vector<1152x16xbf16>
    %c0_157 = arith.constant 0 : index
    %c0_158 = arith.constant 0 : index
    %277 = vector.load %arg14[%c0_157, %c0_158] : memref<128x1152xbf16, #tpu.memory_space<vmem>>, vector<128x1152xbf16>
    %cst_159 = arith.constant dense<0.000000e+00> : vector<128x16xf32>
    %278 = tpu.matmul %277, %276, %cst_159 {dimension_numbers = #tpu.dot_dimension_numbers<[1], [0], [0], [1], [0, 0, 1, 1], [], []>} : vector<128x1152xbf16>, vector<1152x16xbf16>, vector<128x16xf32> -> vector<128x16xf32>
    %c0_160 = arith.constant 0 : index
    %c0_161 = arith.constant 0 : index
    %279 = vector.load %arg15[%c0_160, %c0_161] : memref<128x1xf32, #tpu.memory_space<vmem>>, vector<128x1xf32>
    %280 = vector.broadcast %279 : vector<128x1xf32> to vector<128x16xf32>
    %281 = arith.addf %278, %280 : vector<128x16xf32>
    %cst_162 = arith.constant 0.000000e+00 : f32
    %282 = vector.broadcast %cst_162 : f32 to vector<128x16xf32>
    %283 = arith.maximumf %281, %282 : vector<128x16xf32>
    %cst_163 = arith.constant 0.000000e+00 : f32
    %284 = vector.broadcast %cst_163 : f32 to vector<128x5xf32>
    %285 = vector.extract_strided_slice %283 {offsets = [0, 0], sizes = [128, 11], strides = [1, 1]} : vector<128x16xf32> to vector<128x11xf32>
    %286 = tpu.concatenate %284, %285 in 1 : vector<128x5xf32>, vector<128x11xf32> -> vector<128x16xf32>
    %c0_164 = arith.constant 0 : index
    %c0_165 = arith.constant 0 : index
    %c0_166 = arith.constant 0 : index
    %287 = vector.load %arg4[%c0_164, %c0_165, %c0_166] : memref<9x1x16xf32, #tpu.memory_space<vmem>>, vector<1x1x16xf32>
    %288 = vector.shape_cast %287 : vector<1x1x16xf32> to vector<1x16xf32>
    %289 = vector.broadcast %288 : vector<1x16xf32> to vector<128x16xf32>
    %290 = arith.mulf %286, %289 : vector<128x16xf32>
    %cst_167 = arith.constant 0.000000e+00 : f32
    %291 = vector.broadcast %cst_167 : f32 to vector<128x4xf32>
    %292 = vector.extract_strided_slice %283 {offsets = [0, 0], sizes = [128, 12], strides = [1, 1]} : vector<128x16xf32> to vector<128x12xf32>
    %293 = tpu.concatenate %291, %292 in 1 : vector<128x4xf32>, vector<128x12xf32> -> vector<128x16xf32>
    %c1_168 = arith.constant 1 : index
    %c0_169 = arith.constant 0 : index
    %c0_170 = arith.constant 0 : index
    %294 = vector.load %arg4[%c1_168, %c0_169, %c0_170] : memref<9x1x16xf32, #tpu.memory_space<vmem>>, vector<1x1x16xf32>
    %295 = vector.shape_cast %294 : vector<1x1x16xf32> to vector<1x16xf32>
    %296 = vector.broadcast %295 : vector<1x16xf32> to vector<128x16xf32>
    %297 = arith.mulf %293, %296 : vector<128x16xf32>
    %cst_171 = arith.constant 0.000000e+00 : f32
    %298 = vector.broadcast %cst_171 : f32 to vector<128x3xf32>
    %299 = vector.extract_strided_slice %283 {offsets = [0, 0], sizes = [128, 13], strides = [1, 1]} : vector<128x16xf32> to vector<128x13xf32>
    %300 = tpu.concatenate %298, %299 in 1 : vector<128x3xf32>, vector<128x13xf32> -> vector<128x16xf32>
    %c2_172 = arith.constant 2 : index
    %c0_173 = arith.constant 0 : index
    %c0_174 = arith.constant 0 : index
    %301 = vector.load %arg4[%c2_172, %c0_173, %c0_174] : memref<9x1x16xf32, #tpu.memory_space<vmem>>, vector<1x1x16xf32>
    %302 = vector.shape_cast %301 : vector<1x1x16xf32> to vector<1x16xf32>
    %303 = vector.broadcast %302 : vector<1x16xf32> to vector<128x16xf32>
    %304 = arith.mulf %300, %303 : vector<128x16xf32>
    %cst_175 = arith.constant 0.000000e+00 : f32
    %305 = vector.broadcast %cst_175 : f32 to vector<128x1xf32>
    %306 = vector.extract_strided_slice %283 {offsets = [0, 0], sizes = [128, 15], strides = [1, 1]} : vector<128x16xf32> to vector<128x15xf32>
    %307 = tpu.concatenate %305, %306 in 1 : vector<128x1xf32>, vector<128x15xf32> -> vector<128x16xf32>
    %c3_176 = arith.constant 3 : index
    %c0_177 = arith.constant 0 : index
    %c0_178 = arith.constant 0 : index
    %308 = vector.load %arg4[%c3_176, %c0_177, %c0_178] : memref<9x1x16xf32, #tpu.memory_space<vmem>>, vector<1x1x16xf32>
    %309 = vector.shape_cast %308 : vector<1x1x16xf32> to vector<1x16xf32>
    %310 = vector.broadcast %309 : vector<1x16xf32> to vector<128x16xf32>
    %311 = arith.mulf %307, %310 : vector<128x16xf32>
    %c4_179 = arith.constant 4 : index
    %c0_180 = arith.constant 0 : index
    %c0_181 = arith.constant 0 : index
    %312 = vector.load %arg4[%c4_179, %c0_180, %c0_181] : memref<9x1x16xf32, #tpu.memory_space<vmem>>, vector<1x1x16xf32>
    %313 = vector.shape_cast %312 : vector<1x1x16xf32> to vector<1x16xf32>
    %314 = vector.broadcast %313 : vector<1x16xf32> to vector<128x16xf32>
    %315 = arith.mulf %283, %314 : vector<128x16xf32>
    %cst_182 = arith.constant 0.000000e+00 : f32
    %316 = vector.broadcast %cst_182 : f32 to vector<128x1xf32>
    %317 = vector.extract_strided_slice %283 {offsets = [0, 1], sizes = [128, 15], strides = [1, 1]} : vector<128x16xf32> to vector<128x15xf32>
    %318 = tpu.concatenate %317, %316 in 1 : vector<128x15xf32>, vector<128x1xf32> -> vector<128x16xf32>
    %c5_183 = arith.constant 5 : index
    %c0_184 = arith.constant 0 : index
    %c0_185 = arith.constant 0 : index
    %319 = vector.load %arg4[%c5_183, %c0_184, %c0_185] : memref<9x1x16xf32, #tpu.memory_space<vmem>>, vector<1x1x16xf32>
    %320 = vector.shape_cast %319 : vector<1x1x16xf32> to vector<1x16xf32>
    %321 = vector.broadcast %320 : vector<1x16xf32> to vector<128x16xf32>
    %322 = arith.mulf %318, %321 : vector<128x16xf32>
    %cst_186 = arith.constant 0.000000e+00 : f32
    %323 = vector.broadcast %cst_186 : f32 to vector<128x3xf32>
    %324 = vector.extract_strided_slice %283 {offsets = [0, 3], sizes = [128, 13], strides = [1, 1]} : vector<128x16xf32> to vector<128x13xf32>
    %325 = tpu.concatenate %324, %323 in 1 : vector<128x13xf32>, vector<128x3xf32> -> vector<128x16xf32>
    %c6_187 = arith.constant 6 : index
    %c0_188 = arith.constant 0 : index
    %c0_189 = arith.constant 0 : index
    %326 = vector.load %arg4[%c6_187, %c0_188, %c0_189] : memref<9x1x16xf32, #tpu.memory_space<vmem>>, vector<1x1x16xf32>
    %327 = vector.shape_cast %326 : vector<1x1x16xf32> to vector<1x16xf32>
    %328 = vector.broadcast %327 : vector<1x16xf32> to vector<128x16xf32>
    %329 = arith.mulf %325, %328 : vector<128x16xf32>
    %cst_190 = arith.constant 0.000000e+00 : f32
    %330 = vector.broadcast %cst_190 : f32 to vector<128x4xf32>
    %331 = vector.extract_strided_slice %283 {offsets = [0, 4], sizes = [128, 12], strides = [1, 1]} : vector<128x16xf32> to vector<128x12xf32>
    %332 = tpu.concatenate %331, %330 in 1 : vector<128x12xf32>, vector<128x4xf32> -> vector<128x16xf32>
    %c7_191 = arith.constant 7 : index
    %c0_192 = arith.constant 0 : index
    %c0_193 = arith.constant 0 : index
    %333 = vector.load %arg4[%c7_191, %c0_192, %c0_193] : memref<9x1x16xf32, #tpu.memory_space<vmem>>, vector<1x1x16xf32>
    %334 = vector.shape_cast %333 : vector<1x1x16xf32> to vector<1x16xf32>
    %335 = vector.broadcast %334 : vector<1x16xf32> to vector<128x16xf32>
    %336 = arith.mulf %332, %335 : vector<128x16xf32>
    %cst_194 = arith.constant 0.000000e+00 : f32
    %337 = vector.broadcast %cst_194 : f32 to vector<128x5xf32>
    %338 = vector.extract_strided_slice %283 {offsets = [0, 5], sizes = [128, 11], strides = [1, 1]} : vector<128x16xf32> to vector<128x11xf32>
    %339 = tpu.concatenate %338, %337 in 1 : vector<128x11xf32>, vector<128x5xf32> -> vector<128x16xf32>
    %c8_195 = arith.constant 8 : index
    %c0_196 = arith.constant 0 : index
    %c0_197 = arith.constant 0 : index
    %340 = vector.load %arg4[%c8_195, %c0_196, %c0_197] : memref<9x1x16xf32, #tpu.memory_space<vmem>>, vector<1x1x16xf32>
    %341 = vector.shape_cast %340 : vector<1x1x16xf32> to vector<1x16xf32>
    %342 = vector.broadcast %341 : vector<1x16xf32> to vector<128x16xf32>
    %343 = arith.mulf %339, %342 : vector<128x16xf32>
    %344 = tpu.concatenate %290, %297, %304, %311, %315, %322, %329, %336, %343 in 0 : vector<128x16xf32>, vector<128x16xf32>, vector<128x16xf32>, vector<128x16xf32>, vector<128x16xf32>, vector<128x16xf32>, vector<128x16xf32>, vector<128x16xf32>, vector<128x16xf32> -> vector<1152x16xf32>
    %345 = arith.truncf %344 : vector<1152x16xf32> to vector<1152x16xbf16>
    %c0_198 = arith.constant 0 : index
    %c0_199 = arith.constant 0 : index
    %346 = vector.load %arg16[%c0_198, %c0_199] : memref<64x1152xbf16, #tpu.memory_space<vmem>>, vector<64x1152xbf16>
    %cst_200 = arith.constant dense<0.000000e+00> : vector<64x16xf32>
    %347 = tpu.matmul %346, %345, %cst_200 {dimension_numbers = #tpu.dot_dimension_numbers<[1], [0], [0], [1], [0, 0, 1, 1], [], []>} : vector<64x1152xbf16>, vector<1152x16xbf16>, vector<64x16xf32> -> vector<64x16xf32>
    %c0_201 = arith.constant 0 : index
    %c0_202 = arith.constant 0 : index
    %348 = vector.load %arg17[%c0_201, %c0_202] : memref<64x1xf32, #tpu.memory_space<vmem>>, vector<64x1xf32>
    %349 = vector.broadcast %348 : vector<64x1xf32> to vector<64x16xf32>
    %350 = arith.addf %347, %349 : vector<64x16xf32>
    %cst_203 = arith.constant 0.000000e+00 : f32
    %351 = vector.broadcast %cst_203 : f32 to vector<64x16xf32>
    %352 = arith.maximumf %350, %351 : vector<64x16xf32>
    %cst_204 = arith.constant 0.000000e+00 : f32
    %353 = vector.broadcast %cst_204 : f32 to vector<64x5xf32>
    %354 = vector.extract_strided_slice %352 {offsets = [0, 0], sizes = [64, 11], strides = [1, 1]} : vector<64x16xf32> to vector<64x11xf32>
    %355 = tpu.concatenate %353, %354 in 1 : vector<64x5xf32>, vector<64x11xf32> -> vector<64x16xf32>
    %c0_205 = arith.constant 0 : index
    %c0_206 = arith.constant 0 : index
    %c0_207 = arith.constant 0 : index
    %356 = vector.load %arg4[%c0_205, %c0_206, %c0_207] : memref<9x1x16xf32, #tpu.memory_space<vmem>>, vector<1x1x16xf32>
    %357 = vector.shape_cast %356 : vector<1x1x16xf32> to vector<1x16xf32>
    %358 = vector.broadcast %357 : vector<1x16xf32> to vector<64x16xf32>
    %359 = arith.mulf %355, %358 : vector<64x16xf32>
    %cst_208 = arith.constant 0.000000e+00 : f32
    %360 = vector.broadcast %cst_208 : f32 to vector<64x4xf32>
    %361 = vector.extract_strided_slice %352 {offsets = [0, 0], sizes = [64, 12], strides = [1, 1]} : vector<64x16xf32> to vector<64x12xf32>
    %362 = tpu.concatenate %360, %361 in 1 : vector<64x4xf32>, vector<64x12xf32> -> vector<64x16xf32>
    %c1_209 = arith.constant 1 : index
    %c0_210 = arith.constant 0 : index
    %c0_211 = arith.constant 0 : index
    %363 = vector.load %arg4[%c1_209, %c0_210, %c0_211] : memref<9x1x16xf32, #tpu.memory_space<vmem>>, vector<1x1x16xf32>
    %364 = vector.shape_cast %363 : vector<1x1x16xf32> to vector<1x16xf32>
    %365 = vector.broadcast %364 : vector<1x16xf32> to vector<64x16xf32>
    %366 = arith.mulf %362, %365 : vector<64x16xf32>
    %cst_212 = arith.constant 0.000000e+00 : f32
    %367 = vector.broadcast %cst_212 : f32 to vector<64x3xf32>
    %368 = vector.extract_strided_slice %352 {offsets = [0, 0], sizes = [64, 13], strides = [1, 1]} : vector<64x16xf32> to vector<64x13xf32>
    %369 = tpu.concatenate %367, %368 in 1 : vector<64x3xf32>, vector<64x13xf32> -> vector<64x16xf32>
    %c2_213 = arith.constant 2 : index
    %c0_214 = arith.constant 0 : index
    %c0_215 = arith.constant 0 : index
    %370 = vector.load %arg4[%c2_213, %c0_214, %c0_215] : memref<9x1x16xf32, #tpu.memory_space<vmem>>, vector<1x1x16xf32>
    %371 = vector.shape_cast %370 : vector<1x1x16xf32> to vector<1x16xf32>
    %372 = vector.broadcast %371 : vector<1x16xf32> to vector<64x16xf32>
    %373 = arith.mulf %369, %372 : vector<64x16xf32>
    %cst_216 = arith.constant 0.000000e+00 : f32
    %374 = vector.broadcast %cst_216 : f32 to vector<64x1xf32>
    %375 = vector.extract_strided_slice %352 {offsets = [0, 0], sizes = [64, 15], strides = [1, 1]} : vector<64x16xf32> to vector<64x15xf32>
    %376 = tpu.concatenate %374, %375 in 1 : vector<64x1xf32>, vector<64x15xf32> -> vector<64x16xf32>
    %c3_217 = arith.constant 3 : index
    %c0_218 = arith.constant 0 : index
    %c0_219 = arith.constant 0 : index
    %377 = vector.load %arg4[%c3_217, %c0_218, %c0_219] : memref<9x1x16xf32, #tpu.memory_space<vmem>>, vector<1x1x16xf32>
    %378 = vector.shape_cast %377 : vector<1x1x16xf32> to vector<1x16xf32>
    %379 = vector.broadcast %378 : vector<1x16xf32> to vector<64x16xf32>
    %380 = arith.mulf %376, %379 : vector<64x16xf32>
    %c4_220 = arith.constant 4 : index
    %c0_221 = arith.constant 0 : index
    %c0_222 = arith.constant 0 : index
    %381 = vector.load %arg4[%c4_220, %c0_221, %c0_222] : memref<9x1x16xf32, #tpu.memory_space<vmem>>, vector<1x1x16xf32>
    %382 = vector.shape_cast %381 : vector<1x1x16xf32> to vector<1x16xf32>
    %383 = vector.broadcast %382 : vector<1x16xf32> to vector<64x16xf32>
    %384 = arith.mulf %352, %383 : vector<64x16xf32>
    %cst_223 = arith.constant 0.000000e+00 : f32
    %385 = vector.broadcast %cst_223 : f32 to vector<64x1xf32>
    %386 = vector.extract_strided_slice %352 {offsets = [0, 1], sizes = [64, 15], strides = [1, 1]} : vector<64x16xf32> to vector<64x15xf32>
    %387 = tpu.concatenate %386, %385 in 1 : vector<64x15xf32>, vector<64x1xf32> -> vector<64x16xf32>
    %c5_224 = arith.constant 5 : index
    %c0_225 = arith.constant 0 : index
    %c0_226 = arith.constant 0 : index
    %388 = vector.load %arg4[%c5_224, %c0_225, %c0_226] : memref<9x1x16xf32, #tpu.memory_space<vmem>>, vector<1x1x16xf32>
    %389 = vector.shape_cast %388 : vector<1x1x16xf32> to vector<1x16xf32>
    %390 = vector.broadcast %389 : vector<1x16xf32> to vector<64x16xf32>
    %391 = arith.mulf %387, %390 : vector<64x16xf32>
    %cst_227 = arith.constant 0.000000e+00 : f32
    %392 = vector.broadcast %cst_227 : f32 to vector<64x3xf32>
    %393 = vector.extract_strided_slice %352 {offsets = [0, 3], sizes = [64, 13], strides = [1, 1]} : vector<64x16xf32> to vector<64x13xf32>
    %394 = tpu.concatenate %393, %392 in 1 : vector<64x13xf32>, vector<64x3xf32> -> vector<64x16xf32>
    %c6_228 = arith.constant 6 : index
    %c0_229 = arith.constant 0 : index
    %c0_230 = arith.constant 0 : index
    %395 = vector.load %arg4[%c6_228, %c0_229, %c0_230] : memref<9x1x16xf32, #tpu.memory_space<vmem>>, vector<1x1x16xf32>
    %396 = vector.shape_cast %395 : vector<1x1x16xf32> to vector<1x16xf32>
    %397 = vector.broadcast %396 : vector<1x16xf32> to vector<64x16xf32>
    %398 = arith.mulf %394, %397 : vector<64x16xf32>
    %cst_231 = arith.constant 0.000000e+00 : f32
    %399 = vector.broadcast %cst_231 : f32 to vector<64x4xf32>
    %400 = vector.extract_strided_slice %352 {offsets = [0, 4], sizes = [64, 12], strides = [1, 1]} : vector<64x16xf32> to vector<64x12xf32>
    %401 = tpu.concatenate %400, %399 in 1 : vector<64x12xf32>, vector<64x4xf32> -> vector<64x16xf32>
    %c7_232 = arith.constant 7 : index
    %c0_233 = arith.constant 0 : index
    %c0_234 = arith.constant 0 : index
    %402 = vector.load %arg4[%c7_232, %c0_233, %c0_234] : memref<9x1x16xf32, #tpu.memory_space<vmem>>, vector<1x1x16xf32>
    %403 = vector.shape_cast %402 : vector<1x1x16xf32> to vector<1x16xf32>
    %404 = vector.broadcast %403 : vector<1x16xf32> to vector<64x16xf32>
    %405 = arith.mulf %401, %404 : vector<64x16xf32>
    %cst_235 = arith.constant 0.000000e+00 : f32
    %406 = vector.broadcast %cst_235 : f32 to vector<64x5xf32>
    %407 = vector.extract_strided_slice %352 {offsets = [0, 5], sizes = [64, 11], strides = [1, 1]} : vector<64x16xf32> to vector<64x11xf32>
    %408 = tpu.concatenate %407, %406 in 1 : vector<64x11xf32>, vector<64x5xf32> -> vector<64x16xf32>
    %c8_236 = arith.constant 8 : index
    %c0_237 = arith.constant 0 : index
    %c0_238 = arith.constant 0 : index
    %409 = vector.load %arg4[%c8_236, %c0_237, %c0_238] : memref<9x1x16xf32, #tpu.memory_space<vmem>>, vector<1x1x16xf32>
    %410 = vector.shape_cast %409 : vector<1x1x16xf32> to vector<1x16xf32>
    %411 = vector.broadcast %410 : vector<1x16xf32> to vector<64x16xf32>
    %412 = arith.mulf %408, %411 : vector<64x16xf32>
    %413 = tpu.concatenate %359, %366, %373, %380, %384, %391, %398, %405, %412 in 0 : vector<64x16xf32>, vector<64x16xf32>, vector<64x16xf32>, vector<64x16xf32>, vector<64x16xf32>, vector<64x16xf32>, vector<64x16xf32>, vector<64x16xf32>, vector<64x16xf32> -> vector<576x16xf32>
    %414 = arith.truncf %413 : vector<576x16xf32> to vector<576x16xbf16>
    %c0_239 = arith.constant 0 : index
    %c0_240 = arith.constant 0 : index
    %415 = vector.load %arg18[%c0_239, %c0_240] : memref<32x576xbf16, #tpu.memory_space<vmem>>, vector<32x576xbf16>
    %cst_241 = arith.constant dense<0.000000e+00> : vector<32x16xf32>
    %416 = tpu.matmul %415, %414, %cst_241 {dimension_numbers = #tpu.dot_dimension_numbers<[1], [0], [0], [1], [0, 0, 1, 1], [], []>} : vector<32x576xbf16>, vector<576x16xbf16>, vector<32x16xf32> -> vector<32x16xf32>
    %c0_242 = arith.constant 0 : index
    %c0_243 = arith.constant 0 : index
    %417 = vector.load %arg19[%c0_242, %c0_243] : memref<32x1xf32, #tpu.memory_space<vmem>>, vector<32x1xf32>
    %418 = vector.broadcast %417 : vector<32x1xf32> to vector<32x16xf32>
    %419 = arith.addf %416, %418 : vector<32x16xf32>
    %cst_244 = arith.constant 0.000000e+00 : f32
    %420 = vector.broadcast %cst_244 : f32 to vector<32x16xf32>
    %421 = arith.maximumf %419, %420 : vector<32x16xf32>
    %422 = arith.truncf %421 : vector<32x16xf32> to vector<32x16xbf16>
    %c0_245 = arith.constant 0 : index
    %c0_246 = arith.constant 0 : index
    %423 = vector.load %arg7[%c0_245, %c0_246] : memref<16x256xbf16, #tpu.memory_space<vmem>>, vector<16x256xbf16>
    %cst_247 = arith.constant dense<0.000000e+00> : vector<32x256xf32>
    %424 = tpu.matmul %422, %423, %cst_247 {dimension_numbers = #tpu.dot_dimension_numbers<[1], [0], [0], [1], [0, 0, 1, 1], [], []>} : vector<32x16xbf16>, vector<16x256xbf16>, vector<32x256xf32> -> vector<32x256xf32>
    %cst_248 = arith.constant 0.000000e+00 : f32
    %425 = vector.broadcast %cst_248 : f32 to vector<32x17xf32>
    %426 = vector.extract_strided_slice %424 {offsets = [0, 0], sizes = [32, 239], strides = [1, 1]} : vector<32x256xf32> to vector<32x239xf32>
    %427 = tpu.concatenate %425, %426 in 1 : vector<32x17xf32>, vector<32x239xf32> -> vector<32x256xf32>
    %c0_249 = arith.constant 0 : index
    %c0_250 = arith.constant 0 : index
    %c0_251 = arith.constant 0 : index
    %428 = vector.load %arg2[%c0_249, %c0_250, %c0_251] : memref<9x1x256xf32, #tpu.memory_space<vmem>>, vector<1x1x256xf32>
    %429 = vector.shape_cast %428 : vector<1x1x256xf32> to vector<1x256xf32>
    %430 = vector.broadcast %429 : vector<1x256xf32> to vector<32x256xf32>
    %431 = arith.mulf %427, %430 : vector<32x256xf32>
    %cst_252 = arith.constant 0.000000e+00 : f32
    %432 = vector.broadcast %cst_252 : f32 to vector<32x16xf32>
    %433 = vector.extract_strided_slice %424 {offsets = [0, 0], sizes = [32, 240], strides = [1, 1]} : vector<32x256xf32> to vector<32x240xf32>
    %434 = tpu.concatenate %432, %433 in 1 : vector<32x16xf32>, vector<32x240xf32> -> vector<32x256xf32>
    %c1_253 = arith.constant 1 : index
    %c0_254 = arith.constant 0 : index
    %c0_255 = arith.constant 0 : index
    %435 = vector.load %arg2[%c1_253, %c0_254, %c0_255] : memref<9x1x256xf32, #tpu.memory_space<vmem>>, vector<1x1x256xf32>
    %436 = vector.shape_cast %435 : vector<1x1x256xf32> to vector<1x256xf32>
    %437 = vector.broadcast %436 : vector<1x256xf32> to vector<32x256xf32>
    %438 = arith.mulf %434, %437 : vector<32x256xf32>
    %cst_256 = arith.constant 0.000000e+00 : f32
    %439 = vector.broadcast %cst_256 : f32 to vector<32x15xf32>
    %440 = vector.extract_strided_slice %424 {offsets = [0, 0], sizes = [32, 241], strides = [1, 1]} : vector<32x256xf32> to vector<32x241xf32>
    %441 = tpu.concatenate %439, %440 in 1 : vector<32x15xf32>, vector<32x241xf32> -> vector<32x256xf32>
    %c2_257 = arith.constant 2 : index
    %c0_258 = arith.constant 0 : index
    %c0_259 = arith.constant 0 : index
    %442 = vector.load %arg2[%c2_257, %c0_258, %c0_259] : memref<9x1x256xf32, #tpu.memory_space<vmem>>, vector<1x1x256xf32>
    %443 = vector.shape_cast %442 : vector<1x1x256xf32> to vector<1x256xf32>
    %444 = vector.broadcast %443 : vector<1x256xf32> to vector<32x256xf32>
    %445 = arith.mulf %441, %444 : vector<32x256xf32>
    %cst_260 = arith.constant 0.000000e+00 : f32
    %446 = vector.broadcast %cst_260 : f32 to vector<32x1xf32>
    %447 = vector.extract_strided_slice %424 {offsets = [0, 0], sizes = [32, 255], strides = [1, 1]} : vector<32x256xf32> to vector<32x255xf32>
    %448 = tpu.concatenate %446, %447 in 1 : vector<32x1xf32>, vector<32x255xf32> -> vector<32x256xf32>
    %c3_261 = arith.constant 3 : index
    %c0_262 = arith.constant 0 : index
    %c0_263 = arith.constant 0 : index
    %449 = vector.load %arg2[%c3_261, %c0_262, %c0_263] : memref<9x1x256xf32, #tpu.memory_space<vmem>>, vector<1x1x256xf32>
    %450 = vector.shape_cast %449 : vector<1x1x256xf32> to vector<1x256xf32>
    %451 = vector.broadcast %450 : vector<1x256xf32> to vector<32x256xf32>
    %452 = arith.mulf %448, %451 : vector<32x256xf32>
    %c4_264 = arith.constant 4 : index
    %c0_265 = arith.constant 0 : index
    %c0_266 = arith.constant 0 : index
    %453 = vector.load %arg2[%c4_264, %c0_265, %c0_266] : memref<9x1x256xf32, #tpu.memory_space<vmem>>, vector<1x1x256xf32>
    %454 = vector.shape_cast %453 : vector<1x1x256xf32> to vector<1x256xf32>
    %455 = vector.broadcast %454 : vector<1x256xf32> to vector<32x256xf32>
    %456 = arith.mulf %424, %455 : vector<32x256xf32>
    %cst_267 = arith.constant 0.000000e+00 : f32
    %457 = vector.broadcast %cst_267 : f32 to vector<32x1xf32>
    %458 = vector.extract_strided_slice %424 {offsets = [0, 1], sizes = [32, 255], strides = [1, 1]} : vector<32x256xf32> to vector<32x255xf32>
    %459 = tpu.concatenate %458, %457 in 1 : vector<32x255xf32>, vector<32x1xf32> -> vector<32x256xf32>
    %c5_268 = arith.constant 5 : index
    %c0_269 = arith.constant 0 : index
    %c0_270 = arith.constant 0 : index
    %460 = vector.load %arg2[%c5_268, %c0_269, %c0_270] : memref<9x1x256xf32, #tpu.memory_space<vmem>>, vector<1x1x256xf32>
    %461 = vector.shape_cast %460 : vector<1x1x256xf32> to vector<1x256xf32>
    %462 = vector.broadcast %461 : vector<1x256xf32> to vector<32x256xf32>
    %463 = arith.mulf %459, %462 : vector<32x256xf32>
    %cst_271 = arith.constant 0.000000e+00 : f32
    %464 = vector.broadcast %cst_271 : f32 to vector<32x15xf32>
    %465 = vector.extract_strided_slice %424 {offsets = [0, 15], sizes = [32, 241], strides = [1, 1]} : vector<32x256xf32> to vector<32x241xf32>
    %466 = tpu.concatenate %465, %464 in 1 : vector<32x241xf32>, vector<32x15xf32> -> vector<32x256xf32>
    %c6_272 = arith.constant 6 : index
    %c0_273 = arith.constant 0 : index
    %c0_274 = arith.constant 0 : index
    %467 = vector.load %arg2[%c6_272, %c0_273, %c0_274] : memref<9x1x256xf32, #tpu.memory_space<vmem>>, vector<1x1x256xf32>
    %468 = vector.shape_cast %467 : vector<1x1x256xf32> to vector<1x256xf32>
    %469 = vector.broadcast %468 : vector<1x256xf32> to vector<32x256xf32>
    %470 = arith.mulf %466, %469 : vector<32x256xf32>
    %cst_275 = arith.constant 0.000000e+00 : f32
    %471 = vector.broadcast %cst_275 : f32 to vector<32x16xf32>
    %472 = vector.extract_strided_slice %424 {offsets = [0, 16], sizes = [32, 240], strides = [1, 1]} : vector<32x256xf32> to vector<32x240xf32>
    %473 = tpu.concatenate %472, %471 in 1 : vector<32x240xf32>, vector<32x16xf32> -> vector<32x256xf32>
    %c7_276 = arith.constant 7 : index
    %c0_277 = arith.constant 0 : index
    %c0_278 = arith.constant 0 : index
    %474 = vector.load %arg2[%c7_276, %c0_277, %c0_278] : memref<9x1x256xf32, #tpu.memory_space<vmem>>, vector<1x1x256xf32>
    %475 = vector.shape_cast %474 : vector<1x1x256xf32> to vector<1x256xf32>
    %476 = vector.broadcast %475 : vector<1x256xf32> to vector<32x256xf32>
    %477 = arith.mulf %473, %476 : vector<32x256xf32>
    %cst_279 = arith.constant 0.000000e+00 : f32
    %478 = vector.broadcast %cst_279 : f32 to vector<32x17xf32>
    %479 = vector.extract_strided_slice %424 {offsets = [0, 17], sizes = [32, 239], strides = [1, 1]} : vector<32x256xf32> to vector<32x239xf32>
    %480 = tpu.concatenate %479, %478 in 1 : vector<32x239xf32>, vector<32x17xf32> -> vector<32x256xf32>
    %c8_280 = arith.constant 8 : index
    %c0_281 = arith.constant 0 : index
    %c0_282 = arith.constant 0 : index
    %481 = vector.load %arg2[%c8_280, %c0_281, %c0_282] : memref<9x1x256xf32, #tpu.memory_space<vmem>>, vector<1x1x256xf32>
    %482 = vector.shape_cast %481 : vector<1x1x256xf32> to vector<1x256xf32>
    %483 = vector.broadcast %482 : vector<1x256xf32> to vector<32x256xf32>
    %484 = arith.mulf %480, %483 : vector<32x256xf32>
    %485 = tpu.concatenate %431, %438, %445, %452, %456, %463, %470, %477, %484 in 0 : vector<32x256xf32>, vector<32x256xf32>, vector<32x256xf32>, vector<32x256xf32>, vector<32x256xf32>, vector<32x256xf32>, vector<32x256xf32>, vector<32x256xf32>, vector<32x256xf32> -> vector<288x256xf32>
    %486 = arith.truncf %485 : vector<288x256xf32> to vector<288x256xbf16>
    %c0_283 = arith.constant 0 : index
    %c0_284 = arith.constant 0 : index
    %487 = vector.load %arg20[%c0_283, %c0_284] : memref<16x288xbf16, #tpu.memory_space<vmem>>, vector<16x288xbf16>
    %cst_285 = arith.constant dense<0.000000e+00> : vector<16x256xf32>
    %488 = tpu.matmul %487, %486, %cst_285 {dimension_numbers = #tpu.dot_dimension_numbers<[1], [0], [0], [1], [0, 0, 1, 1], [], []>} : vector<16x288xbf16>, vector<288x256xbf16>, vector<16x256xf32> -> vector<16x256xf32>
    %c0_286 = arith.constant 0 : index
    %c0_287 = arith.constant 0 : index
    %489 = vector.load %arg21[%c0_286, %c0_287] : memref<16x1xf32, #tpu.memory_space<vmem>>, vector<16x1xf32>
    %490 = vector.broadcast %489 : vector<16x1xf32> to vector<16x256xf32>
    %491 = arith.addf %488, %490 : vector<16x256xf32>
    %cst_288 = arith.constant 0.000000e+00 : f32
    %492 = vector.broadcast %cst_288 : f32 to vector<16x256xf32>
    %493 = arith.maximumf %491, %492 : vector<16x256xf32>
    %c0_289 = arith.constant 0 : index
    %c0_290 = arith.constant 0 : index
    %494 = vector.load %arg22[%c0_289, %c0_290] : memref<4x16xbf16, #tpu.memory_space<vmem>>, vector<4x16xbf16>
    %495 = arith.truncf %493 : vector<16x256xf32> to vector<16x256xbf16>
    %cst_291 = arith.constant dense<0.000000e+00> : vector<4x256xf32>
    %496 = tpu.matmul %494, %495, %cst_291 {dimension_numbers = #tpu.dot_dimension_numbers<[1], [0], [0], [1], [0, 0, 1, 1], [], []>} : vector<4x16xbf16>, vector<16x256xbf16>, vector<4x256xf32> -> vector<4x256xf32>
    %c0_292 = arith.constant 0 : index
    %c0_293 = arith.constant 0 : index
    %497 = vector.load %arg23[%c0_292, %c0_293] : memref<4x1xf32, #tpu.memory_space<vmem>>, vector<4x1xf32>
    %498 = vector.broadcast %497 : vector<4x1xf32> to vector<4x256xf32>
    %499 = arith.addf %496, %498 : vector<4x256xf32>
    %c0_294 = arith.constant 0 : index
    %c0_295 = arith.constant 0 : index
    %c0_296 = arith.constant 0 : index
    %500 = vector.load %arg24[%c0_294, %c0_295, %c0_296] : memref<1x4x256xf32, #tpu.memory_space<vmem>>, vector<1x4x256xf32>
    %501 = vector.shape_cast %500 : vector<1x4x256xf32> to vector<4x256xf32>
    %502 = vector.shape_cast %499 : vector<4x256xf32> to vector<1x4x256xf32>
    tpu.vector_store %arg24[%c0_294, %c0_295, %c0_296], %502 {strides = array<i32>} : memref<1x4x256xf32, #tpu.memory_space<vmem>>, vector<1x4x256xf32>,
    return
  }
  func.func @transform_0(%arg0: i32) -> (i32, i32, i32) {
    %c0_i32 = arith.constant 0 : i32
    %c0_i32_0 = arith.constant 0 : i32
    %c0_i32_1 = arith.constant 0 : i32
    return %arg0, %c0_i32, %c0_i32_0 : i32, i32, i32
  }
  func.func @transform_1(%arg0: i32) -> (i32, i32, i32) {
    %c0_i32 = arith.constant 0 : i32
    %c0_i32_0 = arith.constant 0 : i32
    %c0_i32_1 = arith.constant 0 : i32
    %c0_i32_2 = arith.constant 0 : i32
    return %c0_i32, %c0_i32_0, %c0_i32_1 : i32, i32, i32
  }
  func.func @transform_2(%arg0: i32) -> (i32, i32, i32) {
    %c0_i32 = arith.constant 0 : i32
    %c0_i32_0 = arith.constant 0 : i32
    %c0_i32_1 = arith.constant 0 : i32
    %c0_i32_2 = arith.constant 0 : i32
    return %c0_i32, %c0_i32_0, %c0_i32_1 : i32, i32, i32
  }
  func.func @transform_3(%arg0: i32) -> (i32, i32, i32) {
    %c0_i32 = arith.constant 0 : i32
    %c0_i32_0 = arith.constant 0 : i32
    %c0_i32_1 = arith.constant 0 : i32
    %c0_i32_2 = arith.constant 0 : i32
    return %c0_i32, %c0_i32_0, %c0_i32_1 : i32, i32, i32
  }
  func.func @transform_4(%arg0: i32) -> (i32, i32) {
    %c0_i32 = arith.constant 0 : i32
    %c0_i32_0 = arith.constant 0 : i32
    %c0_i32_1 = arith.constant 0 : i32
    return %c0_i32, %c0_i32_0 : i32, i32
  }
  func.func @transform_5(%arg0: i32) -> (i32, i32) {
    %c0_i32 = arith.constant 0 : i32
    %c0_i32_0 = arith.constant 0 : i32
    %c0_i32_1 = arith.constant 0 : i32
    return %c0_i32, %c0_i32_0 : i32, i32
  }
  func.func @transform_6(%arg0: i32) -> (i32, i32) {
    %c0_i32 = arith.constant 0 : i32
    %c0_i32_0 = arith.constant 0 : i32
    %c0_i32_1 = arith.constant 0 : i32
    return %c0_i32, %c0_i32_0 : i32, i32
  }
  func.func @transform_7(%arg0: i32) -> (i32, i32) {
    %c0_i32 = arith.constant 0 : i32
    %c0_i32_0 = arith.constant 0 : i32
    %c0_i32_1 = arith.constant 0 : i32
    return %c0_i32, %c0_i32_0 : i32, i32
  }
  func.func @transform_8(%arg0: i32) -> (i32, i32) {
    %c0_i32 = arith.constant 0 : i32
    %c0_i32_0 = arith.constant 0 : i32
    %c0_i32_1 = arith.constant 0 : i32
    return %c0_i32, %c0_i32_0 : i32, i32
  }
  func.func @transform_9(%arg0: i32) -> (i32, i32) {
    %c0_i32 = arith.constant 0 : i32
    %c0_i32_0 = arith.constant 0 : i32
    %c0_i32_1 = arith.constant 0 : i32
    return %c0_i32, %c0_i32_0 : i32, i32
  }
  func.func @transform_10(%arg0: i32) -> (i32, i32) {
    %c0_i32 = arith.constant 0 : i32
    %c0_i32_0 = arith.constant 0 : i32
    %c0_i32_1 = arith.constant 0 : i32
    return %c0_i32, %c0_i32_0 : i32, i32
  }
  func.func @transform_11(%arg0: i32) -> (i32, i32) {
    %c0_i32 = arith.constant 0 : i32
    %c0_i32_0 = arith.constant 0 : i32
    %c0_i32_1 = arith.constant 0 : i32
    return %c0_i32, %c0_i32_0 : i32, i32
  }
  func.func @transform_12(%arg0: i32) -> (i32, i32) {
    %c0_i32 = arith.constant 0 : i32
    %c0_i32_0 = arith.constant 0 : i32
    %c0_i32_1 = arith.constant 0 : i32
    return %c0_i32, %c0_i32_0 : i32, i32
  }
  func.func @transform_13(%arg0: i32) -> (i32, i32) {
    %c0_i32 = arith.constant 0 : i32
    %c0_i32_0 = arith.constant 0 : i32
    %c0_i32_1 = arith.constant 0 : i32
    return %c0_i32, %c0_i32_0 : i32, i32
  }
  func.func @transform_14(%arg0: i32) -> (i32, i32) {
    %c0_i32 = arith.constant 0 : i32
    %c0_i32_0 = arith.constant 0 : i32
    %c0_i32_1 = arith.constant 0 : i32
    return %c0_i32, %c0_i32_0 : i32, i32
  }
  func.func @transform_15(%arg0: i32) -> (i32, i32) {
    %c0_i32 = arith.constant 0 : i32
    %c0_i32_0 = arith.constant 0 : i32
    %c0_i32_1 = arith.constant 0 : i32
    return %c0_i32, %c0_i32_0 : i32, i32
  }
  func.func @transform_16(%arg0: i32) -> (i32, i32) {
    %c0_i32 = arith.constant 0 : i32
    %c0_i32_0 = arith.constant 0 : i32
    %c0_i32_1 = arith.constant 0 : i32
    return %c0_i32, %c0_i32_0 : i32, i32
  }
  func.func @transform_17(%arg0: i32) -> (i32, i32) {
    %c0_i32 = arith.constant 0 : i32
    %c0_i32_0 = arith.constant 0 : i32
    %c0_i32_1 = arith.constant 0 : i32
    return %c0_i32, %c0_i32_0 : i32, i32
  }
  func.func @transform_18(%arg0: i32) -> (i32, i32) {
    %c0_i32 = arith.constant 0 : i32
    %c0_i32_0 = arith.constant 0 : i32
    %c0_i32_1 = arith.constant 0 : i32
    return %c0_i32, %c0_i32_0 : i32, i32
  }
  func.func @transform_19(%arg0: i32) -> (i32, i32) {
    %c0_i32 = arith.constant 0 : i32
    %c0_i32_0 = arith.constant 0 : i32
    %c0_i32_1 = arith.constant 0 : i32
    return %c0_i32, %c0_i32_0 : i32, i32
  }
  func.func @transform_20(%arg0: i32) -> (i32, i32) {
    %c0_i32 = arith.constant 0 : i32
    %c0_i32_0 = arith.constant 0 : i32
    %c0_i32_1 = arith.constant 0 : i32
    return %c0_i32, %c0_i32_0 : i32, i32
  }
  func.func @transform_21(%arg0: i32) -> (i32, i32) {
    %c0_i32 = arith.constant 0 : i32
    %c0_i32_0 = arith.constant 0 : i32
    %c0_i32_1 = arith.constant 0 : i32
    return %c0_i32, %c0_i32_0 : i32, i32
  }
  func.func @transform_22(%arg0: i32) -> (i32, i32) {
    %c0_i32 = arith.constant 0 : i32
    %c0_i32_0 = arith.constant 0 : i32
    %c0_i32_1 = arith.constant 0 : i32
    return %c0_i32, %c0_i32_0 : i32, i32
  }
  func.func @transform_23(%arg0: i32) -> (i32, i32, i32) {
    %c0_i32 = arith.constant 0 : i32
    %c0_i32_0 = arith.constant 0 : i32
    %c0_i32_1 = arith.constant 0 : i32
    return %arg0, %c0_i32, %c0_i32_0 : i32, i32, i32
  }
}

</mosaic_0001>

<llo_original>
// kernel: bisenet_forward.1
$region0: #{bisenet_forward.1}
  #allocation0 [shape = 'u32[]', space=smem, size = 0x4, offset = 0x4, fixed_abs, tag = 'smem constant byte address 0x4 - core index']
  #allocation1 [shape = 'u32[144,128]{1,0:T(1,128)}', space=vmem, size = 0x12000, scoped, tag = 'internal scratch']
  %s0 = inlined_call_operand.vmem [shape: f32[2,8,256], index: 0, kind: input, shape index: {}]
  %s1 = inlined_call_operand.vmem [shape: f32[9,1,256], index: 1, kind: input, shape index: {}]
  %s2 = inlined_call_operand.hbm [shape: f32[9,1,64], index: 2, kind: input, shape index: {}]
  %s3 = inlined_call_operand.vmem [shape: f32[9,1,16], index: 3, kind: input, shape index: {}]
  %s4 = inlined_call_operand.vmem [shape: bf16[256,64], index: 4, kind: input, shape index: {}]
  %s5 = inlined_call_operand.vmem [shape: bf16[64,16], index: 5, kind: input, shape index: {}]
  %s6 = inlined_call_operand.vmem [shape: bf16[16,256], index: 6, kind: input, shape index: {}]
  %s7 = inlined_call_operand.vmem [shape: bf16[32,72], index: 7, kind: input, shape index: {}]
  %s8 = inlined_call_operand.vmem [shape: f32[32,1], index: 8, kind: input, shape index: {}]
  %s9 = inlined_call_operand.vmem [shape: bf16[64,288], index: 9, kind: input, shape index: {}]
  %s10 = inlined_call_operand.vmem [shape: f32[64,1], index: 10, kind: input, shape index: {}]
  %s11 = inlined_call_operand.vmem [shape: bf16[128,576], index: 11, kind: input, shape index: {}]
  %s12 = inlined_call_operand.vmem [shape: f32[128,1], index: 12, kind: input, shape index: {}]
  %s13 = inlined_call_operand.vmem [shape: bf16[128,1152], index: 13, kind: input, shape index: {}]
  %s14 = inlined_call_operand.vmem [shape: f32[128,1], index: 14, kind: input, shape index: {}]
  %s15 = inlined_call_operand.vmem [shape: bf16[64,1152], index: 15, kind: input, shape index: {}]
  %s16 = inlined_call_operand.vmem [shape: f32[64,1], index: 16, kind: input, shape index: {}]
  %s17 = inlined_call_operand.vmem [shape: bf16[32,576], index: 17, kind: input, shape index: {}]
  %s18 = inlined_call_operand.vmem [shape: f32[32,1], index: 18, kind: input, shape index: {}]
  %s19 = inlined_call_operand.vmem [shape: bf16[16,288], index: 19, kind: input, shape index: {}]
  %s20 = inlined_call_operand.vmem [shape: f32[16,1], index: 20, kind: input, shape index: {}]
  %s21 = inlined_call_operand.vmem [shape: bf16[4,16], index: 21, kind: input, shape index: {}]
  %s22 = inlined_call_operand.vmem [shape: f32[4,1], index: 22, kind: input, shape index: {}]
  %s23 = inlined_call_operand.vmem [shape: f32[2,4,256], index: 23, kind: output, shape index: {}]
  %s24 = sld [smem:[#allocation0]]
  $region129: #{bisenet_forward.1} parent=0
    _
  %s26 = ssub.s32 1, %s24
  %s27 = scalar_select 0, %s26, %s24
  $region1: #{bisenet_forward.1} parent=0
    #allocation2 [shape = 'u8[4608]{0}', space=vmem, size = 0x1400, scoped, tag = 'input window, operand 2, single buffered']
    #allocation3 [shape = 's32[2]{0}', space=sflag, size = 0x8, scoped, tag = 'scoped memory for bisenet_forward.1']
    %28 = vsyncpa [#allocation3], 0
    loop: start=0, step=1, limit=4
    $region2: #{bisenet_forward.1} parent=1 // loop_pre_header
      _
    $region3: #{bisenet_forward.1} parent=1 // loop_header
      %s30 = sphi 0, %s34
      %p31 = scmp.ge.s32.totalorder %s30, 4
      %s40 = sphi 0, %s42
      %s43 = sphi 0, %s40
      %s44 = sphi 0, %s43
      %s60 = sphi 0, %s44
      %s64 = sphi 0, %s64
      %s66 = sphi 0, %s64
      %s67 = sphi 0, %s66
      %s81 = sphi 0, %s67
      %s85 = sphi 0, %s85
      %s87 = sphi 0, %s85
      %s88 = sphi 0, %s87
      %s102 = sphi 0, %s88
      %s106 = sphi 0, %s106
      %s108 = sphi 0, %s106
      %s109 = sphi 0, %s108
      %s123 = sphi 0, %s109
      %s127 = sphi 0, %s127
      %s129 = sphi 0, %s127
      %s130 = sphi 0, %s129
      %s144 = sphi 0, %s130
      %s148 = sphi 0, %s148
      %s150 = sphi 0, %s148
      %s151 = sphi 0, %s150
      %s165 = sphi 0, %s151
      %s169 = sphi 0, %s169
      %s171 = sphi 0, %s169
      %s172 = sphi 0, %s171
      %s186 = sphi 0, %s172
      %s190 = sphi 0, %s190
      %s192 = sphi 0, %s190
      %s193 = sphi 0, %s192
      %s207 = sphi 0, %s193
      %s211 = sphi 0, %s211
      %s213 = sphi 0, %s211
      %s214 = sphi 0, %s213
      %s228 = sphi 0, %s214
      %s232 = sphi 0, %s232
      %s234 = sphi 0, %s232
      %s235 = sphi 0, %s234
      %s249 = sphi 0, %s235
      %s253 = sphi 0, %s253
      %s255 = sphi 0, %s253
      %s256 = sphi 0, %s255
      %s270 = sphi 0, %s256
      %s274 = sphi 0, %s274
      %s276 = sphi 0, %s274
      %s277 = sphi 0, %s276
      %s291 = sphi 0, %s277
      %s295 = sphi 0, %s295
      %s297 = sphi 0, %s295
      %s298 = sphi 0, %s297
      %s312 = sphi 0, %s298
      %s316 = sphi 0, %s316
      %s318 = sphi 0, %s316
      %s319 = sphi 0, %s318
      %s333 = sphi 0, %s319
      %s337 = sphi 0, %s337
      %s339 = sphi 0, %s337
      %s340 = sphi 0, %s339
      %s354 = sphi 0, %s340
      %s358 = sphi 0, %s358
      %s360 = sphi 0, %s358
      %s361 = sphi 0, %s360
      %s375 = sphi 0, %s361
      %s379 = sphi 0, %s379
      %s381 = sphi 0, %s379
      %s382 = sphi 0, %s381
      %s396 = sphi 0, %s382
      %s400 = sphi 0, %s400
      %s402 = sphi 0, %s400
      %s403 = sphi 0, %s402
      %s417 = sphi 0, %s403
      %s421 = sphi 0, %s421
      %s423 = sphi 0, %s421
      %s424 = sphi 0, %s423
      %s438 = sphi 0, %s424
      %s442 = sphi 0, %s442
      %s444 = sphi 0, %s442
      %s445 = sphi 0, %s444
      %s459 = sphi 0, %s445
      %s463 = sphi 0, %s463
      %s465 = sphi 0, %s463
      %s466 = sphi 0, %s465
      %s480 = sphi 0, %s466
      %s484 = sphi 0, %s484
      %s486 = sphi 0, %s484
      %s487 = sphi 0, %s486
      %s501 = sphi 0, %s487
      %s505 = sphi 0, %s505
      %s507 = sphi 0, %s505
      %s508 = sphi 0, %s507
      %s522 = sphi 0, %s508
      %s528 = sphi 0, %s530
      %s531 = sphi 0, %s528
      %s532 = sphi 0, %s531
      %s548 = sphi 0, %s532
    $region4: #{bisenet_forward.1} parent=1 // loop_header_branch
      %33 = sbr.rel (%p31) target = $region8
    $region5: #{bisenet_forward.1} parent=1 // loop_body
      %s35 = ssub.s32 %s30, 1
      %s36 = ssub.s32 %s30, 2
      %s37 = sadd.s32 %s30, 1
      %s38 = ssub.s32 %s30, %s37
      %p39 = scmp.eq.s32.totalorder %s38, 0
      %s41 = sadd.s32 %s40, 1
      %s42 = scalar_select %p39, %s40, %s41
      %p45 = pneg %p39
      %p46 = scmp.eq.s32.totalorder %s30, 1
      %p47 = por %p45, %p46
      %p48 = scmp.ne.s32.totalorder %s40, %s43
      %p49 = scmp.eq.s32.totalorder %s30, 0
      %p50 = por %p48, %p49
      %p51 = scmp.ne.s32.totalorder %s40, %s43
      %p52 = scmp.eq.s32.totalorder %s35, 1
      %p53 = por %p51, %p52
      %p54 = scmp.ne.s32.totalorder %s43, %s44
      %p55 = scmp.eq.s32.totalorder %s35, 0
      %p56 = por %p54, %p55
      %p57 = scmp.ne.s32.totalorder %s43, %s44
      %p58 = scmp.eq.s32.totalorder %s36, 1
      %p59 = por %p57, %p58
      %p61 = scmp.ne.s32.totalorder %s44, %s60
      %p62 = scmp.eq.s32.totalorder %s36, 0
      %p63 = por %p61, %p62
      %s65 = sadd.s32 %s64, 1
      %p68 = scmp.eq.s32.totalorder %s30, 1
      %p69 = scmp.ne.s32.totalorder %s64, %s66
      %p70 = scmp.eq.s32.totalorder %s30, 0
      %p71 = por %p69, %p70
      %p72 = scmp.ne.s32.totalorder %s64, %s66
      %p73 = scmp.eq.s32.totalorder %s35, 1
      %p74 = por %p72, %p73
      %p75 = scmp.ne.s32.totalorder %s66, %s67
      %p76 = scmp.eq.s32.totalorder %s35, 0
      %p77 = por %p75, %p76
      %p78 = scmp.ne.s32.totalorder %s66, %s67
      %p79 = scmp.eq.s32.totalorder %s36, 1
      %p80 = por %p78, %p79
      %p82 = scmp.ne.s32.totalorder %s67, %s81
      %p83 = scmp.eq.s32.totalorder %s36, 0
      %p84 = por %p82, %p83
      %s86 = sadd.s32 %s85, 1
      %p89 = scmp.eq.s32.totalorder %s30, 1
      %p90 = scmp.ne.s32.totalorder %s85, %s87
      %p91 = scmp.eq.s32.totalorder %s30, 0
      %p92 = por %p90, %p91
      %p93 = scmp.ne.s32.totalorder %s85, %s87
      %p94 = scmp.eq.s32.totalorder %s35, 1
      %p95 = por %p93, %p94
      %p96 = scmp.ne.s32.totalorder %s87, %s88
      %p97 = scmp.eq.s32.totalorder %s35, 0
      %p98 = por %p96, %p97
      %p99 = scmp.ne.s32.totalorder %s87, %s88
      %p100 = scmp.eq.s32.totalorder %s36, 1
      %p101 = por %p99, %p100
      %p103 = scmp.ne.s32.totalorder %s88, %s102
      %p104 = scmp.eq.s32.totalorder %s36, 0
      %p105 = por %p103, %p104
      %s107 = sadd.s32 %s106, 1
      %p110 = scmp.eq.s32.totalorder %s30, 1
      %p111 = scmp.ne.s32.totalorder %s106, %s108
      %p112 = scmp.eq.s32.totalorder %s30, 0
      %p113 = por %p111, %p112
      %p114 = scmp.ne.s32.totalorder %s106, %s108
      %p115 = scmp.eq.s32.totalorder %s35, 1
      %p116 = por %p114, %p115
      %p117 = scmp.ne.s32.totalorder %s108, %s109
      %p118 = scmp.eq.s32.totalorder %s35, 0
      %p119 = por %p117, %p118
      %p120 = scmp.ne.s32.totalorder %s108, %s109
      %p121 = scmp.eq.s32.totalorder %s36, 1
      %p122 = por %p120, %p121
      %p124 = scmp.ne.s32.totalorder %s109, %s123
      %p125 = scmp.eq.s32.totalorder %s36, 0
      %p126 = por %p124, %p125
      %s128 = sadd.s32 %s127, 1
      %p131 = scmp.eq.s32.totalorder %s30, 1
      %p132 = scmp.ne.s32.totalorder %s127, %s129
      %p133 = scmp.eq.s32.totalorder %s30, 0
      %p134 = por %p132, %p133
      %p135 = scmp.ne.s32.totalorder %s127, %s129
      %p136 = scmp.eq.s32.totalorder %s35, 1
      %p137 = por %p135, %p136
      %p138 = scmp.ne.s32.totalorder %s129, %s130
      %p139 = scmp.eq.s32.totalorder %s35, 0
      %p140 = por %p138, %p139
      %p141 = scmp.ne.s32.totalorder %s129, %s130
      %p142 = scmp.eq.s32.totalorder %s36, 1
      %p143 = por %p141, %p142
      %p145 = scmp.ne.s32.totalorder %s130, %s144
      %p146 = scmp.eq.s32.totalorder %s36, 0
      %p147 = por %p145, %p146
      %s149 = sadd.s32 %s148, 1
      %p152 = scmp.eq.s32.totalorder %s30, 1
      %p153 = scmp.ne.s32.totalorder %s148, %s150
      %p154 = scmp.eq.s32.totalorder %s30, 0
      %p155 = por %p153, %p154
      %p156 = scmp.ne.s32.totalorder %s148, %s150
      %p157 = scmp.eq.s32.totalorder %s35, 1
      %p158 = por %p156, %p157
      %p159 = scmp.ne.s32.totalorder %s150, %s151
      %p160 = scmp.eq.s32.totalorder %s35, 0
      %p161 = por %p159, %p160
      %p162 = scmp.ne.s32.totalorder %s150, %s151
      %p163 = scmp.eq.s32.totalorder %s36, 1
      %p164 = por %p162, %p163
      %p166 = scmp.ne.s32.totalorder %s151, %s165
      %p167 = scmp.eq.s32.totalorder %s36, 0
      %p168 = por %p166, %p167
      %s170 = sadd.s32 %s169, 1
      %p173 = scmp.eq.s32.totalorder %s30, 1
      %p174 = scmp.ne.s32.totalorder %s169, %s171
      %p175 = scmp.eq.s32.totalorder %s30, 0
      %p176 = por %p174, %p175
      %p177 = scmp.ne.s32.totalorder %s169, %s171
      %p178 = scmp.eq.s32.totalorder %s35, 1
      %p179 = por %p177, %p178
      %p180 = scmp.ne.s32.totalorder %s171, %s172
      %p181 = scmp.eq.s32.totalorder %s35, 0
      %p182 = por %p180, %p181
      %p183 = scmp.ne.s32.totalorder %s171, %s172
      %p184 = scmp.eq.s32.totalorder %s36, 1
      %p185 = por %p183, %p184
      %p187 = scmp.ne.s32.totalorder %s172, %s186
      %p188 = scmp.eq.s32.totalorder %s36, 0
      %p189 = por %p187, %p188
      %s191 = sadd.s32 %s190, 1
      %p194 = scmp.eq.s32.totalorder %s30, 1
      %p195 = scmp.ne.s32.totalorder %s190, %s192
      %p196 = scmp.eq.s32.totalorder %s30, 0
      %p197 = por %p195, %p196
      %p198 = scmp.ne.s32.totalorder %s190, %s192
      %p199 = scmp.eq.s32.totalorder %s35, 1
      %p200 = por %p198, %p199
      %p201 = scmp.ne.s32.totalorder %s192, %s193
      %p202 = scmp.eq.s32.totalorder %s35, 0
      %p203 = por %p201, %p202
      %p204 = scmp.ne.s32.totalorder %s192, %s193
      %p205 = scmp.eq.s32.totalorder %s36, 1
      %p206 = por %p204, %p205
      %p208 = scmp.ne.s32.totalorder %s193, %s207
      %p209 = scmp.eq.s32.totalorder %s36, 0
      %p210 = por %p208, %p209
      %s212 = sadd.s32 %s211, 1
      %p215 = scmp.eq.s32.totalorder %s30, 1
      %p216 = scmp.ne.s32.totalorder %s211, %s213
      %p217 = scmp.eq.s32.totalorder %s30, 0
      %p218 = por %p216, %p217
      %p219 = scmp.ne.s32.totalorder %s211, %s213
      %p220 = scmp.eq.s32.totalorder %s35, 1
      %p221 = por %p219, %p220
      %p222 = scmp.ne.s32.totalorder %s213, %s214
      %p223 = scmp.eq.s32.totalorder %s35, 0
      %p224 = por %p222, %p223
      %p225 = scmp.ne.s32.totalorder %s213, %s214
      %p226 = scmp.eq.s32.totalorder %s36, 1
      %p227 = por %p225, %p226
      %p229 = scmp.ne.s32.totalorder %s214, %s228
      %p230 = scmp.eq.s32.totalorder %s36, 0
      %p231 = por %p229, %p230
      %s233 = sadd.s32 %s232, 1
      %p236 = scmp.eq.s32.totalorder %s30, 1
      %p237 = scmp.ne.s32.totalorder %s232, %s234
      %p238 = scmp.eq.s32.totalorder %s30, 0
      %p239 = por %p237, %p238
      %p240 = scmp.ne.s32.totalorder %s232, %s234
      %p241 = scmp.eq.s32.totalorder %s35, 1
      %p242 = por %p240, %p241
      %p243 = scmp.ne.s32.totalorder %s234, %s235
      %p244 = scmp.eq.s32.totalorder %s35, 0
      %p245 = por %p243, %p244
      %p246 = scmp.ne.s32.totalorder %s234, %s235
      %p247 = scmp.eq.s32.totalorder %s36, 1
      %p248 = por %p246, %p247
      %p250 = scmp.ne.s32.totalorder %s235, %s249
      %p251 = scmp.eq.s32.totalorder %s36, 0
      %p252 = por %p250, %p251
      %s254 = sadd.s32 %s253, 1
      %p257 = scmp.eq.s32.totalorder %s30, 1
      %p258 = scmp.ne.s32.totalorder %s253, %s255
      %p259 = scmp.eq.s32.totalorder %s30, 0
      %p260 = por %p258, %p259
      %p261 = scmp.ne.s32.totalorder %s253, %s255
      %p262 = scmp.eq.s32.totalorder %s35, 1
      %p263 = por %p261, %p262
      %p264 = scmp.ne.s32.totalorder %s255, %s256
      %p265 = scmp.eq.s32.totalorder %s35, 0
      %p266 = por %p264, %p265
      %p267 = scmp.ne.s32.totalorder %s255, %s256
      %p268 = scmp.eq.s32.totalorder %s36, 1
      %p269 = por %p267, %p268
      %p271 = scmp.ne.s32.totalorder %s256, %s270
      %p272 = scmp.eq.s32.totalorder %s36, 0
      %p273 = por %p271, %p272
      %s275 = sadd.s32 %s274, 1
      %p278 = scmp.eq.s32.totalorder %s30, 1
      %p279 = scmp.ne.s32.totalorder %s274, %s276
      %p280 = scmp.eq.s32.totalorder %s30, 0
      %p281 = por %p279, %p280
      %p282 = scmp.ne.s32.totalorder %s274, %s276
      %p283 = scmp.eq.s32.totalorder %s35, 1
      %p284 = por %p282, %p283
      %p285 = scmp.ne.s32.totalorder %s276, %s277
      %p286 = scmp.eq.s32.totalorder %s35, 0
      %p287 = por %p285, %p286
      %p288 = scmp.ne.s32.totalorder %s276, %s277
      %p289 = scmp.eq.s32.totalorder %s36, 1
      %p290 = por %p288, %p289
      %p292 = scmp.ne.s32.totalorder %s277, %s291
      %p293 = scmp.eq.s32.totalorder %s36, 0
      %p294 = por %p292, %p293
      %s296 = sadd.s32 %s295, 1
      %p299 = scmp.eq.s32.totalorder %s30, 1
      %p300 = scmp.ne.s32.totalorder %s295, %s297
      %p301 = scmp.eq.s32.totalorder %s30, 0
      %p302 = por %p300, %p301
      %p303 = scmp.ne.s32.totalorder %s295, %s297
      %p304 = scmp.eq.s32.totalorder %s35, 1
      %p305 = por %p303, %p304
      %p306 = scmp.ne.s32.totalorder %s297, %s298
      %p307 = scmp.eq.s32.totalorder %s35, 0
      %p308 = por %p306, %p307
      %p309 = scmp.ne.s32.totalorder %s297, %s298
      %p310 = scmp.eq.s32.totalorder %s36, 1
      %p311 = por %p309, %p310
      %p313 = scmp.ne.s32.totalorder %s298, %s312
      %p314 = scmp.eq.s32.totalorder %s36, 0
      %p315 = por %p313, %p314
      %s317 = sadd.s32 %s316, 1
      %p320 = scmp.eq.s32.totalorder %s30, 1
      %p321 = scmp.ne.s32.totalorder %s316, %s318
      %p322 = scmp.eq.s32.totalorder %s30, 0
      %p323 = por %p321, %p322
      %p324 = scmp.ne.s32.totalorder %s316, %s318
      %p325 = scmp.eq.s32.totalorder %s35, 1
      %p326 = por %p324, %p325
      %p327 = scmp.ne.s32.totalorder %s318, %s319
      %p328 = scmp.eq.s32.totalorder %s35, 0
      %p329 = por %p327, %p328
      %p330 = scmp.ne.s32.totalorder %s318, %s319
      %p331 = scmp.eq.s32.totalorder %s36, 1
      %p332 = por %p330, %p331
      %p334 = scmp.ne.s32.totalorder %s319, %s333
      %p335 = scmp.eq.s32.totalorder %s36, 0
      %p336 = por %p334, %p335
      %s338 = sadd.s32 %s337, 1
      %p341 = scmp.eq.s32.totalorder %s30, 1
      %p342 = scmp.ne.s32.totalorder %s337, %s339
      %p343 = scmp.eq.s32.totalorder %s30, 0
      %p344 = por %p342, %p343
      %p345 = scmp.ne.s32.totalorder %s337, %s339
      %p346 = scmp.eq.s32.totalorder %s35, 1
      %p347 = por %p345, %p346
      %p348 = scmp.ne.s32.totalorder %s339, %s340
      %p349 = scmp.eq.s32.totalorder %s35, 0
      %p350 = por %p348, %p349
      %p351 = scmp.ne.s32.totalorder %s339, %s340
      %p352 = scmp.eq.s32.totalorder %s36, 1
      %p353 = por %p351, %p352
      %p355 = scmp.ne.s32.totalorder %s340, %s354
      %p356 = scmp.eq.s32.totalorder %s36, 0
      %p357 = por %p355, %p356
      %s359 = sadd.s32 %s358, 1
      %p362 = scmp.eq.s32.totalorder %s30, 1
      %p363 = scmp.ne.s32.totalorder %s358, %s360
      %p364 = scmp.eq.s32.totalorder %s30, 0
      %p365 = por %p363, %p364
      %p366 = scmp.ne.s32.totalorder %s358, %s360
      %p367 = scmp.eq.s32.totalorder %s35, 1
      %p368 = por %p366, %p367
      %p369 = scmp.ne.s32.totalorder %s360, %s361
      %p370 = scmp.eq.s32.totalorder %s35, 0
      %p371 = por %p369, %p370
      %p372 = scmp.ne.s32.totalorder %s360, %s361
      %p373 = scmp.eq.s32.totalorder %s36, 1
      %p374 = por %p372, %p373
      %p376 = scmp.ne.s32.totalorder %s361, %s375
      %p377 = scmp.eq.s32.totalorder %s36, 0
      %p378 = por %p376, %p377
      %s380 = sadd.s32 %s379, 1
      %p383 = scmp.eq.s32.totalorder %s30, 1
      %p384 = scmp.ne.s32.totalorder %s379, %s381
      %p385 = scmp.eq.s32.totalorder %s30, 0
      %p386 = por %p384, %p385
      %p387 = scmp.ne.s32.totalorder %s379, %s381
      %p388 = scmp.eq.s32.totalorder %s35, 1
      %p389 = por %p387, %p388
      %p390 = scmp.ne.s32.totalorder %s381, %s382
      %p391 = scmp.eq.s32.totalorder %s35, 0
      %p392 = por %p390, %p391
      %p393 = scmp.ne.s32.totalorder %s381, %s382
      %p394 = scmp.eq.s32.totalorder %s36, 1
      %p395 = por %p393, %p394
      %p397 = scmp.ne.s32.totalorder %s382, %s396
      %p398 = scmp.eq.s32.totalorder %s36, 0
      %p399 = por %p397, %p398
      %s401 = sadd.s32 %s400, 1
      %p404 = scmp.eq.s32.totalorder %s30, 1
      %p405 = scmp.ne.s32.totalorder %s400, %s402
      %p406 = scmp.eq.s32.totalorder %s30, 0
      %p407 = por %p405, %p406
      %p408 = scmp.ne.s32.totalorder %s400, %s402
      %p409 = scmp.eq.s32.totalorder %s35, 1
      %p410 = por %p408, %p409
      %p411 = scmp.ne.s32.totalorder %s402, %s403
      %p412 = scmp.eq.s32.totalorder %s35, 0
      %p413 = por %p411, %p412
      %p414 = scmp.ne.s32.totalorder %s402, %s403
      %p415 = scmp.eq.s32.totalorder %s36, 1
      %p416 = por %p414, %p415
      %p418 = scmp.ne.s32.totalorder %s403, %s417
      %p419 = scmp.eq.s32.totalorder %s36, 0
      %p420 = por %p418, %p419
      %s422 = sadd.s32 %s421, 1
      %p425 = scmp.eq.s32.totalorder %s30, 1
      %p426 = scmp.ne.s32.totalorder %s421, %s423
      %p427 = scmp.eq.s32.totalorder %s30, 0
      %p428 = por %p426, %p427
      %p429 = scmp.ne.s32.totalorder %s421, %s423
      %p430 = scmp.eq.s32.totalorder %s35, 1
      %p431 = por %p429, %p430
      %p432 = scmp.ne.s32.totalorder %s423, %s424
      %p433 = scmp.eq.s32.totalorder %s35, 0
      %p434 = por %p432, %p433
      %p435 = scmp.ne.s32.totalorder %s423, %s424
      %p436 = scmp.eq.s32.totalorder %s36, 1
      %p437 = por %p435, %p436
      %p439 = scmp.ne.s32.totalorder %s424, %s438
      %p440 = scmp.eq.s32.totalorder %s36, 0
      %p441 = por %p439, %p440
      %s443 = sadd.s32 %s442, 1
      %p446 = scmp.eq.s32.totalorder %s30, 1
      %p447 = scmp.ne.s32.totalorder %s442, %s444
      %p448 = scmp.eq.s32.totalorder %s30, 0
      %p449 = por %p447, %p448
      %p450 = scmp.ne.s32.totalorder %s442, %s444
      %p451 = scmp.eq.s32.totalorder %s35, 1
      %p452 = por %p450, %p451
      %p453 = scmp.ne.s32.totalorder %s444, %s445
      %p454 = scmp.eq.s32.totalorder %s35, 0
      %p455 = por %p453, %p454
      %p456 = scmp.ne.s32.totalorder %s444, %s445
      %p457 = scmp.eq.s32.totalorder %s36, 1
      %p458 = por %p456, %p457
      %p460 = scmp.ne.s32.totalorder %s445, %s459
      %p461 = scmp.eq.s32.totalorder %s36, 0
      %p462 = por %p460, %p461
      %s464 = sadd.s32 %s463, 1
      %p467 = scmp.eq.s32.totalorder %s30, 1
      %p468 = scmp.ne.s32.totalorder %s463, %s465
      %p469 = scmp.eq.s32.totalorder %s30, 0
      %p470 = por %p468, %p469
      %p471 = scmp.ne.s32.totalorder %s463, %s465
      %p472 = scmp.eq.s32.totalorder %s35, 1
      %p473 = por %p471, %p472
      %p474 = scmp.ne.s32.totalorder %s465, %s466
      %p475 = scmp.eq.s32.totalorder %s35, 0
      %p476 = por %p474, %p475
      %p477 = scmp.ne.s32.totalorder %s465, %s466
      %p478 = scmp.eq.s32.totalorder %s36, 1
      %p479 = por %p477, %p478
      %p481 = scmp.ne.s32.totalorder %s466, %s480
      %p482 = scmp.eq.s32.totalorder %s36, 0
      %p483 = por %p481, %p482
      %s485 = sadd.s32 %s484, 1
      %p488 = scmp.eq.s32.totalorder %s30, 1
      %p489 = scmp.ne.s32.totalorder %s484, %s486
      %p490 = scmp.eq.s32.totalorder %s30, 0
      %p491 = por %p489, %p490
      %p492 = scmp.ne.s32.totalorder %s484, %s486
      %p493 = scmp.eq.s32.totalorder %s35, 1
      %p494 = por %p492, %p493
      %p495 = scmp.ne.s32.totalorder %s486, %s487
      %p496 = scmp.eq.s32.totalorder %s35, 0
      %p497 = por %p495, %p496
      %p498 = scmp.ne.s32.totalorder %s486, %s487
      %p499 = scmp.eq.s32.totalorder %s36, 1
      %p500 = por %p498, %p499
      %p502 = scmp.ne.s32.totalorder %s487, %s501
      %p503 = scmp.eq.s32.totalorder %s36, 0
      %p504 = por %p502, %p503
      %s506 = sadd.s32 %s505, 1
      %p509 = scmp.eq.s32.totalorder %s30, 1
      %p510 = scmp.ne.s32.totalorder %s505, %s507
      %p511 = scmp.eq.s32.totalorder %s30, 0
      %p512 = por %p510, %p511
      %p513 = scmp.ne.s32.totalorder %s505, %s507
      %p514 = scmp.eq.s32.totalorder %s35, 1
      %p515 = por %p513, %p514
      %p516 = scmp.ne.s32.totalorder %s507, %s508
      %p517 = scmp.eq.s32.totalorder %s35, 0
      %p518 = por %p516, %p517
      %p519 = scmp.ne.s32.totalorder %s507, %s508
      %p520 = scmp.eq.s32.totalorder %s36, 1
      %p521 = por %p519, %p520
      %p523 = scmp.ne.s32.totalorder %s508, %s522
      %p524 = scmp.eq.s32.totalorder %s36, 0
      %p525 = por %p523, %p524
      %s526 = ssub.s32 %s30, %s37
      %p527 = scmp.eq.s32.totalorder %s526, 0
      %s529 = sadd.s32 %s528, 1
      %s530 = scalar_select %p527, %s528, %s529
      %p533 = pneg %p527
      %p534 = scmp.eq.s32.totalorder %s30, 1
      %p535 = por %p533, %p534
      %p536 = scmp.ne.s32.totalorder %s528, %s531
      %p537 = scmp.eq.s32.totalorder %s30, 0
      %p538 = por %p536, %p537
      %p539 = scmp.ne.s32.totalorder %s528, %s531
      %p540 = scmp.eq.s32.totalorder %s35, 1
      %p541 = por %p539, %p540
      %p542 = scmp.ne.s32.totalorder %s531, %s532
      %p543 = scmp.eq.s32.totalorder %s35, 0
      %p544 = por %p542, %p543
      %p545 = scmp.ne.s32.totalorder %s531, %s532
      %p546 = scmp.eq.s32.totalorder %s36, 1
      %p547 = por %p545, %p546
      %p549 = scmp.ne.s32.totalorder %s532, %s548
      %p550 = scmp.eq.s32.totalorder %s36, 0
      %p551 = por %p549, %p550
      %p552 = scmp.le.s32.totalorder 1, %s30
      %p553 = scmp.lt.s32.totalorder %s30, 3
      %p554 = pnand %p552, %p553
      %p555 = pneg %p554
      // Predicated region
      $region9: #{bisenet_forward.1} parent=5 // pred_check
        _
      $region10: #{bisenet_forward.1} parent=5 // pred_check_branch
        %557 = sbr.rel (%p554) target = $region12
      $region11: #{bisenet_forward.1} parent=5 // pred_region
        %s558 = ssub.s32 %s30, 1
        // Predicated region
        $region13: #{bisenet_forward.1} parent=11 // pred_check
          %p559 = pneg %p77
        $region14: #{bisenet_forward.1} parent=11 // pred_check_branch
          %561 = sbr.rel (%p559) target = $region16
        $region15: #{bisenet_forward.1} parent=11 // pred_region
          _
        $region16: #{bisenet_forward.1} parent=11 // pred_fallthru
          _
        // Predicated region
        $region17: #{bisenet_forward.1} parent=11 // pred_check
          %p562 = pneg %p98
        $region18: #{bisenet_forward.1} parent=11 // pred_check_branch
          %564 = sbr.rel (%p562) target = $region20
        $region19: #{bisenet_forward.1} parent=11 // pred_region
          %s566 = ssub.s32 144, 144
          %567 = vsyncadd [#allocation3], %s566
          %s568 = sshll.u32 [#allocation2], 4
          %s569 = int_to_ptr.vmem [resolvable:$true] %s568
          %574 = dma.hbm_to_vmem [thread:$0]  %s2, 144, %s569, [#allocation3], 16, 16, 1
        $region20: #{bisenet_forward.1} parent=11 // pred_fallthru
          _
        // Predicated region
        $region21: #{bisenet_forward.1} parent=11 // pred_check
          %p575 = pneg %p119
        $region22: #{bisenet_forward.1} parent=11 // pred_check_branch
          %577 = sbr.rel (%p575) target = $region24
        $region23: #{bisenet_forward.1} parent=11 // pred_region
          _
        $region24: #{bisenet_forward.1} parent=11 // pred_fallthru
          _
        // Predicated region
        $region25: #{bisenet_forward.1} parent=11 // pred_check
          %p578 = pneg %p140
        $region26: #{bisenet_forward.1} parent=11 // pred_check_branch
          %580 = sbr.rel (%p578) target = $region28
        $region27: #{bisenet_forward.1} parent=11 // pred_region
          _
        $region28: #{bisenet_forward.1} parent=11 // pred_fallthru
          _
        // Predicated region
        $region29: #{bisenet_forward.1} parent=11 // pred_check
          %p581 = pneg %p161
        $region30: #{bisenet_forward.1} parent=11 // pred_check_branch
          %583 = sbr.rel (%p581) target = $region32
        $region31: #{bisenet_forward.1} parent=11 // pred_region
          _
        $region32: #{bisenet_forward.1} parent=11 // pred_fallthru
          _
        // Predicated region
        $region33: #{bisenet_forward.1} parent=11 // pred_check
          %p584 = pneg %p182
        $region34: #{bisenet_forward.1} parent=11 // pred_check_branch
          %586 = sbr.rel (%p584) target = $region36
        $region35: #{bisenet_forward.1} parent=11 // pred_region
          _
        $region36: #{bisenet_forward.1} parent=11 // pred_fallthru
          _
        // Predicated region
        $region37: #{bisenet_forward.1} parent=11 // pred_check
          %p587 = pneg %p203
        $region38: #{bisenet_forward.1} parent=11 // pred_check_branch
          %589 = sbr.rel (%p587) target = $region40
        $region39: #{bisenet_forward.1} parent=11 // pred_region
          _
        $region40: #{bisenet_forward.1} parent=11 // pred_fallthru
          _
        // Predicated region
        $region41: #{bisenet_forward.1} parent=11 // pred_check
          %p590 = pneg %p224
        $region42: #{bisenet_forward.1} parent=11 // pred_check_branch
          %592 = sbr.rel (%p590) target = $region44
        $region43: #{bisenet_forward.1} parent=11 // pred_region
          _
        $region44: #{bisenet_forward.1} parent=11 // pred_fallthru
          _
        // Predicated region
        $region45: #{bisenet_forward.1} parent=11 // pred_check
          %p593 = pneg %p245
        $region46: #{bisenet_forward.1} parent=11 // pred_check_branch
          %595 = sbr.rel (%p593) target = $region48
        $region47: #{bisenet_forward.1} parent=11 // pred_region
          _
        $region48: #{bisenet_forward.1} parent=11 // pred_fallthru
          _
        // Predicated region
        $region49: #{bisenet_forward.1} parent=11 // pred_check
          %p596 = pneg %p266
        $region50: #{bisenet_forward.1} parent=11 // pred_check_branch
          %598 = sbr.rel (%p596) target = $region52
        $region51: #{bisenet_forward.1} parent=11 // pred_region
          _
        $region52: #{bisenet_forward.1} parent=11 // pred_fallthru
          _
        // Predicated region
        $region53: #{bisenet_forward.1} parent=11 // pred_check
          %p599 = pneg %p287
        $region54: #{bisenet_forward.1} parent=11 // pred_check_branch
          %601 = sbr.rel (%p599) target = $region56
        $region55: #{bisenet_forward.1} parent=11 // pred_region
          _
        $region56: #{bisenet_forward.1} parent=11 // pred_fallthru
          _
        // Predicated region
        $region57: #{bisenet_forward.1} parent=11 // pred_check
          %p602 = pneg %p308
        $region58: #{bisenet_forward.1} parent=11 // pred_check_branch
          %604 = sbr.rel (%p602) target = $region60
        $region59: #{bisenet_forward.1} parent=11 // pred_region
          _
        $region60: #{bisenet_forward.1} parent=11 // pred_fallthru
          _
        // Predicated region
        $region61: #{bisenet_forward.1} parent=11 // pred_check
          %p605 = pneg %p329
        $region62: #{bisenet_forward.1} parent=11 // pred_check_branch
          %607 = sbr.rel (%p605) target = $region64
        $region63: #{bisenet_forward.1} parent=11 // pred_region
          _
        $region64: #{bisenet_forward.1} parent=11 // pred_fallthru
          _
        // Predicated region
        $region65: #{bisenet_forward.1} parent=11 // pred_check
          %p608 = pneg %p350
        $region66: #{bisenet_forward.1} parent=11 // pred_check_branch
          %610 = sbr.rel (%p608) target = $region68
        $region67: #{bisenet_forward.1} parent=11 // pred_region
          _
        $region68: #{bisenet_forward.1} parent=11 // pred_fallthru
          _
        // Predicated region
        $region69: #{bisenet_forward.1} parent=11 // pred_check
          %p611 = pneg %p371
        $region70: #{bisenet_forward.1} parent=11 // pred_check_branch
          %613 = sbr.rel (%p611) target = $region72
        $region71: #{bisenet_forward.1} parent=11 // pred_region
          _
        $region72: #{bisenet_forward.1} parent=11 // pred_fallthru
          _
        // Predicated region
        $region73: #{bisenet_forward.1} parent=11 // pred_check
          %p614 = pneg %p392
        $region74: #{bisenet_forward.1} parent=11 // pred_check_branch
          %616 = sbr.rel (%p614) target = $region76
        $region75: #{bisenet_forward.1} parent=11 // pred_region
          _
        $region76: #{bisenet_forward.1} parent=11 // pred_fallthru
          _
        // Predicated region
        $region77: #{bisenet_forward.1} parent=11 // pred_check
          %p617 = pneg %p413
        $region78: #{bisenet_forward.1} parent=11 // pred_check_branch
          %619 = sbr.rel (%p617) target = $region80
        $region79: #{bisenet_forward.1} parent=11 // pred_region
          _
        $region80: #{bisenet_forward.1} parent=11 // pred_fallthru
          _
        // Predicated region
        $region81: #{bisenet_forward.1} parent=11 // pred_check
          %p620 = pneg %p434
        $region82: #{bisenet_forward.1} parent=11 // pred_check_branch
          %622 = sbr.rel (%p620) target = $region84
        $region83: #{bisenet_forward.1} parent=11 // pred_region
          _
        $region84: #{bisenet_forward.1} parent=11 // pred_fallthru
          _
        // Predicated region
        $region85: #{bisenet_forward.1} parent=11 // pred_check
          %p623 = pneg %p455
        $region86: #{bisenet_forward.1} parent=11 // pred_check_branch
          %625 = sbr.rel (%p623) target = $region88
        $region87: #{bisenet_forward.1} parent=11 // pred_region
          _
        $region88: #{bisenet_forward.1} parent=11 // pred_fallthru
          _
        // Predicated region
        $region89: #{bisenet_forward.1} parent=11 // pred_check
          %p626 = pneg %p476
        $region90: #{bisenet_forward.1} parent=11 // pred_check_branch
          %628 = sbr.rel (%p626) target = $region92
        $region91: #{bisenet_forward.1} parent=11 // pred_region
          _
        $region92: #{bisenet_forward.1} parent=11 // pred_fallthru
          _
        // Predicated region
        $region93: #{bisenet_forward.1} parent=11 // pred_check
          %p629 = pneg %p497
        $region94: #{bisenet_forward.1} parent=11 // pred_check_branch
          %631 = sbr.rel (%p629) target = $region96
        $region95: #{bisenet_forward.1} parent=11 // pred_region
          _
        $region96: #{bisenet_forward.1} parent=11 // pred_fallthru
          _
        // Predicated region
        $region97: #{bisenet_forward.1} parent=11 // pred_check
          %p632 = pneg %p518
        $region98: #{bisenet_forward.1} parent=11 // pred_check_branch
          %634 = sbr.rel (%p632) target = $region100
        $region99: #{bisenet_forward.1} parent=11 // pred_region
          _
        $region100: #{bisenet_forward.1} parent=11 // pred_fallthru
          _
      $region12: #{bisenet_forward.1} parent=5 // pred_fallthru
        _
      %p635 = scmp.lt.s32.totalorder %s30, 2
      // Predicated region
      $region101: #{bisenet_forward.1} parent=5 // pred_check
        %p636 = pneg %p635
      $region102: #{bisenet_forward.1} parent=5 // pred_check_branch
        %638 = sbr.rel (%p636) target = $region104
      $region103: #{bisenet_forward.1} parent=5 // pred_region
        // Predicated region
        $region105: #{bisenet_forward.1} parent=103 // pred_check
          %p639 = pneg %p50
        $region106: #{bisenet_forward.1} parent=103 // pred_check_branch
          %641 = sbr.rel (%p639) target = $region108
        $region107: #{bisenet_forward.1} parent=103 // pred_region
          %p642 = scmp.lt.s32.totalorder %s30, 1
          %s643 = scalar_select %p642, %s30, 1
          %s644 = smul.addr %s643, 2
          %s645 = smul.addr %s644, 8
          %s646 = scalar_lea.vmem %s0, %s645
        $region108: #{bisenet_forward.1} parent=103 // pred_fallthru
          _
      $region104: #{bisenet_forward.1} parent=5 // pred_fallthru
        _
      %p647 = scmp.le.s32.totalorder 1, %s30
      %p648 = scmp.lt.s32.totalorder %s30, 3
      %p649 = pnand %p647, %p648
      %p650 = pneg %p649
      // Predicated region
      $region109: #{bisenet_forward.1} parent=5 // pred_check
        _
      $region110: #{bisenet_forward.1} parent=5 // pred_check_branch
        %652 = sbr.rel (%p649) target = $region112
      $region111: #{bisenet_forward.1} parent=5 // pred_region
        %s653 = ssub.s32 %s30, 1
        // Predicated region
        $region113: #{bisenet_forward.1} parent=111 // pred_check
          %p654 = pneg %p98
        $region114: #{bisenet_forward.1} parent=111 // pred_check_branch
          %656 = sbr.rel (%p654) target = $region116
        $region115: #{bisenet_forward.1} parent=111 // pred_region
          %657 = dma.done [#allocation3], 144
        $region116: #{bisenet_forward.1} parent=111 // pred_fallthru
          _
        %p658 = scmp.lt.s32.totalorder %s35, 1
        %s659 = scalar_select %p658, %s35, 1
        %s660 = smul.addr %s659, 2
        %s661 = smul.addr %s660, 8
        %s662 = scalar_lea.vmem %s0, %s661
        %p663 = pneg %p56
        %p664 = pneg %p53
        %p665 = pneg %p77
        %p666 = pneg %p74
        %p667 = pneg %p98
        %p668 = pneg %p95
        %p669 = pneg %p119
        %p670 = pneg %p116
        %p671 = pneg %p140
        %p672 = pneg %p137
        %p673 = pneg %p161
        %p674 = pneg %p158
        %p675 = pneg %p182
        %p676 = pneg %p179
        %p677 = pneg %p203
        %p678 = pneg %p200
        %p679 = pneg %p224
        %p680 = pneg %p221
        %p681 = pneg %p245
        %p682 = pneg %p242
        %p683 = pneg %p266
        %p684 = pneg %p263
        %p685 = pneg %p287
        %p686 = pneg %p284
        %p687 = pneg %p308
        %p688 = pneg %p305
        %p689 = pneg %p329
        %p690 = pneg %p326
        %p691 = pneg %p350
        %p692 = pneg %p347
        %p693 = pneg %p371
        %p694 = pneg %p368
        %p695 = pneg %p392
        %p696 = pneg %p389
        %p697 = pneg %p413
        %p698 = pneg %p410
        %p699 = pneg %p434
        %p700 = pneg %p431
        %p701 = pneg %p455
        %p702 = pneg %p452
        %p703 = pneg %p476
        %p704 = pneg %p473
        %p705 = pneg %p497
        %p706 = pneg %p494
        %p707 = pneg %p518
        %p708 = pneg %p515
        %p709 = pneg %p544
        %p710 = pneg %p541
        %p711 = scmp.lt.s32.totalorder %s35, 1
        %s712 = scalar_select %p711, %s35, 1
        %s713 = smul.addr %s712, 2
        %s714 = smul.addr %s713, 4
        %s715 = scalar_lea.vmem %s23, %s714
        %p716 = scmp.lt.s32.totalorder %s35, 1
        %s717 = scalar_select %p716, %s35, 1
        %s718 = smul.addr %s717, 2
        %s719 = smul.addr %s718, 8
        %s720 = scalar_lea.vmem %s0, %s719
        %p721 = scmp.lt.s32.totalorder %s35, 1
        %s722 = scalar_select %p721, %s35, 1
        %s723 = smul.addr %s722, 2
        %s724 = smul.addr %s723, 4
        %s725 = scalar_lea.vmem %s23, %s724
        %v727 = vld [vmem:[%s720] sm:$0xff]
        %v728 = vld [vmem:[%s720 + $0x8] sm:$0xff]
        %731 = vrot.lane.b32.xlu0 %v727, 17
        %v732 = vpop.permute.xlu0 %731
        %733 = vrot.lane.b32.xlu0 %v728, 17
        %v734 = vpop.permute.xlu0 %733
        %vm735 = vcmask 138240
        %v736 = vsel %vm735, %v732, %v734
        %v739 = vsel %vm735, 0.0, %v732
        %v740 = vld [vmem:[%s1] sm:$0x3]
        %v742 = vlaneseq
        %v743 = vshrl.u32 %v742, 7
        %v744 = vsub.s32 0, %v743
        %v745 = vrot.slane %v740, %v744
        %v746 = vlaneseq
        %v747 = vshrl.u32 %v746, 7
        %v748 = vsub.s32 1, %v747
        %v749 = vrot.slane %v740, %v748
        %v752 = vmul.f32 %v739, %v745
        %v753 = vmul.f32 %v736, %v749
        %754 = vrot.lane.b32.xlu0 %v727, 16
        %v755 = vpop.permute.xlu0 %754
        %756 = vrot.lane.b32.xlu0 %v728, 16
        %v757 = vpop.permute.xlu0 %756
        %vm758 = vcmask 130048
        %v759 = vsel %vm758, %v755, %v757
        %v762 = vsel %vm758, 0.0, %v755
        %s763 = scalar_lea.vmem %s1, 2
        %v764 = vld [vmem:[%s763] sm:$0x3]
        %v766 = vlaneseq
        %v767 = vshrl.u32 %v766, 7
        %v768 = vsub.s32 0, %v767
        %v769 = vrot.slane %v764, %v768
        %v770 = vlaneseq
        %v771 = vshrl.u32 %v770, 7
        %v772 = vsub.s32 1, %v771
        %v773 = vrot.slane %v764, %v772
        %v776 = vmul.f32 %v762, %v769
        %v777 = vmul.f32 %v759, %v773
        %778 = vrot.lane.b32.xlu0 %v727, 15
        %v779 = vpop.permute.xlu0 %778
        %780 = vrot.lane.b32.xlu0 %v728, 15
        %v781 = vpop.permute.xlu0 %780
        %vm782 = vcmask 121856
        %v783 = vsel %vm782, %v779, %v781
        %v786 = vsel %vm782, 0.0, %v779
        %s787 = scalar_lea.vmem %s1, 4
        %v788 = vld [vmem:[%s787] sm:$0x3]
        %v790 = vlaneseq
        %v791 = vshrl.u32 %v790, 7
        %v792 = vsub.s32 0, %v791
        %v793 = vrot.slane %v788, %v792
        %v794 = vlaneseq
        %v795 = vshrl.u32 %v794, 7
        %v796 = vsub.s32 1, %v795
        %v797 = vrot.slane %v788, %v796
        %v800 = vmul.f32 %v786, %v793
        %v801 = vmul.f32 %v783, %v797
        %802 = vrot.lane.b32.xlu0 %v727, 1
        %v803 = vpop.permute.xlu0 %802
        %804 = vrot.lane.b32.xlu0 %v728, 1
        %v805 = vpop.permute.xlu0 %804
        %vm806 = vcmask 7168
        %v807 = vsel %vm806, %v803, %v805
        %v810 = vsel %vm806, 0.0, %v803
        %s811 = scalar_lea.vmem %s1, 6
        %v812 = vld [vmem:[%s811] sm:$0x3]
        %v814 = vlaneseq
        %v815 = vshrl.u32 %v814, 7
        %v816 = vsub.s32 0, %v815
        %v817 = vrot.slane %v812, %v816
        %v818 = vlaneseq
        %v819 = vshrl.u32 %v818, 7
        %v820 = vsub.s32 1, %v819
        %v821 = vrot.slane %v812, %v820
        %v824 = vmul.f32 %v810, %v817
        %v825 = vmul.f32 %v807, %v821
        %s826 = scalar_lea.vmem %s1, 8
        %v827 = vld [vmem:[%s826] sm:$0x3]
        %v829 = vlaneseq
        %v830 = vshrl.u32 %v829, 7
        %v831 = vsub.s32 0, %v830
        %v832 = vrot.slane %v827, %v831
        %v833 = vlaneseq
        %v834 = vshrl.u32 %v833, 7
        %v835 = vsub.s32 1, %v834
        %v836 = vrot.slane %v827, %v835
        %v839 = vmul.f32 %v727, %v832
        %v840 = vmul.f32 %v728, %v836
        %841 = vrot.lane.b32.xlu0 %v727, 127
        %v842 = vpop.permute.xlu0 %841
        %843 = vrot.lane.b32.xlu0 %v728, 127
        %v844 = vpop.permute.xlu0 %843
        %vm845 = vcmask 1039360
        %v846 = vsel %vm845, %v842, %v844
        %v849 = vsel %vm845, %v844, 0.0
        %s850 = scalar_lea.vmem %s1, 10
        %v851 = vld [vmem:[%s850] sm:$0x3]
        %v853 = vlaneseq
        %v854 = vshrl.u32 %v853, 7
        %v855 = vsub.s32 0, %v854
        %v856 = vrot.slane %v851, %v855
        %v857 = vlaneseq
        %v858 = vshrl.u32 %v857, 7
        %v859 = vsub.s32 1, %v858
        %v860 = vrot.slane %v851, %v859
        %v863 = vmul.f32 %v846, %v856
        %v864 = vmul.f32 %v849, %v860
        %865 = vrot.lane.b32.xlu0 %v727, 113
        %v866 = vpop.permute.xlu0 %865
        %867 = vrot.lane.b32.xlu0 %v728, 113
        %v868 = vpop.permute.xlu0 %867
        %vm869 = vcmask 924672
        %v870 = vsel %vm869, %v866, %v868
        %v873 = vsel %vm869, %v868, 0.0
        %s874 = scalar_lea.vmem %s1, 12
        %v875 = vld [vmem:[%s874] sm:$0x3]
        %v877 = vlaneseq
        %v878 = vshrl.u32 %v877, 7
        %v879 = vsub.s32 0, %v878
        %v880 = vrot.slane %v875, %v879
        %v881 = vlaneseq
        %v882 = vshrl.u32 %v881, 7
        %v883 = vsub.s32 1, %v882
        %v884 = vrot.slane %v875, %v883
        %v887 = vmul.f32 %v870, %v880
        %v888 = vmul.f32 %v873, %v884
        %889 = vrot.lane.b32.xlu0 %v727, 112
        %v890 = vpop.permute.xlu0 %889
        %891 = vrot.lane.b32.xlu0 %v728, 112
        %v892 = vpop.permute.xlu0 %891
        %vm893 = vcmask 916480
        %v894 = vsel %vm893, %v890, %v892
        %v897 = vsel %vm893, %v892, 0.0
        %s898 = scalar_lea.vmem %s1, 14
        %v899 = vld [vmem:[%s898] sm:$0x3]
        %v901 = vlaneseq
        %v902 = vshrl.u32 %v901, 7
        %v903 = vsub.s32 0, %v902
        %v904 = vrot.slane %v899, %v903
        %v905 = vlaneseq
        %v906 = vshrl.u32 %v905, 7
        %v907 = vsub.s32 1, %v906
        %v908 = vrot.slane %v899, %v907
        %v911 = vmul.f32 %v894, %v904
        %v912 = vmul.f32 %v897, %v908
        %913 = vrot.lane.b32.xlu0 %v727, 111
        %v914 = vpop.permute.xlu0 %913
        %915 = vrot.lane.b32.xlu0 %v728, 111
        %v916 = vpop.permute.xlu0 %915
        %vm917 = vcmask 908288
        %v918 = vsel %vm917, %v914, %v916
        %v921 = vsel %vm917, %v916, 0.0
        %s922 = scalar_lea.vmem %s1, 16
        %v923 = vld [vmem:[%s922] sm:$0x3]
        %v925 = vlaneseq
        %v926 = vshrl.u32 %v925, 7
        %v927 = vsub.s32 0, %v926
        %v928 = vrot.slane %v923, %v927
        %v929 = vlaneseq
        %v930 = vshrl.u32 %v929, 7
        %v931 = vsub.s32 1, %v930
        %v932 = vrot.slane %v923, %v931
        %v935 = vmul.f32 %v918, %v928
        %v936 = vmul.f32 %v921, %v932
        %v937 = vpack.c.bf16 %v776, %v752
        %v938 = vpack.c.bf16 %v777, %v753
        %v939 = vpack.c.bf16 %v824, %v800
        %v940 = vpack.c.bf16 %v825, %v801
        %v941 = vpack.c.bf16 %v863, %v839
        %v942 = vpack.c.bf16 %v864, %v840
        %v943 = vpack.c.bf16 %v911, %v887
        %v944 = vpack.c.bf16 %v912, %v888
        %v945 = vpack.c.bf16 %v935, %v935
        %v946 = vpack.c.bf16 %v936, %v936
        %v947 = vld [vmem:[%s7] sm:$0xf]
        %v948 = vld [vmem:[%s7 + $0x4] sm:$0xf]
        %v949 = vld [vmem:[%s7 + $0x8] sm:$0xf]
        %v950 = vld [vmem:[%s7 + $0xc] sm:$0xf]
        %v951 = vld [vmem:[%s8] sm:$0xff]
        %v952 = vld [vmem:[%s8 + $0x8] sm:$0xff]
        %v953 = vld [vmem:[%s8 + $0x10] sm:$0xff]
        %v954 = vld [vmem:[%s8 + $0x18] sm:$0xff]
        %956 = vset.pattern.permute.xlu0 0
        %957 = vperm.xlu0 %956, %v951
        %v958 = vpop.permute.xlu0 %957
        %961 = vset.pattern.permute.xlu0 0
        %962 = vperm.xlu0 %961, %v952
        %v963 = vpop.permute.xlu0 %962
        %966 = vset.pattern.permute.xlu0 0
        %967 = vperm.xlu0 %966, %v953
        %v968 = vpop.permute.xlu0 %967
        %971 = vset.pattern.permute.xlu0 0
        %972 = vperm.xlu0 %971, %v954
        %v973 = vpop.permute.xlu0 %972
        %v979 = vunpack.c.l.b16 %v947
        %v980 = vunpack.c.l.b16 %v948
        %v981 = vunpack.c.l.b16 %v949
        %v982 = vunpack.c.l.b16 %v950
        %v983 = vpack.c.b16 %v980, %v979
        %v984 = vpack.c.b16 %v982, %v981
        %vm985 = vcmask 588800
        %v987 = vsel %vm985, %v983, 0
        %v990 = vsel %vm985, %v984, 0
        %vm992 = vcmask 1043456
        %v994 = vsel %vm992, %v945, 0
        %v997 = vsel %vm992, %v946, 0
        %999 = vmatprep.subr.bf16.mxu0 %v938
        %1000 = vmatpush1.bf16.msra.mxu0 %v937
        %1001 = vmatprep.subr.bf16.mxu0 %v940
        %1002 = vmatpush1.bf16.msra.mxu0 %v939
        %1003 = vmatprep.subr.bf16.mxu0 %v942
        %1004 = vmatpush1.bf16.msra.mxu0 %v941
        %1005 = vmatprep.subr.bf16.mxu0 %v944
        %1006 = vmatpush1.bf16.msra.mxu0 %v943
        %1007 = vmatprep.subr.bf16.mxu0 %v997
        %1008 = vmatpush1.bf16.msra.mxu0 %v994
        %1009 = vmatprep.subr.bf16.mxu0 0
        %1010 = vmatpush1.bf16.msra.mxu0 0
        %1011 = vmatprep.subr.bf16.mxu0 0
        %1012 = vmatpush1.bf16.msra.mxu0 0
        %1013 = vmatprep.subr.bf16.mxu0 0
        %1014 = vmatpush1.bf16.msra.mxu0 0
        %1015 = vmatprep.subr.bf16.mxu0 0
        %1016 = vmatpush1.bf16.msra.mxu0 0
        %1017 = vmatprep.subr.bf16.mxu0 0
        %1018 = vmatpush1.bf16.msra.mxu0 0
        %1019 = vmatprep.subr.bf16.mxu0 0
        %1020 = vmatpush1.bf16.msra.mxu0 0
        %1021 = vmatprep.subr.bf16.mxu0 0
        %1022 = vmatpush1.bf16.msra.mxu0 0
        %1023 = vmatprep.subr.bf16.mxu0 0
        %1024 = vmatpush1.bf16.msra.mxu0 0
        %1025 = vmatprep.subr.bf16.mxu0 0
        %1026 = vmatpush1.bf16.msra.mxu0 0
        %1027 = vmatprep.subr.bf16.mxu0 0
        %1028 = vmatpush1.bf16.msra.mxu0 0
        %1029 = vmatprep.subr.bf16.mxu0 0
        %1030 = vmatpush1.bf16.msra.mxu0 0
        %1031 = vmatprep.mubr.bf16.mxu0 0
        %1032 = vmatmul.mubr.bf16.gmra.mrb[0].mxu0 %v987
        %v1033 = vpop.f32.mrb[0].mxu0
        %v1034 = vadd.f32 %v958, %v1033
        %v1035 = vpop.f32.mrb[0].mxu0
        %v1036 = vadd.f32 %v958, %v1035
        %v1037 = vpop.f32.mrb[0].mxu0
        %v1038 = vadd.f32 %v963, %v1037
        %v1039 = vpop.f32.mrb[0].mxu0
        %v1040 = vadd.f32 %v963, %v1039
        %1041 = vmatprep.mubr.bf16.mxu0 0
        %1042 = vmatmul.mubr.bf16.gmra.mrb[0].mxu0 %v990
        %v1043 = vpop.f32.mrb[0].mxu0
        %v1044 = vadd.f32 %v968, %v1043
        %v1045 = vpop.f32.mrb[0].mxu0
        %v1046 = vadd.f32 %v968, %v1045
        %v1047 = vpop.f32.mrb[0].mxu0
        %v1048 = vadd.f32 %v973, %v1047
        %v1049 = vpop.f32.mrb[0].mxu0
        %v1050 = vadd.f32 %v973, %v1049
        %1051 = vdwg.mxu0
        %v1052 = vmax.f32 %v1034, 0.0
        %v1053 = vmax.f32 %v1036, 0.0
        %v1054 = vmax.f32 %v1038, 0.0
        %v1055 = vmax.f32 %v1040, 0.0
        %v1056 = vmax.f32 %v1044, 0.0
        %v1057 = vmax.f32 %v1046, 0.0
        %v1058 = vmax.f32 %v1048, 0.0
        %v1059 = vmax.f32 %v1050, 0.0
        %1068 = vrot.lane.b32.xlu0 %v1052, 17
        %v1069 = vpop.permute.xlu0 %1068
        %1070 = vrot.lane.b32.xlu0 %v1053, 17
        %v1071 = vpop.permute.xlu0 %1070
        %1072 = vrot.lane.b32.xlu0 %v1054, 17
        %v1073 = vpop.permute.xlu0 %1072
        %1074 = vrot.lane.b32.xlu0 %v1055, 17
        %v1075 = vpop.permute.xlu0 %1074
        %1076 = vrot.lane.b32.xlu0 %v1056, 17
        %v1077 = vpop.permute.xlu0 %1076
        %1078 = vrot.lane.b32.xlu0 %v1057, 17
        %v1079 = vpop.permute.xlu0 %1078
        %1080 = vrot.lane.b32.xlu0 %v1058, 17
        %v1081 = vpop.permute.xlu0 %1080
        %1082 = vrot.lane.b32.xlu0 %v1059, 17
        %v1083 = vpop.permute.xlu0 %1082
        %v1084 = vsel %vm735, %v1069, %v1071
        %v1085 = vsel %vm735, %v1073, %v1075
        %v1086 = vsel %vm735, %v1077, %v1079
        %v1087 = vsel %vm735, %v1081, %v1083
        %v1096 = vsel %vm735, 0.0, %v1069
        %v1097 = vsel %vm735, 0.0, %v1073
        %v1098 = vsel %vm735, 0.0, %v1077
        %v1099 = vsel %vm735, 0.0, %v1081
        %v1100 = vmul.f32 %v1096, %v745
        %v1101 = vmul.f32 %v1084, %v749
        %v1102 = vmul.f32 %v1097, %v745
        %v1103 = vmul.f32 %v1085, %v749
        %v1104 = vmul.f32 %v1098, %v745
        %v1105 = vmul.f32 %v1086, %v749
        %v1106 = vmul.f32 %v1099, %v745
        %v1107 = vmul.f32 %v1087, %v749
        %1108 = vrot.lane.b32.xlu0 %v1052, 16
        %v1109 = vpop.permute.xlu0 %1108
        %1110 = vrot.lane.b32.xlu0 %v1053, 16
        %v1111 = vpop.permute.xlu0 %1110
        %1112 = vrot.lane.b32.xlu0 %v1054, 16
        %v1113 = vpop.permute.xlu0 %1112
        %1114 = vrot.lane.b32.xlu0 %v1055, 16
        %v1115 = vpop.permute.xlu0 %1114
        %1116 = vrot.lane.b32.xlu0 %v1056, 16
        %v1117 = vpop.permute.xlu0 %1116
        %1118 = vrot.lane.b32.xlu0 %v1057, 16
        %v1119 = vpop.permute.xlu0 %1118
        %1120 = vrot.lane.b32.xlu0 %v1058, 16
        %v1121 = vpop.permute.xlu0 %1120
        %1122 = vrot.lane.b32.xlu0 %v1059, 16
        %v1123 = vpop.permute.xlu0 %1122
        %v1124 = vsel %vm758, %v1109, %v1111
        %v1125 = vsel %vm758, %v1113, %v1115
        %v1126 = vsel %vm758, %v1117, %v1119
        %v1127 = vsel %vm758, %v1121, %v1123
        %v1136 = vsel %vm758, 0.0, %v1109
        %v1137 = vsel %vm758, 0.0, %v1113
        %v1138 = vsel %vm758, 0.0, %v1117
        %v1139 = vsel %vm758, 0.0, %v1121
        %v1140 = vmul.f32 %v1136, %v769
        %v1141 = vmul.f32 %v1124, %v773
        %v1142 = vmul.f32 %v1137, %v769
        %v1143 = vmul.f32 %v1125, %v773
        %v1144 = vmul.f32 %v1138, %v769
        %v1145 = vmul.f32 %v1126, %v773
        %v1146 = vmul.f32 %v1139, %v769
        %v1147 = vmul.f32 %v1127, %v773
        %1148 = vrot.lane.b32.xlu0 %v1052, 15
        %v1149 = vpop.permute.xlu0 %1148
        %1150 = vrot.lane.b32.xlu0 %v1053, 15
        %v1151 = vpop.permute.xlu0 %1150
        %1152 = vrot.lane.b32.xlu0 %v1054, 15
        %v1153 = vpop.permute.xlu0 %1152
        %1154 = vrot.lane.b32.xlu0 %v1055, 15
        %v1155 = vpop.permute.xlu0 %1154
        %1156 = vrot.lane.b32.xlu0 %v1056, 15
        %v1157 = vpop.permute.xlu0 %1156
        %1158 = vrot.lane.b32.xlu0 %v1057, 15
        %v1159 = vpop.permute.xlu0 %1158
        %1160 = vrot.lane.b32.xlu0 %v1058, 15
        %v1161 = vpop.permute.xlu0 %1160
        %1162 = vrot.lane.b32.xlu0 %v1059, 15
        %v1163 = vpop.permute.xlu0 %1162
        %v1164 = vsel %vm782, %v1149, %v1151
        %v1165 = vsel %vm782, %v1153, %v1155
        %v1166 = vsel %vm782, %v1157, %v1159
        %v1167 = vsel %vm782, %v1161, %v1163
        %v1176 = vsel %vm782, 0.0, %v1149
        %v1177 = vsel %vm782, 0.0, %v1153
        %v1178 = vsel %vm782, 0.0, %v1157
        %v1179 = vsel %vm782, 0.0, %v1161
        %v1180 = vmul.f32 %v1176, %v793
        %v1181 = vmul.f32 %v1164, %v797
        %v1182 = vmul.f32 %v1177, %v793
        %v1183 = vmul.f32 %v1165, %v797
        %v1184 = vmul.f32 %v1178, %v793
        %v1185 = vmul.f32 %v1166, %v797
        %v1186 = vmul.f32 %v1179, %v793
        %v1187 = vmul.f32 %v1167, %v797
        %1188 = vrot.lane.b32.xlu0 %v1052, 1
        %v1189 = vpop.permute.xlu0 %1188
        %1190 = vrot.lane.b32.xlu0 %v1053, 1
        %v1191 = vpop.permute.xlu0 %1190
        %1192 = vrot.lane.b32.xlu0 %v1054, 1
        %v1193 = vpop.permute.xlu0 %1192
        %1194 = vrot.lane.b32.xlu0 %v1055, 1
        %v1195 = vpop.permute.xlu0 %1194
        %1196 = vrot.lane.b32.xlu0 %v1056, 1
        %v1197 = vpop.permute.xlu0 %1196
        %1198 = vrot.lane.b32.xlu0 %v1057, 1
        %v1199 = vpop.permute.xlu0 %1198
        %1200 = vrot.lane.b32.xlu0 %v1058, 1
        %v1201 = vpop.permute.xlu0 %1200
        %1202 = vrot.lane.b32.xlu0 %v1059, 1
        %v1203 = vpop.permute.xlu0 %1202
        %v1204 = vsel %vm806, %v1189, %v1191
        %v1205 = vsel %vm806, %v1193, %v1195
        %v1206 = vsel %vm806, %v1197, %v1199
        %v1207 = vsel %vm806, %v1201, %v1203
        %v1216 = vsel %vm806, 0.0, %v1189
        %v1217 = vsel %vm806, 0.0, %v1193
        %v1218 = vsel %vm806, 0.0, %v1197
        %v1219 = vsel %vm806, 0.0, %v1201
        %v1220 = vmul.f32 %v1216, %v817
        %v1221 = vmul.f32 %v1204, %v821
        %v1222 = vmul.f32 %v1217, %v817
        %v1223 = vmul.f32 %v1205, %v821
        %v1224 = vmul.f32 %v1218, %v817
        %v1225 = vmul.f32 %v1206, %v821
        %v1226 = vmul.f32 %v1219, %v817
        %v1227 = vmul.f32 %v1207, %v821
        %v1228 = vmul.f32 %v1052, %v832
        %v1229 = vmul.f32 %v1053, %v836
        %v1230 = vmul.f32 %v1054, %v832
        %v1231 = vmul.f32 %v1055, %v836
        %v1232 = vmul.f32 %v1056, %v832
        %v1233 = vmul.f32 %v1057, %v836
        %v1234 = vmul.f32 %v1058, %v832
        %v1235 = vmul.f32 %v1059, %v836
        %1236 = vrot.lane.b32.xlu0 %v1052, 127
        %v1237 = vpop.permute.xlu0 %1236
        %1238 = vrot.lane.b32.xlu0 %v1053, 127
        %v1239 = vpop.permute.xlu0 %1238
        %1240 = vrot.lane.b32.xlu0 %v1054, 127
        %v1241 = vpop.permute.xlu0 %1240
        %1242 = vrot.lane.b32.xlu0 %v1055, 127
        %v1243 = vpop.permute.xlu0 %1242
        %1244 = vrot.lane.b32.xlu0 %v1056, 127
        %v1245 = vpop.permute.xlu0 %1244
        %1246 = vrot.lane.b32.xlu0 %v1057, 127
        %v1247 = vpop.permute.xlu0 %1246
        %1248 = vrot.lane.b32.xlu0 %v1058, 127
        %v1249 = vpop.permute.xlu0 %1248
        %1250 = vrot.lane.b32.xlu0 %v1059, 127
        %v1251 = vpop.permute.xlu0 %1250
        %v1252 = vsel %vm845, %v1237, %v1239
        %v1253 = vsel %vm845, %v1241, %v1243
        %v1254 = vsel %vm845, %v1245, %v1247
        %v1255 = vsel %vm845, %v1249, %v1251
        %v1264 = vsel %vm845, %v1239, 0.0
        %v1265 = vsel %vm845, %v1243, 0.0
        %v1266 = vsel %vm845, %v1247, 0.0
        %v1267 = vsel %vm845, %v1251, 0.0
        %v1268 = vmul.f32 %v1252, %v856
        %v1269 = vmul.f32 %v1264, %v860
        %v1270 = vmul.f32 %v1253, %v856
        %v1271 = vmul.f32 %v1265, %v860
        %v1272 = vmul.f32 %v1254, %v856
        %v1273 = vmul.f32 %v1266, %v860
        %v1274 = vmul.f32 %v1255, %v856
        %v1275 = vmul.f32 %v1267, %v860
        %1276 = vrot.lane.b32.xlu0 %v1052, 113
        %v1277 = vpop.permute.xlu0 %1276
        %1278 = vrot.lane.b32.xlu0 %v1053, 113
        %v1279 = vpop.permute.xlu0 %1278
        %1280 = vrot.lane.b32.xlu0 %v1054, 113
        %v1281 = vpop.permute.xlu0 %1280
        %1282 = vrot.lane.b32.xlu0 %v1055, 113
        %v1283 = vpop.permute.xlu0 %1282
        %1284 = vrot.lane.b32.xlu0 %v1056, 113
        %v1285 = vpop.permute.xlu0 %1284
        %1286 = vrot.lane.b32.xlu0 %v1057, 113
        %v1287 = vpop.permute.xlu0 %1286
        %1288 = vrot.lane.b32.xlu0 %v1058, 113
        %v1289 = vpop.permute.xlu0 %1288
        %1290 = vrot.lane.b32.xlu0 %v1059, 113
        %v1291 = vpop.permute.xlu0 %1290
        %v1292 = vsel %vm869, %v1277, %v1279
        %v1293 = vsel %vm869, %v1281, %v1283
        %v1294 = vsel %vm869, %v1285, %v1287
        %v1295 = vsel %vm869, %v1289, %v1291
        %v1304 = vsel %vm869, %v1279, 0.0
        %v1305 = vsel %vm869, %v1283, 0.0
        %v1306 = vsel %vm869, %v1287, 0.0
        %v1307 = vsel %vm869, %v1291, 0.0
        %v1308 = vmul.f32 %v1292, %v880
        %v1309 = vmul.f32 %v1304, %v884
        %v1310 = vmul.f32 %v1293, %v880
        %v1311 = vmul.f32 %v1305, %v884
        %v1312 = vmul.f32 %v1294, %v880
        %v1313 = vmul.f32 %v1306, %v884
        %v1314 = vmul.f32 %v1295, %v880
        %v1315 = vmul.f32 %v1307, %v884
        %1316 = vrot.lane.b32.xlu0 %v1052, 112
        %v1317 = vpop.permute.xlu0 %1316
        %1318 = vrot.lane.b32.xlu0 %v1053, 112
        %v1319 = vpop.permute.xlu0 %1318
        %1320 = vrot.lane.b32.xlu0 %v1054, 112
        %v1321 = vpop.permute.xlu0 %1320
        %1322 = vrot.lane.b32.xlu0 %v1055, 112
        %v1323 = vpop.permute.xlu0 %1322
        %1324 = vrot.lane.b32.xlu0 %v1056, 112
        %v1325 = vpop.permute.xlu0 %1324
        %1326 = vrot.lane.b32.xlu0 %v1057, 112
        %v1327 = vpop.permute.xlu0 %1326
        %1328 = vrot.lane.b32.xlu0 %v1058, 112
        %v1329 = vpop.permute.xlu0 %1328
        %1330 = vrot.lane.b32.xlu0 %v1059, 112
        %v1331 = vpop.permute.xlu0 %1330
        %v1332 = vsel %vm893, %v1317, %v1319
        %v1333 = vsel %vm893, %v1321, %v1323
        %v1334 = vsel %vm893, %v1325, %v1327
        %v1335 = vsel %vm893, %v1329, %v1331
        %v1344 = vsel %vm893, %v1319, 0.0
        %v1345 = vsel %vm893, %v1323, 0.0
        %v1346 = vsel %vm893, %v1327, 0.0
        %v1347 = vsel %vm893, %v1331, 0.0
        %v1348 = vmul.f32 %v1332, %v904
        %v1349 = vmul.f32 %v1344, %v908
        %v1350 = vmul.f32 %v1333, %v904
        %v1351 = vmul.f32 %v1345, %v908
        %v1352 = vmul.f32 %v1334, %v904
        %v1353 = vmul.f32 %v1346, %v908
        %v1354 = vmul.f32 %v1335, %v904
        %v1355 = vmul.f32 %v1347, %v908
        %1356 = vrot.lane.b32.xlu0 %v1052, 111
        %v1357 = vpop.permute.xlu0 %1356
        %1358 = vrot.lane.b32.xlu0 %v1053, 111
        %v1359 = vpop.permute.xlu0 %1358
        %1360 = vrot.lane.b32.xlu0 %v1054, 111
        %v1361 = vpop.permute.xlu0 %1360
        %1362 = vrot.lane.b32.xlu0 %v1055, 111
        %v1363 = vpop.permute.xlu0 %1362
        %1364 = vrot.lane.b32.xlu0 %v1056, 111
        %v1365 = vpop.permute.xlu0 %1364
        %1366 = vrot.lane.b32.xlu0 %v1057, 111
        %v1367 = vpop.permute.xlu0 %1366
        %1368 = vrot.lane.b32.xlu0 %v1058, 111
        %v1369 = vpop.permute.xlu0 %1368
        %1370 = vrot.lane.b32.xlu0 %v1059, 111
        %v1371 = vpop.permute.xlu0 %1370
        %v1372 = vsel %vm917, %v1357, %v1359
        %v1373 = vsel %vm917, %v1361, %v1363
        %v1374 = vsel %vm917, %v1365, %v1367
        %v1375 = vsel %vm917, %v1369, %v1371
        %v1384 = vsel %vm917, %v1359, 0.0
        %v1385 = vsel %vm917, %v1363, 0.0
        %v1386 = vsel %vm917, %v1367, 0.0
        %v1387 = vsel %vm917, %v1371, 0.0
        %v1388 = vmul.f32 %v1372, %v928
        %v1389 = vmul.f32 %v1384, %v932
        %v1390 = vmul.f32 %v1373, %v928
        %v1391 = vmul.f32 %v1385, %v932
        %v1392 = vmul.f32 %v1374, %v928
        %v1393 = vmul.f32 %v1386, %v932
        %v1394 = vmul.f32 %v1375, %v928
        %v1395 = vmul.f32 %v1387, %v932
        %v1396 = vpack.c.bf16 %v1102, %v1100
        %v1397 = vpack.c.bf16 %v1103, %v1101
        %v1398 = vpack.c.bf16 %v1106, %v1104
        %v1399 = vpack.c.bf16 %v1107, %v1105
        %v1400 = vpack.c.bf16 %v1142, %v1140
        %v1401 = vpack.c.bf16 %v1143, %v1141
        %v1402 = vpack.c.bf16 %v1146, %v1144
        %v1403 = vpack.c.bf16 %v1147, %v1145
        %v1404 = vpack.c.bf16 %v1182, %v1180
        %v1405 = vpack.c.bf16 %v1183, %v1181
        %v1406 = vpack.c.bf16 %v1186, %v1184
        %v1407 = vpack.c.bf16 %v1187, %v1185
        %v1408 = vpack.c.bf16 %v1222, %v1220
        %v1409 = vpack.c.bf16 %v1223, %v1221
        %v1410 = vpack.c.bf16 %v1226, %v1224
        %v1411 = vpack.c.bf16 %v1227, %v1225
        %v1412 = vpack.c.bf16 %v1230, %v1228
        %v1413 = vpack.c.bf16 %v1231, %v1229
        %v1414 = vpack.c.bf16 %v1234, %v1232
        %v1415 = vpack.c.bf16 %v1235, %v1233
        %v1416 = vpack.c.bf16 %v1270, %v1268
        %v1417 = vpack.c.bf16 %v1271, %v1269
        %v1418 = vpack.c.bf16 %v1274, %v1272
        %v1419 = vpack.c.bf16 %v1275, %v1273
        %v1420 = vpack.c.bf16 %v1310, %v1308
        %v1421 = vpack.c.bf16 %v1311, %v1309
        %v1422 = vpack.c.bf16 %v1314, %v1312
        %v1423 = vpack.c.bf16 %v1315, %v1313
        %v1424 = vpack.c.bf16 %v1350, %v1348
        %v1425 = vpack.c.bf16 %v1351, %v1349
        %v1426 = vpack.c.bf16 %v1354, %v1352
        %v1427 = vpack.c.bf16 %v1355, %v1353
        %v1428 = vpack.c.bf16 %v1390, %v1388
        %v1429 = vpack.c.bf16 %v1391, %v1389
        %v1430 = vpack.c.bf16 %v1394, %v1392
        %v1431 = vpack.c.bf16 %v1395, %v1393
        %v1432 = vld [vmem:[%s4] sm:$0xf]
        %v1433 = vld [vmem:[%s4 + $0x4] sm:$0xf]
        %v1434 = vld [vmem:[%s4 + $0x8] sm:$0xf]
        %v1435 = vld [vmem:[%s4 + $0xc] sm:$0xf]
        %v1436 = vld [vmem:[%s4 + $0x10] sm:$0xf]
        %v1437 = vld [vmem:[%s4 + $0x14] sm:$0xf]
        %v1438 = vld [vmem:[%s4 + $0x18] sm:$0xf]
        %v1439 = vld [vmem:[%s4 + $0x1c] sm:$0xf]
        %v1440 = vld [vmem:[%s4 + $0x20] sm:$0xf]
        %v1441 = vld [vmem:[%s4 + $0x24] sm:$0xf]
        %v1442 = vld [vmem:[%s4 + $0x28] sm:$0xf]
        %v1443 = vld [vmem:[%s4 + $0x2c] sm:$0xf]
        %v1444 = vld [vmem:[%s4 + $0x30] sm:$0xf]
        %v1445 = vld [vmem:[%s4 + $0x34] sm:$0xf]
        %v1446 = vld [vmem:[%s4 + $0x38] sm:$0xf]
        %v1447 = vld [vmem:[%s4 + $0x3c] sm:$0xf]
        %v1448 = vld [vmem:[%s4 + $0x40] sm:$0xf]
        %v1449 = vld [vmem:[%s4 + $0x44] sm:$0xf]
        %v1450 = vld [vmem:[%s4 + $0x48] sm:$0xf]
        %v1451 = vld [vmem:[%s4 + $0x4c] sm:$0xf]
        %v1452 = vld [vmem:[%s4 + $0x50] sm:$0xf]
        %v1453 = vld [vmem:[%s4 + $0x54] sm:$0xf]
        %v1454 = vld [vmem:[%s4 + $0x58] sm:$0xf]
        %v1455 = vld [vmem:[%s4 + $0x5c] sm:$0xf]
        %v1456 = vld [vmem:[%s4 + $0x60] sm:$0xf]
        %v1457 = vld [vmem:[%s4 + $0x64] sm:$0xf]
        %v1458 = vld [vmem:[%s4 + $0x68] sm:$0xf]
        %v1459 = vld [vmem:[%s4 + $0x6c] sm:$0xf]
        %v1460 = vld [vmem:[%s4 + $0x70] sm:$0xf]
        %v1461 = vld [vmem:[%s4 + $0x74] sm:$0xf]
        %v1462 = vld [vmem:[%s4 + $0x78] sm:$0xf]
        %v1463 = vld [vmem:[%s4 + $0x7c] sm:$0xf]
        %v1496 = vunpack.c.l.b16 %v1432
        %v1497 = vunpack.c.l.b16 %v1433
        %v1498 = vunpack.c.l.b16 %v1434
        %v1499 = vunpack.c.l.b16 %v1435
        %v1500 = vunpack.c.l.b16 %v1436
        %v1501 = vunpack.c.l.b16 %v1437
        %v1502 = vunpack.c.l.b16 %v1438
        %v1503 = vunpack.c.l.b16 %v1439
        %v1504 = vunpack.c.l.b16 %v1440
        %v1505 = vunpack.c.l.b16 %v1441
        %v1506 = vunpack.c.l.b16 %v1442
        %v1507 = vunpack.c.l.b16 %v1443
        %v1508 = vunpack.c.l.b16 %v1444
        %v1509 = vunpack.c.l.b16 %v1445
        %v1510 = vunpack.c.l.b16 %v1446
        %v1511 = vunpack.c.l.b16 %v1447
        %v1512 = vunpack.c.l.b16 %v1448
        %v1513 = vunpack.c.l.b16 %v1449
        %v1514 = vunpack.c.l.b16 %v1450
        %v1515 = vunpack.c.l.b16 %v1451
        %v1516 = vunpack.c.l.b16 %v1452
        %v1517 = vunpack.c.l.b16 %v1453
        %v1518 = vunpack.c.l.b16 %v1454
        %v1519 = vunpack.c.l.b16 %v1455
        %v1520 = vunpack.c.l.b16 %v1456
        %v1521 = vunpack.c.l.b16 %v1457
        %v1522 = vunpack.c.l.b16 %v1458
        %v1523 = vunpack.c.l.b16 %v1459
        %v1524 = vunpack.c.l.b16 %v1460
        %v1525 = vunpack.c.l.b16 %v1461
        %v1526 = vunpack.c.l.b16 %v1462
        %v1527 = vunpack.c.l.b16 %v1463
        %v1528 = vpack.c.b16 %v1497, %v1496
        %v1529 = vpack.c.b16 %v1499, %v1498
        %v1530 = vpack.c.b16 %v1501, %v1500
        %v1531 = vpack.c.b16 %v1503, %v1502
        %v1532 = vpack.c.b16 %v1505, %v1504
        %v1533 = vpack.c.b16 %v1507, %v1506
        %v1534 = vpack.c.b16 %v1509, %v1508
        %v1535 = vpack.c.b16 %v1511, %v1510
        %v1536 = vpack.c.b16 %v1513, %v1512
        %v1537 = vpack.c.b16 %v1515, %v1514
        %v1538 = vpack.c.b16 %v1517, %v1516
        %v1539 = vpack.c.b16 %v1519, %v1518
        %v1540 = vpack.c.b16 %v1521, %v1520
        %v1541 = vpack.c.b16 %v1523, %v1522
        %v1542 = vpack.c.b16 %v1525, %v1524
        %v1543 = vpack.c.b16 %v1527, %v1526
        %1560 = vmatprep.subr.bf16.mxu0 0
        %1561 = vmatpush1.bf16.msra.mxu0 %v1528
        %1562 = vmatprep.subr.bf16.mxu0 0
        %1563 = vmatpush1.bf16.msra.mxu0 %v1529
        %1564 = vmatprep.subr.bf16.mxu0 0
        %1565 = vmatpush1.bf16.msra.mxu0 %v1530
        %1566 = vmatprep.subr.bf16.mxu0 0
        %1567 = vmatpush1.bf16.msra.mxu0 %v1531
        %1568 = vmatprep.subr.bf16.mxu0 0
        %1569 = vmatpush1.bf16.msra.mxu0 %v1532
        %1570 = vmatprep.subr.bf16.mxu0 0
        %1571 = vmatpush1.bf16.msra.mxu0 %v1533
        %1572 = vmatprep.subr.bf16.mxu0 0
        %1573 = vmatpush1.bf16.msra.mxu0 %v1534
        %1574 = vmatprep.subr.bf16.mxu0 0
        %1575 = vmatpush1.bf16.msra.mxu0 %v1535
        %1576 = vmatprep.subr.bf16.mxu0 0
        %1577 = vmatpush1.bf16.msra.mxu0 %v1536
        %1578 = vmatprep.subr.bf16.mxu0 0
        %1579 = vmatpush1.bf16.msra.mxu0 %v1537
        %1580 = vmatprep.subr.bf16.mxu0 0
        %1581 = vmatpush1.bf16.msra.mxu0 %v1538
        %1582 = vmatprep.subr.bf16.mxu0 0
        %1583 = vmatpush1.bf16.msra.mxu0 %v1539
        %1584 = vmatprep.subr.bf16.mxu0 0
        %1585 = vmatpush1.bf16.msra.mxu0 %v1540
        %1586 = vmatprep.subr.bf16.mxu0 0
        %1587 = vmatpush1.bf16.msra.mxu0 %v1541
        %1588 = vmatprep.subr.bf16.mxu0 0
        %1589 = vmatpush1.bf16.msra.mxu0 %v1542
        %1590 = vmatprep.subr.bf16.mxu0 0
        %1591 = vmatpush1.bf16.msra.mxu0 %v1543
        %1592 = vmatprep.mubr.bf16.mxu0 %v1397
        %1593 = vmatmul.mubr.bf16.gmra.mrb[0].mxu0 %v1396
        %v1594 = vpop.f32.mrb[0].mxu0
        %v1595 = vadd.f32 0.0, %v1594
        %v1596 = vpop.f32.mrb[0].mxu0
        %v1597 = vpop.f32.mrb[0].mxu0
        %v1598 = vadd.f32 0.0, %v1597
        %v1599 = vpop.f32.mrb[0].mxu0
        %1600 = vmatprep.mubr.bf16.mxu0 %v1399
        %1601 = vmatmul.mubr.bf16.gmra.mrb[0].mxu0 %v1398
        %v1602 = vpop.f32.mrb[0].mxu0
        %v1603 = vadd.f32 0.0, %v1602
        %v1604 = vpop.f32.mrb[0].mxu0
        %v1605 = vpop.f32.mrb[0].mxu0
        %v1606 = vadd.f32 0.0, %v1605
        %v1607 = vpop.f32.mrb[0].mxu0
        %1608 = vmatprep.mubr.bf16.mxu0 %v1401
        %1609 = vmatmul.mubr.bf16.gmra.mrb[0].mxu0 %v1400
        %v1610 = vpop.f32.mrb[0].mxu0
        %v1611 = vadd.f32 0.0, %v1610
        %v1612 = vpop.f32.mrb[0].mxu0
        %v1613 = vpop.f32.mrb[0].mxu0
        %v1614 = vadd.f32 0.0, %v1613
        %v1615 = vpop.f32.mrb[0].mxu0
        %1616 = vmatprep.mubr.bf16.mxu0 %v1403
        %1617 = vmatmul.mubr.bf16.gmra.mrb[0].mxu0 %v1402
        %v1618 = vpop.f32.mrb[0].mxu0
        %v1619 = vadd.f32 0.0, %v1618
        %v1620 = vpop.f32.mrb[0].mxu0
        %v1621 = vpop.f32.mrb[0].mxu0
        %v1622 = vadd.f32 0.0, %v1621
        %v1623 = vpop.f32.mrb[0].mxu0
        %1624 = vmatprep.mubr.bf16.mxu0 %v1405
        %1625 = vmatmul.mubr.bf16.gmra.mrb[0].mxu0 %v1404
        %v1626 = vpop.f32.mrb[0].mxu0
        %v1627 = vadd.f32 0.0, %v1626
        %v1628 = vpop.f32.mrb[0].mxu0
        %v1629 = vpop.f32.mrb[0].mxu0
        %v1630 = vadd.f32 0.0, %v1629
        %v1631 = vpop.f32.mrb[0].mxu0
        %1632 = vmatprep.mubr.bf16.mxu0 %v1407
        %1633 = vmatmul.mubr.bf16.gmra.mrb[0].mxu0 %v1406
        %v1634 = vpop.f32.mrb[0].mxu0
        %v1635 = vadd.f32 0.0, %v1634
        %v1636 = vpop.f32.mrb[0].mxu0
        %v1637 = vpop.f32.mrb[0].mxu0
        %v1638 = vadd.f32 0.0, %v1637
        %v1639 = vpop.f32.mrb[0].mxu0
        %1640 = vmatprep.mubr.bf16.mxu0 %v1409
        %1641 = vmatmul.mubr.bf16.gmra.mrb[0].mxu0 %v1408
        %v1642 = vpop.f32.mrb[0].mxu0
        %v1643 = vadd.f32 0.0, %v1642
        %v1644 = vpop.f32.mrb[0].mxu0
        %v1645 = vpop.f32.mrb[0].mxu0
        %v1646 = vadd.f32 0.0, %v1645
        %v1647 = vpop.f32.mrb[0].mxu0
        %1648 = vmatprep.mubr.bf16.mxu0 %v1411
        %1649 = vmatmul.mubr.bf16.gmra.mrb[0].mxu0 %v1410
        %v1650 = vpop.f32.mrb[0].mxu0
        %v1651 = vadd.f32 0.0, %v1650
        %v1652 = vpop.f32.mrb[0].mxu0
        %v1653 = vpop.f32.mrb[0].mxu0
        %v1654 = vadd.f32 0.0, %v1653
        %v1655 = vpop.f32.mrb[0].mxu0
        %1656 = vmatprep.mubr.bf16.mxu0 %v1413
        %1657 = vmatmul.mubr.bf16.gmra.mrb[0].mxu0 %v1412
        %v1658 = vpop.f32.mrb[0].mxu0
        %v1659 = vadd.f32 0.0, %v1658
        %v1660 = vpop.f32.mrb[0].mxu0
        %v1661 = vpop.f32.mrb[0].mxu0
        %v1662 = vadd.f32 0.0, %v1661
        %v1663 = vpop.f32.mrb[0].mxu0
        %1664 = vmatprep.mubr.bf16.mxu0 %v1415
        %1665 = vmatmul.mubr.bf16.gmra.mrb[0].mxu0 %v1414
        %v1666 = vpop.f32.mrb[0].mxu0
        %v1667 = vadd.f32 0.0, %v1666
        %v1668 = vpop.f32.mrb[0].mxu0
        %v1669 = vpop.f32.mrb[0].mxu0
        %v1670 = vadd.f32 0.0, %v1669
        %v1671 = vpop.f32.mrb[0].mxu0
        %1672 = vmatprep.mubr.bf16.mxu0 %v1417
        %1673 = vmatmul.mubr.bf16.gmra.mrb[0].mxu0 %v1416
        %v1674 = vpop.f32.mrb[0].mxu0
        %v1675 = vadd.f32 0.0, %v1674
        %v1676 = vpop.f32.mrb[0].mxu0
        %v1677 = vpop.f32.mrb[0].mxu0
        %v1678 = vadd.f32 0.0, %v1677
        %v1679 = vpop.f32.mrb[0].mxu0
        %1680 = vmatprep.mubr.bf16.mxu0 %v1419
        %1681 = vmatmul.mubr.bf16.gmra.mrb[0].mxu0 %v1418
        %v1682 = vpop.f32.mrb[0].mxu0
        %v1683 = vadd.f32 0.0, %v1682
        %v1684 = vpop.f32.mrb[0].mxu0
        %v1685 = vpop.f32.mrb[0].mxu0
        %v1686 = vadd.f32 0.0, %v1685
        %v1687 = vpop.f32.mrb[0].mxu0
        %1688 = vmatprep.mubr.bf16.mxu0 %v1421
        %1689 = vmatmul.mubr.bf16.gmra.mrb[0].mxu0 %v1420
        %v1690 = vpop.f32.mrb[0].mxu0
        %v1691 = vadd.f32 0.0, %v1690
        %v1692 = vpop.f32.mrb[0].mxu0
        %v1693 = vpop.f32.mrb[0].mxu0
        %v1694 = vadd.f32 0.0, %v1693
        %v1695 = vpop.f32.mrb[0].mxu0
        %1696 = vmatprep.mubr.bf16.mxu0 %v1423
        %1697 = vmatmul.mubr.bf16.gmra.mrb[0].mxu0 %v1422
        %v1698 = vpop.f32.mrb[0].mxu0
        %v1699 = vadd.f32 0.0, %v1698
        %v1700 = vpop.f32.mrb[0].mxu0
        %v1701 = vpop.f32.mrb[0].mxu0
        %v1702 = vadd.f32 0.0, %v1701
        %v1703 = vpop.f32.mrb[0].mxu0
        %1704 = vmatprep.mubr.bf16.mxu0 %v1425
        %1705 = vmatmul.mubr.bf16.gmra.mrb[0].mxu0 %v1424
        %v1706 = vpop.f32.mrb[0].mxu0
        %v1707 = vadd.f32 0.0, %v1706
        %v1708 = vpop.f32.mrb[0].mxu0
        %v1709 = vpop.f32.mrb[0].mxu0
        %v1710 = vadd.f32 0.0, %v1709
        %v1711 = vpop.f32.mrb[0].mxu0
        %1712 = vmatprep.mubr.bf16.mxu0 %v1427
        %1713 = vmatmul.mubr.bf16.gmra.mrb[0].mxu0 %v1426
        %v1714 = vpop.f32.mrb[0].mxu0
        %v1715 = vadd.f32 0.0, %v1714
        %v1716 = vpop.f32.mrb[0].mxu0
        %v1717 = vpop.f32.mrb[0].mxu0
        %v1718 = vadd.f32 0.0, %v1717
        %v1719 = vpop.f32.mrb[0].mxu0
        %1720 = vmatprep.mubr.bf16.mxu0 %v1429
        %1721 = vmatmul.mubr.bf16.gmra.mrb[0].mxu0 %v1428
        %v1722 = vpop.f32.mrb[0].mxu0
        %v1723 = vadd.f32 0.0, %v1722
        %v1724 = vpop.f32.mrb[0].mxu0
        %v1725 = vpop.f32.mrb[0].mxu0
        %v1726 = vadd.f32 0.0, %v1725
        %v1727 = vpop.f32.mrb[0].mxu0
        %1728 = vmatprep.mubr.bf16.mxu0 %v1431
        %1729 = vmatmul.mubr.bf16.gmra.mrb[0].mxu0 %v1430
        %v1730 = vpop.f32.mrb[0].mxu0
        %v1731 = vadd.f32 0.0, %v1730
        %v1732 = vpop.f32.mrb[0].mxu0
        %v1733 = vpop.f32.mrb[0].mxu0
        %v1734 = vadd.f32 0.0, %v1733
        %v1735 = vpop.f32.mrb[0].mxu0
        %1736 = vdwg.mxu0
        %v1737 = vpack.c.bf16 %v1598, %v1595
        %v1738 = vpack.c.bf16 %v1606, %v1603
        %v1739 = vpack.c.bf16 %v1614, %v1611
        %v1740 = vpack.c.bf16 %v1622, %v1619
        %v1741 = vpack.c.bf16 %v1630, %v1627
        %v1742 = vpack.c.bf16 %v1638, %v1635
        %v1743 = vpack.c.bf16 %v1646, %v1643
        %v1744 = vpack.c.bf16 %v1654, %v1651
        %v1745 = vpack.c.bf16 %v1662, %v1659
        %v1746 = vpack.c.bf16 %v1670, %v1667
        %v1747 = vpack.c.bf16 %v1678, %v1675
        %v1748 = vpack.c.bf16 %v1686, %v1683
        %v1749 = vpack.c.bf16 %v1694, %v1691
        %v1750 = vpack.c.bf16 %v1702, %v1699
        %v1751 = vpack.c.bf16 %v1710, %v1707
        %v1752 = vpack.c.bf16 %v1718, %v1715
        %v1753 = vpack.c.bf16 %v1726, %v1723
        %v1754 = vpack.c.bf16 %v1734, %v1731
        %v1755 = vld [vmem:[%s9] sm:$0xff]
        %v1756 = vld [vmem:[%s9 + $0x8] sm:$0xf]
        %v1757 = vld [vmem:[%s9 + $0xc] sm:$0xff]
        %v1758 = vld [vmem:[%s9 + $0x14] sm:$0xf]
        %v1759 = vld [vmem:[%s9 + $0x18] sm:$0xff]
        %v1760 = vld [vmem:[%s9 + $0x20] sm:$0xf]
        %v1761 = vld [vmem:[%s9 + $0x24] sm:$0xff]
        %v1762 = vld [vmem:[%s9 + $0x2c] sm:$0xf]
        %v1763 = vld [vmem:[%s9 + $0x30] sm:$0xff]
        %v1764 = vld [vmem:[%s9 + $0x38] sm:$0xf]
        %v1765 = vld [vmem:[%s9 + $0x3c] sm:$0xff]
        %v1766 = vld [vmem:[%s9 + $0x44] sm:$0xf]
        %v1767 = vld [vmem:[%s9 + $0x48] sm:$0xff]
        %v1768 = vld [vmem:[%s9 + $0x50] sm:$0xf]
        %v1769 = vld [vmem:[%s9 + $0x54] sm:$0xff]
        %v1770 = vld [vmem:[%s9 + $0x5c] sm:$0xf]
        %v1771 = vld [vmem:[%s10] sm:$0xff]
        %v1772 = vld [vmem:[%s10 + $0x8] sm:$0xff]
        %v1773 = vld [vmem:[%s10 + $0x10] sm:$0xff]
        %v1774 = vld [vmem:[%s10 + $0x18] sm:$0xff]
        %v1775 = vld [vmem:[%s10 + $0x20] sm:$0xff]
        %v1776 = vld [vmem:[%s10 + $0x28] sm:$0xff]
        %v1777 = vld [vmem:[%s10 + $0x30] sm:$0xff]
        %v1778 = vld [vmem:[%s10 + $0x38] sm:$0xff]
        %1780 = vset.pattern.permute.xlu0 0
        %1781 = vperm.xlu0 %1780, %v1771
        %v1782 = vpop.permute.xlu0 %1781
        %1785 = vset.pattern.permute.xlu0 0
        %1786 = vperm.xlu0 %1785, %v1772
        %v1787 = vpop.permute.xlu0 %1786
        %1790 = vset.pattern.permute.xlu0 0
        %1791 = vperm.xlu0 %1790, %v1773
        %v1792 = vpop.permute.xlu0 %1791
        %1795 = vset.pattern.permute.xlu0 0
        %1796 = vperm.xlu0 %1795, %v1774
        %v1797 = vpop.permute.xlu0 %1796
        %1800 = vset.pattern.permute.xlu0 0
        %1801 = vperm.xlu0 %1800, %v1775
        %v1802 = vpop.permute.xlu0 %1801
        %1805 = vset.pattern.permute.xlu0 0
        %1806 = vperm.xlu0 %1805, %v1776
        %v1807 = vpop.permute.xlu0 %1806
        %1810 = vset.pattern.permute.xlu0 0
        %1811 = vperm.xlu0 %1810, %v1777
        %v1812 = vpop.permute.xlu0 %1811
        %1815 = vset.pattern.permute.xlu0 0
        %1816 = vperm.xlu0 %1815, %v1778
        %v1817 = vpop.permute.xlu0 %1816
        %v1835 = vunpack.c.l.b16 %v1755
        %v1836 = vunpack.c.h.b16 %v1755
        %v1837 = vunpack.c.l.b16 %v1756
        %v1838 = vunpack.c.l.b16 %v1757
        %v1839 = vunpack.c.h.b16 %v1757
        %v1840 = vunpack.c.l.b16 %v1758
        %v1841 = vunpack.c.l.b16 %v1759
        %v1842 = vunpack.c.h.b16 %v1759
        %v1843 = vunpack.c.l.b16 %v1760
        %v1844 = vunpack.c.l.b16 %v1761
        %v1845 = vunpack.c.h.b16 %v1761
        %v1846 = vunpack.c.l.b16 %v1762
        %v1847 = vunpack.c.l.b16 %v1763
        %v1848 = vunpack.c.h.b16 %v1763
        %v1849 = vunpack.c.l.b16 %v1764
        %v1850 = vunpack.c.l.b16 %v1765
        %v1851 = vunpack.c.h.b16 %v1765
        %v1852 = vunpack.c.l.b16 %v1766
        %v1853 = vunpack.c.l.b16 %v1767
        %v1854 = vunpack.c.h.b16 %v1767
        %v1855 = vunpack.c.l.b16 %v1768
        %v1856 = vunpack.c.l.b16 %v1769
        %v1857 = vunpack.c.h.b16 %v1769
        %v1858 = vunpack.c.l.b16 %v1770
        %v1859 = vpack.c.b16 %v1838, %v1835
        %v1860 = vpack.c.b16 %v1839, %v1836
        %v1861 = vpack.c.b16 %v1840, %v1837
        %v1862 = vpack.c.b16 %v1844, %v1841
        %v1863 = vpack.c.b16 %v1845, %v1842
        %v1864 = vpack.c.b16 %v1846, %v1843
        %v1865 = vpack.c.b16 %v1850, %v1847
        %v1866 = vpack.c.b16 %v1851, %v1848
        %v1867 = vpack.c.b16 %v1852, %v1849
        %v1868 = vpack.c.b16 %v1856, %v1853
        %v1869 = vpack.c.b16 %v1857, %v1854
        %v1870 = vpack.c.b16 %v1858, %v1855
        %vm1879 = vcmask 261120
        %v1881 = vsel %vm1879, %v1861, 0
        %v1884 = vsel %vm1879, %v1864, 0
        %v1887 = vsel %vm1879, %v1867, 0
        %v1890 = vsel %vm1879, %v1870, 0
        %1892 = vmatprep.subr.bf16.mxu0 0
        %1893 = vmatpush1.bf16.msra.mxu0 %v1737
        %1894 = vmatprep.subr.bf16.mxu0 0
        %1895 = vmatpush1.bf16.msra.mxu0 %v1738
        %1896 = vmatprep.subr.bf16.mxu0 0
        %1897 = vmatpush1.bf16.msra.mxu0 %v1739
        %1898 = vmatprep.subr.bf16.mxu0 0
        %1899 = vmatpush1.bf16.msra.mxu0 %v1740
        %1900 = vmatprep.subr.bf16.mxu0 0
        %1901 = vmatpush1.bf16.msra.mxu0 %v1741
        %1902 = vmatprep.subr.bf16.mxu0 0
        %1903 = vmatpush1.bf16.msra.mxu0 %v1742
        %1904 = vmatprep.subr.bf16.mxu0 0
        %1905 = vmatpush1.bf16.msra.mxu0 %v1743
        %1906 = vmatprep.subr.bf16.mxu0 0
        %1907 = vmatpush1.bf16.msra.mxu0 %v1744
        %1908 = vmatprep.subr.bf16.mxu0 0
        %1909 = vmatpush1.bf16.msra.mxu0 %v1745
        %1910 = vmatprep.subr.bf16.mxu0 0
        %1911 = vmatpush1.bf16.msra.mxu0 %v1746
        %1912 = vmatprep.subr.bf16.mxu0 0
        %1913 = vmatpush1.bf16.msra.mxu0 %v1747
        %1914 = vmatprep.subr.bf16.mxu0 0
        %1915 = vmatpush1.bf16.msra.mxu0 %v1748
        %1916 = vmatprep.subr.bf16.mxu0 0
        %1917 = vmatpush1.bf16.msra.mxu0 %v1749
        %1918 = vmatprep.subr.bf16.mxu0 0
        %1919 = vmatpush1.bf16.msra.mxu0 %v1750
        %1920 = vmatprep.subr.bf16.mxu0 0
        %1921 = vmatpush1.bf16.msra.mxu0 %v1751
        %1922 = vmatprep.subr.bf16.mxu0 0
        %1923 = vmatpush1.bf16.msra.mxu0 %v1752
        %1924 = vmatprep.mubr.bf16.mxu0 %v1860
        %1925 = vmatmul.mubr.bf16.gmra.mrb[0].mxu0 %v1859
        %v1926 = vpop.f32.mrb[0].mxu0
        %v1927 = vadd.f32 %v1782, %v1926
        %v1928 = vpop.f32.mrb[0].mxu0
        %v1929 = vpop.f32.mrb[0].mxu0
        %v1930 = vadd.f32 %v1787, %v1929
        %v1931 = vpop.f32.mrb[0].mxu0
        %1932 = vmatprep.mubr.bf16.mxu0 %v1863
        %1933 = vmatmul.mubr.bf16.gmra.mrb[0].mxu0 %v1862
        %v1934 = vpop.f32.mrb[0].mxu0
        %v1935 = vadd.f32 %v1792, %v1934
        %v1936 = vpop.f32.mrb[0].mxu0
        %v1937 = vpop.f32.mrb[0].mxu0
        %v1938 = vadd.f32 %v1797, %v1937
        %v1939 = vpop.f32.mrb[0].mxu0
        %1940 = vmatprep.mubr.bf16.mxu0 %v1866
        %1941 = vmatmul.mubr.bf16.gmra.mrb[0].mxu0 %v1865
        %v1942 = vpop.f32.mrb[0].mxu0
        %v1943 = vadd.f32 %v1802, %v1942
        %v1944 = vpop.f32.mrb[0].mxu0
        %v1945 = vpop.f32.mrb[0].mxu0
        %v1946 = vadd.f32 %v1807, %v1945
        %v1947 = vpop.f32.mrb[0].mxu0
        %1948 = vmatprep.mubr.bf16.mxu0 %v1869
        %1949 = vmatmul.mubr.bf16.gmra.mrb[0].mxu0 %v1868
        %v1950 = vpop.f32.mrb[0].mxu0
        %v1951 = vadd.f32 %v1812, %v1950
        %v1952 = vpop.f32.mrb[0].mxu0
        %v1953 = vpop.f32.mrb[0].mxu0
        %v1954 = vadd.f32 %v1817, %v1953
        %v1955 = vpop.f32.mrb[0].mxu0
        %1956 = vdwg.mxu0
        %1957 = vmatprep.subr.bf16.mxu0 0
        %1958 = vmatpush1.bf16.msra.mxu0 %v1753
        %1959 = vmatprep.subr.bf16.mxu0 0
        %1960 = vmatpush1.bf16.msra.mxu0 %v1754
        %1961 = vmatprep.subr.bf16.mxu0 0
        %1962 = vmatpush1.bf16.msra.mxu0 0
        %1963 = vmatprep.subr.bf16.mxu0 0
        %1964 = vmatpush1.bf16.msra.mxu0 0
        %1965 = vmatprep.subr.bf16.mxu0 0
        %1966 = vmatpush1.bf16.msra.mxu0 0
        %1967 = vmatprep.subr.bf16.mxu0 0
        %1968 = vmatpush1.bf16.msra.mxu0 0
        %1969 = vmatprep.subr.bf16.mxu0 0
        %1970 = vmatpush1.bf16.msra.mxu0 0
        %1971 = vmatprep.subr.bf16.mxu0 0
        %1972 = vmatpush1.bf16.msra.mxu0 0
        %1973 = vmatprep.subr.bf16.mxu0 0
        %1974 = vmatpush1.bf16.msra.mxu0 0
        %1975 = vmatprep.subr.bf16.mxu0 0
        %1976 = vmatpush1.bf16.msra.mxu0 0
        %1977 = vmatprep.subr.bf16.mxu0 0
        %1978 = vmatpush1.bf16.msra.mxu0 0
        %1979 = vmatprep.subr.bf16.mxu0 0
        %1980 = vmatpush1.bf16.msra.mxu0 0
        %1981 = vmatprep.subr.bf16.mxu0 0
        %1982 = vmatpush1.bf16.msra.mxu0 0
        %1983 = vmatprep.subr.bf16.mxu0 0
        %1984 = vmatpush1.bf16.msra.mxu0 0
        %1985 = vmatprep.subr.bf16.mxu0 0
        %1986 = vmatpush1.bf16.msra.mxu0 0
        %1987 = vmatprep.subr.bf16.mxu0 0
        %1988 = vmatpush1.bf16.msra.mxu0 0
        %1989 = vmatprep.mubr.bf16.mxu0 0
        %1990 = vmatmul.mubr.bf16.gmra.mrb[0].mxu0 %v1881
        %v1991 = vpop.f32.mrb[0].mxu0
        %v1992 = vadd.f32 %v1927, %v1991
        %v1993 = vpop.f32.mrb[0].mxu0
        %v1994 = vpop.f32.mrb[0].mxu0
        %v1995 = vadd.f32 %v1930, %v1994
        %v1996 = vpop.f32.mrb[0].mxu0
        %1997 = vmatprep.mubr.bf16.mxu0 0
        %1998 = vmatmul.mubr.bf16.gmra.mrb[0].mxu0 %v1884
        %v1999 = vpop.f32.mrb[0].mxu0
        %v2000 = vadd.f32 %v1935, %v1999
        %v2001 = vpop.f32.mrb[0].mxu0
        %v2002 = vpop.f32.mrb[0].mxu0
        %v2003 = vadd.f32 %v1938, %v2002
        %v2004 = vpop.f32.mrb[0].mxu0
        %2005 = vmatprep.mubr.bf16.mxu0 0
        %2006 = vmatmul.mubr.bf16.gmra.mrb[0].mxu0 %v1887
        %v2007 = vpop.f32.mrb[0].mxu0
        %v2008 = vadd.f32 %v1943, %v2007
        %v2009 = vpop.f32.mrb[0].mxu0
        %v2010 = vpop.f32.mrb[0].mxu0
        %v2011 = vadd.f32 %v1946, %v2010
        %v2012 = vpop.f32.mrb[0].mxu0
        %2013 = vmatprep.mubr.bf16.mxu0 0
        %2014 = vmatmul.mubr.bf16.gmra.mrb[0].mxu0 %v1890
        %v2015 = vpop.f32.mrb[0].mxu0
        %v2016 = vadd.f32 %v1951, %v2015
        %v2017 = vpop.f32.mrb[0].mxu0
        %v2018 = vpop.f32.mrb[0].mxu0
        %v2019 = vadd.f32 %v1954, %v2018
        %v2020 = vpop.f32.mrb[0].mxu0
        %2021 = vdwg.mxu0
        %v2022 = vmax.f32 %v1992, 0.0
        %v2023 = vmax.f32 %v1995, 0.0
        %v2024 = vmax.f32 %v2000, 0.0
        %v2025 = vmax.f32 %v2003, 0.0
        %v2026 = vmax.f32 %v2008, 0.0
        %v2027 = vmax.f32 %v2011, 0.0
        %v2028 = vmax.f32 %v2016, 0.0
        %v2029 = vmax.f32 %v2019, 0.0
        %2038 = vrot.lane.b32.xlu0 %v2022, 9
        %v2039 = vpop.permute.xlu0 %2038
        %2040 = vrot.lane.b32.xlu0 %v2023, 9
        %v2041 = vpop.permute.xlu0 %2040
        %2042 = vrot.lane.b32.xlu0 %v2024, 9
        %v2043 = vpop.permute.xlu0 %2042
        %2044 = vrot.lane.b32.xlu0 %v2025, 9
        %v2045 = vpop.permute.xlu0 %2044
        %2046 = vrot.lane.b32.xlu0 %v2026, 9
        %v2047 = vpop.permute.xlu0 %2046
        %2048 = vrot.lane.b32.xlu0 %v2027, 9
        %v2049 = vpop.permute.xlu0 %2048
        %2050 = vrot.lane.b32.xlu0 %v2028, 9
        %v2051 = vpop.permute.xlu0 %2050
        %2052 = vrot.lane.b32.xlu0 %v2029, 9
        %v2053 = vpop.permute.xlu0 %2052
        %vm2062 = vcmask 72704
        %v2063 = vsel %vm2062, 0.0, %v2039
        %v2064 = vsel %vm2062, 0.0, %v2041
        %v2065 = vsel %vm2062, 0.0, %v2043
        %v2066 = vsel %vm2062, 0.0, %v2045
        %v2067 = vsel %vm2062, 0.0, %v2047
        %v2068 = vsel %vm2062, 0.0, %v2049
        %v2069 = vsel %vm2062, 0.0, %v2051
        %v2070 = vsel %vm2062, 0.0, %v2053
        %v2071 = vld [vmem:[#allocation2] sm:$0x1]
        %v2073 = vlaneseq
        %v2074 = vshrl.u32 %v2073, 7
        %v2075 = vsub.s32 0, %v2074
        %v2076 = vrot.slane %v2071, %v2075
        %v2078 = vmul.f32 %v2063, %v2076
        %v2079 = vmul.f32 %v2064, %v2076
        %v2080 = vmul.f32 %v2065, %v2076
        %v2081 = vmul.f32 %v2066, %v2076
        %v2082 = vmul.f32 %v2067, %v2076
        %v2083 = vmul.f32 %v2068, %v2076
        %v2084 = vmul.f32 %v2069, %v2076
        %v2085 = vmul.f32 %v2070, %v2076
        %2086 = vrot.lane.b32.xlu0 %v2022, 8
        %v2087 = vpop.permute.xlu0 %2086
        %2088 = vrot.lane.b32.xlu0 %v2023, 8
        %v2089 = vpop.permute.xlu0 %2088
        %2090 = vrot.lane.b32.xlu0 %v2024, 8
        %v2091 = vpop.permute.xlu0 %2090
        %2092 = vrot.lane.b32.xlu0 %v2025, 8
        %v2093 = vpop.permute.xlu0 %2092
        %2094 = vrot.lane.b32.xlu0 %v2026, 8
        %v2095 = vpop.permute.xlu0 %2094
        %2096 = vrot.lane.b32.xlu0 %v2027, 8
        %v2097 = vpop.permute.xlu0 %2096
        %2098 = vrot.lane.b32.xlu0 %v2028, 8
        %v2099 = vpop.permute.xlu0 %2098
        %2100 = vrot.lane.b32.xlu0 %v2029, 8
        %v2101 = vpop.permute.xlu0 %2100
        %vm2110 = vcmask 64512
        %v2111 = vsel %vm2110, 0.0, %v2087
        %v2112 = vsel %vm2110, 0.0, %v2089
        %v2113 = vsel %vm2110, 0.0, %v2091
        %v2114 = vsel %vm2110, 0.0, %v2093
        %v2115 = vsel %vm2110, 0.0, %v2095
        %v2116 = vsel %vm2110, 0.0, %v2097
        %v2117 = vsel %vm2110, 0.0, %v2099
        %v2118 = vsel %vm2110, 0.0, %v2101
        %s2119 = scalar_lea.vmem [#allocation2], 1
        %v2120 = vld [vmem:[%s2119] sm:$0x1]
        %v2122 = vlaneseq
        %v2123 = vshrl.u32 %v2122, 7
        %v2124 = vsub.s32 0, %v2123
        %v2125 = vrot.slane %v2120, %v2124
        %v2127 = vmul.f32 %v2111, %v2125
        %v2128 = vmul.f32 %v2112, %v2125
        %v2129 = vmul.f32 %v2113, %v2125
        %v2130 = vmul.f32 %v2114, %v2125
        %v2131 = vmul.f32 %v2115, %v2125
        %v2132 = vmul.f32 %v2116, %v2125
        %v2133 = vmul.f32 %v2117, %v2125
        %v2134 = vmul.f32 %v2118, %v2125
        %2135 = vrot.lane.b32.xlu0 %v2022, 7
        %v2136 = vpop.permute.xlu0 %2135
        %2137 = vrot.lane.b32.xlu0 %v2023, 7
        %v2138 = vpop.permute.xlu0 %2137
        %2139 = vrot.lane.b32.xlu0 %v2024, 7
        %v2140 = vpop.permute.xlu0 %2139
        %2141 = vrot.lane.b32.xlu0 %v2025, 7
        %v2142 = vpop.permute.xlu0 %2141
        %2143 = vrot.lane.b32.xlu0 %v2026, 7
        %v2144 = vpop.permute.xlu0 %2143
        %2145 = vrot.lane.b32.xlu0 %v2027, 7
        %v2146 = vpop.permute.xlu0 %2145
        %2147 = vrot.lane.b32.xlu0 %v2028, 7
        %v2148 = vpop.permute.xlu0 %2147
        %2149 = vrot.lane.b32.xlu0 %v2029, 7
        %v2150 = vpop.permute.xlu0 %2149
        %vm2159 = vcmask 56320
        %v2160 = vsel %vm2159, 0.0, %v2136
        %v2161 = vsel %vm2159, 0.0, %v2138
        %v2162 = vsel %vm2159, 0.0, %v2140
        %v2163 = vsel %vm2159, 0.0, %v2142
        %v2164 = vsel %vm2159, 0.0, %v2144
        %v2165 = vsel %vm2159, 0.0, %v2146
        %v2166 = vsel %vm2159, 0.0, %v2148
        %v2167 = vsel %vm2159, 0.0, %v2150
        %s2168 = scalar_lea.vmem [#allocation2], 2
        %v2169 = vld [vmem:[%s2168] sm:$0x1]
        %v2171 = vlaneseq
        %v2172 = vshrl.u32 %v2171, 7
        %v2173 = vsub.s32 0, %v2172
        %v2174 = vrot.slane %v2169, %v2173
        %v2176 = vmul.f32 %v2160, %v2174
        %v2177 = vmul.f32 %v2161, %v2174
        %v2178 = vmul.f32 %v2162, %v2174
        %v2179 = vmul.f32 %v2163, %v2174
        %v2180 = vmul.f32 %v2164, %v2174
        %v2181 = vmul.f32 %v2165, %v2174
        %v2182 = vmul.f32 %v2166, %v2174
        %v2183 = vmul.f32 %v2167, %v2174
        %2184 = vrot.lane.b32.xlu0 %v2022, 1
        %v2185 = vpop.permute.xlu0 %2184
        %2186 = vrot.lane.b32.xlu0 %v2023, 1
        %v2187 = vpop.permute.xlu0 %2186
        %2188 = vrot.lane.b32.xlu0 %v2024, 1
        %v2189 = vpop.permute.xlu0 %2188
        %2190 = vrot.lane.b32.xlu0 %v2025, 1
        %v2191 = vpop.permute.xlu0 %2190
        %2192 = vrot.lane.b32.xlu0 %v2026, 1
        %v2193 = vpop.permute.xlu0 %2192
        %2194 = vrot.lane.b32.xlu0 %v2027, 1
        %v2195 = vpop.permute.xlu0 %2194
        %2196 = vrot.lane.b32.xlu0 %v2028, 1
        %v2197 = vpop.permute.xlu0 %2196
        %2198 = vrot.lane.b32.xlu0 %v2029, 1
        %v2199 = vpop.permute.xlu0 %2198
        %v2208 = vsel %vm806, 0.0, %v2185
        %v2209 = vsel %vm806, 0.0, %v2187
        %v2210 = vsel %vm806, 0.0, %v2189
        %v2211 = vsel %vm806, 0.0, %v2191
        %v2212 = vsel %vm806, 0.0, %v2193
        %v2213 = vsel %vm806, 0.0, %v2195
        %v2214 = vsel %vm806, 0.0, %v2197
        %v2215 = vsel %vm806, 0.0, %v2199
        %s2216 = scalar_lea.vmem [#allocation2], 3
        %v2217 = vld [vmem:[%s2216] sm:$0x1]
        %v2219 = vlaneseq
        %v2220 = vshrl.u32 %v2219, 7
        %v2221 = vsub.s32 0, %v2220
        %v2222 = vrot.slane %v2217, %v2221
        %v2224 = vmul.f32 %v2208, %v2222
        %v2225 = vmul.f32 %v2209, %v2222
        %v2226 = vmul.f32 %v2210, %v2222
        %v2227 = vmul.f32 %v2211, %v2222
        %v2228 = vmul.f32 %v2212, %v2222
        %v2229 = vmul.f32 %v2213, %v2222
        %v2230 = vmul.f32 %v2214, %v2222
        %v2231 = vmul.f32 %v2215, %v2222
        %s2232 = scalar_lea.vmem [#allocation2], 4
        %v2233 = vld [vmem:[%s2232] sm:$0x1]
        %v2235 = vlaneseq
        %v2236 = vshrl.u32 %v2235, 7
        %v2237 = vsub.s32 0, %v2236
        %v2238 = vrot.slane %v2233, %v2237
        %v2240 = vmul.f32 %v2022, %v2238
        %v2241 = vmul.f32 %v2023, %v2238
        %v2242 = vmul.f32 %v2024, %v2238
        %v2243 = vmul.f32 %v2025, %v2238
        %v2244 = vmul.f32 %v2026, %v2238
        %v2245 = vmul.f32 %v2027, %v2238
        %v2246 = vmul.f32 %v2028, %v2238
        %v2247 = vmul.f32 %v2029, %v2238
        %2248 = vrot.lane.b32.xlu0 %v2022, 127
        %v2249 = vpop.permute.xlu0 %2248
        %2250 = vrot.lane.b32.xlu0 %v2023, 127
        %v2251 = vpop.permute.xlu0 %2250
        %2252 = vrot.lane.b32.xlu0 %v2024, 127
        %v2253 = vpop.permute.xlu0 %2252
        %2254 = vrot.lane.b32.xlu0 %v2025, 127
        %v2255 = vpop.permute.xlu0 %2254
        %2256 = vrot.lane.b32.xlu0 %v2026, 127
        %v2257 = vpop.permute.xlu0 %2256
        %2258 = vrot.lane.b32.xlu0 %v2027, 127
        %v2259 = vpop.permute.xlu0 %2258
        %2260 = vrot.lane.b32.xlu0 %v2028, 127
        %v2261 = vpop.permute.xlu0 %2260
        %2262 = vrot.lane.b32.xlu0 %v2029, 127
        %v2263 = vpop.permute.xlu0 %2262
        %vm2272 = vcmask 515072
        %v2273 = vsel %vm2272, %v2249, 0.0
        %v2274 = vsel %vm2272, %v2251, 0.0
        %v2275 = vsel %vm2272, %v2253, 0.0
        %v2276 = vsel %vm2272, %v2255, 0.0
        %v2277 = vsel %vm2272, %v2257, 0.0
        %v2278 = vsel %vm2272, %v2259, 0.0
        %v2279 = vsel %vm2272, %v2261, 0.0
        %v2280 = vsel %vm2272, %v2263, 0.0
        %s2281 = scalar_lea.vmem [#allocation2], 5
        %v2282 = vld [vmem:[%s2281] sm:$0x1]
        %v2284 = vlaneseq
        %v2285 = vshrl.u32 %v2284, 7
        %v2286 = vsub.s32 0, %v2285
        %v2287 = vrot.slane %v2282, %v2286
        %v2289 = vmul.f32 %v2273, %v2287
        %v2290 = vmul.f32 %v2274, %v2287
        %v2291 = vmul.f32 %v2275, %v2287
        %v2292 = vmul.f32 %v2276, %v2287
        %v2293 = vmul.f32 %v2277, %v2287
        %v2294 = vmul.f32 %v2278, %v2287
        %v2295 = vmul.f32 %v2279, %v2287
        %v2296 = vmul.f32 %v2280, %v2287
        %2297 = vrot.lane.b32.xlu0 %v2022, 121
        %v2298 = vpop.permute.xlu0 %2297
        %2299 = vrot.lane.b32.xlu0 %v2023, 121
        %v2300 = vpop.permute.xlu0 %2299
        %2301 = vrot.lane.b32.xlu0 %v2024, 121
        %v2302 = vpop.permute.xlu0 %2301
        %2303 = vrot.lane.b32.xlu0 %v2025, 121
        %v2304 = vpop.permute.xlu0 %2303
        %2305 = vrot.lane.b32.xlu0 %v2026, 121
        %v2306 = vpop.permute.xlu0 %2305
        %2307 = vrot.lane.b32.xlu0 %v2027, 121
        %v2308 = vpop.permute.xlu0 %2307
        %2309 = vrot.lane.b32.xlu0 %v2028, 121
        %v2310 = vpop.permute.xlu0 %2309
        %2311 = vrot.lane.b32.xlu0 %v2029, 121
        %v2312 = vpop.permute.xlu0 %2311
        %vm2321 = vcmask 465920
        %v2322 = vsel %vm2321, %v2298, 0.0
        %v2323 = vsel %vm2321, %v2300, 0.0
        %v2324 = vsel %vm2321, %v2302, 0.0
        %v2325 = vsel %vm2321, %v2304, 0.0
        %v2326 = vsel %vm2321, %v2306, 0.0
        %v2327 = vsel %vm2321, %v2308, 0.0
        %v2328 = vsel %vm2321, %v2310, 0.0
        %v2329 = vsel %vm2321, %v2312, 0.0
        %s2330 = scalar_lea.vmem [#allocation2], 6
        %v2331 = vld [vmem:[%s2330] sm:$0x1]
        %v2333 = vlaneseq
        %v2334 = vshrl.u32 %v2333, 7
        %v2335 = vsub.s32 0, %v2334
        %v2336 = vrot.slane %v2331, %v2335
        %v2338 = vmul.f32 %v2322, %v2336
        %v2339 = vmul.f32 %v2323, %v2336
        %v2340 = vmul.f32 %v2324, %v2336
        %v2341 = vmul.f32 %v2325, %v2336
        %v2342 = vmul.f32 %v2326, %v2336
        %v2343 = vmul.f32 %v2327, %v2336
        %v2344 = vmul.f32 %v2328, %v2336
        %v2345 = vmul.f32 %v2329, %v2336
        %2346 = vrot.lane.b32.xlu0 %v2022, 120
        %v2347 = vpop.permute.xlu0 %2346
        %2348 = vrot.lane.b32.xlu0 %v2023, 120
        %v2349 = vpop.permute.xlu0 %2348
        %2350 = vrot.lane.b32.xlu0 %v2024, 120
        %v2351 = vpop.permute.xlu0 %2350
        %2352 = vrot.lane.b32.xlu0 %v2025, 120
        %v2353 = vpop.permute.xlu0 %2352
        %2354 = vrot.lane.b32.xlu0 %v2026, 120
        %v2355 = vpop.permute.xlu0 %2354
        %2356 = vrot.lane.b32.xlu0 %v2027, 120
        %v2357 = vpop.permute.xlu0 %2356
        %2358 = vrot.lane.b32.xlu0 %v2028, 120
        %v2359 = vpop.permute.xlu0 %2358
        %2360 = vrot.lane.b32.xlu0 %v2029, 120
        %v2361 = vpop.permute.xlu0 %2360
        %vm2370 = vcmask 457728
        %v2371 = vsel %vm2370, %v2347, 0.0
        %v2372 = vsel %vm2370, %v2349, 0.0
        %v2373 = vsel %vm2370, %v2351, 0.0
        %v2374 = vsel %vm2370, %v2353, 0.0
        %v2375 = vsel %vm2370, %v2355, 0.0
        %v2376 = vsel %vm2370, %v2357, 0.0
        %v2377 = vsel %vm2370, %v2359, 0.0
        %v2378 = vsel %vm2370, %v2361, 0.0
        %s2379 = scalar_lea.vmem [#allocation2], 7
        %v2380 = vld [vmem:[%s2379] sm:$0x1]
        %v2382 = vlaneseq
        %v2383 = vshrl.u32 %v2382, 7
        %v2384 = vsub.s32 0, %v2383
        %v2385 = vrot.slane %v2380, %v2384
        %v2387 = vmul.f32 %v2371, %v2385
        %v2388 = vmul.f32 %v2372, %v2385
        %v2389 = vmul.f32 %v2373, %v2385
        %v2390 = vmul.f32 %v2374, %v2385
        %v2391 = vmul.f32 %v2375, %v2385
        %v2392 = vmul.f32 %v2376, %v2385
        %v2393 = vmul.f32 %v2377, %v2385
        %v2394 = vmul.f32 %v2378, %v2385
        %2395 = vrot.lane.b32.xlu0 %v2022, 119
        %v2396 = vpop.permute.xlu0 %2395
        %2397 = vrot.lane.b32.xlu0 %v2023, 119
        %v2398 = vpop.permute.xlu0 %2397
        %2399 = vrot.lane.b32.xlu0 %v2024, 119
        %v2400 = vpop.permute.xlu0 %2399
        %2401 = vrot.lane.b32.xlu0 %v2025, 119
        %v2402 = vpop.permute.xlu0 %2401
        %2403 = vrot.lane.b32.xlu0 %v2026, 119
        %v2404 = vpop.permute.xlu0 %2403
        %2405 = vrot.lane.b32.xlu0 %v2027, 119
        %v2406 = vpop.permute.xlu0 %2405
        %2407 = vrot.lane.b32.xlu0 %v2028, 119
        %v2408 = vpop.permute.xlu0 %2407
        %2409 = vrot.lane.b32.xlu0 %v2029, 119
        %v2410 = vpop.permute.xlu0 %2409
        %vm2419 = vcmask 449536
        %v2420 = vsel %vm2419, %v2396, 0.0
        %v2421 = vsel %vm2419, %v2398, 0.0
        %v2422 = vsel %vm2419, %v2400, 0.0
        %v2423 = vsel %vm2419, %v2402, 0.0
        %v2424 = vsel %vm2419, %v2404, 0.0
        %v2425 = vsel %vm2419, %v2406, 0.0
        %v2426 = vsel %vm2419, %v2408, 0.0
        %v2427 = vsel %vm2419, %v2410, 0.0
        %s2428 = scalar_lea.vmem [#allocation2], 8
        %v2429 = vld [vmem:[%s2428] sm:$0x1]
        %v2431 = vlaneseq
        %v2432 = vshrl.u32 %v2431, 7
        %v2433 = vsub.s32 0, %v2432
        %v2434 = vrot.slane %v2429, %v2433
        %v2436 = vmul.f32 %v2420, %v2434
        %v2437 = vmul.f32 %v2421, %v2434
        %v2438 = vmul.f32 %v2422, %v2434
        %v2439 = vmul.f32 %v2423, %v2434
        %v2440 = vmul.f32 %v2424, %v2434
        %v2441 = vmul.f32 %v2425, %v2434
        %v2442 = vmul.f32 %v2426, %v2434
        %v2443 = vmul.f32 %v2427, %v2434
        %v2444 = vpack.c.bf16 %v2079, %v2078
        %v2445 = vpack.c.bf16 %v2081, %v2080
        %v2446 = vpack.c.bf16 %v2083, %v2082
        %v2447 = vpack.c.bf16 %v2085, %v2084
        %v2448 = vpack.c.bf16 %v2128, %v2127
        %v2449 = vpack.c.bf16 %v2130, %v2129
        %v2450 = vpack.c.bf16 %v2132, %v2131
        %v2451 = vpack.c.bf16 %v2134, %v2133
        %v2452 = vpack.c.bf16 %v2177, %v2176
        %v2453 = vpack.c.bf16 %v2179, %v2178
        %v2454 = vpack.c.bf16 %v2181, %v2180
        %v2455 = vpack.c.bf16 %v2183, %v2182
        %v2456 = vpack.c.bf16 %v2225, %v2224
        %v2457 = vpack.c.bf16 %v2227, %v2226
        %v2458 = vpack.c.bf16 %v2229, %v2228
        %v2459 = vpack.c.bf16 %v2231, %v2230
        %v2460 = vpack.c.bf16 %v2241, %v2240
        %v2461 = vpack.c.bf16 %v2243, %v2242
        %v2462 = vpack.c.bf16 %v2245, %v2244
        %v2463 = vpack.c.bf16 %v2247, %v2246
        %v2464 = vpack.c.bf16 %v2290, %v2289
        %v2465 = vpack.c.bf16 %v2292, %v2291
        %v2466 = vpack.c.bf16 %v2294, %v2293
        %v2467 = vpack.c.bf16 %v2296, %v2295
        %v2468 = vpack.c.bf16 %v2339, %v2338
        %v2469 = vpack.c.bf16 %v2341, %v2340
        %v2470 = vpack.c.bf16 %v2343, %v2342
        %v2471 = vpack.c.bf16 %v2345, %v2344
        %v2472 = vpack.c.bf16 %v2388, %v2387
        %v2473 = vpack.c.bf16 %v2390, %v2389
        %v2474 = vpack.c.bf16 %v2392, %v2391
        %v2475 = vpack.c.bf16 %v2394, %v2393
        %v2476 = vpack.c.bf16 %v2437, %v2436
        %v2477 = vpack.c.bf16 %v2439, %v2438
        %v2478 = vpack.c.bf16 %v2441, %v2440
        %v2479 = vpack.c.bf16 %v2443, %v2442
        %v2480 = vld [vmem:[%s5] sm:$0xf]
        %v2481 = vld [vmem:[%s5 + $0x4] sm:$0xf]
        %v2482 = vld [vmem:[%s5 + $0x8] sm:$0xf]
        %v2483 = vld [vmem:[%s5 + $0xc] sm:$0xf]
        %v2484 = vld [vmem:[%s5 + $0x10] sm:$0xf]
        %v2485 = vld [vmem:[%s5 + $0x14] sm:$0xf]
        %v2486 = vld [vmem:[%s5 + $0x18] sm:$0xf]
        %v2487 = vld [vmem:[%s5 + $0x1c] sm:$0xf]
        %v2496 = vunpack.c.l.b16 %v2480
        %v2497 = vunpack.c.l.b16 %v2481
        %v2498 = vunpack.c.l.b16 %v2482
        %v2499 = vunpack.c.l.b16 %v2483
        %v2500 = vunpack.c.l.b16 %v2484
        %v2501 = vunpack.c.l.b16 %v2485
        %v2502 = vunpack.c.l.b16 %v2486
        %v2503 = vunpack.c.l.b16 %v2487
        %v2504 = vpack.c.b16 %v2497, %v2496
        %v2505 = vpack.c.b16 %v2499, %v2498
        %v2506 = vpack.c.b16 %v2501, %v2500
        %v2507 = vpack.c.b16 %v2503, %v2502
        %vm2512 = vcmask 523264
        %v2514 = vsel %vm2512, %v2444, 0
        %v2517 = vsel %vm2512, %v2445, 0
        %v2520 = vsel %vm2512, %v2446, 0
        %v2523 = vsel %vm2512, %v2447, 0
        %v2526 = vsel %vm2512, %v2448, 0
        %v2529 = vsel %vm2512, %v2449, 0
        %v2532 = vsel %vm2512, %v2450, 0
        %v2535 = vsel %vm2512, %v2451, 0
        %v2538 = vsel %vm2512, %v2452, 0
        %v2541 = vsel %vm2512, %v2453, 0
        %v2544 = vsel %vm2512, %v2454, 0
        %v2547 = vsel %vm2512, %v2455, 0
        %v2550 = vsel %vm2512, %v2456, 0
        %v2553 = vsel %vm2512, %v2457, 0
        %v2556 = vsel %vm2512, %v2458, 0
        %v2559 = vsel %vm2512, %v2459, 0
        %v2562 = vsel %vm2512, %v2460, 0
        %v2565 = vsel %vm2512, %v2461, 0
        %v2568 = vsel %vm2512, %v2462, 0
        %v2571 = vsel %vm2512, %v2463, 0
        %v2574 = vsel %vm2512, %v2464, 0
        %v2577 = vsel %vm2512, %v2465, 0
        %v2580 = vsel %vm2512, %v2466, 0
        %v2583 = vsel %vm2512, %v2467, 0
        %v2586 = vsel %vm2512, %v2468, 0
        %v2589 = vsel %vm2512, %v2469, 0
        %v2592 = vsel %vm2512, %v2470, 0
        %v2595 = vsel %vm2512, %v2471, 0
        %v2598 = vsel %vm2512, %v2472, 0
        %v2601 = vsel %vm2512, %v2473, 0
        %v2604 = vsel %vm2512, %v2474, 0
        %v2607 = vsel %vm2512, %v2475, 0
        %v2610 = vsel %vm2512, %v2476, 0
        %v2613 = vsel %vm2512, %v2477, 0
        %v2616 = vsel %vm2512, %v2478, 0
        %v2619 = vsel %vm2512, %v2479, 0
        %2621 = vmatprep.subr.bf16.mxu0 0
        %2622 = vmatpush1.bf16.msra.mxu0 %v2504
        %2623 = vmatprep.subr.bf16.mxu0 0
        %2624 = vmatpush1.bf16.msra.mxu0 %v2505
        %2625 = vmatprep.subr.bf16.mxu0 0
        %2626 = vmatpush1.bf16.msra.mxu0 %v2506
        %2627 = vmatprep.subr.bf16.mxu0 0
        %2628 = vmatpush1.bf16.msra.mxu0 %v2507
        %2629 = vmatprep.subr.bf16.mxu0 0
        %2630 = vmatpush1.bf16.msra.mxu0 0
        %2631 = vmatprep.subr.bf16.mxu0 0
        %2632 = vmatpush1.bf16.msra.mxu0 0
        %2633 = vmatprep.subr.bf16.mxu0 0
        %2634 = vmatpush1.bf16.msra.mxu0 0
        %2635 = vmatprep.subr.bf16.mxu0 0
        %2636 = vmatpush1.bf16.msra.mxu0 0
        %2637 = vmatprep.subr.bf16.mxu0 0
        %2638 = vmatpush1.bf16.msra.mxu0 0
        %2639 = vmatprep.subr.bf16.mxu0 0
        %2640 = vmatpush1.bf16.msra.mxu0 0
        %2641 = vmatprep.subr.bf16.mxu0 0
        %2642 = vmatpush1.bf16.msra.mxu0 0
        %2643 = vmatprep.subr.bf16.mxu0 0
        %2644 = vmatpush1.bf16.msra.mxu0 0
        %2645 = vmatprep.subr.bf16.mxu0 0
        %2646 = vmatpush1.bf16.msra.mxu0 0
        %2647 = vmatprep.subr.bf16.mxu0 0
        %2648 = vmatpush1.bf16.msra.mxu0 0
        %2649 = vmatprep.subr.bf16.mxu0 0
        %2650 = vmatpush1.bf16.msra.mxu0 0
        %2651 = vmatprep.subr.bf16.mxu0 0
        %2652 = vmatpush1.bf16.msra.mxu0 0
        %2653 = vmatprep.mubr.bf16.mxu0 0
        %2654 = vmatmul.mubr.bf16.gmra.mrb[0].mxu0 %v2514
        %v2655 = vpop.f32.mrb[0].mxu0
        %v2656 = vadd.f32 0.0, %v2655
        %v2657 = vpop.f32.mrb[0].mxu0
        %v2658 = vpop.f32.mrb[0].mxu0
        %v2659 = vadd.f32 0.0, %v2658
        %v2660 = vpop.f32.mrb[0].mxu0
        %2661 = vmatprep.mubr.bf16.mxu0 0
        %2662 = vmatmul.mubr.bf16.gmra.mrb[0].mxu0 %v2517
        %v2663 = vpop.f32.mrb[0].mxu0
        %v2664 = vadd.f32 0.0, %v2663
        %v2665 = vpop.f32.mrb[0].mxu0
        %v2666 = vpop.f32.mrb[0].mxu0
        %v2667 = vadd.f32 0.0, %v2666
        %v2668 = vpop.f32.mrb[0].mxu0
        %2669 = vmatprep.mubr.bf16.mxu0 0
        %2670 = vmatmul.mubr.bf16.gmra.mrb[0].mxu0 %v2520
        %v2671 = vpop.f32.mrb[0].mxu0
        %v2672 = vadd.f32 0.0, %v2671
        %v2673 = vpop.f32.mrb[0].mxu0
        %v2674 = vpop.f32.mrb[0].mxu0
        %v2675 = vadd.f32 0.0, %v2674
        %v2676 = vpop.f32.mrb[0].mxu0
        %2677 = vmatprep.mubr.bf16.mxu0 0
        %2678 = vmatmul.mubr.bf16.gmra.mrb[0].mxu0 %v2523
        %v2679 = vpop.f32.mrb[0].mxu0
        %v2680 = vadd.f32 0.0, %v2679
        %v2681 = vpop.f32.mrb[0].mxu0
        %v2682 = vpop.f32.mrb[0].mxu0
        %v2683 = vadd.f32 0.0, %v2682
        %v2684 = vpop.f32.mrb[0].mxu0
        %2685 = vmatprep.mubr.bf16.mxu0 0
        %2686 = vmatmul.mubr.bf16.gmra.mrb[0].mxu0 %v2526
        %v2687 = vpop.f32.mrb[0].mxu0
        %v2688 = vadd.f32 0.0, %v2687
        %v2689 = vpop.f32.mrb[0].mxu0
        %v2690 = vpop.f32.mrb[0].mxu0
        %v2691 = vadd.f32 0.0, %v2690
        %v2692 = vpop.f32.mrb[0].mxu0
        %2693 = vmatprep.mubr.bf16.mxu0 0
        %2694 = vmatmul.mubr.bf16.gmra.mrb[0].mxu0 %v2529
        %v2695 = vpop.f32.mrb[0].mxu0
        %v2696 = vadd.f32 0.0, %v2695
        %v2697 = vpop.f32.mrb[0].mxu0
        %v2698 = vpop.f32.mrb[0].mxu0
        %v2699 = vadd.f32 0.0, %v2698
        %v2700 = vpop.f32.mrb[0].mxu0
        %2701 = vmatprep.mubr.bf16.mxu0 0
        %2702 = vmatmul.mubr.bf16.gmra.mrb[0].mxu0 %v2532
        %v2703 = vpop.f32.mrb[0].mxu0
        %v2704 = vadd.f32 0.0, %v2703
        %v2705 = vpop.f32.mrb[0].mxu0
        %v2706 = vpop.f32.mrb[0].mxu0
        %v2707 = vadd.f32 0.0, %v2706
        %v2708 = vpop.f32.mrb[0].mxu0
        %2709 = vmatprep.mubr.bf16.mxu0 0
        %2710 = vmatmul.mubr.bf16.gmra.mrb[0].mxu0 %v2535
        %v2711 = vpop.f32.mrb[0].mxu0
        %v2712 = vadd.f32 0.0, %v2711
        %v2713 = vpop.f32.mrb[0].mxu0
        %v2714 = vpop.f32.mrb[0].mxu0
        %v2715 = vadd.f32 0.0, %v2714
        %v2716 = vpop.f32.mrb[0].mxu0
        %2717 = vmatprep.mubr.bf16.mxu0 0
        %2718 = vmatmul.mubr.bf16.gmra.mrb[0].mxu0 %v2538
        %v2719 = vpop.f32.mrb[0].mxu0
        %v2720 = vadd.f32 0.0, %v2719
        %v2721 = vpop.f32.mrb[0].mxu0
        %v2722 = vpop.f32.mrb[0].mxu0
        %v2723 = vadd.f32 0.0, %v2722
        %v2724 = vpop.f32.mrb[0].mxu0
        %2725 = vmatprep.mubr.bf16.mxu0 0
        %2726 = vmatmul.mubr.bf16.gmra.mrb[0].mxu0 %v2541
        %v2727 = vpop.f32.mrb[0].mxu0
        %v2728 = vadd.f32 0.0, %v2727
        %v2729 = vpop.f32.mrb[0].mxu0
        %v2730 = vpop.f32.mrb[0].mxu0
        %v2731 = vadd.f32 0.0, %v2730
        %v2732 = vpop.f32.mrb[0].mxu0
        %2733 = vmatprep.mubr.bf16.mxu0 0
        %2734 = vmatmul.mubr.bf16.gmra.mrb[0].mxu0 %v2544
        %v2735 = vpop.f32.mrb[0].mxu0
        %v2736 = vadd.f32 0.0, %v2735
        %v2737 = vpop.f32.mrb[0].mxu0
        %v2738 = vpop.f32.mrb[0].mxu0
        %v2739 = vadd.f32 0.0, %v2738
        %v2740 = vpop.f32.mrb[0].mxu0
        %2741 = vmatprep.mubr.bf16.mxu0 0
        %2742 = vmatmul.mubr.bf16.gmra.mrb[0].mxu0 %v2547
        %v2743 = vpop.f32.mrb[0].mxu0
        %v2744 = vadd.f32 0.0, %v2743
        %v2745 = vpop.f32.mrb[0].mxu0
        %v2746 = vpop.f32.mrb[0].mxu0
        %v2747 = vadd.f32 0.0, %v2746
        %v2748 = vpop.f32.mrb[0].mxu0
        %2749 = vmatprep.mubr.bf16.mxu0 0
        %2750 = vmatmul.mubr.bf16.gmra.mrb[0].mxu0 %v2550
        %v2751 = vpop.f32.mrb[0].mxu0
        %v2752 = vadd.f32 0.0, %v2751
        %v2753 = vpop.f32.mrb[0].mxu0
        %v2754 = vpop.f32.mrb[0].mxu0
        %v2755 = vadd.f32 0.0, %v2754
        %v2756 = vpop.f32.mrb[0].mxu0
        %2757 = vmatprep.mubr.bf16.mxu0 0
        %2758 = vmatmul.mubr.bf16.gmra.mrb[0].mxu0 %v2553
        %v2759 = vpop.f32.mrb[0].mxu0
        %v2760 = vadd.f32 0.0, %v2759
        %v2761 = vpop.f32.mrb[0].mxu0
        %v2762 = vpop.f32.mrb[0].mxu0
        %v2763 = vadd.f32 0.0, %v2762
        %v2764 = vpop.f32.mrb[0].mxu0
        %2765 = vmatprep.mubr.bf16.mxu0 0
        %2766 = vmatmul.mubr.bf16.gmra.mrb[0].mxu0 %v2556
        %v2767 = vpop.f32.mrb[0].mxu0
        %v2768 = vadd.f32 0.0, %v2767
        %v2769 = vpop.f32.mrb[0].mxu0
        %v2770 = vpop.f32.mrb[0].mxu0
        %v2771 = vadd.f32 0.0, %v2770
        %v2772 = vpop.f32.mrb[0].mxu0
        %2773 = vmatprep.mubr.bf16.mxu0 0
        %2774 = vmatmul.mubr.bf16.gmra.mrb[0].mxu0 %v2559
        %v2775 = vpop.f32.mrb[0].mxu0
        %v2776 = vadd.f32 0.0, %v2775
        %v2777 = vpop.f32.mrb[0].mxu0
        %v2778 = vpop.f32.mrb[0].mxu0
        %v2779 = vadd.f32 0.0, %v2778
        %v2780 = vpop.f32.mrb[0].mxu0
        %2781 = vmatprep.mubr.bf16.mxu0 0
        %2782 = vmatmul.mubr.bf16.gmra.mrb[0].mxu0 %v2562
        %v2783 = vpop.f32.mrb[0].mxu0
        %v2784 = vadd.f32 0.0, %v2783
        %v2785 = vpop.f32.mrb[0].mxu0
        %v2786 = vpop.f32.mrb[0].mxu0
        %v2787 = vadd.f32 0.0, %v2786
        %v2788 = vpop.f32.mrb[0].mxu0
        %2789 = vmatprep.mubr.bf16.mxu0 0
        %2790 = vmatmul.mubr.bf16.gmra.mrb[0].mxu0 %v2565
        %v2791 = vpop.f32.mrb[0].mxu0
        %v2792 = vadd.f32 0.0, %v2791
        %v2793 = vpop.f32.mrb[0].mxu0
        %v2794 = vpop.f32.mrb[0].mxu0
        %v2795 = vadd.f32 0.0, %v2794
        %v2796 = vpop.f32.mrb[0].mxu0
        %2797 = vmatprep.mubr.bf16.mxu0 0
        %2798 = vmatmul.mubr.bf16.gmra.mrb[0].mxu0 %v2568
        %v2799 = vpop.f32.mrb[0].mxu0
        %v2800 = vadd.f32 0.0, %v2799
        %v2801 = vpop.f32.mrb[0].mxu0
        %v2802 = vpop.f32.mrb[0].mxu0
        %v2803 = vadd.f32 0.0, %v2802
        %v2804 = vpop.f32.mrb[0].mxu0
        %2805 = vmatprep.mubr.bf16.mxu0 0
        %2806 = vmatmul.mubr.bf16.gmra.mrb[0].mxu0 %v2571
        %v2807 = vpop.f32.mrb[0].mxu0
        %v2808 = vadd.f32 0.0, %v2807
        %v2809 = vpop.f32.mrb[0].mxu0
        %v2810 = vpop.f32.mrb[0].mxu0
        %v2811 = vadd.f32 0.0, %v2810
        %v2812 = vpop.f32.mrb[0].mxu0
        %2813 = vmatprep.mubr.bf16.mxu0 0
        %2814 = vmatmul.mubr.bf16.gmra.mrb[0].mxu0 %v2574
        %v2815 = vpop.f32.mrb[0].mxu0
        %v2816 = vadd.f32 0.0, %v2815
        %v2817 = vpop.f32.mrb[0].mxu0
        %v2818 = vpop.f32.mrb[0].mxu0
        %v2819 = vadd.f32 0.0, %v2818
        %v2820 = vpop.f32.mrb[0].mxu0
        %2821 = vmatprep.mubr.bf16.mxu0 0
        %2822 = vmatmul.mubr.bf16.gmra.mrb[0].mxu0 %v2577
        %v2823 = vpop.f32.mrb[0].mxu0
        %v2824 = vadd.f32 0.0, %v2823
        %v2825 = vpop.f32.mrb[0].mxu0
        %v2826 = vpop.f32.mrb[0].mxu0
        %v2827 = vadd.f32 0.0, %v2826
        %v2828 = vpop.f32.mrb[0].mxu0
        %2829 = vmatprep.mubr.bf16.mxu0 0
        %2830 = vmatmul.mubr.bf16.gmra.mrb[0].mxu0 %v2580
        %v2831 = vpop.f32.mrb[0].mxu0
        %v2832 = vadd.f32 0.0, %v2831
        %v2833 = vpop.f32.mrb[0].mxu0
        %v2834 = vpop.f32.mrb[0].mxu0
        %v2835 = vadd.f32 0.0, %v2834
        %v2836 = vpop.f32.mrb[0].mxu0
        %2837 = vmatprep.mubr.bf16.mxu0 0
        %2838 = vmatmul.mubr.bf16.gmra.mrb[0].mxu0 %v2583
        %v2839 = vpop.f32.mrb[0].mxu0
        %v2840 = vadd.f32 0.0, %v2839
        %v2841 = vpop.f32.mrb[0].mxu0
        %v2842 = vpop.f32.mrb[0].mxu0
        %v2843 = vadd.f32 0.0, %v2842
        %v2844 = vpop.f32.mrb[0].mxu0
        %2845 = vmatprep.mubr.bf16.mxu0 0
        %2846 = vmatmul.mubr.bf16.gmra.mrb[0].mxu0 %v2586
        %v2847 = vpop.f32.mrb[0].mxu0
        %v2848 = vadd.f32 0.0, %v2847
        %v2849 = vpop.f32.mrb[0].mxu0
        %v2850 = vpop.f32.mrb[0].mxu0
        %v2851 = vadd.f32 0.0, %v2850
        %v2852 = vpop.f32.mrb[0].mxu0
        %2853 = vmatprep.mubr.bf16.mxu0 0
        %2854 = vmatmul.mubr.bf16.gmra.mrb[0].mxu0 %v2589
        %v2855 = vpop.f32.mrb[0].mxu0
        %v2856 = vadd.f32 0.0, %v2855
        %v2857 = vpop.f32.mrb[0].mxu0
        %v2858 = vpop.f32.mrb[0].mxu0
        %v2859 = vadd.f32 0.0, %v2858
        %v2860 = vpop.f32.mrb[0].mxu0
        %2861 = vmatprep.mubr.bf16.mxu0 0
        %2862 = vmatmul.mubr.bf16.gmra.mrb[0].mxu0 %v2592
        %v2863 = vpop.f32.mrb[0].mxu0
        %v2864 = vadd.f32 0.0, %v2863
        %v2865 = vpop.f32.mrb[0].mxu0
        %v2866 = vpop.f32.mrb[0].mxu0
        %v2867 = vadd.f32 0.0, %v2866
        %v2868 = vpop.f32.mrb[0].mxu0
        %2869 = vmatprep.mubr.bf16.mxu0 0
        %2870 = vmatmul.mubr.bf16.gmra.mrb[0].mxu0 %v2595
        %v2871 = vpop.f32.mrb[0].mxu0
        %v2872 = vadd.f32 0.0, %v2871
        %v2873 = vpop.f32.mrb[0].mxu0
        %v2874 = vpop.f32.mrb[0].mxu0
        %v2875 = vadd.f32 0.0, %v2874
        %v2876 = vpop.f32.mrb[0].mxu0
        %2877 = vmatprep.mubr.bf16.mxu0 0
        %2878 = vmatmul.mubr.bf16.gmra.mrb[0].mxu0 %v2598
        %v2879 = vpop.f32.mrb[0].mxu0
        %v2880 = vadd.f32 0.0, %v2879
        %v2881 = vpop.f32.mrb[0].mxu0
        %v2882 = vpop.f32.mrb[0].mxu0
        %v2883 = vadd.f32 0.0, %v2882
        %v2884 = vpop.f32.mrb[0].mxu0
        %2885 = vmatprep.mubr.bf16.mxu0 0
        %2886 = vmatmul.mubr.bf16.gmra.mrb[0].mxu0 %v2601
        %v2887 = vpop.f32.mrb[0].mxu0
        %v2888 = vadd.f32 0.0, %v2887
        %v2889 = vpop.f32.mrb[0].mxu0
        %v2890 = vpop.f32.mrb[0].mxu0
        %v2891 = vadd.f32 0.0, %v2890
        %v2892 = vpop.f32.mrb[0].mxu0
        %2893 = vmatprep.mubr.bf16.mxu0 0
        %2894 = vmatmul.mubr.bf16.gmra.mrb[0].mxu0 %v2604
        %v2895 = vpop.f32.mrb[0].mxu0
        %v2896 = vadd.f32 0.0, %v2895
        %v2897 = vpop.f32.mrb[0].mxu0
        %v2898 = vpop.f32.mrb[0].mxu0
        %v2899 = vadd.f32 0.0, %v2898
        %v2900 = vpop.f32.mrb[0].mxu0
        %2901 = vmatprep.mubr.bf16.mxu0 0
        %2902 = vmatmul.mubr.bf16.gmra.mrb[0].mxu0 %v2607
        %v2903 = vpop.f32.mrb[0].mxu0
        %v2904 = vadd.f32 0.0, %v2903
        %v2905 = vpop.f32.mrb[0].mxu0
        %v2906 = vpop.f32.mrb[0].mxu0
        %v2907 = vadd.f32 0.0, %v2906
        %v2908 = vpop.f32.mrb[0].mxu0
        %2909 = vmatprep.mubr.bf16.mxu0 0
        %2910 = vmatmul.mubr.bf16.gmra.mrb[0].mxu0 %v2610
        %v2911 = vpop.f32.mrb[0].mxu0
        %v2912 = vadd.f32 0.0, %v2911
        %v2913 = vpop.f32.mrb[0].mxu0
        %v2914 = vpop.f32.mrb[0].mxu0
        %v2915 = vadd.f32 0.0, %v2914
        %v2916 = vpop.f32.mrb[0].mxu0
        %2917 = vmatprep.mubr.bf16.mxu0 0
        %2918 = vmatmul.mubr.bf16.gmra.mrb[0].mxu0 %v2613
        %v2919 = vpop.f32.mrb[0].mxu0
        %v2920 = vadd.f32 0.0, %v2919
        %v2921 = vpop.f32.mrb[0].mxu0
        %v2922 = vpop.f32.mrb[0].mxu0
        %v2923 = vadd.f32 0.0, %v2922
        %v2924 = vpop.f32.mrb[0].mxu0
        %2925 = vmatprep.mubr.bf16.mxu0 0
        %2926 = vmatmul.mubr.bf16.gmra.mrb[0].mxu0 %v2616
        %v2927 = vpop.f32.mrb[0].mxu0
        %v2928 = vadd.f32 0.0, %v2927
        %v2929 = vpop.f32.mrb[0].mxu0
        %v2930 = vpop.f32.mrb[0].mxu0
        %v2931 = vadd.f32 0.0, %v2930
        %v2932 = vpop.f32.mrb[0].mxu0
        %2933 = vmatprep.mubr.bf16.mxu0 0
        %2934 = vmatmul.mubr.bf16.gmra.mrb[0].mxu0 %v2619
        %v2935 = vpop.f32.mrb[0].mxu0
        %v2936 = vadd.f32 0.0, %v2935
        %v2937 = vpop.f32.mrb[0].mxu0
        %v2938 = vpop.f32.mrb[0].mxu0
        %v2939 = vadd.f32 0.0, %v2938
        %v2940 = vpop.f32.mrb[0].mxu0
        %2941 = vdwg.mxu0
        %v2942 = vpack.c.bf16 %v2659, %v2656
        %v2943 = vpack.c.bf16 %v2667, %v2664
        %v2944 = vpack.c.bf16 %v2675, %v2672
        %v2945 = vpack.c.bf16 %v2683, %v2680
        %v2946 = vpack.c.bf16 %v2691, %v2688
        %v2947 = vpack.c.bf16 %v2699, %v2696
        %v2948 = vpack.c.bf16 %v2707, %v2704
        %v2949 = vpack.c.bf16 %v2715, %v2712
        %v2950 = vpack.c.bf16 %v2723, %v2720
        %v2951 = vpack.c.bf16 %v2731, %v2728
        %v2952 = vpack.c.bf16 %v2739, %v2736
        %v2953 = vpack.c.bf16 %v2747, %v2744
        %v2954 = vpack.c.bf16 %v2755, %v2752
        %v2955 = vpack.c.bf16 %v2763, %v2760
        %v2956 = vpack.c.bf16 %v2771, %v2768
        %v2957 = vpack.c.bf16 %v2779, %v2776
        %v2958 = vpack.c.bf16 %v2787, %v2784
        %v2959 = vpack.c.bf16 %v2795, %v2792
        %v2960 = vpack.c.bf16 %v2803, %v2800
        %v2961 = vpack.c.bf16 %v2811, %v2808
        %v2962 = vpack.c.bf16 %v2819, %v2816
        %v2963 = vpack.c.bf16 %v2827, %v2824
        %v2964 = vpack.c.bf16 %v2835, %v2832
        %v2965 = vpack.c.bf16 %v2843, %v2840
        %v2966 = vpack.c.bf16 %v2851, %v2848
        %v2967 = vpack.c.bf16 %v2859, %v2856
        %v2968 = vpack.c.bf16 %v2867, %v2864
        %v2969 = vpack.c.bf16 %v2875, %v2872
        %v2970 = vpack.c.bf16 %v2883, %v2880
        %v2971 = vpack.c.bf16 %v2891, %v2888
        %v2972 = vpack.c.bf16 %v2899, %v2896
        %v2973 = vpack.c.bf16 %v2907, %v2904
        %v2974 = vpack.c.bf16 %v2915, %v2912
        %v2975 = vpack.c.bf16 %v2923, %v2920
        %v2976 = vpack.c.bf16 %v2931, %v2928
        %v2977 = vpack.c.bf16 %v2939, %v2936
        %v2978 = vld [vmem:[%s11] sm:$0xff]
        %v2979 = vld [vmem:[%s11 + $0x8] sm:$0xff]
        %v2980 = vld [vmem:[%s11 + $0x10] sm:$0xf]
        %v2981 = vld [vmem:[%s11 + $0x14] sm:$0xff]
        %v2982 = vld [vmem:[%s11 + $0x1c] sm:$0xff]
        %v2983 = vld [vmem:[%s11 + $0x24] sm:$0xf]
        %v2984 = vld [vmem:[%s11 + $0x28] sm:$0xff]
        %v2985 = vld [vmem:[%s11 + $0x30] sm:$0xff]
        %v2986 = vld [vmem:[%s11 + $0x38] sm:$0xf]
        %v2987 = vld [vmem:[%s11 + $0x3c] sm:$0xff]
        %v2988 = vld [vmem:[%s11 + $0x44] sm:$0xff]
        %v2989 = vld [vmem:[%s11 + $0x4c] sm:$0xf]
        %v2990 = vld [vmem:[%s11 + $0x50] sm:$0xff]
        %v2991 = vld [vmem:[%s11 + $0x58] sm:$0xff]
        %v2992 = vld [vmem:[%s11 + $0x60] sm:$0xf]
        %v2993 = vld [vmem:[%s11 + $0x64] sm:$0xff]
        %v2994 = vld [vmem:[%s11 + $0x6c] sm:$0xff]
        %v2995 = vld [vmem:[%s11 + $0x74] sm:$0xf]
        %v2996 = vld [vmem:[%s11 + $0x78] sm:$0xff]
        %v2997 = vld [vmem:[%s11 + $0x80] sm:$0xff]
        %v2998 = vld [vmem:[%s11 + $0x88] sm:$0xf]
        %v2999 = vld [vmem:[%s11 + $0x8c] sm:$0xff]
        %v3000 = vld [vmem:[%s11 + $0x94] sm:$0xff]
        %v3001 = vld [vmem:[%s11 + $0x9c] sm:$0xf]
        %v3002 = vld [vmem:[%s11 + $0xa0] sm:$0xff]
        %v3003 = vld [vmem:[%s11 + $0xa8] sm:$0xff]
        %v3004 = vld [vmem:[%s11 + $0xb0] sm:$0xf]
        %v3005 = vld [vmem:[%s11 + $0xb4] sm:$0xff]
        %v3006 = vld [vmem:[%s11 + $0xbc] sm:$0xff]
        %v3007 = vld [vmem:[%s11 + $0xc4] sm:$0xf]
        %v3008 = vld [vmem:[%s11 + $0xc8] sm:$0xff]
        %v3009 = vld [vmem:[%s11 + $0xd0] sm:$0xff]
        %v3010 = vld [vmem:[%s11 + $0xd8] sm:$0xf]
        %v3011 = vld [vmem:[%s11 + $0xdc] sm:$0xff]
        %v3012 = vld [vmem:[%s11 + $0xe4] sm:$0xff]
        %v3013 = vld [vmem:[%s11 + $0xec] sm:$0xf]
        %v3014 = vld [vmem:[%s11 + $0xf0] sm:$0xff]
        %v3015 = vld [vmem:[%s11 + $0xf8] sm:$0xff]
        %v3016 = vld [vmem:[%s11 + $0x100] sm:$0xf]
        %v3017 = vld [vmem:[%s11 + $0x104] sm:$0xff]
        %v3018 = vld [vmem:[%s11 + $0x10c] sm:$0xff]
        %v3019 = vld [vmem:[%s11 + $0x114] sm:$0xf]
        %v3020 = vld [vmem:[%s11 + $0x118] sm:$0xff]
        %v3021 = vld [vmem:[%s11 + $0x120] sm:$0xff]
        %v3022 = vld [vmem:[%s11 + $0x128] sm:$0xf]
        %v3023 = vld [vmem:[%s11 + $0x12c] sm:$0xff]
        %v3024 = vld [vmem:[%s11 + $0x134] sm:$0xff]
        %v3025 = vld [vmem:[%s11 + $0x13c] sm:$0xf]
        %v3026 = vld [vmem:[%s12] sm:$0xff]
        %v3027 = vld [vmem:[%s12 + $0x8] sm:$0xff]
        %v3028 = vld [vmem:[%s12 + $0x10] sm:$0xff]
        %v3029 = vld [vmem:[%s12 + $0x18] sm:$0xff]
        %v3030 = vld [vmem:[%s12 + $0x20] sm:$0xff]
        %v3031 = vld [vmem:[%s12 + $0x28] sm:$0xff]
        %v3032 = vld [vmem:[%s12 + $0x30] sm:$0xff]
        %v3033 = vld [vmem:[%s12 + $0x38] sm:$0xff]
        %v3034 = vld [vmem:[%s12 + $0x40] sm:$0xff]
        %v3035 = vld [vmem:[%s12 + $0x48] sm:$0xff]
        %v3036 = vld [vmem:[%s12 + $0x50] sm:$0xff]
        %v3037 = vld [vmem:[%s12 + $0x58] sm:$0xff]
        %v3038 = vld [vmem:[%s12 + $0x60] sm:$0xff]
        %v3039 = vld [vmem:[%s12 + $0x68] sm:$0xff]
        %v3040 = vld [vmem:[%s12 + $0x70] sm:$0xff]
        %v3041 = vld [vmem:[%s12 + $0x78] sm:$0xff]
        %3043 = vset.pattern.permute.xlu0 0
        %3044 = vperm.xlu0 %3043, %v3026
        %v3045 = vpop.permute.xlu0 %3044
        %3048 = vset.pattern.permute.xlu0 0
        %3049 = vperm.xlu0 %3048, %v3027
        %v3050 = vpop.permute.xlu0 %3049
        %3053 = vset.pattern.permute.xlu0 0
        %3054 = vperm.xlu0 %3053, %v3028
        %v3055 = vpop.permute.xlu0 %3054
        %3058 = vset.pattern.permute.xlu0 0
        %3059 = vperm.xlu0 %3058, %v3029
        %v3060 = vpop.permute.xlu0 %3059
        %3063 = vset.pattern.permute.xlu0 0
        %3064 = vperm.xlu0 %3063, %v3030
        %v3065 = vpop.permute.xlu0 %3064
        %3068 = vset.pattern.permute.xlu0 0
        %3069 = vperm.xlu0 %3068, %v3031
        %v3070 = vpop.permute.xlu0 %3069
        %3073 = vset.pattern.permute.xlu0 0
        %3074 = vperm.xlu0 %3073, %v3032
        %v3075 = vpop.permute.xlu0 %3074
        %3078 = vset.pattern.permute.xlu0 0
        %3079 = vperm.xlu0 %3078, %v3033
        %v3080 = vpop.permute.xlu0 %3079
        %3083 = vset.pattern.permute.xlu0 0
        %3084 = vperm.xlu0 %3083, %v3034
        %v3085 = vpop.permute.xlu0 %3084
        %3088 = vset.pattern.permute.xlu0 0
        %3089 = vperm.xlu0 %3088, %v3035
        %v3090 = vpop.permute.xlu0 %3089
        %3093 = vset.pattern.permute.xlu0 0
        %3094 = vperm.xlu0 %3093, %v3036
        %v3095 = vpop.permute.xlu0 %3094
        %3098 = vset.pattern.permute.xlu0 0
        %3099 = vperm.xlu0 %3098, %v3037
        %v3100 = vpop.permute.xlu0 %3099
        %3103 = vset.pattern.permute.xlu0 0
        %3104 = vperm.xlu0 %3103, %v3038
        %v3105 = vpop.permute.xlu0 %3104
        %3108 = vset.pattern.permute.xlu0 0
        %3109 = vperm.xlu0 %3108, %v3039
        %v3110 = vpop.permute.xlu0 %3109
        %3113 = vset.pattern.permute.xlu0 0
        %3114 = vperm.xlu0 %3113, %v3040
        %v3115 = vpop.permute.xlu0 %3114
        %3118 = vset.pattern.permute.xlu0 0
        %3119 = vperm.xlu0 %3118, %v3041
        %v3120 = vpop.permute.xlu0 %3119
        %v3170 = vunpack.c.l.b16 %v2978
        %v3171 = vunpack.c.h.b16 %v2978
        %v3172 = vunpack.c.l.b16 %v2979
        %v3173 = vunpack.c.h.b16 %v2979
        %v3174 = vunpack.c.l.b16 %v2980
        %v3175 = vunpack.c.l.b16 %v2981
        %v3176 = vunpack.c.h.b16 %v2981
        %v3177 = vunpack.c.l.b16 %v2982
        %v3178 = vunpack.c.h.b16 %v2982
        %v3179 = vunpack.c.l.b16 %v2983
        %v3180 = vunpack.c.l.b16 %v2984
        %v3181 = vunpack.c.h.b16 %v2984
        %v3182 = vunpack.c.l.b16 %v2985
        %v3183 = vunpack.c.h.b16 %v2985
        %v3184 = vunpack.c.l.b16 %v2986
        %v3185 = vunpack.c.l.b16 %v2987
        %v3186 = vunpack.c.h.b16 %v2987
        %v3187 = vunpack.c.l.b16 %v2988
        %v3188 = vunpack.c.h.b16 %v2988
        %v3189 = vunpack.c.l.b16 %v2989
        %v3190 = vunpack.c.l.b16 %v2990
        %v3191 = vunpack.c.h.b16 %v2990
        %v3192 = vunpack.c.l.b16 %v2991
        %v3193 = vunpack.c.h.b16 %v2991
        %v3194 = vunpack.c.l.b16 %v2992
        %v3195 = vunpack.c.l.b16 %v2993
        %v3196 = vunpack.c.h.b16 %v2993
        %v3197 = vunpack.c.l.b16 %v2994
        %v3198 = vunpack.c.h.b16 %v2994
        %v3199 = vunpack.c.l.b16 %v2995
        %v3200 = vunpack.c.l.b16 %v2996
        %v3201 = vunpack.c.h.b16 %v2996
        %v3202 = vunpack.c.l.b16 %v2997
        %v3203 = vunpack.c.h.b16 %v2997
        %v3204 = vunpack.c.l.b16 %v2998
        %v3205 = vunpack.c.l.b16 %v2999
        %v3206 = vunpack.c.h.b16 %v2999
        %v3207 = vunpack.c.l.b16 %v3000
        %v3208 = vunpack.c.h.b16 %v3000
        %v3209 = vunpack.c.l.b16 %v3001
        %v3210 = vunpack.c.l.b16 %v3002
        %v3211 = vunpack.c.h.b16 %v3002
        %v3212 = vunpack.c.l.b16 %v3003
        %v3213 = vunpack.c.h.b16 %v3003
        %v3214 = vunpack.c.l.b16 %v3004
        %v3215 = vunpack.c.l.b16 %v3005
        %v3216 = vunpack.c.h.b16 %v3005
        %v3217 = vunpack.c.l.b16 %v3006
        %v3218 = vunpack.c.h.b16 %v3006
        %v3219 = vunpack.c.l.b16 %v3007
        %v3220 = vunpack.c.l.b16 %v3008
        %v3221 = vunpack.c.h.b16 %v3008
        %v3222 = vunpack.c.l.b16 %v3009
        %v3223 = vunpack.c.h.b16 %v3009
        %v3224 = vunpack.c.l.b16 %v3010
        %v3225 = vunpack.c.l.b16 %v3011
        %v3226 = vunpack.c.h.b16 %v3011
        %v3227 = vunpack.c.l.b16 %v3012
        %v3228 = vunpack.c.h.b16 %v3012
        %v3229 = vunpack.c.l.b16 %v3013
        %v3230 = vunpack.c.l.b16 %v3014
        %v3231 = vunpack.c.h.b16 %v3014
        %v3232 = vunpack.c.l.b16 %v3015
        %v3233 = vunpack.c.h.b16 %v3015
        %v3234 = vunpack.c.l.b16 %v3016
        %v3235 = vunpack.c.l.b16 %v3017
        %v3236 = vunpack.c.h.b16 %v3017
        %v3237 = vunpack.c.l.b16 %v3018
        %v3238 = vunpack.c.h.b16 %v3018
        %v3239 = vunpack.c.l.b16 %v3019
        %v3240 = vunpack.c.l.b16 %v3020
        %v3241 = vunpack.c.h.b16 %v3020
        %v3242 = vunpack.c.l.b16 %v3021
        %v3243 = vunpack.c.h.b16 %v3021
        %v3244 = vunpack.c.l.b16 %v3022
        %v3245 = vunpack.c.l.b16 %v3023
        %v3246 = vunpack.c.h.b16 %v3023
        %v3247 = vunpack.c.l.b16 %v3024
        %v3248 = vunpack.c.h.b16 %v3024
        %v3249 = vunpack.c.l.b16 %v3025
        %v3250 = vpack.c.b16 %v3175, %v3170
        %v3251 = vpack.c.b16 %v3176, %v3171
        %v3252 = vpack.c.b16 %v3177, %v3172
        %v3253 = vpack.c.b16 %v3178, %v3173
        %v3254 = vpack.c.b16 %v3179, %v3174
        %v3255 = vpack.c.b16 %v3185, %v3180
        %v3256 = vpack.c.b16 %v3186, %v3181
        %v3257 = vpack.c.b16 %v3187, %v3182
        %v3258 = vpack.c.b16 %v3188, %v3183
        %v3259 = vpack.c.b16 %v3189, %v3184
        %v3260 = vpack.c.b16 %v3195, %v3190
        %v3261 = vpack.c.b16 %v3196, %v3191
        %v3262 = vpack.c.b16 %v3197, %v3192
        %v3263 = vpack.c.b16 %v3198, %v3193
        %v3264 = vpack.c.b16 %v3199, %v3194
        %v3265 = vpack.c.b16 %v3205, %v3200
        %v3266 = vpack.c.b16 %v3206, %v3201
        %v3267 = vpack.c.b16 %v3207, %v3202
        %v3268 = vpack.c.b16 %v3208, %v3203
        %v3269 = vpack.c.b16 %v3209, %v3204
        %v3270 = vpack.c.b16 %v3215, %v3210
        %v3271 = vpack.c.b16 %v3216, %v3211
        %v3272 = vpack.c.b16 %v3217, %v3212
        %v3273 = vpack.c.b16 %v3218, %v3213
        %v3274 = vpack.c.b16 %v3219, %v3214
        %v3275 = vpack.c.b16 %v3225, %v3220
        %v3276 = vpack.c.b16 %v3226, %v3221
        %v3277 = vpack.c.b16 %v3227, %v3222
        %v3278 = vpack.c.b16 %v3228, %v3223
        %v3279 = vpack.c.b16 %v3229, %v3224
        %v3280 = vpack.c.b16 %v3235, %v3230
        %v3281 = vpack.c.b16 %v3236, %v3231
        %v3282 = vpack.c.b16 %v3237, %v3232
        %v3283 = vpack.c.b16 %v3238, %v3233
        %v3284 = vpack.c.b16 %v3239, %v3234
        %v3285 = vpack.c.b16 %v3245, %v3240
        %v3286 = vpack.c.b16 %v3246, %v3241
        %v3287 = vpack.c.b16 %v3247, %v3242
        %v3288 = vpack.c.b16 %v3248, %v3243
        %v3289 = vpack.c.b16 %v3249, %v3244
        %v3323 = vsel %vm2512, %v3254, 0
        %v3326 = vsel %vm2512, %v3259, 0
        %v3329 = vsel %vm2512, %v3264, 0
        %v3332 = vsel %vm2512, %v3269, 0
        %v3335 = vsel %vm2512, %v3274, 0
        %v3338 = vsel %vm2512, %v3279, 0
        %v3341 = vsel %vm2512, %v3284, 0
        %v3344 = vsel %vm2512, %v3289, 0
        %3346 = vmatprep.subr.bf16.mxu0 0
        %3347 = vmatpush1.bf16.msra.mxu0 %v2942
        %3348 = vmatprep.subr.bf16.mxu0 0
        %3349 = vmatpush1.bf16.msra.mxu0 %v2943
        %3350 = vmatprep.subr.bf16.mxu0 0
        %3351 = vmatpush1.bf16.msra.mxu0 %v2944
        %3352 = vmatprep.subr.bf16.mxu0 0
        %3353 = vmatpush1.bf16.msra.mxu0 %v2945
        %3354 = vmatprep.subr.bf16.mxu0 0
        %3355 = vmatpush1.bf16.msra.mxu0 %v2946
        %3356 = vmatprep.subr.bf16.mxu0 0
        %3357 = vmatpush1.bf16.msra.mxu0 %v2947
        %3358 = vmatprep.subr.bf16.mxu0 0
        %3359 = vmatpush1.bf16.msra.mxu0 %v2948
        %3360 = vmatprep.subr.bf16.mxu0 0
        %3361 = vmatpush1.bf16.msra.mxu0 %v2949
        %3362 = vmatprep.subr.bf16.mxu0 0
        %3363 = vmatpush1.bf16.msra.mxu0 %v2950
        %3364 = vmatprep.subr.bf16.mxu0 0
        %3365 = vmatpush1.bf16.msra.mxu0 %v2951
        %3366 = vmatprep.subr.bf16.mxu0 0
        %3367 = vmatpush1.bf16.msra.mxu0 %v2952
        %3368 = vmatprep.subr.bf16.mxu0 0
        %3369 = vmatpush1.bf16.msra.mxu0 %v2953
        %3370 = vmatprep.subr.bf16.mxu0 0
        %3371 = vmatpush1.bf16.msra.mxu0 %v2954
        %3372 = vmatprep.subr.bf16.mxu0 0
        %3373 = vmatpush1.bf16.msra.mxu0 %v2955
        %3374 = vmatprep.subr.bf16.mxu0 0
        %3375 = vmatpush1.bf16.msra.mxu0 %v2956
        %3376 = vmatprep.subr.bf16.mxu0 0
        %3377 = vmatpush1.bf16.msra.mxu0 %v2957
        %3378 = vmatprep.mubr.bf16.mxu0 %v3251
        %3379 = vmatmul.mubr.bf16.gmra.mrb[0].mxu0 %v3250
        %v3380 = vpop.f32.mrb[0].mxu0
        %v3381 = vadd.f32 %v3045, %v3380
        %v3382 = vpop.f32.mrb[0].mxu0
        %v3383 = vpop.f32.mrb[0].mxu0
        %v3384 = vadd.f32 %v3050, %v3383
        %v3385 = vpop.f32.mrb[0].mxu0
        %3386 = vmatprep.mubr.bf16.mxu0 %v3256
        %3387 = vmatmul.mubr.bf16.gmra.mrb[0].mxu0 %v3255
        %v3388 = vpop.f32.mrb[0].mxu0
        %v3389 = vadd.f32 %v3055, %v3388
        %v3390 = vpop.f32.mrb[0].mxu0
        %v3391 = vpop.f32.mrb[0].mxu0
        %v3392 = vadd.f32 %v3060, %v3391
        %v3393 = vpop.f32.mrb[0].mxu0
        %3394 = vmatprep.mubr.bf16.mxu0 %v3261
        %3395 = vmatmul.mubr.bf16.gmra.mrb[0].mxu0 %v3260
        %v3396 = vpop.f32.mrb[0].mxu0
        %v3397 = vadd.f32 %v3065, %v3396
        %v3398 = vpop.f32.mrb[0].mxu0
        %v3399 = vpop.f32.mrb[0].mxu0
        %v3400 = vadd.f32 %v3070, %v3399
        %v3401 = vpop.f32.mrb[0].mxu0
        %3402 = vmatprep.mubr.bf16.mxu0 %v3266
        %3403 = vmatmul.mubr.bf16.gmra.mrb[0].mxu0 %v3265
        %v3404 = vpop.f32.mrb[0].mxu0
        %v3405 = vadd.f32 %v3075, %v3404
        %v3406 = vpop.f32.mrb[0].mxu0
        %v3407 = vpop.f32.mrb[0].mxu0
        %v3408 = vadd.f32 %v3080, %v3407
        %v3409 = vpop.f32.mrb[0].mxu0
        %3410 = vmatprep.mubr.bf16.mxu0 %v3271
        %3411 = vmatmul.mubr.bf16.gmra.mrb[0].mxu0 %v3270
        %v3412 = vpop.f32.mrb[0].mxu0
        %v3413 = vadd.f32 %v3085, %v3412
        %v3414 = vpop.f32.mrb[0].mxu0
        %v3415 = vpop.f32.mrb[0].mxu0
        %v3416 = vadd.f32 %v3090, %v3415
        %v3417 = vpop.f32.mrb[0].mxu0
        %3418 = vmatprep.mubr.bf16.mxu0 %v3276
        %3419 = vmatmul.mubr.bf16.gmra.mrb[0].mxu0 %v3275
        %v3420 = vpop.f32.mrb[0].mxu0
        %v3421 = vadd.f32 %v3095, %v3420
        %v3422 = vpop.f32.mrb[0].mxu0
        %v3423 = vpop.f32.mrb[0].mxu0
        %v3424 = vadd.f32 %v3100, %v3423
        %v3425 = vpop.f32.mrb[0].mxu0
        %3426 = vmatprep.mubr.bf16.mxu0 %v3281
        %3427 = vmatmul.mubr.bf16.gmra.mrb[0].mxu0 %v3280
        %v3428 = vpop.f32.mrb[0].mxu0
        %v3429 = vadd.f32 %v3105, %v3428
        %v3430 = vpop.f32.mrb[0].mxu0
        %v3431 = vpop.f32.mrb[0].mxu0
        %v3432 = vadd.f32 %v3110, %v3431
        %v3433 = vpop.f32.mrb[0].mxu0
        %3434 = vmatprep.mubr.bf16.mxu0 %v3286
        %3435 = vmatmul.mubr.bf16.gmra.mrb[0].mxu0 %v3285
        %v3436 = vpop.f32.mrb[0].mxu0
        %v3437 = vadd.f32 %v3115, %v3436
        %v3438 = vpop.f32.mrb[0].mxu0
        %v3439 = vpop.f32.mrb[0].mxu0
        %v3440 = vadd.f32 %v3120, %v3439
        %v3441 = vpop.f32.mrb[0].mxu0
        %3442 = vdwg.mxu0
        %3443 = vmatprep.subr.bf16.mxu0 0
        %3444 = vmatpush1.bf16.msra.mxu0 %v2958
        %3445 = vmatprep.subr.bf16.mxu0 0
        %3446 = vmatpush1.bf16.msra.mxu0 %v2959
        %3447 = vmatprep.subr.bf16.mxu0 0
        %3448 = vmatpush1.bf16.msra.mxu0 %v2960
        %3449 = vmatprep.subr.bf16.mxu0 0
        %3450 = vmatpush1.bf16.msra.mxu0 %v2961
        %3451 = vmatprep.subr.bf16.mxu0 0
        %3452 = vmatpush1.bf16.msra.mxu0 %v2962
        %3453 = vmatprep.subr.bf16.mxu0 0
        %3454 = vmatpush1.bf16.msra.mxu0 %v2963
        %3455 = vmatprep.subr.bf16.mxu0 0
        %3456 = vmatpush1.bf16.msra.mxu0 %v2964
        %3457 = vmatprep.subr.bf16.mxu0 0
        %3458 = vmatpush1.bf16.msra.mxu0 %v2965
        %3459 = vmatprep.subr.bf16.mxu0 0
        %3460 = vmatpush1.bf16.msra.mxu0 %v2966
        %3461 = vmatprep.subr.bf16.mxu0 0
        %3462 = vmatpush1.bf16.msra.mxu0 %v2967
        %3463 = vmatprep.subr.bf16.mxu0 0
        %3464 = vmatpush1.bf16.msra.mxu0 %v2968
        %3465 = vmatprep.subr.bf16.mxu0 0
        %3466 = vmatpush1.bf16.msra.mxu0 %v2969
        %3467 = vmatprep.subr.bf16.mxu0 0
        %3468 = vmatpush1.bf16.msra.mxu0 %v2970
        %3469 = vmatprep.subr.bf16.mxu0 0
        %3470 = vmatpush1.bf16.msra.mxu0 %v2971
        %3471 = vmatprep.subr.bf16.mxu0 0
        %3472 = vmatpush1.bf16.msra.mxu0 %v2972
        %3473 = vmatprep.subr.bf16.mxu0 0
        %3474 = vmatpush1.bf16.msra.mxu0 %v2973
        %3475 = vmatprep.mubr.bf16.mxu0 %v3253
        %3476 = vmatmul.mubr.bf16.gmra.mrb[0].mxu0 %v3252
        %v3477 = vpop.f32.mrb[0].mxu0
        %v3478 = vadd.f32 %v3381, %v3477
        %v3479 = vpop.f32.mrb[0].mxu0
        %v3480 = vpop.f32.mrb[0].mxu0
        %v3481 = vadd.f32 %v3384, %v3480
        %v3482 = vpop.f32.mrb[0].mxu0
        %3483 = vmatprep.mubr.bf16.mxu0 %v3258
        %3484 = vmatmul.mubr.bf16.gmra.mrb[0].mxu0 %v3257
        %v3485 = vpop.f32.mrb[0].mxu0
        %v3486 = vadd.f32 %v3389, %v3485
        %v3487 = vpop.f32.mrb[0].mxu0
        %v3488 = vpop.f32.mrb[0].mxu0
        %v3489 = vadd.f32 %v3392, %v3488
        %v3490 = vpop.f32.mrb[0].mxu0
        %3491 = vmatprep.mubr.bf16.mxu0 %v3263
        %3492 = vmatmul.mubr.bf16.gmra.mrb[0].mxu0 %v3262
        %v3493 = vpop.f32.mrb[0].mxu0
        %v3494 = vadd.f32 %v3397, %v3493
        %v3495 = vpop.f32.mrb[0].mxu0
        %v3496 = vpop.f32.mrb[0].mxu0
        %v3497 = vadd.f32 %v3400, %v3496
        %v3498 = vpop.f32.mrb[0].mxu0
        %3499 = vmatprep.mubr.bf16.mxu0 %v3268
        %3500 = vmatmul.mubr.bf16.gmra.mrb[0].mxu0 %v3267
        %v3501 = vpop.f32.mrb[0].mxu0
        %v3502 = vadd.f32 %v3405, %v3501
        %v3503 = vpop.f32.mrb[0].mxu0
        %v3504 = vpop.f32.mrb[0].mxu0
        %v3505 = vadd.f32 %v3408, %v3504
        %v3506 = vpop.f32.mrb[0].mxu0
        %3507 = vmatprep.mubr.bf16.mxu0 %v3273
        %3508 = vmatmul.mubr.bf16.gmra.mrb[0].mxu0 %v3272
        %v3509 = vpop.f32.mrb[0].mxu0
        %v3510 = vadd.f32 %v3413, %v3509
        %v3511 = vpop.f32.mrb[0].mxu0
        %v3512 = vpop.f32.mrb[0].mxu0
        %v3513 = vadd.f32 %v3416, %v3512
        %v3514 = vpop.f32.mrb[0].mxu0
        %3515 = vmatprep.mubr.bf16.mxu0 %v3278
        %3516 = vmatmul.mubr.bf16.gmra.mrb[0].mxu0 %v3277
        %v3517 = vpop.f32.mrb[0].mxu0
        %v3518 = vadd.f32 %v3421, %v3517
        %v3519 = vpop.f32.mrb[0].mxu0
        %v3520 = vpop.f32.mrb[0].mxu0
        %v3521 = vadd.f32 %v3424, %v3520
        %v3522 = vpop.f32.mrb[0].mxu0
        %3523 = vmatprep.mubr.bf16.mxu0 %v3283
        %3524 = vmatmul.mubr.bf16.gmra.mrb[0].mxu0 %v3282
        %v3525 = vpop.f32.mrb[0].mxu0
        %v3526 = vadd.f32 %v3429, %v3525
        %v3527 = vpop.f32.mrb[0].mxu0
        %v3528 = vpop.f32.mrb[0].mxu0
        %v3529 = vadd.f32 %v3432, %v3528
        %v3530 = vpop.f32.mrb[0].mxu0
        %3531 = vmatprep.mubr.bf16.mxu0 %v3288
        %3532 = vmatmul.mubr.bf16.gmra.mrb[0].mxu0 %v3287
        %v3533 = vpop.f32.mrb[0].mxu0
        %v3534 = vadd.f32 %v3437, %v3533
        %v3535 = vpop.f32.mrb[0].mxu0
        %v3536 = vpop.f32.mrb[0].mxu0
        %v3537 = vadd.f32 %v3440, %v3536
        %v3538 = vpop.f32.mrb[0].mxu0
        %3539 = vdwg.mxu0
        %3540 = vmatprep.subr.bf16.mxu0 0
        %3541 = vmatpush1.bf16.msra.mxu0 %v2974
        %3542 = vmatprep.subr.bf16.mxu0 0
        %3543 = vmatpush1.bf16.msra.mxu0 %v2975
        %3544 = vmatprep.subr.bf16.mxu0 0
        %3545 = vmatpush1.bf16.msra.mxu0 %v2976
        %3546 = vmatprep.subr.bf16.mxu0 0
        %3547 = vmatpush1.bf16.msra.mxu0 %v2977
        %3548 = vmatprep.subr.bf16.mxu0 0
        %3549 = vmatpush1.bf16.msra.mxu0 0
        %3550 = vmatprep.subr.bf16.mxu0 0
        %3551 = vmatpush1.bf16.msra.mxu0 0
        %3552 = vmatprep.subr.bf16.mxu0 0
        %3553 = vmatpush1.bf16.msra.mxu0 0
        %3554 = vmatprep.subr.bf16.mxu0 0
        %3555 = vmatpush1.bf16.msra.mxu0 0
        %3556 = vmatprep.subr.bf16.mxu0 0
        %3557 = vmatpush1.bf16.msra.mxu0 0
        %3558 = vmatprep.subr.bf16.mxu0 0
        %3559 = vmatpush1.bf16.msra.mxu0 0
        %3560 = vmatprep.subr.bf16.mxu0 0
        %3561 = vmatpush1.bf16.msra.mxu0 0
        %3562 = vmatprep.subr.bf16.mxu0 0
        %3563 = vmatpush1.bf16.msra.mxu0 0
        %3564 = vmatprep.subr.bf16.mxu0 0
        %3565 = vmatpush1.bf16.msra.mxu0 0
        %3566 = vmatprep.subr.bf16.mxu0 0
        %3567 = vmatpush1.bf16.msra.mxu0 0
        %3568 = vmatprep.subr.bf16.mxu0 0
        %3569 = vmatpush1.bf16.msra.mxu0 0
        %3570 = vmatprep.subr.bf16.mxu0 0
        %3571 = vmatpush1.bf16.msra.mxu0 0
        %3572 = vmatprep.mubr.bf16.mxu0 0
        %3573 = vmatmul.mubr.bf16.gmra.mrb[0].mxu0 %v3323
        %v3574 = vpop.f32.mrb[0].mxu0
        %v3575 = vadd.f32 %v3478, %v3574
        %v3576 = vpop.f32.mrb[0].mxu0
        %v3577 = vpop.f32.mrb[0].mxu0
        %v3578 = vadd.f32 %v3481, %v3577
        %v3579 = vpop.f32.mrb[0].mxu0
        %3580 = vmatprep.mubr.bf16.mxu0 0
        %3581 = vmatmul.mubr.bf16.gmra.mrb[0].mxu0 %v3326
        %v3582 = vpop.f32.mrb[0].mxu0
        %v3583 = vadd.f32 %v3486, %v3582
        %v3584 = vpop.f32.mrb[0].mxu0
        %v3585 = vpop.f32.mrb[0].mxu0
        %v3586 = vadd.f32 %v3489, %v3585
        %v3587 = vpop.f32.mrb[0].mxu0
        %3588 = vmatprep.mubr.bf16.mxu0 0
        %3589 = vmatmul.mubr.bf16.gmra.mrb[0].mxu0 %v3329
        %v3590 = vpop.f32.mrb[0].mxu0
        %v3591 = vadd.f32 %v3494, %v3590
        %v3592 = vpop.f32.mrb[0].mxu0
        %v3593 = vpop.f32.mrb[0].mxu0
        %v3594 = vadd.f32 %v3497, %v3593
        %v3595 = vpop.f32.mrb[0].mxu0
        %3596 = vmatprep.mubr.bf16.mxu0 0
        %3597 = vmatmul.mubr.bf16.gmra.mrb[0].mxu0 %v3332
        %v3598 = vpop.f32.mrb[0].mxu0
        %v3599 = vadd.f32 %v3502, %v3598
        %v3600 = vpop.f32.mrb[0].mxu0
        %v3601 = vpop.f32.mrb[0].mxu0
        %v3602 = vadd.f32 %v3505, %v3601
        %v3603 = vpop.f32.mrb[0].mxu0
        %3604 = vmatprep.mubr.bf16.mxu0 0
        %3605 = vmatmul.mubr.bf16.gmra.mrb[0].mxu0 %v3335
        %v3606 = vpop.f32.mrb[0].mxu0
        %v3607 = vadd.f32 %v3510, %v3606
        %v3608 = vpop.f32.mrb[0].mxu0
        %v3609 = vpop.f32.mrb[0].mxu0
        %v3610 = vadd.f32 %v3513, %v3609
        %v3611 = vpop.f32.mrb[0].mxu0
        %3612 = vmatprep.mubr.bf16.mxu0 0
        %3613 = vmatmul.mubr.bf16.gmra.mrb[0].mxu0 %v3338
        %v3614 = vpop.f32.mrb[0].mxu0
        %v3615 = vadd.f32 %v3518, %v3614
        %v3616 = vpop.f32.mrb[0].mxu0
        %v3617 = vpop.f32.mrb[0].mxu0
        %v3618 = vadd.f32 %v3521, %v3617
        %v3619 = vpop.f32.mrb[0].mxu0
        %3620 = vmatprep.mubr.bf16.mxu0 0
        %3621 = vmatmul.mubr.bf16.gmra.mrb[0].mxu0 %v3341
        %v3622 = vpop.f32.mrb[0].mxu0
        %v3623 = vadd.f32 %v3526, %v3622
        %v3624 = vpop.f32.mrb[0].mxu0
        %v3625 = vpop.f32.mrb[0].mxu0
        %v3626 = vadd.f32 %v3529, %v3625
        %v3627 = vpop.f32.mrb[0].mxu0
        %3628 = vmatprep.mubr.bf16.mxu0 0
        %3629 = vmatmul.mubr.bf16.gmra.mrb[0].mxu0 %v3344
        %v3630 = vpop.f32.mrb[0].mxu0
        %v3631 = vadd.f32 %v3534, %v3630
        %v3632 = vpop.f32.mrb[0].mxu0
        %v3633 = vpop.f32.mrb[0].mxu0
        %v3634 = vadd.f32 %v3537, %v3633
        %v3635 = vpop.f32.mrb[0].mxu0
        %3636 = vdwg.mxu0
        %v3637 = vmax.f32 %v3575, 0.0
        %v3638 = vmax.f32 %v3578, 0.0
        %v3639 = vmax.f32 %v3583, 0.0
        %v3640 = vmax.f32 %v3586, 0.0
        %v3641 = vmax.f32 %v3591, 0.0
        %v3642 = vmax.f32 %v3594, 0.0
        %v3643 = vmax.f32 %v3599, 0.0
        %v3644 = vmax.f32 %v3602, 0.0
        %v3645 = vmax.f32 %v3607, 0.0
        %v3646 = vmax.f32 %v3610, 0.0
        %v3647 = vmax.f32 %v3615, 0.0
        %v3648 = vmax.f32 %v3618, 0.0
        %v3649 = vmax.f32 %v3623, 0.0
        %v3650 = vmax.f32 %v3626, 0.0
        %v3651 = vmax.f32 %v3631, 0.0
        %v3652 = vmax.f32 %v3634, 0.0
        %3669 = vrot.lane.b32.xlu0 %v3637, 5
        %v3670 = vpop.permute.xlu0 %3669
        %3671 = vrot.lane.b32.xlu0 %v3638, 5
        %v3672 = vpop.permute.xlu0 %3671
        %3673 = vrot.lane.b32.xlu0 %v3639, 5
        %v3674 = vpop.permute.xlu0 %3673
        %3675 = vrot.lane.b32.xlu0 %v3640, 5
        %v3676 = vpop.permute.xlu0 %3675
        %3677 = vrot.lane.b32.xlu0 %v3641, 5
        %v3678 = vpop.permute.xlu0 %3677
        %3679 = vrot.lane.b32.xlu0 %v3642, 5
        %v3680 = vpop.permute.xlu0 %3679
        %3681 = vrot.lane.b32.xlu0 %v3643, 5
        %v3682 = vpop.permute.xlu0 %3681
        %3683 = vrot.lane.b32.xlu0 %v3644, 5
        %v3684 = vpop.permute.xlu0 %3683
        %3685 = vrot.lane.b32.xlu0 %v3645, 5
        %v3686 = vpop.permute.xlu0 %3685
        %3687 = vrot.lane.b32.xlu0 %v3646, 5
        %v3688 = vpop.permute.xlu0 %3687
        %3689 = vrot.lane.b32.xlu0 %v3647, 5
        %v3690 = vpop.permute.xlu0 %3689
        %3691 = vrot.lane.b32.xlu0 %v3648, 5
        %v3692 = vpop.permute.xlu0 %3691
        %3693 = vrot.lane.b32.xlu0 %v3649, 5
        %v3694 = vpop.permute.xlu0 %3693
        %3695 = vrot.lane.b32.xlu0 %v3650, 5
        %v3696 = vpop.permute.xlu0 %3695
        %3697 = vrot.lane.b32.xlu0 %v3651, 5
        %v3698 = vpop.permute.xlu0 %3697
        %3699 = vrot.lane.b32.xlu0 %v3652, 5
        %v3700 = vpop.permute.xlu0 %3699
        %vm3717 = vcmask 39936
        %v3718 = vsel %vm3717, 0.0, %v3670
        %v3719 = vsel %vm3717, 0.0, %v3672
        %v3720 = vsel %vm3717, 0.0, %v3674
        %v3721 = vsel %vm3717, 0.0, %v3676
        %v3722 = vsel %vm3717, 0.0, %v3678
        %v3723 = vsel %vm3717, 0.0, %v3680
        %v3724 = vsel %vm3717, 0.0, %v3682
        %v3725 = vsel %vm3717, 0.0, %v3684
        %v3726 = vsel %vm3717, 0.0, %v3686
        %v3727 = vsel %vm3717, 0.0, %v3688
        %v3728 = vsel %vm3717, 0.0, %v3690
        %v3729 = vsel %vm3717, 0.0, %v3692
        %v3730 = vsel %vm3717, 0.0, %v3694
        %v3731 = vsel %vm3717, 0.0, %v3696
        %v3732 = vsel %vm3717, 0.0, %v3698
        %v3733 = vsel %vm3717, 0.0, %v3700
        %v3734 = vld [vmem:[%s3] sm:$0x1]
        %v3736 = vlaneseq
        %v3737 = vshrl.u32 %v3736, 7
        %v3738 = vsub.s32 0, %v3737
        %v3739 = vrot.slane %v3734, %v3738
        %v3741 = vmul.f32 %v3718, %v3739
        %v3742 = vmul.f32 %v3719, %v3739
        %v3743 = vmul.f32 %v3720, %v3739
        %v3744 = vmul.f32 %v3721, %v3739
        %v3745 = vmul.f32 %v3722, %v3739
        %v3746 = vmul.f32 %v3723, %v3739
        %v3747 = vmul.f32 %v3724, %v3739
        %v3748 = vmul.f32 %v3725, %v3739
        %v3749 = vmul.f32 %v3726, %v3739
        %v3750 = vmul.f32 %v3727, %v3739
        %v3751 = vmul.f32 %v3728, %v3739
        %v3752 = vmul.f32 %v3729, %v3739
        %v3753 = vmul.f32 %v3730, %v3739
        %v3754 = vmul.f32 %v3731, %v3739
        %v3755 = vmul.f32 %v3732, %v3739
        %v3756 = vmul.f32 %v3733, %v3739
        %3757 = vrot.lane.b32.xlu0 %v3637, 4
        %v3758 = vpop.permute.xlu0 %3757
        %3759 = vrot.lane.b32.xlu0 %v3638, 4
        %v3760 = vpop.permute.xlu0 %3759
        %3761 = vrot.lane.b32.xlu0 %v3639, 4
        %v3762 = vpop.permute.xlu0 %3761
        %3763 = vrot.lane.b32.xlu0 %v3640, 4
        %v3764 = vpop.permute.xlu0 %3763
        %3765 = vrot.lane.b32.xlu0 %v3641, 4
        %v3766 = vpop.permute.xlu0 %3765
        %3767 = vrot.lane.b32.xlu0 %v3642, 4
        %v3768 = vpop.permute.xlu0 %3767
        %3769 = vrot.lane.b32.xlu0 %v3643, 4
        %v3770 = vpop.permute.xlu0 %3769
        %3771 = vrot.lane.b32.xlu0 %v3644, 4
        %v3772 = vpop.permute.xlu0 %3771
        %3773 = vrot.lane.b32.xlu0 %v3645, 4
        %v3774 = vpop.permute.xlu0 %3773
        %3775 = vrot.lane.b32.xlu0 %v3646, 4
        %v3776 = vpop.permute.xlu0 %3775
        %3777 = vrot.lane.b32.xlu0 %v3647, 4
        %v3778 = vpop.permute.xlu0 %3777
        %3779 = vrot.lane.b32.xlu0 %v3648, 4
        %v3780 = vpop.permute.xlu0 %3779
        %3781 = vrot.lane.b32.xlu0 %v3649, 4
        %v3782 = vpop.permute.xlu0 %3781
        %3783 = vrot.lane.b32.xlu0 %v3650, 4
        %v3784 = vpop.permute.xlu0 %3783
        %3785 = vrot.lane.b32.xlu0 %v3651, 4
        %v3786 = vpop.permute.xlu0 %3785
        %3787 = vrot.lane.b32.xlu0 %v3652, 4
        %v3788 = vpop.permute.xlu0 %3787
        %vm3805 = vcmask 31744
        %v3806 = vsel %vm3805, 0.0, %v3758
        %v3807 = vsel %vm3805, 0.0, %v3760
        %v3808 = vsel %vm3805, 0.0, %v3762
        %v3809 = vsel %vm3805, 0.0, %v3764
        %v3810 = vsel %vm3805, 0.0, %v3766
        %v3811 = vsel %vm3805, 0.0, %v3768
        %v3812 = vsel %vm3805, 0.0, %v3770
        %v3813 = vsel %vm3805, 0.0, %v3772
        %v3814 = vsel %vm3805, 0.0, %v3774
        %v3815 = vsel %vm3805, 0.0, %v3776
        %v3816 = vsel %vm3805, 0.0, %v3778
        %v3817 = vsel %vm3805, 0.0, %v3780
        %v3818 = vsel %vm3805, 0.0, %v3782
        %v3819 = vsel %vm3805, 0.0, %v3784
        %v3820 = vsel %vm3805, 0.0, %v3786
        %v3821 = vsel %vm3805, 0.0, %v3788
        %s3822 = scalar_lea.vmem %s3, 1
        %v3823 = vld [vmem:[%s3822] sm:$0x1]
        %v3825 = vlaneseq
        %v3826 = vshrl.u32 %v3825, 7
        %v3827 = vsub.s32 0, %v3826
        %v3828 = vrot.slane %v3823, %v3827
        %v3830 = vmul.f32 %v3806, %v3828
        %v3831 = vmul.f32 %v3807, %v3828
        %v3832 = vmul.f32 %v3808, %v3828
        %v3833 = vmul.f32 %v3809, %v3828
        %v3834 = vmul.f32 %v3810, %v3828
        %v3835 = vmul.f32 %v3811, %v3828
        %v3836 = vmul.f32 %v3812, %v3828
        %v3837 = vmul.f32 %v3813, %v3828
        %v3838 = vmul.f32 %v3814, %v3828
        %v3839 = vmul.f32 %v3815, %v3828
        %v3840 = vmul.f32 %v3816, %v3828
        %v3841 = vmul.f32 %v3817, %v3828
        %v3842 = vmul.f32 %v3818, %v3828
        %v3843 = vmul.f32 %v3819, %v3828
        %v3844 = vmul.f32 %v3820, %v3828
        %v3845 = vmul.f32 %v3821, %v3828
        %3846 = vrot.lane.b32.xlu0 %v3637, 3
        %v3847 = vpop.permute.xlu0 %3846
        %3848 = vrot.lane.b32.xlu0 %v3638, 3
        %v3849 = vpop.permute.xlu0 %3848
        %3850 = vrot.lane.b32.xlu0 %v3639, 3
        %v3851 = vpop.permute.xlu0 %3850
        %3852 = vrot.lane.b32.xlu0 %v3640, 3
        %v3853 = vpop.permute.xlu0 %3852
        %3854 = vrot.lane.b32.xlu0 %v3641, 3
        %v3855 = vpop.permute.xlu0 %3854
        %3856 = vrot.lane.b32.xlu0 %v3642, 3
        %v3857 = vpop.permute.xlu0 %3856
        %3858 = vrot.lane.b32.xlu0 %v3643, 3
        %v3859 = vpop.permute.xlu0 %3858
        %3860 = vrot.lane.b32.xlu0 %v3644, 3
        %v3861 = vpop.permute.xlu0 %3860
        %3862 = vrot.lane.b32.xlu0 %v3645, 3
        %v3863 = vpop.permute.xlu0 %3862
        %3864 = vrot.lane.b32.xlu0 %v3646, 3
        %v3865 = vpop.permute.xlu0 %3864
        %3866 = vrot.lane.b32.xlu0 %v3647, 3
        %v3867 = vpop.permute.xlu0 %3866
        %3868 = vrot.lane.b32.xlu0 %v3648, 3
        %v3869 = vpop.permute.xlu0 %3868
        %3870 = vrot.lane.b32.xlu0 %v3649, 3
        %v3871 = vpop.permute.xlu0 %3870
        %3872 = vrot.lane.b32.xlu0 %v3650, 3
        %v3873 = vpop.permute.xlu0 %3872
        %3874 = vrot.lane.b32.xlu0 %v3651, 3
        %v3875 = vpop.permute.xlu0 %3874
        %3876 = vrot.lane.b32.xlu0 %v3652, 3
        %v3877 = vpop.permute.xlu0 %3876
        %vm3894 = vcmask 23552
        %v3895 = vsel %vm3894, 0.0, %v3847
        %v3896 = vsel %vm3894, 0.0, %v3849
        %v3897 = vsel %vm3894, 0.0, %v3851
        %v3898 = vsel %vm3894, 0.0, %v3853
        %v3899 = vsel %vm3894, 0.0, %v3855
        %v3900 = vsel %vm3894, 0.0, %v3857
        %v3901 = vsel %vm3894, 0.0, %v3859
        %v3902 = vsel %vm3894, 0.0, %v3861
        %v3903 = vsel %vm3894, 0.0, %v3863
        %v3904 = vsel %vm3894, 0.0, %v3865
        %v3905 = vsel %vm3894, 0.0, %v3867
        %v3906 = vsel %vm3894, 0.0, %v3869
        %v3907 = vsel %vm3894, 0.0, %v3871
        %v3908 = vsel %vm3894, 0.0, %v3873
        %v3909 = vsel %vm3894, 0.0, %v3875
        %v3910 = vsel %vm3894, 0.0, %v3877
        %s3911 = scalar_lea.vmem %s3, 2
        %v3912 = vld [vmem:[%s3911] sm:$0x1]
        %v3914 = vlaneseq
        %v3915 = vshrl.u32 %v3914, 7
        %v3916 = vsub.s32 0, %v3915
        %v3917 = vrot.slane %v3912, %v3916
        %v3919 = vmul.f32 %v3895, %v3917
        %v3920 = vmul.f32 %v3896, %v3917
        %v3921 = vmul.f32 %v3897, %v3917
        %v3922 = vmul.f32 %v3898, %v3917
        %v3923 = vmul.f32 %v3899, %v3917
        %v3924 = vmul.f32 %v3900, %v3917
        %v3925 = vmul.f32 %v3901, %v3917
        %v3926 = vmul.f32 %v3902, %v3917
        %v3927 = vmul.f32 %v3903, %v3917
        %v3928 = vmul.f32 %v3904, %v3917
        %v3929 = vmul.f32 %v3905, %v3917
        %v3930 = vmul.f32 %v3906, %v3917
        %v3931 = vmul.f32 %v3907, %v3917
        %v3932 = vmul.f32 %v3908, %v3917
        %v3933 = vmul.f32 %v3909, %v3917
        %v3934 = vmul.f32 %v3910, %v3917
        %3935 = vrot.lane.b32.xlu0 %v3637, 1
        %v3936 = vpop.permute.xlu0 %3935
        %3937 = vrot.lane.b32.xlu0 %v3638, 1
        %v3938 = vpop.permute.xlu0 %3937
        %3939 = vrot.lane.b32.xlu0 %v3639, 1
        %v3940 = vpop.permute.xlu0 %3939
        %3941 = vrot.lane.b32.xlu0 %v3640, 1
        %v3942 = vpop.permute.xlu0 %3941
        %3943 = vrot.lane.b32.xlu0 %v3641, 1
        %v3944 = vpop.permute.xlu0 %3943
        %3945 = vrot.lane.b32.xlu0 %v3642, 1
        %v3946 = vpop.permute.xlu0 %3945
        %3947 = vrot.lane.b32.xlu0 %v3643, 1
        %v3948 = vpop.permute.xlu0 %3947
        %3949 = vrot.lane.b32.xlu0 %v3644, 1
        %v3950 = vpop.permute.xlu0 %3949
        %3951 = vrot.lane.b32.xlu0 %v3645, 1
        %v3952 = vpop.permute.xlu0 %3951
        %3953 = vrot.lane.b32.xlu0 %v3646, 1
        %v3954 = vpop.permute.xlu0 %3953
        %3955 = vrot.lane.b32.xlu0 %v3647, 1
        %v3956 = vpop.permute.xlu0 %3955
        %3957 = vrot.lane.b32.xlu0 %v3648, 1
        %v3958 = vpop.permute.xlu0 %3957
        %3959 = vrot.lane.b32.xlu0 %v3649, 1
        %v3960 = vpop.permute.xlu0 %3959
        %3961 = vrot.lane.b32.xlu0 %v3650, 1
        %v3962 = vpop.permute.xlu0 %3961
        %3963 = vrot.lane.b32.xlu0 %v3651, 1
        %v3964 = vpop.permute.xlu0 %3963
        %3965 = vrot.lane.b32.xlu0 %v3652, 1
        %v3966 = vpop.permute.xlu0 %3965
        %v3983 = vsel %vm806, 0.0, %v3936
        %v3984 = vsel %vm806, 0.0, %v3938
        %v3985 = vsel %vm806, 0.0, %v3940
        %v3986 = vsel %vm806, 0.0, %v3942
        %v3987 = vsel %vm806, 0.0, %v3944
        %v3988 = vsel %vm806, 0.0, %v3946
        %v3989 = vsel %vm806, 0.0, %v3948
        %v3990 = vsel %vm806, 0.0, %v3950
        %v3991 = vsel %vm806, 0.0, %v3952
        %v3992 = vsel %vm806, 0.0, %v3954
        %v3993 = vsel %vm806, 0.0, %v3956
        %v3994 = vsel %vm806, 0.0, %v3958
        %v3995 = vsel %vm806, 0.0, %v3960
        %v3996 = vsel %vm806, 0.0, %v3962
        %v3997 = vsel %vm806, 0.0, %v3964
        %v3998 = vsel %vm806, 0.0, %v3966
        %s3999 = scalar_lea.vmem %s3, 3
        %v4000 = vld [vmem:[%s3999] sm:$0x1]
        %v4002 = vlaneseq
        %v4003 = vshrl.u32 %v4002, 7
        %v4004 = vsub.s32 0, %v4003
        %v4005 = vrot.slane %v4000, %v4004
        %v4007 = vmul.f32 %v3983, %v4005
        %v4008 = vmul.f32 %v3984, %v4005
        %v4009 = vmul.f32 %v3985, %v4005
        %v4010 = vmul.f32 %v3986, %v4005
        %v4011 = vmul.f32 %v3987, %v4005
        %v4012 = vmul.f32 %v3988, %v4005
        %v4013 = vmul.f32 %v3989, %v4005
        %v4014 = vmul.f32 %v3990, %v4005
        %v4015 = vmul.f32 %v3991, %v4005
        %v4016 = vmul.f32 %v3992, %v4005
        %v4017 = vmul.f32 %v3993, %v4005
        %v4018 = vmul.f32 %v3994, %v4005
        %v4019 = vmul.f32 %v3995, %v4005
        %v4020 = vmul.f32 %v3996, %v4005
        %v4021 = vmul.f32 %v3997, %v4005
        %v4022 = vmul.f32 %v3998, %v4005
        %s4023 = scalar_lea.vmem %s3, 4
        %v4024 = vld [vmem:[%s4023] sm:$0x1]
        %v4026 = vlaneseq
        %v4027 = vshrl.u32 %v4026, 7
        %v4028 = vsub.s32 0, %v4027
        %v4029 = vrot.slane %v4024, %v4028
        %v4031 = vmul.f32 %v3637, %v4029
        %v4032 = vmul.f32 %v3638, %v4029
        %v4033 = vmul.f32 %v3639, %v4029
        %v4034 = vmul.f32 %v3640, %v4029
        %v4035 = vmul.f32 %v3641, %v4029
        %v4036 = vmul.f32 %v3642, %v4029
        %v4037 = vmul.f32 %v3643, %v4029
        %v4038 = vmul.f32 %v3644, %v4029
        %v4039 = vmul.f32 %v3645, %v4029
        %v4040 = vmul.f32 %v3646, %v4029
        %v4041 = vmul.f32 %v3647, %v4029
        %v4042 = vmul.f32 %v3648, %v4029
        %v4043 = vmul.f32 %v3649, %v4029
        %v4044 = vmul.f32 %v3650, %v4029
        %v4045 = vmul.f32 %v3651, %v4029
        %v4046 = vmul.f32 %v3652, %v4029
        %4047 = vrot.lane.b32.xlu0 %v3637, 127
        %v4048 = vpop.permute.xlu0 %4047
        %4049 = vrot.lane.b32.xlu0 %v3638, 127
        %v4050 = vpop.permute.xlu0 %4049
        %4051 = vrot.lane.b32.xlu0 %v3639, 127
        %v4052 = vpop.permute.xlu0 %4051
        %4053 = vrot.lane.b32.xlu0 %v3640, 127
        %v4054 = vpop.permute.xlu0 %4053
        %4055 = vrot.lane.b32.xlu0 %v3641, 127
        %v4056 = vpop.permute.xlu0 %4055
        %4057 = vrot.lane.b32.xlu0 %v3642, 127
        %v4058 = vpop.permute.xlu0 %4057
        %4059 = vrot.lane.b32.xlu0 %v3643, 127
        %v4060 = vpop.permute.xlu0 %4059
        %4061 = vrot.lane.b32.xlu0 %v3644, 127
        %v4062 = vpop.permute.xlu0 %4061
        %4063 = vrot.lane.b32.xlu0 %v3645, 127
        %v4064 = vpop.permute.xlu0 %4063
        %4065 = vrot.lane.b32.xlu0 %v3646, 127
        %v4066 = vpop.permute.xlu0 %4065
        %4067 = vrot.lane.b32.xlu0 %v3647, 127
        %v4068 = vpop.permute.xlu0 %4067
        %4069 = vrot.lane.b32.xlu0 %v3648, 127
        %v4070 = vpop.permute.xlu0 %4069
        %4071 = vrot.lane.b32.xlu0 %v3649, 127
        %v4072 = vpop.permute.xlu0 %4071
        %4073 = vrot.lane.b32.xlu0 %v3650, 127
        %v4074 = vpop.permute.xlu0 %4073
        %4075 = vrot.lane.b32.xlu0 %v3651, 127
        %v4076 = vpop.permute.xlu0 %4075
        %4077 = vrot.lane.b32.xlu0 %v3652, 127
        %v4078 = vpop.permute.xlu0 %4077
        %v4095 = vsel %vm782, %v4048, 0.0
        %v4096 = vsel %vm782, %v4050, 0.0
        %v4097 = vsel %vm782, %v4052, 0.0
        %v4098 = vsel %vm782, %v4054, 0.0
        %v4099 = vsel %vm782, %v4056, 0.0
        %v4100 = vsel %vm782, %v4058, 0.0
        %v4101 = vsel %vm782, %v4060, 0.0
        %v4102 = vsel %vm782, %v4062, 0.0
        %v4103 = vsel %vm782, %v4064, 0.0
        %v4104 = vsel %vm782, %v4066, 0.0
        %v4105 = vsel %vm782, %v4068, 0.0
        %v4106 = vsel %vm782, %v4070, 0.0
        %v4107 = vsel %vm782, %v4072, 0.0
        %v4108 = vsel %vm782, %v4074, 0.0
        %v4109 = vsel %vm782, %v4076, 0.0
        %v4110 = vsel %vm782, %v4078, 0.0
        %s4111 = scalar_lea.vmem %s3, 5
        %v4112 = vld [vmem:[%s4111] sm:$0x1]
        %v4114 = vlaneseq
        %v4115 = vshrl.u32 %v4114, 7
        %v4116 = vsub.s32 0, %v4115
        %v4117 = vrot.slane %v4112, %v4116
        %v4119 = vmul.f32 %v4095, %v4117
        %v4120 = vmul.f32 %v4096, %v4117
        %v4121 = vmul.f32 %v4097, %v4117
        %v4122 = vmul.f32 %v4098, %v4117
        %v4123 = vmul.f32 %v4099, %v4117
        %v4124 = vmul.f32 %v4100, %v4117
        %v4125 = vmul.f32 %v4101, %v4117
        %v4126 = vmul.f32 %v4102, %v4117
        %v4127 = vmul.f32 %v4103, %v4117
        %v4128 = vmul.f32 %v4104, %v4117
        %v4129 = vmul.f32 %v4105, %v4117
        %v4130 = vmul.f32 %v4106, %v4117
        %v4131 = vmul.f32 %v4107, %v4117
        %v4132 = vmul.f32 %v4108, %v4117
        %v4133 = vmul.f32 %v4109, %v4117
        %v4134 = vmul.f32 %v4110, %v4117
        %4135 = vrot.lane.b32.xlu0 %v3637, 125
        %v4136 = vpop.permute.xlu0 %4135
        %4137 = vrot.lane.b32.xlu0 %v3638, 125
        %v4138 = vpop.permute.xlu0 %4137
        %4139 = vrot.lane.b32.xlu0 %v3639, 125
        %v4140 = vpop.permute.xlu0 %4139
        %4141 = vrot.lane.b32.xlu0 %v3640, 125
        %v4142 = vpop.permute.xlu0 %4141
        %4143 = vrot.lane.b32.xlu0 %v3641, 125
        %v4144 = vpop.permute.xlu0 %4143
        %4145 = vrot.lane.b32.xlu0 %v3642, 125
        %v4146 = vpop.permute.xlu0 %4145
        %4147 = vrot.lane.b32.xlu0 %v3643, 125
        %v4148 = vpop.permute.xlu0 %4147
        %4149 = vrot.lane.b32.xlu0 %v3644, 125
        %v4150 = vpop.permute.xlu0 %4149
        %4151 = vrot.lane.b32.xlu0 %v3645, 125
        %v4152 = vpop.permute.xlu0 %4151
        %4153 = vrot.lane.b32.xlu0 %v3646, 125
        %v4154 = vpop.permute.xlu0 %4153
        %4155 = vrot.lane.b32.xlu0 %v3647, 125
        %v4156 = vpop.permute.xlu0 %4155
        %4157 = vrot.lane.b32.xlu0 %v3648, 125
        %v4158 = vpop.permute.xlu0 %4157
        %4159 = vrot.lane.b32.xlu0 %v3649, 125
        %v4160 = vpop.permute.xlu0 %4159
        %4161 = vrot.lane.b32.xlu0 %v3650, 125
        %v4162 = vpop.permute.xlu0 %4161
        %4163 = vrot.lane.b32.xlu0 %v3651, 125
        %v4164 = vpop.permute.xlu0 %4163
        %4165 = vrot.lane.b32.xlu0 %v3652, 125
        %v4166 = vpop.permute.xlu0 %4165
        %vm4183 = vcmask 105472
        %v4184 = vsel %vm4183, %v4136, 0.0
        %v4185 = vsel %vm4183, %v4138, 0.0
        %v4186 = vsel %vm4183, %v4140, 0.0
        %v4187 = vsel %vm4183, %v4142, 0.0
        %v4188 = vsel %vm4183, %v4144, 0.0
        %v4189 = vsel %vm4183, %v4146, 0.0
        %v4190 = vsel %vm4183, %v4148, 0.0
        %v4191 = vsel %vm4183, %v4150, 0.0
        %v4192 = vsel %vm4183, %v4152, 0.0
        %v4193 = vsel %vm4183, %v4154, 0.0
        %v4194 = vsel %vm4183, %v4156, 0.0
        %v4195 = vsel %vm4183, %v4158, 0.0
        %v4196 = vsel %vm4183, %v4160, 0.0
        %v4197 = vsel %vm4183, %v4162, 0.0
        %v4198 = vsel %vm4183, %v4164, 0.0
        %v4199 = vsel %vm4183, %v4166, 0.0
        %s4200 = scalar_lea.vmem %s3, 6
        %v4201 = vld [vmem:[%s4200] sm:$0x1]
        %v4203 = vlaneseq
        %v4204 = vshrl.u32 %v4203, 7
        %v4205 = vsub.s32 0, %v4204
        %v4206 = vrot.slane %v4201, %v4205
        %v4208 = vmul.f32 %v4184, %v4206
        %v4209 = vmul.f32 %v4185, %v4206
        %v4210 = vmul.f32 %v4186, %v4206
        %v4211 = vmul.f32 %v4187, %v4206
        %v4212 = vmul.f32 %v4188, %v4206
        %v4213 = vmul.f32 %v4189, %v4206
        %v4214 = vmul.f32 %v4190, %v4206
        %v4215 = vmul.f32 %v4191, %v4206
        %v4216 = vmul.f32 %v4192, %v4206
        %v4217 = vmul.f32 %v4193, %v4206
        %v4218 = vmul.f32 %v4194, %v4206
        %v4219 = vmul.f32 %v4195, %v4206
        %v4220 = vmul.f32 %v4196, %v4206
        %v4221 = vmul.f32 %v4197, %v4206
        %v4222 = vmul.f32 %v4198, %v4206
        %v4223 = vmul.f32 %v4199, %v4206
        %4224 = vrot.lane.b32.xlu0 %v3637, 124
        %v4225 = vpop.permute.xlu0 %4224
        %4226 = vrot.lane.b32.xlu0 %v3638, 124
        %v4227 = vpop.permute.xlu0 %4226
        %4228 = vrot.lane.b32.xlu0 %v3639, 124
        %v4229 = vpop.permute.xlu0 %4228
        %4230 = vrot.lane.b32.xlu0 %v3640, 124
        %v4231 = vpop.permute.xlu0 %4230
        %4232 = vrot.lane.b32.xlu0 %v3641, 124
        %v4233 = vpop.permute.xlu0 %4232
        %4234 = vrot.lane.b32.xlu0 %v3642, 124
        %v4235 = vpop.permute.xlu0 %4234
        %4236 = vrot.lane.b32.xlu0 %v3643, 124
        %v4237 = vpop.permute.xlu0 %4236
        %4238 = vrot.lane.b32.xlu0 %v3644, 124
        %v4239 = vpop.permute.xlu0 %4238
        %4240 = vrot.lane.b32.xlu0 %v3645, 124
        %v4241 = vpop.permute.xlu0 %4240
        %4242 = vrot.lane.b32.xlu0 %v3646, 124
        %v4243 = vpop.permute.xlu0 %4242
        %4244 = vrot.lane.b32.xlu0 %v3647, 124
        %v4245 = vpop.permute.xlu0 %4244
        %4246 = vrot.lane.b32.xlu0 %v3648, 124
        %v4247 = vpop.permute.xlu0 %4246
        %4248 = vrot.lane.b32.xlu0 %v3649, 124
        %v4249 = vpop.permute.xlu0 %4248
        %4250 = vrot.lane.b32.xlu0 %v3650, 124
        %v4251 = vpop.permute.xlu0 %4250
        %4252 = vrot.lane.b32.xlu0 %v3651, 124
        %v4253 = vpop.permute.xlu0 %4252
        %4254 = vrot.lane.b32.xlu0 %v3652, 124
        %v4255 = vpop.permute.xlu0 %4254
        %vm4272 = vcmask 97280
        %v4273 = vsel %vm4272, %v4225, 0.0
        %v4274 = vsel %vm4272, %v4227, 0.0
        %v4275 = vsel %vm4272, %v4229, 0.0
        %v4276 = vsel %vm4272, %v4231, 0.0
        %v4277 = vsel %vm4272, %v4233, 0.0
        %v4278 = vsel %vm4272, %v4235, 0.0
        %v4279 = vsel %vm4272, %v4237, 0.0
        %v4280 = vsel %vm4272, %v4239, 0.0
        %v4281 = vsel %vm4272, %v4241, 0.0
        %v4282 = vsel %vm4272, %v4243, 0.0
        %v4283 = vsel %vm4272, %v4245, 0.0
        %v4284 = vsel %vm4272, %v4247, 0.0
        %v4285 = vsel %vm4272, %v4249, 0.0
        %v4286 = vsel %vm4272, %v4251, 0.0
        %v4287 = vsel %vm4272, %v4253, 0.0
        %v4288 = vsel %vm4272, %v4255, 0.0
        %s4289 = scalar_lea.vmem %s3, 7
        %v4290 = vld [vmem:[%s4289] sm:$0x1]
        %v4292 = vlaneseq
        %v4293 = vshrl.u32 %v4292, 7
        %v4294 = vsub.s32 0, %v4293
        %v4295 = vrot.slane %v4290, %v4294
        %v4297 = vmul.f32 %v4273, %v4295
        %v4298 = vmul.f32 %v4274, %v4295
        %v4299 = vmul.f32 %v4275, %v4295
        %v4300 = vmul.f32 %v4276, %v4295
        %v4301 = vmul.f32 %v4277, %v4295
        %v4302 = vmul.f32 %v4278, %v4295
        %v4303 = vmul.f32 %v4279, %v4295
        %v4304 = vmul.f32 %v4280, %v4295
        %v4305 = vmul.f32 %v4281, %v4295
        %v4306 = vmul.f32 %v4282, %v4295
        %v4307 = vmul.f32 %v4283, %v4295
        %v4308 = vmul.f32 %v4284, %v4295
        %v4309 = vmul.f32 %v4285, %v4295
        %v4310 = vmul.f32 %v4286, %v4295
        %v4311 = vmul.f32 %v4287, %v4295
        %v4312 = vmul.f32 %v4288, %v4295
        %4313 = vrot.lane.b32.xlu0 %v3637, 123
        %v4314 = vpop.permute.xlu0 %4313
        %4315 = vrot.lane.b32.xlu0 %v3638, 123
        %v4316 = vpop.permute.xlu0 %4315
        %4317 = vrot.lane.b32.xlu0 %v3639, 123
        %v4318 = vpop.permute.xlu0 %4317
        %4319 = vrot.lane.b32.xlu0 %v3640, 123
        %v4320 = vpop.permute.xlu0 %4319
        %4321 = vrot.lane.b32.xlu0 %v3641, 123
        %v4322 = vpop.permute.xlu0 %4321
        %4323 = vrot.lane.b32.xlu0 %v3642, 123
        %v4324 = vpop.permute.xlu0 %4323
        %4325 = vrot.lane.b32.xlu0 %v3643, 123
        %v4326 = vpop.permute.xlu0 %4325
        %4327 = vrot.lane.b32.xlu0 %v3644, 123
        %v4328 = vpop.permute.xlu0 %4327
        %4329 = vrot.lane.b32.xlu0 %v3645, 123
        %v4330 = vpop.permute.xlu0 %4329
        %4331 = vrot.lane.b32.xlu0 %v3646, 123
        %v4332 = vpop.permute.xlu0 %4331
        %4333 = vrot.lane.b32.xlu0 %v3647, 123
        %v4334 = vpop.permute.xlu0 %4333
        %4335 = vrot.lane.b32.xlu0 %v3648, 123
        %v4336 = vpop.permute.xlu0 %4335
        %4337 = vrot.lane.b32.xlu0 %v3649, 123
        %v4338 = vpop.permute.xlu0 %4337
        %4339 = vrot.lane.b32.xlu0 %v3650, 123
        %v4340 = vpop.permute.xlu0 %4339
        %4341 = vrot.lane.b32.xlu0 %v3651, 123
        %v4342 = vpop.permute.xlu0 %4341
        %4343 = vrot.lane.b32.xlu0 %v3652, 123
        %v4344 = vpop.permute.xlu0 %4343
        %vm4361 = vcmask 89088
        %v4362 = vsel %vm4361, %v4314, 0.0
        %v4363 = vsel %vm4361, %v4316, 0.0
        %v4364 = vsel %vm4361, %v4318, 0.0
        %v4365 = vsel %vm4361, %v4320, 0.0
        %v4366 = vsel %vm4361, %v4322, 0.0
        %v4367 = vsel %vm4361, %v4324, 0.0
        %v4368 = vsel %vm4361, %v4326, 0.0
        %v4369 = vsel %vm4361, %v4328, 0.0
        %v4370 = vsel %vm4361, %v4330, 0.0
        %v4371 = vsel %vm4361, %v4332, 0.0
        %v4372 = vsel %vm4361, %v4334, 0.0
        %v4373 = vsel %vm4361, %v4336, 0.0
        %v4374 = vsel %vm4361, %v4338, 0.0
        %v4375 = vsel %vm4361, %v4340, 0.0
        %v4376 = vsel %vm4361, %v4342, 0.0
        %v4377 = vsel %vm4361, %v4344, 0.0
        %s4378 = scalar_lea.vmem %s3, 8
        %v4379 = vld [vmem:[%s4378] sm:$0x1]
        %v4381 = vlaneseq
        %v4382 = vshrl.u32 %v4381, 7
        %v4383 = vsub.s32 0, %v4382
        %v4384 = vrot.slane %v4379, %v4383
        %v4386 = vmul.f32 %v4362, %v4384
        %v4387 = vmul.f32 %v4363, %v4384
        %v4388 = vmul.f32 %v4364, %v4384
        %v4389 = vmul.f32 %v4365, %v4384
        %v4390 = vmul.f32 %v4366, %v4384
        %v4391 = vmul.f32 %v4367, %v4384
        %v4392 = vmul.f32 %v4368, %v4384
        %v4393 = vmul.f32 %v4369, %v4384
        %v4394 = vmul.f32 %v4370, %v4384
        %v4395 = vmul.f32 %v4371, %v4384
        %v4396 = vmul.f32 %v4372, %v4384
        %v4397 = vmul.f32 %v4373, %v4384
        %v4398 = vmul.f32 %v4374, %v4384
        %v4399 = vmul.f32 %v4375, %v4384
        %v4400 = vmul.f32 %v4376, %v4384
        %v4401 = vmul.f32 %v4377, %v4384
        %v4402 = vpack.c.bf16 %v3742, %v3741
        %v4403 = vpack.c.bf16 %v3744, %v3743
        %v4404 = vpack.c.bf16 %v3746, %v3745
        %v4405 = vpack.c.bf16 %v3748, %v3747
        %v4406 = vpack.c.bf16 %v3750, %v3749
        %v4407 = vpack.c.bf16 %v3752, %v3751
        %v4408 = vpack.c.bf16 %v3754, %v3753
        %v4409 = vpack.c.bf16 %v3756, %v3755
        %v4410 = vpack.c.bf16 %v3831, %v3830
        %v4411 = vpack.c.bf16 %v3833, %v3832
        %v4412 = vpack.c.bf16 %v3835, %v3834
        %v4413 = vpack.c.bf16 %v3837, %v3836
        %v4414 = vpack.c.bf16 %v3839, %v3838
        %v4415 = vpack.c.bf16 %v3841, %v3840
        %v4416 = vpack.c.bf16 %v3843, %v3842
        %v4417 = vpack.c.bf16 %v3845, %v3844
        %v4418 = vpack.c.bf16 %v3920, %v3919
        %v4419 = vpack.c.bf16 %v3922, %v3921
        %v4420 = vpack.c.bf16 %v3924, %v3923
        %v4421 = vpack.c.bf16 %v3926, %v3925
        %v4422 = vpack.c.bf16 %v3928, %v3927
        %v4423 = vpack.c.bf16 %v3930, %v3929
        %v4424 = vpack.c.bf16 %v3932, %v3931
        %v4425 = vpack.c.bf16 %v3934, %v3933
        %v4426 = vpack.c.bf16 %v4008, %v4007
        %v4427 = vpack.c.bf16 %v4010, %v4009
        %v4428 = vpack.c.bf16 %v4012, %v4011
        %v4429 = vpack.c.bf16 %v4014, %v4013
        %v4430 = vpack.c.bf16 %v4016, %v4015
        %v4431 = vpack.c.bf16 %v4018, %v4017
        %v4432 = vpack.c.bf16 %v4020, %v4019
        %v4433 = vpack.c.bf16 %v4022, %v4021
        %v4434 = vpack.c.bf16 %v4032, %v4031
        %v4435 = vpack.c.bf16 %v4034, %v4033
        %v4436 = vpack.c.bf16 %v4036, %v4035
        %v4437 = vpack.c.bf16 %v4038, %v4037
        %v4438 = vpack.c.bf16 %v4040, %v4039
        %v4439 = vpack.c.bf16 %v4042, %v4041
        %v4440 = vpack.c.bf16 %v4044, %v4043
        %v4441 = vpack.c.bf16 %v4046, %v4045
        %v4442 = vpack.c.bf16 %v4120, %v4119
        %v4443 = vpack.c.bf16 %v4122, %v4121
        %v4444 = vpack.c.bf16 %v4124, %v4123
        %v4445 = vpack.c.bf16 %v4126, %v4125
        %v4446 = vpack.c.bf16 %v4128, %v4127
        %v4447 = vpack.c.bf16 %v4130, %v4129
        %v4448 = vpack.c.bf16 %v4132, %v4131
        %v4449 = vpack.c.bf16 %v4134, %v4133
        %v4450 = vpack.c.bf16 %v4209, %v4208
        %v4451 = vpack.c.bf16 %v4211, %v4210
        %v4452 = vpack.c.bf16 %v4213, %v4212
        %v4453 = vpack.c.bf16 %v4215, %v4214
        %v4454 = vpack.c.bf16 %v4217, %v4216
        %v4455 = vpack.c.bf16 %v4219, %v4218
        %v4456 = vpack.c.bf16 %v4221, %v4220
        %v4457 = vpack.c.bf16 %v4223, %v4222
        %v4458 = vpack.c.bf16 %v4298, %v4297
        %v4459 = vpack.c.bf16 %v4300, %v4299
        %v4460 = vpack.c.bf16 %v4302, %v4301
        %v4461 = vpack.c.bf16 %v4304, %v4303
        %v4462 = vpack.c.bf16 %v4306, %v4305
        %v4463 = vpack.c.bf16 %v4308, %v4307
        %v4464 = vpack.c.bf16 %v4310, %v4309
        %v4465 = vpack.c.bf16 %v4312, %v4311
        %v4466 = vpack.c.bf16 %v4387, %v4386
        %v4467 = vpack.c.bf16 %v4389, %v4388
        %v4468 = vpack.c.bf16 %v4391, %v4390
        %v4469 = vpack.c.bf16 %v4393, %v4392
        %v4470 = vpack.c.bf16 %v4395, %v4394
        %v4471 = vpack.c.bf16 %v4397, %v4396
        %v4472 = vpack.c.bf16 %v4399, %v4398
        %v4473 = vpack.c.bf16 %v4401, %v4400
        %v4474 = vld [vmem:[%s13] sm:$0xff]
        %v4475 = vld [vmem:[%s13 + $0x8] sm:$0xff]
        %v4476 = vld [vmem:[%s13 + $0x10] sm:$0xff]
        %v4477 = vld [vmem:[%s13 + $0x18] sm:$0xff]
        %v4478 = vld [vmem:[%s13 + $0x20] sm:$0xf]
        %v4479 = vld [vmem:[%s13 + $0x24] sm:$0xff]
        %v4480 = vld [vmem:[%s13 + $0x2c] sm:$0xff]
        %v4481 = vld [vmem:[%s13 + $0x34] sm:$0xff]
        %v4482 = vld [vmem:[%s13 + $0x3c] sm:$0xff]
        %v4483 = vld [vmem:[%s13 + $0x44] sm:$0xf]
        %v4484 = vld [vmem:[%s13 + $0x48] sm:$0xff]
        %v4485 = vld [vmem:[%s13 + $0x50] sm:$0xff]
        %v4486 = vld [vmem:[%s13 + $0x58] sm:$0xff]
        %v4487 = vld [vmem:[%s13 + $0x60] sm:$0xff]
        %v4488 = vld [vmem:[%s13 + $0x68] sm:$0xf]
        %v4489 = vld [vmem:[%s13 + $0x6c] sm:$0xff]
        %v4490 = vld [vmem:[%s13 + $0x74] sm:$0xff]
        %v4491 = vld [vmem:[%s13 + $0x7c] sm:$0xff]
        %v4492 = vld [vmem:[%s13 + $0x84] sm:$0xff]
        %v4493 = vld [vmem:[%s13 + $0x8c] sm:$0xf]
        %v4494 = vld [vmem:[%s13 + $0x90] sm:$0xff]
        %v4495 = vld [vmem:[%s13 + $0x98] sm:$0xff]
        %v4496 = vld [vmem:[%s13 + $0xa0] sm:$0xff]
        %v4497 = vld [vmem:[%s13 + $0xa8] sm:$0xff]
        %v4498 = vld [vmem:[%s13 + $0xb0] sm:$0xf]
        %v4499 = vld [vmem:[%s13 + $0xb4] sm:$0xff]
        %v4500 = vld [vmem:[%s13 + $0xbc] sm:$0xff]
        %v4501 = vld [vmem:[%s13 + $0xc4] sm:$0xff]
        %v4502 = vld [vmem:[%s13 + $0xcc] sm:$0xff]
        %v4503 = vld [vmem:[%s13 + $0xd4] sm:$0xf]
        %v4504 = vld [vmem:[%s13 + $0xd8] sm:$0xff]
        %v4505 = vld [vmem:[%s13 + $0xe0] sm:$0xff]
        %v4506 = vld [vmem:[%s13 + $0xe8] sm:$0xff]
        %v4507 = vld [vmem:[%s13 + $0xf0] sm:$0xff]
        %v4508 = vld [vmem:[%s13 + $0xf8] sm:$0xf]
        %v4509 = vld [vmem:[%s13 + $0xfc] sm:$0xff]
        %v4510 = vld [vmem:[%s13 + $0x104] sm:$0xff]
        %v4511 = vld [vmem:[%s13 + $0x10c] sm:$0xff]
        %v4512 = vld [vmem:[%s13 + $0x114] sm:$0xff]
        %v4513 = vld [vmem:[%s13 + $0x11c] sm:$0xf]
        %v4514 = vld [vmem:[%s13 + $0x120] sm:$0xff]
        %v4515 = vld [vmem:[%s13 + $0x128] sm:$0xff]
        %v4516 = vld [vmem:[%s13 + $0x130] sm:$0xff]
        %v4517 = vld [vmem:[%s13 + $0x138] sm:$0xff]
        %v4518 = vld [vmem:[%s13 + $0x140] sm:$0xf]
        %v4519 = vld [vmem:[%s13 + $0x144] sm:$0xff]
        %v4520 = vld [vmem:[%s13 + $0x14c] sm:$0xff]
        %v4521 = vld [vmem:[%s13 + $0x154] sm:$0xff]
        %v4522 = vld [vmem:[%s13 + $0x15c] sm:$0xff]
        %v4523 = vld [vmem:[%s13 + $0x164] sm:$0xf]
        %v4524 = vld [vmem:[%s13 + $0x168] sm:$0xff]
        %v4525 = vld [vmem:[%s13 + $0x170] sm:$0xff]
        %v4526 = vld [vmem:[%s13 + $0x178] sm:$0xff]
        %v4527 = vld [vmem:[%s13 + $0x180] sm:$0xff]
        %v4528 = vld [vmem:[%s13 + $0x188] sm:$0xf]
        %v4529 = vld [vmem:[%s13 + $0x18c] sm:$0xff]
        %v4530 = vld [vmem:[%s13 + $0x194] sm:$0xff]
        %v4531 = vld [vmem:[%s13 + $0x19c] sm:$0xff]
        %v4532 = vld [vmem:[%s13 + $0x1a4] sm:$0xff]
        %v4533 = vld [vmem:[%s13 + $0x1ac] sm:$0xf]
        %v4534 = vld [vmem:[%s13 + $0x1b0] sm:$0xff]
        %v4535 = vld [vmem:[%s13 + $0x1b8] sm:$0xff]
        %v4536 = vld [vmem:[%s13 + $0x1c0] sm:$0xff]
        %v4537 = vld [vmem:[%s13 + $0x1c8] sm:$0xff]
        %v4538 = vld [vmem:[%s13 + $0x1d0] sm:$0xf]
        %v4539 = vld [vmem:[%s13 + $0x1d4] sm:$0xff]
        %v4540 = vld [vmem:[%s13 + $0x1dc] sm:$0xff]
        %v4541 = vld [vmem:[%s13 + $0x1e4] sm:$0xff]
        %v4542 = vld [vmem:[%s13 + $0x1ec] sm:$0xff]
        %v4543 = vld [vmem:[%s13 + $0x1f4] sm:$0xf]
        %v4544 = vld [vmem:[%s13 + $0x1f8] sm:$0xff]
        %v4545 = vld [vmem:[%s13 + $0x200] sm:$0xff]
        %v4546 = vld [vmem:[%s13 + $0x208] sm:$0xff]
        %v4547 = vld [vmem:[%s13 + $0x210] sm:$0xff]
        %v4548 = vld [vmem:[%s13 + $0x218] sm:$0xf]
        %v4549 = vld [vmem:[%s13 + $0x21c] sm:$0xff]
        %v4550 = vld [vmem:[%s13 + $0x224] sm:$0xff]
        %v4551 = vld [vmem:[%s13 + $0x22c] sm:$0xff]
        %v4552 = vld [vmem:[%s13 + $0x234] sm:$0xff]
        %v4553 = vld [vmem:[%s13 + $0x23c] sm:$0xf]
        %v4554 = vld [vmem:[%s14] sm:$0xff]
        %v4555 = vld [vmem:[%s14 + $0x8] sm:$0xff]
        %v4556 = vld [vmem:[%s14 + $0x10] sm:$0xff]
        %v4557 = vld [vmem:[%s14 + $0x18] sm:$0xff]
        %v4558 = vld [vmem:[%s14 + $0x20] sm:$0xff]
        %v4559 = vld [vmem:[%s14 + $0x28] sm:$0xff]
        %v4560 = vld [vmem:[%s14 + $0x30] sm:$0xff]
        %v4561 = vld [vmem:[%s14 + $0x38] sm:$0xff]
        %v4562 = vld [vmem:[%s14 + $0x40] sm:$0xff]
        %v4563 = vld [vmem:[%s14 + $0x48] sm:$0xff]
        %v4564 = vld [vmem:[%s14 + $0x50] sm:$0xff]
        %v4565 = vld [vmem:[%s14 + $0x58] sm:$0xff]
        %v4566 = vld [vmem:[%s14 + $0x60] sm:$0xff]
        %v4567 = vld [vmem:[%s14 + $0x68] sm:$0xff]
        %v4568 = vld [vmem:[%s14 + $0x70] sm:$0xff]
        %v4569 = vld [vmem:[%s14 + $0x78] sm:$0xff]
        %4571 = vset.pattern.permute.xlu0 0
        %4572 = vperm.xlu0 %4571, %v4554
        %v4573 = vpop.permute.xlu0 %4572
        %4576 = vset.pattern.permute.xlu0 0
        %4577 = vperm.xlu0 %4576, %v4555
        %v4578 = vpop.permute.xlu0 %4577
        %4581 = vset.pattern.permute.xlu0 0
        %4582 = vperm.xlu0 %4581, %v4556
        %v4583 = vpop.permute.xlu0 %4582
        %4586 = vset.pattern.permute.xlu0 0
        %4587 = vperm.xlu0 %4586, %v4557
        %v4588 = vpop.permute.xlu0 %4587
        %4591 = vset.pattern.permute.xlu0 0
        %4592 = vperm.xlu0 %4591, %v4558
        %v4593 = vpop.permute.xlu0 %4592
        %4596 = vset.pattern.permute.xlu0 0
        %4597 = vperm.xlu0 %4596, %v4559
        %v4598 = vpop.permute.xlu0 %4597
        %4601 = vset.pattern.permute.xlu0 0
        %4602 = vperm.xlu0 %4601, %v4560
        %v4603 = vpop.permute.xlu0 %4602
        %4606 = vset.pattern.permute.xlu0 0
        %4607 = vperm.xlu0 %4606, %v4561
        %v4608 = vpop.permute.xlu0 %4607
        %4611 = vset.pattern.permute.xlu0 0
        %4612 = vperm.xlu0 %4611, %v4562
        %v4613 = vpop.permute.xlu0 %4612
        %4616 = vset.pattern.permute.xlu0 0
        %4617 = vperm.xlu0 %4616, %v4563
        %v4618 = vpop.permute.xlu0 %4617
        %4621 = vset.pattern.permute.xlu0 0
        %4622 = vperm.xlu0 %4621, %v4564
        %v4623 = vpop.permute.xlu0 %4622
        %4626 = vset.pattern.permute.xlu0 0
        %4627 = vperm.xlu0 %4626, %v4565
        %v4628 = vpop.permute.xlu0 %4627
        %4631 = vset.pattern.permute.xlu0 0
        %4632 = vperm.xlu0 %4631, %v4566
        %v4633 = vpop.permute.xlu0 %4632
        %4636 = vset.pattern.permute.xlu0 0
        %4637 = vperm.xlu0 %4636, %v4567
        %v4638 = vpop.permute.xlu0 %4637
        %4641 = vset.pattern.permute.xlu0 0
        %4642 = vperm.xlu0 %4641, %v4568
        %v4643 = vpop.permute.xlu0 %4642
        %4646 = vset.pattern.permute.xlu0 0
        %4647 = vperm.xlu0 %4646, %v4569
        %v4648 = vpop.permute.xlu0 %4647
        %v4730 = vunpack.c.l.b16 %v4474
        %v4731 = vunpack.c.h.b16 %v4474
        %v4732 = vunpack.c.l.b16 %v4475
        %v4733 = vunpack.c.h.b16 %v4475
        %v4734 = vunpack.c.l.b16 %v4476
        %v4735 = vunpack.c.h.b16 %v4476
        %v4736 = vunpack.c.l.b16 %v4477
        %v4737 = vunpack.c.h.b16 %v4477
        %v4738 = vunpack.c.l.b16 %v4478
        %v4739 = vunpack.c.l.b16 %v4479
        %v4740 = vunpack.c.h.b16 %v4479
        %v4741 = vunpack.c.l.b16 %v4480
        %v4742 = vunpack.c.h.b16 %v4480
        %v4743 = vunpack.c.l.b16 %v4481
        %v4744 = vunpack.c.h.b16 %v4481
        %v4745 = vunpack.c.l.b16 %v4482
        %v4746 = vunpack.c.h.b16 %v4482
        %v4747 = vunpack.c.l.b16 %v4483
        %v4748 = vunpack.c.l.b16 %v4484
        %v4749 = vunpack.c.h.b16 %v4484
        %v4750 = vunpack.c.l.b16 %v4485
        %v4751 = vunpack.c.h.b16 %v4485
        %v4752 = vunpack.c.l.b16 %v4486
        %v4753 = vunpack.c.h.b16 %v4486
        %v4754 = vunpack.c.l.b16 %v4487
        %v4755 = vunpack.c.h.b16 %v4487
        %v4756 = vunpack.c.l.b16 %v4488
        %v4757 = vunpack.c.l.b16 %v4489
        %v4758 = vunpack.c.h.b16 %v4489
        %v4759 = vunpack.c.l.b16 %v4490
        %v4760 = vunpack.c.h.b16 %v4490
        %v4761 = vunpack.c.l.b16 %v4491
        %v4762 = vunpack.c.h.b16 %v4491
        %v4763 = vunpack.c.l.b16 %v4492
        %v4764 = vunpack.c.h.b16 %v4492
        %v4765 = vunpack.c.l.b16 %v4493
        %v4766 = vunpack.c.l.b16 %v4494
        %v4767 = vunpack.c.h.b16 %v4494
        %v4768 = vunpack.c.l.b16 %v4495
        %v4769 = vunpack.c.h.b16 %v4495
        %v4770 = vunpack.c.l.b16 %v4496
        %v4771 = vunpack.c.h.b16 %v4496
        %v4772 = vunpack.c.l.b16 %v4497
        %v4773 = vunpack.c.h.b16 %v4497
        %v4774 = vunpack.c.l.b16 %v4498
        %v4775 = vunpack.c.l.b16 %v4499
        %v4776 = vunpack.c.h.b16 %v4499
        %v4777 = vunpack.c.l.b16 %v4500
        %v4778 = vunpack.c.h.b16 %v4500
        %v4779 = vunpack.c.l.b16 %v4501
        %v4780 = vunpack.c.h.b16 %v4501
        %v4781 = vunpack.c.l.b16 %v4502
        %v4782 = vunpack.c.h.b16 %v4502
        %v4783 = vunpack.c.l.b16 %v4503
        %v4784 = vunpack.c.l.b16 %v4504
        %v4785 = vunpack.c.h.b16 %v4504
        %v4786 = vunpack.c.l.b16 %v4505
        %v4787 = vunpack.c.h.b16 %v4505
        %v4788 = vunpack.c.l.b16 %v4506
        %v4789 = vunpack.c.h.b16 %v4506
        %v4790 = vunpack.c.l.b16 %v4507
        %v4791 = vunpack.c.h.b16 %v4507
        %v4792 = vunpack.c.l.b16 %v4508
        %v4793 = vunpack.c.l.b16 %v4509
        %v4794 = vunpack.c.h.b16 %v4509
        %v4795 = vunpack.c.l.b16 %v4510
        %v4796 = vunpack.c.h.b16 %v4510
        %v4797 = vunpack.c.l.b16 %v4511
        %v4798 = vunpack.c.h.b16 %v4511
        %v4799 = vunpack.c.l.b16 %v4512
        %v4800 = vunpack.c.h.b16 %v4512
        %v4801 = vunpack.c.l.b16 %v4513
        %v4802 = vunpack.c.l.b16 %v4514
        %v4803 = vunpack.c.h.b16 %v4514
        %v4804 = vunpack.c.l.b16 %v4515
        %v4805 = vunpack.c.h.b16 %v4515
        %v4806 = vunpack.c.l.b16 %v4516
        %v4807 = vunpack.c.h.b16 %v4516
        %v4808 = vunpack.c.l.b16 %v4517
        %v4809 = vunpack.c.h.b16 %v4517
        %v4810 = vunpack.c.l.b16 %v4518
        %v4811 = vunpack.c.l.b16 %v4519
        %v4812 = vunpack.c.h.b16 %v4519
        %v4813 = vunpack.c.l.b16 %v4520
        %v4814 = vunpack.c.h.b16 %v4520
        %v4815 = vunpack.c.l.b16 %v4521
        %v4816 = vunpack.c.h.b16 %v4521
        %v4817 = vunpack.c.l.b16 %v4522
        %v4818 = vunpack.c.h.b16 %v4522
        %v4819 = vunpack.c.l.b16 %v4523
        %v4820 = vunpack.c.l.b16 %v4524
        %v4821 = vunpack.c.h.b16 %v4524
        %v4822 = vunpack.c.l.b16 %v4525
        %v4823 = vunpack.c.h.b16 %v4525
        %v4824 = vunpack.c.l.b16 %v4526
        %v4825 = vunpack.c.h.b16 %v4526
        %v4826 = vunpack.c.l.b16 %v4527
        %v4827 = vunpack.c.h.b16 %v4527
        %v4828 = vunpack.c.l.b16 %v4528
        %v4829 = vunpack.c.l.b16 %v4529
        %v4830 = vunpack.c.h.b16 %v4529
        %v4831 = vunpack.c.l.b16 %v4530
        %v4832 = vunpack.c.h.b16 %v4530
        %v4833 = vunpack.c.l.b16 %v4531
        %v4834 = vunpack.c.h.b16 %v4531
        %v4835 = vunpack.c.l.b16 %v4532
        %v4836 = vunpack.c.h.b16 %v4532
        %v4837 = vunpack.c.l.b16 %v4533
        %v4838 = vunpack.c.l.b16 %v4534
        %v4839 = vunpack.c.h.b16 %v4534
        %v4840 = vunpack.c.l.b16 %v4535
        %v4841 = vunpack.c.h.b16 %v4535
        %v4842 = vunpack.c.l.b16 %v4536
        %v4843 = vunpack.c.h.b16 %v4536
        %v4844 = vunpack.c.l.b16 %v4537
        %v4845 = vunpack.c.h.b16 %v4537
        %v4846 = vunpack.c.l.b16 %v4538
        %v4847 = vunpack.c.l.b16 %v4539
        %v4848 = vunpack.c.h.b16 %v4539
        %v4849 = vunpack.c.l.b16 %v4540
        %v4850 = vunpack.c.h.b16 %v4540
        %v4851 = vunpack.c.l.b16 %v4541
        %v4852 = vunpack.c.h.b16 %v4541
        %v4853 = vunpack.c.l.b16 %v4542
        %v4854 = vunpack.c.h.b16 %v4542
        %v4855 = vunpack.c.l.b16 %v4543
        %v4856 = vunpack.c.l.b16 %v4544
        %v4857 = vunpack.c.h.b16 %v4544
        %v4858 = vunpack.c.l.b16 %v4545
        %v4859 = vunpack.c.h.b16 %v4545
        %v4860 = vunpack.c.l.b16 %v4546
        %v4861 = vunpack.c.h.b16 %v4546
        %v4862 = vunpack.c.l.b16 %v4547
        %v4863 = vunpack.c.h.b16 %v4547
        %v4864 = vunpack.c.l.b16 %v4548
        %v4865 = vunpack.c.l.b16 %v4549
        %v4866 = vunpack.c.h.b16 %v4549
        %v4867 = vunpack.c.l.b16 %v4550
        %v4868 = vunpack.c.h.b16 %v4550
        %v4869 = vunpack.c.l.b16 %v4551
        %v4870 = vunpack.c.h.b16 %v4551
        %v4871 = vunpack.c.l.b16 %v4552
        %v4872 = vunpack.c.h.b16 %v4552
        %v4873 = vunpack.c.l.b16 %v4553
        %v4874 = vpack.c.b16 %v4739, %v4730
        %v4875 = vpack.c.b16 %v4740, %v4731
        %v4876 = vpack.c.b16 %v4741, %v4732
        %v4877 = vpack.c.b16 %v4742, %v4733
        %v4878 = vpack.c.b16 %v4743, %v4734
        %v4879 = vpack.c.b16 %v4744, %v4735
        %v4880 = vpack.c.b16 %v4745, %v4736
        %v4881 = vpack.c.b16 %v4746, %v4737
        %v4882 = vpack.c.b16 %v4747, %v4738
        %v4883 = vpack.c.b16 %v4757, %v4748
        %v4884 = vpack.c.b16 %v4758, %v4749
        %v4885 = vpack.c.b16 %v4759, %v4750
        %v4886 = vpack.c.b16 %v4760, %v4751
        %v4887 = vpack.c.b16 %v4761, %v4752
        %v4888 = vpack.c.b16 %v4762, %v4753
        %v4889 = vpack.c.b16 %v4763, %v4754
        %v4890 = vpack.c.b16 %v4764, %v4755
        %v4891 = vpack.c.b16 %v4765, %v4756
        %v4892 = vpack.c.b16 %v4775, %v4766
        %v4893 = vpack.c.b16 %v4776, %v4767
        %v4894 = vpack.c.b16 %v4777, %v4768
        %v4895 = vpack.c.b16 %v4778, %v4769
        %v4896 = vpack.c.b16 %v4779, %v4770
        %v4897 = vpack.c.b16 %v4780, %v4771
        %v4898 = vpack.c.b16 %v4781, %v4772
        %v4899 = vpack.c.b16 %v4782, %v4773
        %v4900 = vpack.c.b16 %v4783, %v4774
        %v4901 = vpack.c.b16 %v4793, %v4784
        %v4902 = vpack.c.b16 %v4794, %v4785
        %v4903 = vpack.c.b16 %v4795, %v4786
        %v4904 = vpack.c.b16 %v4796, %v4787
        %v4905 = vpack.c.b16 %v4797, %v4788
        %v4906 = vpack.c.b16 %v4798, %v4789
        %v4907 = vpack.c.b16 %v4799, %v4790
        %v4908 = vpack.c.b16 %v4800, %v4791
        %v4909 = vpack.c.b16 %v4801, %v4792
        %v4910 = vpack.c.b16 %v4811, %v4802
        %v4911 = vpack.c.b16 %v4812, %v4803
        %v4912 = vpack.c.b16 %v4813, %v4804
        %v4913 = vpack.c.b16 %v4814, %v4805
        %v4914 = vpack.c.b16 %v4815, %v4806
        %v4915 = vpack.c.b16 %v4816, %v4807
        %v4916 = vpack.c.b16 %v4817, %v4808
        %v4917 = vpack.c.b16 %v4818, %v4809
        %v4918 = vpack.c.b16 %v4819, %v4810
        %v4919 = vpack.c.b16 %v4829, %v4820
        %v4920 = vpack.c.b16 %v4830, %v4821
        %v4921 = vpack.c.b16 %v4831, %v4822
        %v4922 = vpack.c.b16 %v4832, %v4823
        %v4923 = vpack.c.b16 %v4833, %v4824
        %v4924 = vpack.c.b16 %v4834, %v4825
        %v4925 = vpack.c.b16 %v4835, %v4826
        %v4926 = vpack.c.b16 %v4836, %v4827
        %v4927 = vpack.c.b16 %v4837, %v4828
        %v4928 = vpack.c.b16 %v4847, %v4838
        %v4929 = vpack.c.b16 %v4848, %v4839
        %v4930 = vpack.c.b16 %v4849, %v4840
        %v4931 = vpack.c.b16 %v4850, %v4841
        %v4932 = vpack.c.b16 %v4851, %v4842
        %v4933 = vpack.c.b16 %v4852, %v4843
        %v4934 = vpack.c.b16 %v4853, %v4844
        %v4935 = vpack.c.b16 %v4854, %v4845
        %v4936 = vpack.c.b16 %v4855, %v4846
        %v4937 = vpack.c.b16 %v4865, %v4856
        %v4938 = vpack.c.b16 %v4866, %v4857
        %v4939 = vpack.c.b16 %v4867, %v4858
        %v4940 = vpack.c.b16 %v4868, %v4859
        %v4941 = vpack.c.b16 %v4869, %v4860
        %v4942 = vpack.c.b16 %v4870, %v4861
        %v4943 = vpack.c.b16 %v4871, %v4862
        %v4944 = vpack.c.b16 %v4872, %v4863
        %v4945 = vpack.c.b16 %v4873, %v4864
        %5018 = vmatprep.subr.bf16.mxu0 0
        %5019 = vmatpush1.bf16.msra.mxu0 %v4402
        %5020 = vmatprep.subr.bf16.mxu0 0
        %5021 = vmatpush1.bf16.msra.mxu0 %v4403
        %5022 = vmatprep.subr.bf16.mxu0 0
        %5023 = vmatpush1.bf16.msra.mxu0 %v4404
        %5024 = vmatprep.subr.bf16.mxu0 0
        %5025 = vmatpush1.bf16.msra.mxu0 %v4405
        %5026 = vmatprep.subr.bf16.mxu0 0
        %5027 = vmatpush1.bf16.msra.mxu0 %v4406
        %5028 = vmatprep.subr.bf16.mxu0 0
        %5029 = vmatpush1.bf16.msra.mxu0 %v4407
        %5030 = vmatprep.subr.bf16.mxu0 0
        %5031 = vmatpush1.bf16.msra.mxu0 %v4408
        %5032 = vmatprep.subr.bf16.mxu0 0
        %5033 = vmatpush1.bf16.msra.mxu0 %v4409
        %5034 = vmatprep.subr.bf16.mxu0 0
        %5035 = vmatpush1.bf16.msra.mxu0 %v4410
        %5036 = vmatprep.subr.bf16.mxu0 0
        %5037 = vmatpush1.bf16.msra.mxu0 %v4411
        %5038 = vmatprep.subr.bf16.mxu0 0
        %5039 = vmatpush1.bf16.msra.mxu0 %v4412
        %5040 = vmatprep.subr.bf16.mxu0 0
        %5041 = vmatpush1.bf16.msra.mxu0 %v4413
        %5042 = vmatprep.subr.bf16.mxu0 0
        %5043 = vmatpush1.bf16.msra.mxu0 %v4414
        %5044 = vmatprep.subr.bf16.mxu0 0
        %5045 = vmatpush1.bf16.msra.mxu0 %v4415
        %5046 = vmatprep.subr.bf16.mxu0 0
        %5047 = vmatpush1.bf16.msra.mxu0 %v4416
        %5048 = vmatprep.subr.bf16.mxu0 0
        %5049 = vmatpush1.bf16.msra.mxu0 %v4417
        %5050 = vmatprep.mubr.bf16.mxu0 %v4875
        %5051 = vmatmul.mubr.bf16.gmra.mrb[0].mxu0 %v4874
        %v5052 = vpop.f32.mrb[0].mxu0
        %v5053 = vadd.f32 %v4573, %v5052
        %v5054 = vpop.f32.mrb[0].mxu0
        %v5055 = vpop.f32.mrb[0].mxu0
        %v5056 = vadd.f32 %v4578, %v5055
        %v5057 = vpop.f32.mrb[0].mxu0
        %5058 = vmatprep.mubr.bf16.mxu0 %v4884
        %5059 = vmatmul.mubr.bf16.gmra.mrb[0].mxu0 %v4883
        %v5060 = vpop.f32.mrb[0].mxu0
        %v5061 = vadd.f32 %v4583, %v5060
        %v5062 = vpop.f32.mrb[0].mxu0
        %v5063 = vpop.f32.mrb[0].mxu0
        %v5064 = vadd.f32 %v4588, %v5063
        %v5065 = vpop.f32.mrb[0].mxu0
        %5066 = vmatprep.mubr.bf16.mxu0 %v4893
        %5067 = vmatmul.mubr.bf16.gmra.mrb[0].mxu0 %v4892
        %v5068 = vpop.f32.mrb[0].mxu0
        %v5069 = vadd.f32 %v4593, %v5068
        %v5070 = vpop.f32.mrb[0].mxu0
        %v5071 = vpop.f32.mrb[0].mxu0
        %v5072 = vadd.f32 %v4598, %v5071
        %v5073 = vpop.f32.mrb[0].mxu0
        %5074 = vmatprep.mubr.bf16.mxu0 %v4902
        %5075 = vmatmul.mubr.bf16.gmra.mrb[0].mxu0 %v4901
        %v5076 = vpop.f32.mrb[0].mxu0
        %v5077 = vadd.f32 %v4603, %v5076
        %v5078 = vpop.f32.mrb[0].mxu0
        %v5079 = vpop.f32.mrb[0].mxu0
        %v5080 = vadd.f32 %v4608, %v5079
        %v5081 = vpop.f32.mrb[0].mxu0
        %5082 = vmatprep.mubr.bf16.mxu0 %v4911
        %5083 = vmatmul.mubr.bf16.gmra.mrb[0].mxu0 %v4910
        %v5084 = vpop.f32.mrb[0].mxu0
        %v5085 = vadd.f32 %v4613, %v5084
        %v5086 = vpop.f32.mrb[0].mxu0
        %v5087 = vpop.f32.mrb[0].mxu0
        %v5088 = vadd.f32 %v4618, %v5087
        %v5089 = vpop.f32.mrb[0].mxu0
        %5090 = vmatprep.mubr.bf16.mxu0 %v4920
        %5091 = vmatmul.mubr.bf16.gmra.mrb[0].mxu0 %v4919
        %v5092 = vpop.f32.mrb[0].mxu0
        %v5093 = vadd.f32 %v4623, %v5092
        %v5094 = vpop.f32.mrb[0].mxu0
        %v5095 = vpop.f32.mrb[0].mxu0
        %v5096 = vadd.f32 %v4628, %v5095
        %v5097 = vpop.f32.mrb[0].mxu0
        %5098 = vmatprep.mubr.bf16.mxu0 %v4929
        %5099 = vmatmul.mubr.bf16.gmra.mrb[0].mxu0 %v4928
        %v5100 = vpop.f32.mrb[0].mxu0
        %v5101 = vadd.f32 %v4633, %v5100
        %v5102 = vpop.f32.mrb[0].mxu0
        %v5103 = vpop.f32.mrb[0].mxu0
        %v5104 = vadd.f32 %v4638, %v5103
        %v5105 = vpop.f32.mrb[0].mxu0
        %5106 = vmatprep.mubr.bf16.mxu0 %v4938
        %5107 = vmatmul.mubr.bf16.gmra.mrb[0].mxu0 %v4937
        %v5108 = vpop.f32.mrb[0].mxu0
        %v5109 = vadd.f32 %v4643, %v5108
        %v5110 = vpop.f32.mrb[0].mxu0
        %v5111 = vpop.f32.mrb[0].mxu0
        %v5112 = vadd.f32 %v4648, %v5111
        %v5113 = vpop.f32.mrb[0].mxu0
        %5114 = vdwg.mxu0
        %5115 = vmatprep.subr.bf16.mxu0 0
        %5116 = vmatpush1.bf16.msra.mxu0 %v4418
        %5117 = vmatprep.subr.bf16.mxu0 0
        %5118 = vmatpush1.bf16.msra.mxu0 %v4419
        %5119 = vmatprep.subr.bf16.mxu0 0
        %5120 = vmatpush1.bf16.msra.mxu0 %v4420
        %5121 = vmatprep.subr.bf16.mxu0 0
        %5122 = vmatpush1.bf16.msra.mxu0 %v4421
        %5123 = vmatprep.subr.bf16.mxu0 0
        %5124 = vmatpush1.bf16.msra.mxu0 %v4422
        %5125 = vmatprep.subr.bf16.mxu0 0
        %5126 = vmatpush1.bf16.msra.mxu0 %v4423
        %5127 = vmatprep.subr.bf16.mxu0 0
        %5128 = vmatpush1.bf16.msra.mxu0 %v4424
        %5129 = vmatprep.subr.bf16.mxu0 0
        %5130 = vmatpush1.bf16.msra.mxu0 %v4425
        %5131 = vmatprep.subr.bf16.mxu0 0
        %5132 = vmatpush1.bf16.msra.mxu0 %v4426
        %5133 = vmatprep.subr.bf16.mxu0 0
        %5134 = vmatpush1.bf16.msra.mxu0 %v4427
        %5135 = vmatprep.subr.bf16.mxu0 0
        %5136 = vmatpush1.bf16.msra.mxu0 %v4428
        %5137 = vmatprep.subr.bf16.mxu0 0
        %5138 = vmatpush1.bf16.msra.mxu0 %v4429
        %5139 = vmatprep.subr.bf16.mxu0 0
        %5140 = vmatpush1.bf16.msra.mxu0 %v4430
        %5141 = vmatprep.subr.bf16.mxu0 0
        %5142 = vmatpush1.bf16.msra.mxu0 %v4431
        %5143 = vmatprep.subr.bf16.mxu0 0
        %5144 = vmatpush1.bf16.msra.mxu0 %v4432
        %5145 = vmatprep.subr.bf16.mxu0 0
        %5146 = vmatpush1.bf16.msra.mxu0 %v4433
        %5147 = vmatprep.mubr.bf16.mxu0 %v4877
        %5148 = vmatmul.mubr.bf16.gmra.mrb[0].mxu0 %v4876
        %v5149 = vpop.f32.mrb[0].mxu0
        %v5150 = vadd.f32 %v5053, %v5149
        %v5151 = vpop.f32.mrb[0].mxu0
        %v5152 = vpop.f32.mrb[0].mxu0
        %v5153 = vadd.f32 %v5056, %v5152
        %v5154 = vpop.f32.mrb[0].mxu0
        %5155 = vmatprep.mubr.bf16.mxu0 %v4886
        %5156 = vmatmul.mubr.bf16.gmra.mrb[0].mxu0 %v4885
        %v5157 = vpop.f32.mrb[0].mxu0
        %v5158 = vadd.f32 %v5061, %v5157
        %v5159 = vpop.f32.mrb[0].mxu0
        %v5160 = vpop.f32.mrb[0].mxu0
        %v5161 = vadd.f32 %v5064, %v5160
        %v5162 = vpop.f32.mrb[0].mxu0
        %5163 = vmatprep.mubr.bf16.mxu0 %v4895
        %5164 = vmatmul.mubr.bf16.gmra.mrb[0].mxu0 %v4894
        %v5165 = vpop.f32.mrb[0].mxu0
        %v5166 = vadd.f32 %v5069, %v5165
        %v5167 = vpop.f32.mrb[0].mxu0
        %v5168 = vpop.f32.mrb[0].mxu0
        %v5169 = vadd.f32 %v5072, %v5168
        %v5170 = vpop.f32.mrb[0].mxu0
        %5171 = vmatprep.mubr.bf16.mxu0 %v4904
        %5172 = vmatmul.mubr.bf16.gmra.mrb[0].mxu0 %v4903
        %v5173 = vpop.f32.mrb[0].mxu0
        %v5174 = vadd.f32 %v5077, %v5173
        %v5175 = vpop.f32.mrb[0].mxu0
        %v5176 = vpop.f32.mrb[0].mxu0
        %v5177 = vadd.f32 %v5080, %v5176
        %v5178 = vpop.f32.mrb[0].mxu0
        %5179 = vmatprep.mubr.bf16.mxu0 %v4913
        %5180 = vmatmul.mubr.bf16.gmra.mrb[0].mxu0 %v4912
        %v5181 = vpop.f32.mrb[0].mxu0
        %v5182 = vadd.f32 %v5085, %v5181
        %v5183 = vpop.f32.mrb[0].mxu0
        %v5184 = vpop.f32.mrb[0].mxu0
        %v5185 = vadd.f32 %v5088, %v5184
        %v5186 = vpop.f32.mrb[0].mxu0
        %5187 = vmatprep.mubr.bf16.mxu0 %v4922
        %5188 = vmatmul.mubr.bf16.gmra.mrb[0].mxu0 %v4921
        %v5189 = vpop.f32.mrb[0].mxu0
        %v5190 = vadd.f32 %v5093, %v5189
        %v5191 = vpop.f32.mrb[0].mxu0
        %v5192 = vpop.f32.mrb[0].mxu0
        %v5193 = vadd.f32 %v5096, %v5192
        %v5194 = vpop.f32.mrb[0].mxu0
        %5195 = vmatprep.mubr.bf16.mxu0 %v4931
        %5196 = vmatmul.mubr.bf16.gmra.mrb[0].mxu0 %v4930
        %v5197 = vpop.f32.mrb[0].mxu0
        %v5198 = vadd.f32 %v5101, %v5197
        %v5199 = vpop.f32.mrb[0].mxu0
        %v5200 = vpop.f32.mrb[0].mxu0
        %v5201 = vadd.f32 %v5104, %v5200
        %v5202 = vpop.f32.mrb[0].mxu0
        %5203 = vmatprep.mubr.bf16.mxu0 %v4940
        %5204 = vmatmul.mubr.bf16.gmra.mrb[0].mxu0 %v4939
        %v5205 = vpop.f32.mrb[0].mxu0
        %v5206 = vadd.f32 %v5109, %v5205
        %v5207 = vpop.f32.mrb[0].mxu0
        %v5208 = vpop.f32.mrb[0].mxu0
        %v5209 = vadd.f32 %v5112, %v5208
        %v5210 = vpop.f32.mrb[0].mxu0
        %5211 = vdwg.mxu0
        %5212 = vmatprep.subr.bf16.mxu0 0
        %5213 = vmatpush1.bf16.msra.mxu0 %v4434
        %5214 = vmatprep.subr.bf16.mxu0 0
        %5215 = vmatpush1.bf16.msra.mxu0 %v4435
        %5216 = vmatprep.subr.bf16.mxu0 0
        %5217 = vmatpush1.bf16.msra.mxu0 %v4436
        %5218 = vmatprep.subr.bf16.mxu0 0
        %5219 = vmatpush1.bf16.msra.mxu0 %v4437
        %5220 = vmatprep.subr.bf16.mxu0 0
        %5221 = vmatpush1.bf16.msra.mxu0 %v4438
        %5222 = vmatprep.subr.bf16.mxu0 0
        %5223 = vmatpush1.bf16.msra.mxu0 %v4439
        %5224 = vmatprep.subr.bf16.mxu0 0
        %5225 = vmatpush1.bf16.msra.mxu0 %v4440
        %5226 = vmatprep.subr.bf16.mxu0 0
        %5227 = vmatpush1.bf16.msra.mxu0 %v4441
        %5228 = vmatprep.subr.bf16.mxu0 0
        %5229 = vmatpush1.bf16.msra.mxu0 %v4442
        %5230 = vmatprep.subr.bf16.mxu0 0
        %5231 = vmatpush1.bf16.msra.mxu0 %v4443
        %5232 = vmatprep.subr.bf16.mxu0 0
        %5233 = vmatpush1.bf16.msra.mxu0 %v4444
        %5234 = vmatprep.subr.bf16.mxu0 0
        %5235 = vmatpush1.bf16.msra.mxu0 %v4445
        %5236 = vmatprep.subr.bf16.mxu0 0
        %5237 = vmatpush1.bf16.msra.mxu0 %v4446
        %5238 = vmatprep.subr.bf16.mxu0 0
        %5239 = vmatpush1.bf16.msra.mxu0 %v4447
        %5240 = vmatprep.subr.bf16.mxu0 0
        %5241 = vmatpush1.bf16.msra.mxu0 %v4448
        %5242 = vmatprep.subr.bf16.mxu0 0
        %5243 = vmatpush1.bf16.msra.mxu0 %v4449
        %5244 = vmatprep.mubr.bf16.mxu0 %v4879
        %5245 = vmatmul.mubr.bf16.gmra.mrb[0].mxu0 %v4878
        %v5246 = vpop.f32.mrb[0].mxu0
        %v5247 = vadd.f32 %v5150, %v5246
        %v5248 = vpop.f32.mrb[0].mxu0
        %v5249 = vpop.f32.mrb[0].mxu0
        %v5250 = vadd.f32 %v5153, %v5249
        %v5251 = vpop.f32.mrb[0].mxu0
        %5252 = vmatprep.mubr.bf16.mxu0 %v4888
        %5253 = vmatmul.mubr.bf16.gmra.mrb[0].mxu0 %v4887
        %v5254 = vpop.f32.mrb[0].mxu0
        %v5255 = vadd.f32 %v5158, %v5254
        %v5256 = vpop.f32.mrb[0].mxu0
        %v5257 = vpop.f32.mrb[0].mxu0
        %v5258 = vadd.f32 %v5161, %v5257
        %v5259 = vpop.f32.mrb[0].mxu0
        %5260 = vmatprep.mubr.bf16.mxu0 %v4897
        %5261 = vmatmul.mubr.bf16.gmra.mrb[0].mxu0 %v4896
        %v5262 = vpop.f32.mrb[0].mxu0
        %v5263 = vadd.f32 %v5166, %v5262
        %v5264 = vpop.f32.mrb[0].mxu0
        %v5265 = vpop.f32.mrb[0].mxu0
        %v5266 = vadd.f32 %v5169, %v5265
        %v5267 = vpop.f32.mrb[0].mxu0
        %5268 = vmatprep.mubr.bf16.mxu0 %v4906
        %5269 = vmatmul.mubr.bf16.gmra.mrb[0].mxu0 %v4905
        %v5270 = vpop.f32.mrb[0].mxu0
        %v5271 = vadd.f32 %v5174, %v5270
        %v5272 = vpop.f32.mrb[0].mxu0
        %v5273 = vpop.f32.mrb[0].mxu0
        %v5274 = vadd.f32 %v5177, %v5273
        %v5275 = vpop.f32.mrb[0].mxu0
        %5276 = vmatprep.mubr.bf16.mxu0 %v4915
        %5277 = vmatmul.mubr.bf16.gmra.mrb[0].mxu0 %v4914
        %v5278 = vpop.f32.mrb[0].mxu0
        %v5279 = vadd.f32 %v5182, %v5278
        %v5280 = vpop.f32.mrb[0].mxu0
        %v5281 = vpop.f32.mrb[0].mxu0
        %v5282 = vadd.f32 %v5185, %v5281
        %v5283 = vpop.f32.mrb[0].mxu0
        %5284 = vmatprep.mubr.bf16.mxu0 %v4924
        %5285 = vmatmul.mubr.bf16.gmra.mrb[0].mxu0 %v4923
        %v5286 = vpop.f32.mrb[0].mxu0
        %v5287 = vadd.f32 %v5190, %v5286
        %v5288 = vpop.f32.mrb[0].mxu0
        %v5289 = vpop.f32.mrb[0].mxu0
        %v5290 = vadd.f32 %v5193, %v5289
        %v5291 = vpop.f32.mrb[0].mxu0
        %5292 = vmatprep.mubr.bf16.mxu0 %v4933
        %5293 = vmatmul.mubr.bf16.gmra.mrb[0].mxu0 %v4932
        %v5294 = vpop.f32.mrb[0].mxu0
        %v5295 = vadd.f32 %v5198, %v5294
        %v5296 = vpop.f32.mrb[0].mxu0
        %v5297 = vpop.f32.mrb[0].mxu0
        %v5298 = vadd.f32 %v5201, %v5297
        %v5299 = vpop.f32.mrb[0].mxu0
        %5300 = vmatprep.mubr.bf16.mxu0 %v4942
        %5301 = vmatmul.mubr.bf16.gmra.mrb[0].mxu0 %v4941
        %v5302 = vpop.f32.mrb[0].mxu0
        %v5303 = vadd.f32 %v5206, %v5302
        %v5304 = vpop.f32.mrb[0].mxu0
        %v5305 = vpop.f32.mrb[0].mxu0
        %v5306 = vadd.f32 %v5209, %v5305
        %v5307 = vpop.f32.mrb[0].mxu0
        %5308 = vdwg.mxu0
        %5309 = vmatprep.subr.bf16.mxu0 0
        %5310 = vmatpush1.bf16.msra.mxu0 %v4450
        %5311 = vmatprep.subr.bf16.mxu0 0
        %5312 = vmatpush1.bf16.msra.mxu0 %v4451
        %5313 = vmatprep.subr.bf16.mxu0 0
        %5314 = vmatpush1.bf16.msra.mxu0 %v4452
        %5315 = vmatprep.subr.bf16.mxu0 0
        %5316 = vmatpush1.bf16.msra.mxu0 %v4453
        %5317 = vmatprep.subr.bf16.mxu0 0
        %5318 = vmatpush1.bf16.msra.mxu0 %v4454
        %5319 = vmatprep.subr.bf16.mxu0 0
        %5320 = vmatpush1.bf16.msra.mxu0 %v4455
        %5321 = vmatprep.subr.bf16.mxu0 0
        %5322 = vmatpush1.bf16.msra.mxu0 %v4456
        %5323 = vmatprep.subr.bf16.mxu0 0
        %5324 = vmatpush1.bf16.msra.mxu0 %v4457
        %5325 = vmatprep.subr.bf16.mxu0 0
        %5326 = vmatpush1.bf16.msra.mxu0 %v4458
        %5327 = vmatprep.subr.bf16.mxu0 0
        %5328 = vmatpush1.bf16.msra.mxu0 %v4459
        %5329 = vmatprep.subr.bf16.mxu0 0
        %5330 = vmatpush1.bf16.msra.mxu0 %v4460
        %5331 = vmatprep.subr.bf16.mxu0 0
        %5332 = vmatpush1.bf16.msra.mxu0 %v4461
        %5333 = vmatprep.subr.bf16.mxu0 0
        %5334 = vmatpush1.bf16.msra.mxu0 %v4462
        %5335 = vmatprep.subr.bf16.mxu0 0
        %5336 = vmatpush1.bf16.msra.mxu0 %v4463
        %5337 = vmatprep.subr.bf16.mxu0 0
        %5338 = vmatpush1.bf16.msra.mxu0 %v4464
        %5339 = vmatprep.subr.bf16.mxu0 0
        %5340 = vmatpush1.bf16.msra.mxu0 %v4465
        %5341 = vmatprep.mubr.bf16.mxu0 %v4881
        %5342 = vmatmul.mubr.bf16.gmra.mrb[0].mxu0 %v4880
        %v5343 = vpop.f32.mrb[0].mxu0
        %v5344 = vadd.f32 %v5247, %v5343
        %v5345 = vpop.f32.mrb[0].mxu0
        %v5346 = vpop.f32.mrb[0].mxu0
        %v5347 = vadd.f32 %v5250, %v5346
        %v5348 = vpop.f32.mrb[0].mxu0
        %5349 = vmatprep.mubr.bf16.mxu0 %v4890
        %5350 = vmatmul.mubr.bf16.gmra.mrb[0].mxu0 %v4889
        %v5351 = vpop.f32.mrb[0].mxu0
        %v5352 = vadd.f32 %v5255, %v5351
        %v5353 = vpop.f32.mrb[0].mxu0
        %v5354 = vpop.f32.mrb[0].mxu0
        %v5355 = vadd.f32 %v5258, %v5354
        %v5356 = vpop.f32.mrb[0].mxu0
        %5357 = vmatprep.mubr.bf16.mxu0 %v4899
        %5358 = vmatmul.mubr.bf16.gmra.mrb[0].mxu0 %v4898
        %v5359 = vpop.f32.mrb[0].mxu0
        %v5360 = vadd.f32 %v5263, %v5359
        %v5361 = vpop.f32.mrb[0].mxu0
        %v5362 = vpop.f32.mrb[0].mxu0
        %v5363 = vadd.f32 %v5266, %v5362
        %v5364 = vpop.f32.mrb[0].mxu0
        %5365 = vmatprep.mubr.bf16.mxu0 %v4908
        %5366 = vmatmul.mubr.bf16.gmra.mrb[0].mxu0 %v4907
        %v5367 = vpop.f32.mrb[0].mxu0
        %v5368 = vadd.f32 %v5271, %v5367
        %v5369 = vpop.f32.mrb[0].mxu0
        %v5370 = vpop.f32.mrb[0].mxu0
        %v5371 = vadd.f32 %v5274, %v5370
        %v5372 = vpop.f32.mrb[0].mxu0
        %5373 = vmatprep.mubr.bf16.mxu0 %v4917
        %5374 = vmatmul.mubr.bf16.gmra.mrb[0].mxu0 %v4916
        %v5375 = vpop.f32.mrb[0].mxu0
        %v5376 = vadd.f32 %v5279, %v5375
        %v5377 = vpop.f32.mrb[0].mxu0
        %v5378 = vpop.f32.mrb[0].mxu0
        %v5379 = vadd.f32 %v5282, %v5378
        %v5380 = vpop.f32.mrb[0].mxu0
        %5381 = vmatprep.mubr.bf16.mxu0 %v4926
        %5382 = vmatmul.mubr.bf16.gmra.mrb[0].mxu0 %v4925
        %v5383 = vpop.f32.mrb[0].mxu0
        %v5384 = vadd.f32 %v5287, %v5383
        %v5385 = vpop.f32.mrb[0].mxu0
        %v5386 = vpop.f32.mrb[0].mxu0
        %v5387 = vadd.f32 %v5290, %v5386
        %v5388 = vpop.f32.mrb[0].mxu0
        %5389 = vmatprep.mubr.bf16.mxu0 %v4935
        %5390 = vmatmul.mubr.bf16.gmra.mrb[0].mxu0 %v4934
        %v5391 = vpop.f32.mrb[0].mxu0
        %v5392 = vadd.f32 %v5295, %v5391
        %v5393 = vpop.f32.mrb[0].mxu0
        %v5394 = vpop.f32.mrb[0].mxu0
        %v5395 = vadd.f32 %v5298, %v5394
        %v5396 = vpop.f32.mrb[0].mxu0
        %5397 = vmatprep.mubr.bf16.mxu0 %v4944
        %5398 = vmatmul.mubr.bf16.gmra.mrb[0].mxu0 %v4943
        %v5399 = vpop.f32.mrb[0].mxu0
        %v5400 = vadd.f32 %v5303, %v5399
        %v5401 = vpop.f32.mrb[0].mxu0
        %v5402 = vpop.f32.mrb[0].mxu0
        %v5403 = vadd.f32 %v5306, %v5402
        %v5404 = vpop.f32.mrb[0].mxu0
        %5405 = vdwg.mxu0
        %5406 = vmatprep.subr.bf16.mxu0 0
        %5407 = vmatpush1.bf16.msra.mxu0 %v4466
        %5408 = vmatprep.subr.bf16.mxu0 0
        %5409 = vmatpush1.bf16.msra.mxu0 %v4467
        %5410 = vmatprep.subr.bf16.mxu0 0
        %5411 = vmatpush1.bf16.msra.mxu0 %v4468
        %5412 = vmatprep.subr.bf16.mxu0 0
        %5413 = vmatpush1.bf16.msra.mxu0 %v4469
        %5414 = vmatprep.subr.bf16.mxu0 0
        %5415 = vmatpush1.bf16.msra.mxu0 %v4470
        %5416 = vmatprep.subr.bf16.mxu0 0
        %5417 = vmatpush1.bf16.msra.mxu0 %v4471
        %5418 = vmatprep.subr.bf16.mxu0 0
        %5419 = vmatpush1.bf16.msra.mxu0 %v4472
        %5420 = vmatprep.subr.bf16.mxu0 0
        %5421 = vmatpush1.bf16.msra.mxu0 %v4473
        %5422 = vmatprep.subr.bf16.mxu0 0
        %5423 = vmatpush1.bf16.msra.mxu0 0
        %5424 = vmatprep.subr.bf16.mxu0 0
        %5425 = vmatpush1.bf16.msra.mxu0 0
        %5426 = vmatprep.subr.bf16.mxu0 0
        %5427 = vmatpush1.bf16.msra.mxu0 0
        %5428 = vmatprep.subr.bf16.mxu0 0
        %5429 = vmatpush1.bf16.msra.mxu0 0
        %5430 = vmatprep.subr.bf16.mxu0 0
        %5431 = vmatpush1.bf16.msra.mxu0 0
        %5432 = vmatprep.subr.bf16.mxu0 0
        %5433 = vmatpush1.bf16.msra.mxu0 0
        %5434 = vmatprep.subr.bf16.mxu0 0
        %5435 = vmatpush1.bf16.msra.mxu0 0
        %5436 = vmatprep.subr.bf16.mxu0 0
        %5437 = vmatpush1.bf16.msra.mxu0 0
        %5438 = vmatprep.mubr.bf16.mxu0 0
        %5439 = vmatmul.mubr.bf16.gmra.mrb[0].mxu0 %v4882
        %v5440 = vpop.f32.mrb[0].mxu0
        %v5441 = vadd.f32 %v5344, %v5440
        %v5442 = vpop.f32.mrb[0].mxu0
        %v5443 = vpop.f32.mrb[0].mxu0
        %v5444 = vadd.f32 %v5347, %v5443
        %v5445 = vpop.f32.mrb[0].mxu0
        %5446 = vmatprep.mubr.bf16.mxu0 0
        %5447 = vmatmul.mubr.bf16.gmra.mrb[0].mxu0 %v4891
        %v5448 = vpop.f32.mrb[0].mxu0
        %v5449 = vadd.f32 %v5352, %v5448
        %v5450 = vpop.f32.mrb[0].mxu0
        %v5451 = vpop.f32.mrb[0].mxu0
        %v5452 = vadd.f32 %v5355, %v5451
        %v5453 = vpop.f32.mrb[0].mxu0
        %5454 = vmatprep.mubr.bf16.mxu0 0
        %5455 = vmatmul.mubr.bf16.gmra.mrb[0].mxu0 %v4900
        %v5456 = vpop.f32.mrb[0].mxu0
        %v5457 = vadd.f32 %v5360, %v5456
        %v5458 = vpop.f32.mrb[0].mxu0
        %v5459 = vpop.f32.mrb[0].mxu0
        %v5460 = vadd.f32 %v5363, %v5459
        %v5461 = vpop.f32.mrb[0].mxu0
        %5462 = vmatprep.mubr.bf16.mxu0 0
        %5463 = vmatmul.mubr.bf16.gmra.mrb[0].mxu0 %v4909
        %v5464 = vpop.f32.mrb[0].mxu0
        %v5465 = vadd.f32 %v5368, %v5464
        %v5466 = vpop.f32.mrb[0].mxu0
        %v5467 = vpop.f32.mrb[0].mxu0
        %v5468 = vadd.f32 %v5371, %v5467
        %v5469 = vpop.f32.mrb[0].mxu0
        %5470 = vmatprep.mubr.bf16.mxu0 0
        %5471 = vmatmul.mubr.bf16.gmra.mrb[0].mxu0 %v4918
        %v5472 = vpop.f32.mrb[0].mxu0
        %v5473 = vadd.f32 %v5376, %v5472
        %v5474 = vpop.f32.mrb[0].mxu0
        %v5475 = vpop.f32.mrb[0].mxu0
        %v5476 = vadd.f32 %v5379, %v5475
        %v5477 = vpop.f32.mrb[0].mxu0
        %5478 = vmatprep.mubr.bf16.mxu0 0
        %5479 = vmatmul.mubr.bf16.gmra.mrb[0].mxu0 %v4927
        %v5480 = vpop.f32.mrb[0].mxu0
        %v5481 = vadd.f32 %v5384, %v5480
        %v5482 = vpop.f32.mrb[0].mxu0
        %v5483 = vpop.f32.mrb[0].mxu0
        %v5484 = vadd.f32 %v5387, %v5483
        %v5485 = vpop.f32.mrb[0].mxu0
        %5486 = vmatprep.mubr.bf16.mxu0 0
        %5487 = vmatmul.mubr.bf16.gmra.mrb[0].mxu0 %v4936
        %v5488 = vpop.f32.mrb[0].mxu0
        %v5489 = vadd.f32 %v5392, %v5488
        %v5490 = vpop.f32.mrb[0].mxu0
        %v5491 = vpop.f32.mrb[0].mxu0
        %v5492 = vadd.f32 %v5395, %v5491
        %v5493 = vpop.f32.mrb[0].mxu0
        %5494 = vmatprep.mubr.bf16.mxu0 0
        %5495 = vmatmul.mubr.bf16.gmra.mrb[0].mxu0 %v4945
        %v5496 = vpop.f32.mrb[0].mxu0
        %v5497 = vadd.f32 %v5400, %v5496
        %v5498 = vpop.f32.mrb[0].mxu0
        %v5499 = vpop.f32.mrb[0].mxu0
        %v5500 = vadd.f32 %v5403, %v5499
        %v5501 = vpop.f32.mrb[0].mxu0
        %5502 = vdwg.mxu0
        %v5503 = vmax.f32 %v5441, 0.0
        %v5504 = vmax.f32 %v5444, 0.0
        %v5505 = vmax.f32 %v5449, 0.0
        %v5506 = vmax.f32 %v5452, 0.0
        %v5507 = vmax.f32 %v5457, 0.0
        %v5508 = vmax.f32 %v5460, 0.0
        %v5509 = vmax.f32 %v5465, 0.0
        %v5510 = vmax.f32 %v5468, 0.0
        %v5511 = vmax.f32 %v5473, 0.0
        %v5512 = vmax.f32 %v5476, 0.0
        %v5513 = vmax.f32 %v5481, 0.0
        %v5514 = vmax.f32 %v5484, 0.0
        %v5515 = vmax.f32 %v5489, 0.0
        %v5516 = vmax.f32 %v5492, 0.0
        %v5517 = vmax.f32 %v5497, 0.0
        %v5518 = vmax.f32 %v5500, 0.0
        %5535 = vrot.lane.b32.xlu0 %v5503, 5
        %v5536 = vpop.permute.xlu0 %5535
        %5537 = vrot.lane.b32.xlu0 %v5504, 5
        %v5538 = vpop.permute.xlu0 %5537
        %5539 = vrot.lane.b32.xlu0 %v5505, 5
        %v5540 = vpop.permute.xlu0 %5539
        %5541 = vrot.lane.b32.xlu0 %v5506, 5
        %v5542 = vpop.permute.xlu0 %5541
        %5543 = vrot.lane.b32.xlu0 %v5507, 5
        %v5544 = vpop.permute.xlu0 %5543
        %5545 = vrot.lane.b32.xlu0 %v5508, 5
        %v5546 = vpop.permute.xlu0 %5545
        %5547 = vrot.lane.b32.xlu0 %v5509, 5
        %v5548 = vpop.permute.xlu0 %5547
        %5549 = vrot.lane.b32.xlu0 %v5510, 5
        %v5550 = vpop.permute.xlu0 %5549
        %5551 = vrot.lane.b32.xlu0 %v5511, 5
        %v5552 = vpop.permute.xlu0 %5551
        %5553 = vrot.lane.b32.xlu0 %v5512, 5
        %v5554 = vpop.permute.xlu0 %5553
        %5555 = vrot.lane.b32.xlu0 %v5513, 5
        %v5556 = vpop.permute.xlu0 %5555
        %5557 = vrot.lane.b32.xlu0 %v5514, 5
        %v5558 = vpop.permute.xlu0 %5557
        %5559 = vrot.lane.b32.xlu0 %v5515, 5
        %v5560 = vpop.permute.xlu0 %5559
        %5561 = vrot.lane.b32.xlu0 %v5516, 5
        %v5562 = vpop.permute.xlu0 %5561
        %5563 = vrot.lane.b32.xlu0 %v5517, 5
        %v5564 = vpop.permute.xlu0 %5563
        %5565 = vrot.lane.b32.xlu0 %v5518, 5
        %v5566 = vpop.permute.xlu0 %5565
        %v5583 = vsel %vm3717, 0.0, %v5536
        %v5584 = vsel %vm3717, 0.0, %v5538
        %v5585 = vsel %vm3717, 0.0, %v5540
        %v5586 = vsel %vm3717, 0.0, %v5542
        %v5587 = vsel %vm3717, 0.0, %v5544
        %v5588 = vsel %vm3717, 0.0, %v5546
        %v5589 = vsel %vm3717, 0.0, %v5548
        %v5590 = vsel %vm3717, 0.0, %v5550
        %v5591 = vsel %vm3717, 0.0, %v5552
        %v5592 = vsel %vm3717, 0.0, %v5554
        %v5593 = vsel %vm3717, 0.0, %v5556
        %v5594 = vsel %vm3717, 0.0, %v5558
        %v5595 = vsel %vm3717, 0.0, %v5560
        %v5596 = vsel %vm3717, 0.0, %v5562
        %v5597 = vsel %vm3717, 0.0, %v5564
        %v5598 = vsel %vm3717, 0.0, %v5566
        %v5599 = vmul.f32 %v5583, %v3739
        %v5600 = vmul.f32 %v5584, %v3739
        %v5601 = vmul.f32 %v5585, %v3739
        %v5602 = vmul.f32 %v5586, %v3739
        %v5603 = vmul.f32 %v5587, %v3739
        %v5604 = vmul.f32 %v5588, %v3739
        %v5605 = vmul.f32 %v5589, %v3739
        %v5606 = vmul.f32 %v5590, %v3739
        %v5607 = vmul.f32 %v5591, %v3739
        %v5608 = vmul.f32 %v5592, %v3739
        %v5609 = vmul.f32 %v5593, %v3739
        %v5610 = vmul.f32 %v5594, %v3739
        %v5611 = vmul.f32 %v5595, %v3739
        %v5612 = vmul.f32 %v5596, %v3739
        %v5613 = vmul.f32 %v5597, %v3739
        %v5614 = vmul.f32 %v5598, %v3739
        %5615 = vrot.lane.b32.xlu0 %v5503, 4
        %v5616 = vpop.permute.xlu0 %5615
        %5617 = vrot.lane.b32.xlu0 %v5504, 4
        %v5618 = vpop.permute.xlu0 %5617
        %5619 = vrot.lane.b32.xlu0 %v5505, 4
        %v5620 = vpop.permute.xlu0 %5619
        %5621 = vrot.lane.b32.xlu0 %v5506, 4
        %v5622 = vpop.permute.xlu0 %5621
        %5623 = vrot.lane.b32.xlu0 %v5507, 4
        %v5624 = vpop.permute.xlu0 %5623
        %5625 = vrot.lane.b32.xlu0 %v5508, 4
        %v5626 = vpop.permute.xlu0 %5625
        %5627 = vrot.lane.b32.xlu0 %v5509, 4
        %v5628 = vpop.permute.xlu0 %5627
        %5629 = vrot.lane.b32.xlu0 %v5510, 4
        %v5630 = vpop.permute.xlu0 %5629
        %5631 = vrot.lane.b32.xlu0 %v5511, 4
        %v5632 = vpop.permute.xlu0 %5631
        %5633 = vrot.lane.b32.xlu0 %v5512, 4
        %v5634 = vpop.permute.xlu0 %5633
        %5635 = vrot.lane.b32.xlu0 %v5513, 4
        %v5636 = vpop.permute.xlu0 %5635
        %5637 = vrot.lane.b32.xlu0 %v5514, 4
        %v5638 = vpop.permute.xlu0 %5637
        %5639 = vrot.lane.b32.xlu0 %v5515, 4
        %v5640 = vpop.permute.xlu0 %5639
        %5641 = vrot.lane.b32.xlu0 %v5516, 4
        %v5642 = vpop.permute.xlu0 %5641
        %5643 = vrot.lane.b32.xlu0 %v5517, 4
        %v5644 = vpop.permute.xlu0 %5643
        %5645 = vrot.lane.b32.xlu0 %v5518, 4
        %v5646 = vpop.permute.xlu0 %5645
        %v5663 = vsel %vm3805, 0.0, %v5616
        %v5664 = vsel %vm3805, 0.0, %v5618
        %v5665 = vsel %vm3805, 0.0, %v5620
        %v5666 = vsel %vm3805, 0.0, %v5622
        %v5667 = vsel %vm3805, 0.0, %v5624
        %v5668 = vsel %vm3805, 0.0, %v5626
        %v5669 = vsel %vm3805, 0.0, %v5628
        %v5670 = vsel %vm3805, 0.0, %v5630
        %v5671 = vsel %vm3805, 0.0, %v5632
        %v5672 = vsel %vm3805, 0.0, %v5634
        %v5673 = vsel %vm3805, 0.0, %v5636
        %v5674 = vsel %vm3805, 0.0, %v5638
        %v5675 = vsel %vm3805, 0.0, %v5640
        %v5676 = vsel %vm3805, 0.0, %v5642
        %v5677 = vsel %vm3805, 0.0, %v5644
        %v5678 = vsel %vm3805, 0.0, %v5646
        %v5679 = vmul.f32 %v5663, %v3828
        %v5680 = vmul.f32 %v5664, %v3828
        %v5681 = vmul.f32 %v5665, %v3828
        %v5682 = vmul.f32 %v5666, %v3828
        %v5683 = vmul.f32 %v5667, %v3828
        %v5684 = vmul.f32 %v5668, %v3828
        %v5685 = vmul.f32 %v5669, %v3828
        %v5686 = vmul.f32 %v5670, %v3828
        %v5687 = vmul.f32 %v5671, %v3828
        %v5688 = vmul.f32 %v5672, %v3828
        %v5689 = vmul.f32 %v5673, %v3828
        %v5690 = vmul.f32 %v5674, %v3828
        %v5691 = vmul.f32 %v5675, %v3828
        %v5692 = vmul.f32 %v5676, %v3828
        %v5693 = vmul.f32 %v5677, %v3828
        %v5694 = vmul.f32 %v5678, %v3828
        %5695 = vrot.lane.b32.xlu0 %v5503, 3
        %v5696 = vpop.permute.xlu0 %5695
        %5697 = vrot.lane.b32.xlu0 %v5504, 3
        %v5698 = vpop.permute.xlu0 %5697
        %5699 = vrot.lane.b32.xlu0 %v5505, 3
        %v5700 = vpop.permute.xlu0 %5699
        %5701 = vrot.lane.b32.xlu0 %v5506, 3
        %v5702 = vpop.permute.xlu0 %5701
        %5703 = vrot.lane.b32.xlu0 %v5507, 3
        %v5704 = vpop.permute.xlu0 %5703
        %5705 = vrot.lane.b32.xlu0 %v5508, 3
        %v5706 = vpop.permute.xlu0 %5705
        %5707 = vrot.lane.b32.xlu0 %v5509, 3
        %v5708 = vpop.permute.xlu0 %5707
        %5709 = vrot.lane.b32.xlu0 %v5510, 3
        %v5710 = vpop.permute.xlu0 %5709
        %5711 = vrot.lane.b32.xlu0 %v5511, 3
        %v5712 = vpop.permute.xlu0 %5711
        %5713 = vrot.lane.b32.xlu0 %v5512, 3
        %v5714 = vpop.permute.xlu0 %5713
        %5715 = vrot.lane.b32.xlu0 %v5513, 3
        %v5716 = vpop.permute.xlu0 %5715
        %5717 = vrot.lane.b32.xlu0 %v5514, 3
        %v5718 = vpop.permute.xlu0 %5717
        %5719 = vrot.lane.b32.xlu0 %v5515, 3
        %v5720 = vpop.permute.xlu0 %5719
        %5721 = vrot.lane.b32.xlu0 %v5516, 3
        %v5722 = vpop.permute.xlu0 %5721
        %5723 = vrot.lane.b32.xlu0 %v5517, 3
        %v5724 = vpop.permute.xlu0 %5723
        %5725 = vrot.lane.b32.xlu0 %v5518, 3
        %v5726 = vpop.permute.xlu0 %5725
        %v5743 = vsel %vm3894, 0.0, %v5696
        %v5744 = vsel %vm3894, 0.0, %v5698
        %v5745 = vsel %vm3894, 0.0, %v5700
        %v5746 = vsel %vm3894, 0.0, %v5702
        %v5747 = vsel %vm3894, 0.0, %v5704
        %v5748 = vsel %vm3894, 0.0, %v5706
        %v5749 = vsel %vm3894, 0.0, %v5708
        %v5750 = vsel %vm3894, 0.0, %v5710
        %v5751 = vsel %vm3894, 0.0, %v5712
        %v5752 = vsel %vm3894, 0.0, %v5714
        %v5753 = vsel %vm3894, 0.0, %v5716
        %v5754 = vsel %vm3894, 0.0, %v5718
        %v5755 = vsel %vm3894, 0.0, %v5720
        %v5756 = vsel %vm3894, 0.0, %v5722
        %v5757 = vsel %vm3894, 0.0, %v5724
        %v5758 = vsel %vm3894, 0.0, %v5726
        %v5759 = vmul.f32 %v5743, %v3917
        %v5760 = vmul.f32 %v5744, %v3917
        %v5761 = vmul.f32 %v5745, %v3917
        %v5762 = vmul.f32 %v5746, %v3917
        %v5763 = vmul.f32 %v5747, %v3917
        %v5764 = vmul.f32 %v5748, %v3917
        %v5765 = vmul.f32 %v5749, %v3917
        %v5766 = vmul.f32 %v5750, %v3917
        %v5767 = vmul.f32 %v5751, %v3917
        %v5768 = vmul.f32 %v5752, %v3917
        %v5769 = vmul.f32 %v5753, %v3917
        %v5770 = vmul.f32 %v5754, %v3917
        %v5771 = vmul.f32 %v5755, %v3917
        %v5772 = vmul.f32 %v5756, %v3917
        %v5773 = vmul.f32 %v5757, %v3917
        %v5774 = vmul.f32 %v5758, %v3917
        %5775 = vrot.lane.b32.xlu0 %v5503, 1
        %v5776 = vpop.permute.xlu0 %5775
        %5777 = vrot.lane.b32.xlu0 %v5504, 1
        %v5778 = vpop.permute.xlu0 %5777
        %5779 = vrot.lane.b32.xlu0 %v5505, 1
        %v5780 = vpop.permute.xlu0 %5779
        %5781 = vrot.lane.b32.xlu0 %v5506, 1
        %v5782 = vpop.permute.xlu0 %5781
        %5783 = vrot.lane.b32.xlu0 %v5507, 1
        %v5784 = vpop.permute.xlu0 %5783
        %5785 = vrot.lane.b32.xlu0 %v5508, 1
        %v5786 = vpop.permute.xlu0 %5785
        %5787 = vrot.lane.b32.xlu0 %v5509, 1
        %v5788 = vpop.permute.xlu0 %5787
        %5789 = vrot.lane.b32.xlu0 %v5510, 1
        %v5790 = vpop.permute.xlu0 %5789
        %5791 = vrot.lane.b32.xlu0 %v5511, 1
        %v5792 = vpop.permute.xlu0 %5791
        %5793 = vrot.lane.b32.xlu0 %v5512, 1
        %v5794 = vpop.permute.xlu0 %5793
        %5795 = vrot.lane.b32.xlu0 %v5513, 1
        %v5796 = vpop.permute.xlu0 %5795
        %5797 = vrot.lane.b32.xlu0 %v5514, 1
        %v5798 = vpop.permute.xlu0 %5797
        %5799 = vrot.lane.b32.xlu0 %v5515, 1
        %v5800 = vpop.permute.xlu0 %5799
        %5801 = vrot.lane.b32.xlu0 %v5516, 1
        %v5802 = vpop.permute.xlu0 %5801
        %5803 = vrot.lane.b32.xlu0 %v5517, 1
        %v5804 = vpop.permute.xlu0 %5803
        %5805 = vrot.lane.b32.xlu0 %v5518, 1
        %v5806 = vpop.permute.xlu0 %5805
        %v5823 = vsel %vm806, 0.0, %v5776
        %v5824 = vsel %vm806, 0.0, %v5778
        %v5825 = vsel %vm806, 0.0, %v5780
        %v5826 = vsel %vm806, 0.0, %v5782
        %v5827 = vsel %vm806, 0.0, %v5784
        %v5828 = vsel %vm806, 0.0, %v5786
        %v5829 = vsel %vm806, 0.0, %v5788
        %v5830 = vsel %vm806, 0.0, %v5790
        %v5831 = vsel %vm806, 0.0, %v5792
        %v5832 = vsel %vm806, 0.0, %v5794
        %v5833 = vsel %vm806, 0.0, %v5796
        %v5834 = vsel %vm806, 0.0, %v5798
        %v5835 = vsel %vm806, 0.0, %v5800
        %v5836 = vsel %vm806, 0.0, %v5802
        %v5837 = vsel %vm806, 0.0, %v5804
        %v5838 = vsel %vm806, 0.0, %v5806
        %v5839 = vmul.f32 %v5823, %v4005
        %v5840 = vmul.f32 %v5824, %v4005
        %v5841 = vmul.f32 %v5825, %v4005
        %v5842 = vmul.f32 %v5826, %v4005
        %v5843 = vmul.f32 %v5827, %v4005
        %v5844 = vmul.f32 %v5828, %v4005
        %v5845 = vmul.f32 %v5829, %v4005
        %v5846 = vmul.f32 %v5830, %v4005
        %v5847 = vmul.f32 %v5831, %v4005
        %v5848 = vmul.f32 %v5832, %v4005
        %v5849 = vmul.f32 %v5833, %v4005
        %v5850 = vmul.f32 %v5834, %v4005
        %v5851 = vmul.f32 %v5835, %v4005
        %v5852 = vmul.f32 %v5836, %v4005
        %v5853 = vmul.f32 %v5837, %v4005
        %v5854 = vmul.f32 %v5838, %v4005
        %v5855 = vmul.f32 %v5503, %v4029
        %v5856 = vmul.f32 %v5504, %v4029
        %v5857 = vmul.f32 %v5505, %v4029
        %v5858 = vmul.f32 %v5506, %v4029
        %v5859 = vmul.f32 %v5507, %v4029
        %v5860 = vmul.f32 %v5508, %v4029
        %v5861 = vmul.f32 %v5509, %v4029
        %v5862 = vmul.f32 %v5510, %v4029
        %v5863 = vmul.f32 %v5511, %v4029
        %v5864 = vmul.f32 %v5512, %v4029
        %v5865 = vmul.f32 %v5513, %v4029
        %v5866 = vmul.f32 %v5514, %v4029
        %v5867 = vmul.f32 %v5515, %v4029
        %v5868 = vmul.f32 %v5516, %v4029
        %v5869 = vmul.f32 %v5517, %v4029
        %v5870 = vmul.f32 %v5518, %v4029
        %5871 = vrot.lane.b32.xlu0 %v5503, 127
        %v5872 = vpop.permute.xlu0 %5871
        %5873 = vrot.lane.b32.xlu0 %v5504, 127
        %v5874 = vpop.permute.xlu0 %5873
        %5875 = vrot.lane.b32.xlu0 %v5505, 127
        %v5876 = vpop.permute.xlu0 %5875
        %5877 = vrot.lane.b32.xlu0 %v5506, 127
        %v5878 = vpop.permute.xlu0 %5877
        %5879 = vrot.lane.b32.xlu0 %v5507, 127
        %v5880 = vpop.permute.xlu0 %5879
        %5881 = vrot.lane.b32.xlu0 %v5508, 127
        %v5882 = vpop.permute.xlu0 %5881
        %5883 = vrot.lane.b32.xlu0 %v5509, 127
        %v5884 = vpop.permute.xlu0 %5883
        %5885 = vrot.lane.b32.xlu0 %v5510, 127
        %v5886 = vpop.permute.xlu0 %5885
        %5887 = vrot.lane.b32.xlu0 %v5511, 127
        %v5888 = vpop.permute.xlu0 %5887
        %5889 = vrot.lane.b32.xlu0 %v5512, 127
        %v5890 = vpop.permute.xlu0 %5889
        %5891 = vrot.lane.b32.xlu0 %v5513, 127
        %v5892 = vpop.permute.xlu0 %5891
        %5893 = vrot.lane.b32.xlu0 %v5514, 127
        %v5894 = vpop.permute.xlu0 %5893
        %5895 = vrot.lane.b32.xlu0 %v5515, 127
        %v5896 = vpop.permute.xlu0 %5895
        %5897 = vrot.lane.b32.xlu0 %v5516, 127
        %v5898 = vpop.permute.xlu0 %5897
        %5899 = vrot.lane.b32.xlu0 %v5517, 127
        %v5900 = vpop.permute.xlu0 %5899
        %5901 = vrot.lane.b32.xlu0 %v5518, 127
        %v5902 = vpop.permute.xlu0 %5901
        %v5919 = vsel %vm782, %v5872, 0.0
        %v5920 = vsel %vm782, %v5874, 0.0
        %v5921 = vsel %vm782, %v5876, 0.0
        %v5922 = vsel %vm782, %v5878, 0.0
        %v5923 = vsel %vm782, %v5880, 0.0
        %v5924 = vsel %vm782, %v5882, 0.0
        %v5925 = vsel %vm782, %v5884, 0.0
        %v5926 = vsel %vm782, %v5886, 0.0
        %v5927 = vsel %vm782, %v5888, 0.0
        %v5928 = vsel %vm782, %v5890, 0.0
        %v5929 = vsel %vm782, %v5892, 0.0
        %v5930 = vsel %vm782, %v5894, 0.0
        %v5931 = vsel %vm782, %v5896, 0.0
        %v5932 = vsel %vm782, %v5898, 0.0
        %v5933 = vsel %vm782, %v5900, 0.0
        %v5934 = vsel %vm782, %v5902, 0.0
        %v5935 = vmul.f32 %v5919, %v4117
        %v5936 = vmul.f32 %v5920, %v4117
        %v5937 = vmul.f32 %v5921, %v4117
        %v5938 = vmul.f32 %v5922, %v4117
        %v5939 = vmul.f32 %v5923, %v4117
        %v5940 = vmul.f32 %v5924, %v4117
        %v5941 = vmul.f32 %v5925, %v4117
        %v5942 = vmul.f32 %v5926, %v4117
        %v5943 = vmul.f32 %v5927, %v4117
        %v5944 = vmul.f32 %v5928, %v4117
        %v5945 = vmul.f32 %v5929, %v4117
        %v5946 = vmul.f32 %v5930, %v4117
        %v5947 = vmul.f32 %v5931, %v4117
        %v5948 = vmul.f32 %v5932, %v4117
        %v5949 = vmul.f32 %v5933, %v4117
        %v5950 = vmul.f32 %v5934, %v4117
        %5951 = vrot.lane.b32.xlu0 %v5503, 125
        %v5952 = vpop.permute.xlu0 %5951
        %5953 = vrot.lane.b32.xlu0 %v5504, 125
        %v5954 = vpop.permute.xlu0 %5953
        %5955 = vrot.lane.b32.xlu0 %v5505, 125
        %v5956 = vpop.permute.xlu0 %5955
        %5957 = vrot.lane.b32.xlu0 %v5506, 125
        %v5958 = vpop.permute.xlu0 %5957
        %5959 = vrot.lane.b32.xlu0 %v5507, 125
        %v5960 = vpop.permute.xlu0 %5959
        %5961 = vrot.lane.b32.xlu0 %v5508, 125
        %v5962 = vpop.permute.xlu0 %5961
        %5963 = vrot.lane.b32.xlu0 %v5509, 125
        %v5964 = vpop.permute.xlu0 %5963
        %5965 = vrot.lane.b32.xlu0 %v5510, 125
        %v5966 = vpop.permute.xlu0 %5965
        %5967 = vrot.lane.b32.xlu0 %v5511, 125
        %v5968 = vpop.permute.xlu0 %5967
        %5969 = vrot.lane.b32.xlu0 %v5512, 125
        %v5970 = vpop.permute.xlu0 %5969
        %5971 = vrot.lane.b32.xlu0 %v5513, 125
        %v5972 = vpop.permute.xlu0 %5971
        %5973 = vrot.lane.b32.xlu0 %v5514, 125
        %v5974 = vpop.permute.xlu0 %5973
        %5975 = vrot.lane.b32.xlu0 %v5515, 125
        %v5976 = vpop.permute.xlu0 %5975
        %5977 = vrot.lane.b32.xlu0 %v5516, 125
        %v5978 = vpop.permute.xlu0 %5977
        %5979 = vrot.lane.b32.xlu0 %v5517, 125
        %v5980 = vpop.permute.xlu0 %5979
        %5981 = vrot.lane.b32.xlu0 %v5518, 125
        %v5982 = vpop.permute.xlu0 %5981
        %v5999 = vsel %vm4183, %v5952, 0.0
        %v6000 = vsel %vm4183, %v5954, 0.0
        %v6001 = vsel %vm4183, %v5956, 0.0
        %v6002 = vsel %vm4183, %v5958, 0.0
        %v6003 = vsel %vm4183, %v5960, 0.0
        %v6004 = vsel %vm4183, %v5962, 0.0
        %v6005 = vsel %vm4183, %v5964, 0.0
        %v6006 = vsel %vm4183, %v5966, 0.0
        %v6007 = vsel %vm4183, %v5968, 0.0
        %v6008 = vsel %vm4183, %v5970, 0.0
        %v6009 = vsel %vm4183, %v5972, 0.0
        %v6010 = vsel %vm4183, %v5974, 0.0
        %v6011 = vsel %vm4183, %v5976, 0.0
        %v6012 = vsel %vm4183, %v5978, 0.0
        %v6013 = vsel %vm4183, %v5980, 0.0
        %v6014 = vsel %vm4183, %v5982, 0.0
        %v6015 = vmul.f32 %v5999, %v4206
        %v6016 = vmul.f32 %v6000, %v4206
        %v6017 = vmul.f32 %v6001, %v4206
        %v6018 = vmul.f32 %v6002, %v4206
        %v6019 = vmul.f32 %v6003, %v4206
        %v6020 = vmul.f32 %v6004, %v4206
        %v6021 = vmul.f32 %v6005, %v4206
        %v6022 = vmul.f32 %v6006, %v4206
        %v6023 = vmul.f32 %v6007, %v4206
        %v6024 = vmul.f32 %v6008, %v4206
        %v6025 = vmul.f32 %v6009, %v4206
        %v6026 = vmul.f32 %v6010, %v4206
        %v6027 = vmul.f32 %v6011, %v4206
        %v6028 = vmul.f32 %v6012, %v4206
        %v6029 = vmul.f32 %v6013, %v4206
        %v6030 = vmul.f32 %v6014, %v4206
        %6031 = vrot.lane.b32.xlu0 %v5503, 124
        %v6032 = vpop.permute.xlu0 %6031
        %6033 = vrot.lane.b32.xlu0 %v5504, 124
        %v6034 = vpop.permute.xlu0 %6033
        %6035 = vrot.lane.b32.xlu0 %v5505, 124
        %v6036 = vpop.permute.xlu0 %6035
        %6037 = vrot.lane.b32.xlu0 %v5506, 124
        %v6038 = vpop.permute.xlu0 %6037
        %6039 = vrot.lane.b32.xlu0 %v5507, 124
        %v6040 = vpop.permute.xlu0 %6039
        %6041 = vrot.lane.b32.xlu0 %v5508, 124
        %v6042 = vpop.permute.xlu0 %6041
        %6043 = vrot.lane.b32.xlu0 %v5509, 124
        %v6044 = vpop.permute.xlu0 %6043
        %6045 = vrot.lane.b32.xlu0 %v5510, 124
        %v6046 = vpop.permute.xlu0 %6045
        %6047 = vrot.lane.b32.xlu0 %v5511, 124
        %v6048 = vpop.permute.xlu0 %6047
        %6049 = vrot.lane.b32.xlu0 %v5512, 124
        %v6050 = vpop.permute.xlu0 %6049
        %6051 = vrot.lane.b32.xlu0 %v5513, 124
        %v6052 = vpop.permute.xlu0 %6051
        %6053 = vrot.lane.b32.xlu0 %v5514, 124
        %v6054 = vpop.permute.xlu0 %6053
        %6055 = vrot.lane.b32.xlu0 %v5515, 124
        %v6056 = vpop.permute.xlu0 %6055
        %6057 = vrot.lane.b32.xlu0 %v5516, 124
        %v6058 = vpop.permute.xlu0 %6057
        %6059 = vrot.lane.b32.xlu0 %v5517, 124
        %v6060 = vpop.permute.xlu0 %6059
        %6061 = vrot.lane.b32.xlu0 %v5518, 124
        %v6062 = vpop.permute.xlu0 %6061
        %v6079 = vsel %vm4272, %v6032, 0.0
        %v6080 = vsel %vm4272, %v6034, 0.0
        %v6081 = vsel %vm4272, %v6036, 0.0
        %v6082 = vsel %vm4272, %v6038, 0.0
        %v6083 = vsel %vm4272, %v6040, 0.0
        %v6084 = vsel %vm4272, %v6042, 0.0
        %v6085 = vsel %vm4272, %v6044, 0.0
        %v6086 = vsel %vm4272, %v6046, 0.0
        %v6087 = vsel %vm4272, %v6048, 0.0
        %v6088 = vsel %vm4272, %v6050, 0.0
        %v6089 = vsel %vm4272, %v6052, 0.0
        %v6090 = vsel %vm4272, %v6054, 0.0
        %v6091 = vsel %vm4272, %v6056, 0.0
        %v6092 = vsel %vm4272, %v6058, 0.0
        %v6093 = vsel %vm4272, %v6060, 0.0
        %v6094 = vsel %vm4272, %v6062, 0.0
        %v6095 = vmul.f32 %v6079, %v4295
        %v6096 = vmul.f32 %v6080, %v4295
        %v6097 = vmul.f32 %v6081, %v4295
        %v6098 = vmul.f32 %v6082, %v4295
        %v6099 = vmul.f32 %v6083, %v4295
        %v6100 = vmul.f32 %v6084, %v4295
        %v6101 = vmul.f32 %v6085, %v4295
        %v6102 = vmul.f32 %v6086, %v4295
        %v6103 = vmul.f32 %v6087, %v4295
        %v6104 = vmul.f32 %v6088, %v4295
        %v6105 = vmul.f32 %v6089, %v4295
        %v6106 = vmul.f32 %v6090, %v4295
        %v6107 = vmul.f32 %v6091, %v4295
        %v6108 = vmul.f32 %v6092, %v4295
        %v6109 = vmul.f32 %v6093, %v4295
        %v6110 = vmul.f32 %v6094, %v4295
        %6111 = vrot.lane.b32.xlu0 %v5503, 123
        %v6112 = vpop.permute.xlu0 %6111
        %6113 = vrot.lane.b32.xlu0 %v5504, 123
        %v6114 = vpop.permute.xlu0 %6113
        %6115 = vrot.lane.b32.xlu0 %v5505, 123
        %v6116 = vpop.permute.xlu0 %6115
        %6117 = vrot.lane.b32.xlu0 %v5506, 123
        %v6118 = vpop.permute.xlu0 %6117
        %6119 = vrot.lane.b32.xlu0 %v5507, 123
        %v6120 = vpop.permute.xlu0 %6119
        %6121 = vrot.lane.b32.xlu0 %v5508, 123
        %v6122 = vpop.permute.xlu0 %6121
        %6123 = vrot.lane.b32.xlu0 %v5509, 123
        %v6124 = vpop.permute.xlu0 %6123
        %6125 = vrot.lane.b32.xlu0 %v5510, 123
        %v6126 = vpop.permute.xlu0 %6125
        %6127 = vrot.lane.b32.xlu0 %v5511, 123
        %v6128 = vpop.permute.xlu0 %6127
        %6129 = vrot.lane.b32.xlu0 %v5512, 123
        %v6130 = vpop.permute.xlu0 %6129
        %6131 = vrot.lane.b32.xlu0 %v5513, 123
        %v6132 = vpop.permute.xlu0 %6131
        %6133 = vrot.lane.b32.xlu0 %v5514, 123
        %v6134 = vpop.permute.xlu0 %6133
        %6135 = vrot.lane.b32.xlu0 %v5515, 123
        %v6136 = vpop.permute.xlu0 %6135
        %6137 = vrot.lane.b32.xlu0 %v5516, 123
        %v6138 = vpop.permute.xlu0 %6137
        %6139 = vrot.lane.b32.xlu0 %v5517, 123
        %v6140 = vpop.permute.xlu0 %6139
        %6141 = vrot.lane.b32.xlu0 %v5518, 123
        %v6142 = vpop.permute.xlu0 %6141
        %v6159 = vsel %vm4361, %v6112, 0.0
        %v6160 = vsel %vm4361, %v6114, 0.0
        %v6161 = vsel %vm4361, %v6116, 0.0
        %v6162 = vsel %vm4361, %v6118, 0.0
        %v6163 = vsel %vm4361, %v6120, 0.0
        %v6164 = vsel %vm4361, %v6122, 0.0
        %v6165 = vsel %vm4361, %v6124, 0.0
        %v6166 = vsel %vm4361, %v6126, 0.0
        %v6167 = vsel %vm4361, %v6128, 0.0
        %v6168 = vsel %vm4361, %v6130, 0.0
        %v6169 = vsel %vm4361, %v6132, 0.0
        %v6170 = vsel %vm4361, %v6134, 0.0
        %v6171 = vsel %vm4361, %v6136, 0.0
        %v6172 = vsel %vm4361, %v6138, 0.0
        %v6173 = vsel %vm4361, %v6140, 0.0
        %v6174 = vsel %vm4361, %v6142, 0.0
        %v6175 = vmul.f32 %v6159, %v4384
        %v6176 = vmul.f32 %v6160, %v4384
        %v6177 = vmul.f32 %v6161, %v4384
        %v6178 = vmul.f32 %v6162, %v4384
        %v6179 = vmul.f32 %v6163, %v4384
        %v6180 = vmul.f32 %v6164, %v4384
        %v6181 = vmul.f32 %v6165, %v4384
        %v6182 = vmul.f32 %v6166, %v4384
        %v6183 = vmul.f32 %v6167, %v4384
        %v6184 = vmul.f32 %v6168, %v4384
        %v6185 = vmul.f32 %v6169, %v4384
        %v6186 = vmul.f32 %v6170, %v4384
        %v6187 = vmul.f32 %v6171, %v4384
        %v6188 = vmul.f32 %v6172, %v4384
        %v6189 = vmul.f32 %v6173, %v4384
        %v6190 = vmul.f32 %v6174, %v4384
        %v6191 = vpack.c.bf16 %v5600, %v5599
        %v6192 = vpack.c.bf16 %v5602, %v5601
        %v6193 = vpack.c.bf16 %v5604, %v5603
        %v6194 = vpack.c.bf16 %v5606, %v5605
        %v6195 = vpack.c.bf16 %v5608, %v5607
        %v6196 = vpack.c.bf16 %v5610, %v5609
        %v6197 = vpack.c.bf16 %v5612, %v5611
        %v6198 = vpack.c.bf16 %v5614, %v5613
        %v6199 = vpack.c.bf16 %v5680, %v5679
        %v6200 = vpack.c.bf16 %v5682, %v5681
        %v6201 = vpack.c.bf16 %v5684, %v5683
        %v6202 = vpack.c.bf16 %v5686, %v5685
        %v6203 = vpack.c.bf16 %v5688, %v5687
        %v6204 = vpack.c.bf16 %v5690, %v5689
        %v6205 = vpack.c.bf16 %v5692, %v5691
        %v6206 = vpack.c.bf16 %v5694, %v5693
        %v6207 = vpack.c.bf16 %v5760, %v5759
        %v6208 = vpack.c.bf16 %v5762, %v5761
        %v6209 = vpack.c.bf16 %v5764, %v5763
        %v6210 = vpack.c.bf16 %v5766, %v5765
        %v6211 = vpack.c.bf16 %v5768, %v5767
        %v6212 = vpack.c.bf16 %v5770, %v5769
        %v6213 = vpack.c.bf16 %v5772, %v5771
        %v6214 = vpack.c.bf16 %v5774, %v5773
        %v6215 = vpack.c.bf16 %v5840, %v5839
        %v6216 = vpack.c.bf16 %v5842, %v5841
        %v6217 = vpack.c.bf16 %v5844, %v5843
        %v6218 = vpack.c.bf16 %v5846, %v5845
        %v6219 = vpack.c.bf16 %v5848, %v5847
        %v6220 = vpack.c.bf16 %v5850, %v5849
        %v6221 = vpack.c.bf16 %v5852, %v5851
        %v6222 = vpack.c.bf16 %v5854, %v5853
        %v6223 = vpack.c.bf16 %v5856, %v5855
        %v6224 = vpack.c.bf16 %v5858, %v5857
        %v6225 = vpack.c.bf16 %v5860, %v5859
        %v6226 = vpack.c.bf16 %v5862, %v5861
        %v6227 = vpack.c.bf16 %v5864, %v5863
        %v6228 = vpack.c.bf16 %v5866, %v5865
        %v6229 = vpack.c.bf16 %v5868, %v5867
        %v6230 = vpack.c.bf16 %v5870, %v5869
        %v6231 = vpack.c.bf16 %v5936, %v5935
        %v6232 = vpack.c.bf16 %v5938, %v5937
        %v6233 = vpack.c.bf16 %v5940, %v5939
        %v6234 = vpack.c.bf16 %v5942, %v5941
        %v6235 = vpack.c.bf16 %v5944, %v5943
        %v6236 = vpack.c.bf16 %v5946, %v5945
        %v6237 = vpack.c.bf16 %v5948, %v5947
        %v6238 = vpack.c.bf16 %v5950, %v5949
        %v6239 = vpack.c.bf16 %v6016, %v6015
        %v6240 = vpack.c.bf16 %v6018, %v6017
        %v6241 = vpack.c.bf16 %v6020, %v6019
        %v6242 = vpack.c.bf16 %v6022, %v6021
        %v6243 = vpack.c.bf16 %v6024, %v6023
        %v6244 = vpack.c.bf16 %v6026, %v6025
        %v6245 = vpack.c.bf16 %v6028, %v6027
        %v6246 = vpack.c.bf16 %v6030, %v6029
        %v6247 = vpack.c.bf16 %v6096, %v6095
        %v6248 = vpack.c.bf16 %v6098, %v6097
        %v6249 = vpack.c.bf16 %v6100, %v6099
        %v6250 = vpack.c.bf16 %v6102, %v6101
        %v6251 = vpack.c.bf16 %v6104, %v6103
        %v6252 = vpack.c.bf16 %v6106, %v6105
        %v6253 = vpack.c.bf16 %v6108, %v6107
        %v6254 = vpack.c.bf16 %v6110, %v6109
        %v6255 = vpack.c.bf16 %v6176, %v6175
        %v6256 = vpack.c.bf16 %v6178, %v6177
        %v6257 = vpack.c.bf16 %v6180, %v6179
        %v6258 = vpack.c.bf16 %v6182, %v6181
        %v6259 = vpack.c.bf16 %v6184, %v6183
        %v6260 = vpack.c.bf16 %v6186, %v6185
        %v6261 = vpack.c.bf16 %v6188, %v6187
        %v6262 = vpack.c.bf16 %v6190, %v6189
        %v6263 = vld [vmem:[%s15] sm:$0xff]
        %v6264 = vld [vmem:[%s15 + $0x8] sm:$0xff]
        %v6265 = vld [vmem:[%s15 + $0x10] sm:$0xff]
        %v6266 = vld [vmem:[%s15 + $0x18] sm:$0xff]
        %v6267 = vld [vmem:[%s15 + $0x20] sm:$0xf]
        %v6268 = vld [vmem:[%s15 + $0x24] sm:$0xff]
        %v6269 = vld [vmem:[%s15 + $0x2c] sm:$0xff]
        %v6270 = vld [vmem:[%s15 + $0x34] sm:$0xff]
        %v6271 = vld [vmem:[%s15 + $0x3c] sm:$0xff]
        %v6272 = vld [vmem:[%s15 + $0x44] sm:$0xf]
        %v6273 = vld [vmem:[%s15 + $0x48] sm:$0xff]
        %v6274 = vld [vmem:[%s15 + $0x50] sm:$0xff]
        %v6275 = vld [vmem:[%s15 + $0x58] sm:$0xff]
        %v6276 = vld [vmem:[%s15 + $0x60] sm:$0xff]
        %v6277 = vld [vmem:[%s15 + $0x68] sm:$0xf]
        %v6278 = vld [vmem:[%s15 + $0x6c] sm:$0xff]
        %v6279 = vld [vmem:[%s15 + $0x74] sm:$0xff]
        %v6280 = vld [vmem:[%s15 + $0x7c] sm:$0xff]
        %v6281 = vld [vmem:[%s15 + $0x84] sm:$0xff]
        %v6282 = vld [vmem:[%s15 + $0x8c] sm:$0xf]
        %v6283 = vld [vmem:[%s15 + $0x90] sm:$0xff]
        %v6284 = vld [vmem:[%s15 + $0x98] sm:$0xff]
        %v6285 = vld [vmem:[%s15 + $0xa0] sm:$0xff]
        %v6286 = vld [vmem:[%s15 + $0xa8] sm:$0xff]
        %v6287 = vld [vmem:[%s15 + $0xb0] sm:$0xf]
        %v6288 = vld [vmem:[%s15 + $0xb4] sm:$0xff]
        %v6289 = vld [vmem:[%s15 + $0xbc] sm:$0xff]
        %v6290 = vld [vmem:[%s15 + $0xc4] sm:$0xff]
        %v6291 = vld [vmem:[%s15 + $0xcc] sm:$0xff]
        %v6292 = vld [vmem:[%s15 + $0xd4] sm:$0xf]
        %v6293 = vld [vmem:[%s15 + $0xd8] sm:$0xff]
        %v6294 = vld [vmem:[%s15 + $0xe0] sm:$0xff]
        %v6295 = vld [vmem:[%s15 + $0xe8] sm:$0xff]
        %v6296 = vld [vmem:[%s15 + $0xf0] sm:$0xff]
        %v6297 = vld [vmem:[%s15 + $0xf8] sm:$0xf]
        %v6298 = vld [vmem:[%s15 + $0xfc] sm:$0xff]
        %v6299 = vld [vmem:[%s15 + $0x104] sm:$0xff]
        %v6300 = vld [vmem:[%s15 + $0x10c] sm:$0xff]
        %v6301 = vld [vmem:[%s15 + $0x114] sm:$0xff]
        %v6302 = vld [vmem:[%s15 + $0x11c] sm:$0xf]
        %v6303 = vld [vmem:[%s16] sm:$0xff]
        %v6304 = vld [vmem:[%s16 + $0x8] sm:$0xff]
        %v6305 = vld [vmem:[%s16 + $0x10] sm:$0xff]
        %v6306 = vld [vmem:[%s16 + $0x18] sm:$0xff]
        %v6307 = vld [vmem:[%s16 + $0x20] sm:$0xff]
        %v6308 = vld [vmem:[%s16 + $0x28] sm:$0xff]
        %v6309 = vld [vmem:[%s16 + $0x30] sm:$0xff]
        %v6310 = vld [vmem:[%s16 + $0x38] sm:$0xff]
        %6312 = vset.pattern.permute.xlu0 0
        %6313 = vperm.xlu0 %6312, %v6303
        %v6314 = vpop.permute.xlu0 %6313
        %6317 = vset.pattern.permute.xlu0 0
        %6318 = vperm.xlu0 %6317, %v6304
        %v6319 = vpop.permute.xlu0 %6318
        %6322 = vset.pattern.permute.xlu0 0
        %6323 = vperm.xlu0 %6322, %v6305
        %v6324 = vpop.permute.xlu0 %6323
        %6327 = vset.pattern.permute.xlu0 0
        %6328 = vperm.xlu0 %6327, %v6306
        %v6329 = vpop.permute.xlu0 %6328
        %6332 = vset.pattern.permute.xlu0 0
        %6333 = vperm.xlu0 %6332, %v6307
        %v6334 = vpop.permute.xlu0 %6333
        %6337 = vset.pattern.permute.xlu0 0
        %6338 = vperm.xlu0 %6337, %v6308
        %v6339 = vpop.permute.xlu0 %6338
        %6342 = vset.pattern.permute.xlu0 0
        %6343 = vperm.xlu0 %6342, %v6309
        %v6344 = vpop.permute.xlu0 %6343
        %6347 = vset.pattern.permute.xlu0 0
        %6348 = vperm.xlu0 %6347, %v6310
        %v6349 = vpop.permute.xlu0 %6348
        %v6391 = vunpack.c.l.b16 %v6263
        %v6392 = vunpack.c.h.b16 %v6263
        %v6393 = vunpack.c.l.b16 %v6264
        %v6394 = vunpack.c.h.b16 %v6264
        %v6395 = vunpack.c.l.b16 %v6265
        %v6396 = vunpack.c.h.b16 %v6265
        %v6397 = vunpack.c.l.b16 %v6266
        %v6398 = vunpack.c.h.b16 %v6266
        %v6399 = vunpack.c.l.b16 %v6267
        %v6400 = vunpack.c.l.b16 %v6268
        %v6401 = vunpack.c.h.b16 %v6268
        %v6402 = vunpack.c.l.b16 %v6269
        %v6403 = vunpack.c.h.b16 %v6269
        %v6404 = vunpack.c.l.b16 %v6270
        %v6405 = vunpack.c.h.b16 %v6270
        %v6406 = vunpack.c.l.b16 %v6271
        %v6407 = vunpack.c.h.b16 %v6271
        %v6408 = vunpack.c.l.b16 %v6272
        %v6409 = vunpack.c.l.b16 %v6273
        %v6410 = vunpack.c.h.b16 %v6273
        %v6411 = vunpack.c.l.b16 %v6274
        %v6412 = vunpack.c.h.b16 %v6274
        %v6413 = vunpack.c.l.b16 %v6275
        %v6414 = vunpack.c.h.b16 %v6275
        %v6415 = vunpack.c.l.b16 %v6276
        %v6416 = vunpack.c.h.b16 %v6276
        %v6417 = vunpack.c.l.b16 %v6277
        %v6418 = vunpack.c.l.b16 %v6278
        %v6419 = vunpack.c.h.b16 %v6278
        %v6420 = vunpack.c.l.b16 %v6279
        %v6421 = vunpack.c.h.b16 %v6279
        %v6422 = vunpack.c.l.b16 %v6280
        %v6423 = vunpack.c.h.b16 %v6280
        %v6424 = vunpack.c.l.b16 %v6281
        %v6425 = vunpack.c.h.b16 %v6281
        %v6426 = vunpack.c.l.b16 %v6282
        %v6427 = vunpack.c.l.b16 %v6283
        %v6428 = vunpack.c.h.b16 %v6283
        %v6429 = vunpack.c.l.b16 %v6284
        %v6430 = vunpack.c.h.b16 %v6284
        %v6431 = vunpack.c.l.b16 %v6285
        %v6432 = vunpack.c.h.b16 %v6285
        %v6433 = vunpack.c.l.b16 %v6286
        %v6434 = vunpack.c.h.b16 %v6286
        %v6435 = vunpack.c.l.b16 %v6287
        %v6436 = vunpack.c.l.b16 %v6288
        %v6437 = vunpack.c.h.b16 %v6288
        %v6438 = vunpack.c.l.b16 %v6289
        %v6439 = vunpack.c.h.b16 %v6289
        %v6440 = vunpack.c.l.b16 %v6290
        %v6441 = vunpack.c.h.b16 %v6290
        %v6442 = vunpack.c.l.b16 %v6291
        %v6443 = vunpack.c.h.b16 %v6291
        %v6444 = vunpack.c.l.b16 %v6292
        %v6445 = vunpack.c.l.b16 %v6293
        %v6446 = vunpack.c.h.b16 %v6293
        %v6447 = vunpack.c.l.b16 %v6294
        %v6448 = vunpack.c.h.b16 %v6294
        %v6449 = vunpack.c.l.b16 %v6295
        %v6450 = vunpack.c.h.b16 %v6295
        %v6451 = vunpack.c.l.b16 %v6296
        %v6452 = vunpack.c.h.b16 %v6296
        %v6453 = vunpack.c.l.b16 %v6297
        %v6454 = vunpack.c.l.b16 %v6298
        %v6455 = vunpack.c.h.b16 %v6298
        %v6456 = vunpack.c.l.b16 %v6299
        %v6457 = vunpack.c.h.b16 %v6299
        %v6458 = vunpack.c.l.b16 %v6300
        %v6459 = vunpack.c.h.b16 %v6300
        %v6460 = vunpack.c.l.b16 %v6301
        %v6461 = vunpack.c.h.b16 %v6301
        %v6462 = vunpack.c.l.b16 %v6302
        %v6463 = vpack.c.b16 %v6400, %v6391
        %v6464 = vpack.c.b16 %v6401, %v6392
        %v6465 = vpack.c.b16 %v6402, %v6393
        %v6466 = vpack.c.b16 %v6403, %v6394
        %v6467 = vpack.c.b16 %v6404, %v6395
        %v6468 = vpack.c.b16 %v6405, %v6396
        %v6469 = vpack.c.b16 %v6406, %v6397
        %v6470 = vpack.c.b16 %v6407, %v6398
        %v6471 = vpack.c.b16 %v6408, %v6399
        %v6472 = vpack.c.b16 %v6418, %v6409
        %v6473 = vpack.c.b16 %v6419, %v6410
        %v6474 = vpack.c.b16 %v6420, %v6411
        %v6475 = vpack.c.b16 %v6421, %v6412
        %v6476 = vpack.c.b16 %v6422, %v6413
        %v6477 = vpack.c.b16 %v6423, %v6414
        %v6478 = vpack.c.b16 %v6424, %v6415
        %v6479 = vpack.c.b16 %v6425, %v6416
        %v6480 = vpack.c.b16 %v6426, %v6417
        %v6481 = vpack.c.b16 %v6436, %v6427
        %v6482 = vpack.c.b16 %v6437, %v6428
        %v6483 = vpack.c.b16 %v6438, %v6429
        %v6484 = vpack.c.b16 %v6439, %v6430
        %v6485 = vpack.c.b16 %v6440, %v6431
        %v6486 = vpack.c.b16 %v6441, %v6432
        %v6487 = vpack.c.b16 %v6442, %v6433
        %v6488 = vpack.c.b16 %v6443, %v6434
        %v6489 = vpack.c.b16 %v6444, %v6435
        %v6490 = vpack.c.b16 %v6454, %v6445
        %v6491 = vpack.c.b16 %v6455, %v6446
        %v6492 = vpack.c.b16 %v6456, %v6447
        %v6493 = vpack.c.b16 %v6457, %v6448
        %v6494 = vpack.c.b16 %v6458, %v6449
        %v6495 = vpack.c.b16 %v6459, %v6450
        %v6496 = vpack.c.b16 %v6460, %v6451
        %v6497 = vpack.c.b16 %v6461, %v6452
        %v6498 = vpack.c.b16 %v6462, %v6453
        %6535 = vmatprep.subr.bf16.mxu0 0
        %6536 = vmatpush1.bf16.msra.mxu0 %v6191
        %6537 = vmatprep.subr.bf16.mxu0 0
        %6538 = vmatpush1.bf16.msra.mxu0 %v6192
        %6539 = vmatprep.subr.bf16.mxu0 0
        %6540 = vmatpush1.bf16.msra.mxu0 %v6193
        %6541 = vmatprep.subr.bf16.mxu0 0
        %6542 = vmatpush1.bf16.msra.mxu0 %v6194
        %6543 = vmatprep.subr.bf16.mxu0 0
        %6544 = vmatpush1.bf16.msra.mxu0 %v6195
        %6545 = vmatprep.subr.bf16.mxu0 0
        %6546 = vmatpush1.bf16.msra.mxu0 %v6196
        %6547 = vmatprep.subr.bf16.mxu0 0
        %6548 = vmatpush1.bf16.msra.mxu0 %v6197
        %6549 = vmatprep.subr.bf16.mxu0 0
        %6550 = vmatpush1.bf16.msra.mxu0 %v6198
        %6551 = vmatprep.subr.bf16.mxu0 0
        %6552 = vmatpush1.bf16.msra.mxu0 %v6199
        %6553 = vmatprep.subr.bf16.mxu0 0
        %6554 = vmatpush1.bf16.msra.mxu0 %v6200
        %6555 = vmatprep.subr.bf16.mxu0 0
        %6556 = vmatpush1.bf16.msra.mxu0 %v6201
        %6557 = vmatprep.subr.bf16.mxu0 0
        %6558 = vmatpush1.bf16.msra.mxu0 %v6202
        %6559 = vmatprep.subr.bf16.mxu0 0
        %6560 = vmatpush1.bf16.msra.mxu0 %v6203
        %6561 = vmatprep.subr.bf16.mxu0 0
        %6562 = vmatpush1.bf16.msra.mxu0 %v6204
        %6563 = vmatprep.subr.bf16.mxu0 0
        %6564 = vmatpush1.bf16.msra.mxu0 %v6205
        %6565 = vmatprep.subr.bf16.mxu0 0
        %6566 = vmatpush1.bf16.msra.mxu0 %v6206
        %6567 = vmatprep.mubr.bf16.mxu0 %v6464
        %6568 = vmatmul.mubr.bf16.gmra.mrb[0].mxu0 %v6463
        %v6569 = vpop.f32.mrb[0].mxu0
        %v6570 = vadd.f32 %v6314, %v6569
        %v6571 = vpop.f32.mrb[0].mxu0
        %v6572 = vpop.f32.mrb[0].mxu0
        %v6573 = vadd.f32 %v6319, %v6572
        %v6574 = vpop.f32.mrb[0].mxu0
        %6575 = vmatprep.mubr.bf16.mxu0 %v6473
        %6576 = vmatmul.mubr.bf16.gmra.mrb[0].mxu0 %v6472
        %v6577 = vpop.f32.mrb[0].mxu0
        %v6578 = vadd.f32 %v6324, %v6577
        %v6579 = vpop.f32.mrb[0].mxu0
        %v6580 = vpop.f32.mrb[0].mxu0
        %v6581 = vadd.f32 %v6329, %v6580
        %v6582 = vpop.f32.mrb[0].mxu0
        %6583 = vmatprep.mubr.bf16.mxu0 %v6482
        %6584 = vmatmul.mubr.bf16.gmra.mrb[0].mxu0 %v6481
        %v6585 = vpop.f32.mrb[0].mxu0
        %v6586 = vadd.f32 %v6334, %v6585
        %v6587 = vpop.f32.mrb[0].mxu0
        %v6588 = vpop.f32.mrb[0].mxu0
        %v6589 = vadd.f32 %v6339, %v6588
        %v6590 = vpop.f32.mrb[0].mxu0
        %6591 = vmatprep.mubr.bf16.mxu0 %v6491
        %6592 = vmatmul.mubr.bf16.gmra.mrb[0].mxu0 %v6490
        %v6593 = vpop.f32.mrb[0].mxu0
        %v6594 = vadd.f32 %v6344, %v6593
        %v6595 = vpop.f32.mrb[0].mxu0
        %v6596 = vpop.f32.mrb[0].mxu0
        %v6597 = vadd.f32 %v6349, %v6596
        %v6598 = vpop.f32.mrb[0].mxu0
        %6599 = vdwg.mxu0
        %6600 = vmatprep.subr.bf16.mxu0 0
        %6601 = vmatpush1.bf16.msra.mxu0 %v6207
        %6602 = vmatprep.subr.bf16.mxu0 0
        %6603 = vmatpush1.bf16.msra.mxu0 %v6208
        %6604 = vmatprep.subr.bf16.mxu0 0
        %6605 = vmatpush1.bf16.msra.mxu0 %v6209
        %6606 = vmatprep.subr.bf16.mxu0 0
        %6607 = vmatpush1.bf16.msra.mxu0 %v6210
        %6608 = vmatprep.subr.bf16.mxu0 0
        %6609 = vmatpush1.bf16.msra.mxu0 %v6211
        %6610 = vmatprep.subr.bf16.mxu0 0
        %6611 = vmatpush1.bf16.msra.mxu0 %v6212
        %6612 = vmatprep.subr.bf16.mxu0 0
        %6613 = vmatpush1.bf16.msra.mxu0 %v6213
        %6614 = vmatprep.subr.bf16.mxu0 0
        %6615 = vmatpush1.bf16.msra.mxu0 %v6214
        %6616 = vmatprep.subr.bf16.mxu0 0
        %6617 = vmatpush1.bf16.msra.mxu0 %v6215
        %6618 = vmatprep.subr.bf16.mxu0 0
        %6619 = vmatpush1.bf16.msra.mxu0 %v6216
        %6620 = vmatprep.subr.bf16.mxu0 0
        %6621 = vmatpush1.bf16.msra.mxu0 %v6217
        %6622 = vmatprep.subr.bf16.mxu0 0
        %6623 = vmatpush1.bf16.msra.mxu0 %v6218
        %6624 = vmatprep.subr.bf16.mxu0 0
        %6625 = vmatpush1.bf16.msra.mxu0 %v6219
        %6626 = vmatprep.subr.bf16.mxu0 0
        %6627 = vmatpush1.bf16.msra.mxu0 %v6220
        %6628 = vmatprep.subr.bf16.mxu0 0
        %6629 = vmatpush1.bf16.msra.mxu0 %v6221
        %6630 = vmatprep.subr.bf16.mxu0 0
        %6631 = vmatpush1.bf16.msra.mxu0 %v6222
        %6632 = vmatprep.mubr.bf16.mxu0 %v6466
        %6633 = vmatmul.mubr.bf16.gmra.mrb[0].mxu0 %v6465
        %v6634 = vpop.f32.mrb[0].mxu0
        %v6635 = vadd.f32 %v6570, %v6634
        %v6636 = vpop.f32.mrb[0].mxu0
        %v6637 = vpop.f32.mrb[0].mxu0
        %v6638 = vadd.f32 %v6573, %v6637
        %v6639 = vpop.f32.mrb[0].mxu0
        %6640 = vmatprep.mubr.bf16.mxu0 %v6475
        %6641 = vmatmul.mubr.bf16.gmra.mrb[0].mxu0 %v6474
        %v6642 = vpop.f32.mrb[0].mxu0
        %v6643 = vadd.f32 %v6578, %v6642
        %v6644 = vpop.f32.mrb[0].mxu0
        %v6645 = vpop.f32.mrb[0].mxu0
        %v6646 = vadd.f32 %v6581, %v6645
        %v6647 = vpop.f32.mrb[0].mxu0
        %6648 = vmatprep.mubr.bf16.mxu0 %v6484
        %6649 = vmatmul.mubr.bf16.gmra.mrb[0].mxu0 %v6483
        %v6650 = vpop.f32.mrb[0].mxu0
        %v6651 = vadd.f32 %v6586, %v6650
        %v6652 = vpop.f32.mrb[0].mxu0
        %v6653 = vpop.f32.mrb[0].mxu0
        %v6654 = vadd.f32 %v6589, %v6653
        %v6655 = vpop.f32.mrb[0].mxu0
        %6656 = vmatprep.mubr.bf16.mxu0 %v6493
        %6657 = vmatmul.mubr.bf16.gmra.mrb[0].mxu0 %v6492
        %v6658 = vpop.f32.mrb[0].mxu0
        %v6659 = vadd.f32 %v6594, %v6658
        %v6660 = vpop.f32.mrb[0].mxu0
        %v6661 = vpop.f32.mrb[0].mxu0
        %v6662 = vadd.f32 %v6597, %v6661
        %v6663 = vpop.f32.mrb[0].mxu0
        %6664 = vdwg.mxu0
        %6665 = vmatprep.subr.bf16.mxu0 0
        %6666 = vmatpush1.bf16.msra.mxu0 %v6223
        %6667 = vmatprep.subr.bf16.mxu0 0
        %6668 = vmatpush1.bf16.msra.mxu0 %v6224
        %6669 = vmatprep.subr.bf16.mxu0 0
        %6670 = vmatpush1.bf16.msra.mxu0 %v6225
        %6671 = vmatprep.subr.bf16.mxu0 0
        %6672 = vmatpush1.bf16.msra.mxu0 %v6226
        %6673 = vmatprep.subr.bf16.mxu0 0
        %6674 = vmatpush1.bf16.msra.mxu0 %v6227
        %6675 = vmatprep.subr.bf16.mxu0 0
        %6676 = vmatpush1.bf16.msra.mxu0 %v6228
        %6677 = vmatprep.subr.bf16.mxu0 0
        %6678 = vmatpush1.bf16.msra.mxu0 %v6229
        %6679 = vmatprep.subr.bf16.mxu0 0
        %6680 = vmatpush1.bf16.msra.mxu0 %v6230
        %6681 = vmatprep.subr.bf16.mxu0 0
        %6682 = vmatpush1.bf16.msra.mxu0 %v6231
        %6683 = vmatprep.subr.bf16.mxu0 0
        %6684 = vmatpush1.bf16.msra.mxu0 %v6232
        %6685 = vmatprep.subr.bf16.mxu0 0
        %6686 = vmatpush1.bf16.msra.mxu0 %v6233
        %6687 = vmatprep.subr.bf16.mxu0 0
        %6688 = vmatpush1.bf16.msra.mxu0 %v6234
        %6689 = vmatprep.subr.bf16.mxu0 0
        %6690 = vmatpush1.bf16.msra.mxu0 %v6235
        %6691 = vmatprep.subr.bf16.mxu0 0
        %6692 = vmatpush1.bf16.msra.mxu0 %v6236
        %6693 = vmatprep.subr.bf16.mxu0 0
        %6694 = vmatpush1.bf16.msra.mxu0 %v6237
        %6695 = vmatprep.subr.bf16.mxu0 0
        %6696 = vmatpush1.bf16.msra.mxu0 %v6238
        %6697 = vmatprep.mubr.bf16.mxu0 %v6468
        %6698 = vmatmul.mubr.bf16.gmra.mrb[0].mxu0 %v6467
        %v6699 = vpop.f32.mrb[0].mxu0
        %v6700 = vadd.f32 %v6635, %v6699
        %v6701 = vpop.f32.mrb[0].mxu0
        %v6702 = vpop.f32.mrb[0].mxu0
        %v6703 = vadd.f32 %v6638, %v6702
        %v6704 = vpop.f32.mrb[0].mxu0
        %6705 = vmatprep.mubr.bf16.mxu0 %v6477
        %6706 = vmatmul.mubr.bf16.gmra.mrb[0].mxu0 %v6476
        %v6707 = vpop.f32.mrb[0].mxu0
        %v6708 = vadd.f32 %v6643, %v6707
        %v6709 = vpop.f32.mrb[0].mxu0
        %v6710 = vpop.f32.mrb[0].mxu0
        %v6711 = vadd.f32 %v6646, %v6710
        %v6712 = vpop.f32.mrb[0].mxu0
        %6713 = vmatprep.mubr.bf16.mxu0 %v6486
        %6714 = vmatmul.mubr.bf16.gmra.mrb[0].mxu0 %v6485
        %v6715 = vpop.f32.mrb[0].mxu0
        %v6716 = vadd.f32 %v6651, %v6715
        %v6717 = vpop.f32.mrb[0].mxu0
        %v6718 = vpop.f32.mrb[0].mxu0
        %v6719 = vadd.f32 %v6654, %v6718
        %v6720 = vpop.f32.mrb[0].mxu0
        %6721 = vmatprep.mubr.bf16.mxu0 %v6495
        %6722 = vmatmul.mubr.bf16.gmra.mrb[0].mxu0 %v6494
        %v6723 = vpop.f32.mrb[0].mxu0
        %v6724 = vadd.f32 %v6659, %v6723
        %v6725 = vpop.f32.mrb[0].mxu0
        %v6726 = vpop.f32.mrb[0].mxu0
        %v6727 = vadd.f32 %v6662, %v6726
        %v6728 = vpop.f32.mrb[0].mxu0
        %6729 = vdwg.mxu0
        %6730 = vmatprep.subr.bf16.mxu0 0
        %6731 = vmatpush1.bf16.msra.mxu0 %v6239
        %6732 = vmatprep.subr.bf16.mxu0 0
        %6733 = vmatpush1.bf16.msra.mxu0 %v6240
        %6734 = vmatprep.subr.bf16.mxu0 0
        %6735 = vmatpush1.bf16.msra.mxu0 %v6241
        %6736 = vmatprep.subr.bf16.mxu0 0
        %6737 = vmatpush1.bf16.msra.mxu0 %v6242
        %6738 = vmatprep.subr.bf16.mxu0 0
        %6739 = vmatpush1.bf16.msra.mxu0 %v6243
        %6740 = vmatprep.subr.bf16.mxu0 0
        %6741 = vmatpush1.bf16.msra.mxu0 %v6244
        %6742 = vmatprep.subr.bf16.mxu0 0
        %6743 = vmatpush1.bf16.msra.mxu0 %v6245
        %6744 = vmatprep.subr.bf16.mxu0 0
        %6745 = vmatpush1.bf16.msra.mxu0 %v6246
        %6746 = vmatprep.subr.bf16.mxu0 0
        %6747 = vmatpush1.bf16.msra.mxu0 %v6247
        %6748 = vmatprep.subr.bf16.mxu0 0
        %6749 = vmatpush1.bf16.msra.mxu0 %v6248
        %6750 = vmatprep.subr.bf16.mxu0 0
        %6751 = vmatpush1.bf16.msra.mxu0 %v6249
        %6752 = vmatprep.subr.bf16.mxu0 0
        %6753 = vmatpush1.bf16.msra.mxu0 %v6250
        %6754 = vmatprep.subr.bf16.mxu0 0
        %6755 = vmatpush1.bf16.msra.mxu0 %v6251
        %6756 = vmatprep.subr.bf16.mxu0 0
        %6757 = vmatpush1.bf16.msra.mxu0 %v6252
        %6758 = vmatprep.subr.bf16.mxu0 0
        %6759 = vmatpush1.bf16.msra.mxu0 %v6253
        %6760 = vmatprep.subr.bf16.mxu0 0
        %6761 = vmatpush1.bf16.msra.mxu0 %v6254
        %6762 = vmatprep.mubr.bf16.mxu0 %v6470
        %6763 = vmatmul.mubr.bf16.gmra.mrb[0].mxu0 %v6469
        %v6764 = vpop.f32.mrb[0].mxu0
        %v6765 = vadd.f32 %v6700, %v6764
        %v6766 = vpop.f32.mrb[0].mxu0
        %v6767 = vpop.f32.mrb[0].mxu0
        %v6768 = vadd.f32 %v6703, %v6767
        %v6769 = vpop.f32.mrb[0].mxu0
        %6770 = vmatprep.mubr.bf16.mxu0 %v6479
        %6771 = vmatmul.mubr.bf16.gmra.mrb[0].mxu0 %v6478
        %v6772 = vpop.f32.mrb[0].mxu0
        %v6773 = vadd.f32 %v6708, %v6772
        %v6774 = vpop.f32.mrb[0].mxu0
        %v6775 = vpop.f32.mrb[0].mxu0
        %v6776 = vadd.f32 %v6711, %v6775
        %v6777 = vpop.f32.mrb[0].mxu0
        %6778 = vmatprep.mubr.bf16.mxu0 %v6488
        %6779 = vmatmul.mubr.bf16.gmra.mrb[0].mxu0 %v6487
        %v6780 = vpop.f32.mrb[0].mxu0
        %v6781 = vadd.f32 %v6716, %v6780
        %v6782 = vpop.f32.mrb[0].mxu0
        %v6783 = vpop.f32.mrb[0].mxu0
        %v6784 = vadd.f32 %v6719, %v6783
        %v6785 = vpop.f32.mrb[0].mxu0
        %6786 = vmatprep.mubr.bf16.mxu0 %v6497
        %6787 = vmatmul.mubr.bf16.gmra.mrb[0].mxu0 %v6496
        %v6788 = vpop.f32.mrb[0].mxu0
        %v6789 = vadd.f32 %v6724, %v6788
        %v6790 = vpop.f32.mrb[0].mxu0
        %v6791 = vpop.f32.mrb[0].mxu0
        %v6792 = vadd.f32 %v6727, %v6791
        %v6793 = vpop.f32.mrb[0].mxu0
        %6794 = vdwg.mxu0
        %6795 = vmatprep.subr.bf16.mxu0 0
        %6796 = vmatpush1.bf16.msra.mxu0 %v6255
        %6797 = vmatprep.subr.bf16.mxu0 0
        %6798 = vmatpush1.bf16.msra.mxu0 %v6256
        %6799 = vmatprep.subr.bf16.mxu0 0
        %6800 = vmatpush1.bf16.msra.mxu0 %v6257
        %6801 = vmatprep.subr.bf16.mxu0 0
        %6802 = vmatpush1.bf16.msra.mxu0 %v6258
        %6803 = vmatprep.subr.bf16.mxu0 0
        %6804 = vmatpush1.bf16.msra.mxu0 %v6259
        %6805 = vmatprep.subr.bf16.mxu0 0
        %6806 = vmatpush1.bf16.msra.mxu0 %v6260
        %6807 = vmatprep.subr.bf16.mxu0 0
        %6808 = vmatpush1.bf16.msra.mxu0 %v6261
        %6809 = vmatprep.subr.bf16.mxu0 0
        %6810 = vmatpush1.bf16.msra.mxu0 %v6262
        %6811 = vmatprep.subr.bf16.mxu0 0
        %6812 = vmatpush1.bf16.msra.mxu0 0
        %6813 = vmatprep.subr.bf16.mxu0 0
        %6814 = vmatpush1.bf16.msra.mxu0 0
        %6815 = vmatprep.subr.bf16.mxu0 0
        %6816 = vmatpush1.bf16.msra.mxu0 0
        %6817 = vmatprep.subr.bf16.mxu0 0
        %6818 = vmatpush1.bf16.msra.mxu0 0
        %6819 = vmatprep.subr.bf16.mxu0 0
        %6820 = vmatpush1.bf16.msra.mxu0 0
        %6821 = vmatprep.subr.bf16.mxu0 0
        %6822 = vmatpush1.bf16.msra.mxu0 0
        %6823 = vmatprep.subr.bf16.mxu0 0
        %6824 = vmatpush1.bf16.msra.mxu0 0
        %6825 = vmatprep.subr.bf16.mxu0 0
        %6826 = vmatpush1.bf16.msra.mxu0 0
        %6827 = vmatprep.mubr.bf16.mxu0 0
        %6828 = vmatmul.mubr.bf16.gmra.mrb[0].mxu0 %v6471
        %v6829 = vpop.f32.mrb[0].mxu0
        %v6830 = vadd.f32 %v6765, %v6829
        %v6831 = vpop.f32.mrb[0].mxu0
        %v6832 = vpop.f32.mrb[0].mxu0
        %v6833 = vadd.f32 %v6768, %v6832
        %v6834 = vpop.f32.mrb[0].mxu0
        %6835 = vmatprep.mubr.bf16.mxu0 0
        %6836 = vmatmul.mubr.bf16.gmra.mrb[0].mxu0 %v6480
        %v6837 = vpop.f32.mrb[0].mxu0
        %v6838 = vadd.f32 %v6773, %v6837
        %v6839 = vpop.f32.mrb[0].mxu0
        %v6840 = vpop.f32.mrb[0].mxu0
        %v6841 = vadd.f32 %v6776, %v6840
        %v6842 = vpop.f32.mrb[0].mxu0
        %6843 = vmatprep.mubr.bf16.mxu0 0
        %6844 = vmatmul.mubr.bf16.gmra.mrb[0].mxu0 %v6489
        %v6845 = vpop.f32.mrb[0].mxu0
        %v6846 = vadd.f32 %v6781, %v6845
        %v6847 = vpop.f32.mrb[0].mxu0
        %v6848 = vpop.f32.mrb[0].mxu0
        %v6849 = vadd.f32 %v6784, %v6848
        %v6850 = vpop.f32.mrb[0].mxu0
        %6851 = vmatprep.mubr.bf16.mxu0 0
        %6852 = vmatmul.mubr.bf16.gmra.mrb[0].mxu0 %v6498
        %v6853 = vpop.f32.mrb[0].mxu0
        %v6854 = vadd.f32 %v6789, %v6853
        %v6855 = vpop.f32.mrb[0].mxu0
        %v6856 = vpop.f32.mrb[0].mxu0
        %v6857 = vadd.f32 %v6792, %v6856
        %v6858 = vpop.f32.mrb[0].mxu0
        %6859 = vdwg.mxu0
        %v6860 = vmax.f32 %v6830, 0.0
        %v6861 = vmax.f32 %v6833, 0.0
        %v6862 = vmax.f32 %v6838, 0.0
        %v6863 = vmax.f32 %v6841, 0.0
        %v6864 = vmax.f32 %v6846, 0.0
        %v6865 = vmax.f32 %v6849, 0.0
        %v6866 = vmax.f32 %v6854, 0.0
        %v6867 = vmax.f32 %v6857, 0.0
        %6876 = vrot.lane.b32.xlu0 %v6860, 5
        %v6877 = vpop.permute.xlu0 %6876
        %6878 = vrot.lane.b32.xlu0 %v6861, 5
        %v6879 = vpop.permute.xlu0 %6878
        %6880 = vrot.lane.b32.xlu0 %v6862, 5
        %v6881 = vpop.permute.xlu0 %6880
        %6882 = vrot.lane.b32.xlu0 %v6863, 5
        %v6883 = vpop.permute.xlu0 %6882
        %6884 = vrot.lane.b32.xlu0 %v6864, 5
        %v6885 = vpop.permute.xlu0 %6884
        %6886 = vrot.lane.b32.xlu0 %v6865, 5
        %v6887 = vpop.permute.xlu0 %6886
        %6888 = vrot.lane.b32.xlu0 %v6866, 5
        %v6889 = vpop.permute.xlu0 %6888
        %6890 = vrot.lane.b32.xlu0 %v6867, 5
        %v6891 = vpop.permute.xlu0 %6890
        %v6900 = vsel %vm3717, 0.0, %v6877
        %v6901 = vsel %vm3717, 0.0, %v6879
        %v6902 = vsel %vm3717, 0.0, %v6881
        %v6903 = vsel %vm3717, 0.0, %v6883
        %v6904 = vsel %vm3717, 0.0, %v6885
        %v6905 = vsel %vm3717, 0.0, %v6887
        %v6906 = vsel %vm3717, 0.0, %v6889
        %v6907 = vsel %vm3717, 0.0, %v6891
        %v6908 = vmul.f32 %v6900, %v3739
        %v6909 = vmul.f32 %v6901, %v3739
        %v6910 = vmul.f32 %v6902, %v3739
        %v6911 = vmul.f32 %v6903, %v3739
        %v6912 = vmul.f32 %v6904, %v3739
        %v6913 = vmul.f32 %v6905, %v3739
        %v6914 = vmul.f32 %v6906, %v3739
        %v6915 = vmul.f32 %v6907, %v3739
        %6916 = vrot.lane.b32.xlu0 %v6860, 4
        %v6917 = vpop.permute.xlu0 %6916
        %6918 = vrot.lane.b32.xlu0 %v6861, 4
        %v6919 = vpop.permute.xlu0 %6918
        %6920 = vrot.lane.b32.xlu0 %v6862, 4
        %v6921 = vpop.permute.xlu0 %6920
        %6922 = vrot.lane.b32.xlu0 %v6863, 4
        %v6923 = vpop.permute.xlu0 %6922
        %6924 = vrot.lane.b32.xlu0 %v6864, 4
        %v6925 = vpop.permute.xlu0 %6924
        %6926 = vrot.lane.b32.xlu0 %v6865, 4
        %v6927 = vpop.permute.xlu0 %6926
        %6928 = vrot.lane.b32.xlu0 %v6866, 4
        %v6929 = vpop.permute.xlu0 %6928
        %6930 = vrot.lane.b32.xlu0 %v6867, 4
        %v6931 = vpop.permute.xlu0 %6930
        %v6940 = vsel %vm3805, 0.0, %v6917
        %v6941 = vsel %vm3805, 0.0, %v6919
        %v6942 = vsel %vm3805, 0.0, %v6921
        %v6943 = vsel %vm3805, 0.0, %v6923
        %v6944 = vsel %vm3805, 0.0, %v6925
        %v6945 = vsel %vm3805, 0.0, %v6927
        %v6946 = vsel %vm3805, 0.0, %v6929
        %v6947 = vsel %vm3805, 0.0, %v6931
        %v6948 = vmul.f32 %v6940, %v3828
        %v6949 = vmul.f32 %v6941, %v3828
        %v6950 = vmul.f32 %v6942, %v3828
        %v6951 = vmul.f32 %v6943, %v3828
        %v6952 = vmul.f32 %v6944, %v3828
        %v6953 = vmul.f32 %v6945, %v3828
        %v6954 = vmul.f32 %v6946, %v3828
        %v6955 = vmul.f32 %v6947, %v3828
        %6956 = vrot.lane.b32.xlu0 %v6860, 3
        %v6957 = vpop.permute.xlu0 %6956
        %6958 = vrot.lane.b32.xlu0 %v6861, 3
        %v6959 = vpop.permute.xlu0 %6958
        %6960 = vrot.lane.b32.xlu0 %v6862, 3
        %v6961 = vpop.permute.xlu0 %6960
        %6962 = vrot.lane.b32.xlu0 %v6863, 3
        %v6963 = vpop.permute.xlu0 %6962
        %6964 = vrot.lane.b32.xlu0 %v6864, 3
        %v6965 = vpop.permute.xlu0 %6964
        %6966 = vrot.lane.b32.xlu0 %v6865, 3
        %v6967 = vpop.permute.xlu0 %6966
        %6968 = vrot.lane.b32.xlu0 %v6866, 3
        %v6969 = vpop.permute.xlu0 %6968
        %6970 = vrot.lane.b32.xlu0 %v6867, 3
        %v6971 = vpop.permute.xlu0 %6970
        %v6980 = vsel %vm3894, 0.0, %v6957
        %v6981 = vsel %vm3894, 0.0, %v6959
        %v6982 = vsel %vm3894, 0.0, %v6961
        %v6983 = vsel %vm3894, 0.0, %v6963
        %v6984 = vsel %vm3894, 0.0, %v6965
        %v6985 = vsel %vm3894, 0.0, %v6967
        %v6986 = vsel %vm3894, 0.0, %v6969
        %v6987 = vsel %vm3894, 0.0, %v6971
        %v6988 = vmul.f32 %v6980, %v3917
        %v6989 = vmul.f32 %v6981, %v3917
        %v6990 = vmul.f32 %v6982, %v3917
        %v6991 = vmul.f32 %v6983, %v3917
        %v6992 = vmul.f32 %v6984, %v3917
        %v6993 = vmul.f32 %v6985, %v3917
        %v6994 = vmul.f32 %v6986, %v3917
        %v6995 = vmul.f32 %v6987, %v3917
        %6996 = vrot.lane.b32.xlu0 %v6860, 1
        %v6997 = vpop.permute.xlu0 %6996
        %6998 = vrot.lane.b32.xlu0 %v6861, 1
        %v6999 = vpop.permute.xlu0 %6998
        %7000 = vrot.lane.b32.xlu0 %v6862, 1
        %v7001 = vpop.permute.xlu0 %7000
        %7002 = vrot.lane.b32.xlu0 %v6863, 1
        %v7003 = vpop.permute.xlu0 %7002
        %7004 = vrot.lane.b32.xlu0 %v6864, 1
        %v7005 = vpop.permute.xlu0 %7004
        %7006 = vrot.lane.b32.xlu0 %v6865, 1
        %v7007 = vpop.permute.xlu0 %7006
        %7008 = vrot.lane.b32.xlu0 %v6866, 1
        %v7009 = vpop.permute.xlu0 %7008
        %7010 = vrot.lane.b32.xlu0 %v6867, 1
        %v7011 = vpop.permute.xlu0 %7010
        %v7020 = vsel %vm806, 0.0, %v6997
        %v7021 = vsel %vm806, 0.0, %v6999
        %v7022 = vsel %vm806, 0.0, %v7001
        %v7023 = vsel %vm806, 0.0, %v7003
        %v7024 = vsel %vm806, 0.0, %v7005
        %v7025 = vsel %vm806, 0.0, %v7007
        %v7026 = vsel %vm806, 0.0, %v7009
        %v7027 = vsel %vm806, 0.0, %v7011
        %v7028 = vmul.f32 %v7020, %v4005
        %v7029 = vmul.f32 %v7021, %v4005
        %v7030 = vmul.f32 %v7022, %v4005
        %v7031 = vmul.f32 %v7023, %v4005
        %v7032 = vmul.f32 %v7024, %v4005
        %v7033 = vmul.f32 %v7025, %v4005
        %v7034 = vmul.f32 %v7026, %v4005
        %v7035 = vmul.f32 %v7027, %v4005
        %v7036 = vmul.f32 %v6860, %v4029
        %v7037 = vmul.f32 %v6861, %v4029
        %v7038 = vmul.f32 %v6862, %v4029
        %v7039 = vmul.f32 %v6863, %v4029
        %v7040 = vmul.f32 %v6864, %v4029
        %v7041 = vmul.f32 %v6865, %v4029
        %v7042 = vmul.f32 %v6866, %v4029
        %v7043 = vmul.f32 %v6867, %v4029
        %7044 = vrot.lane.b32.xlu0 %v6860, 127
        %v7045 = vpop.permute.xlu0 %7044
        %7046 = vrot.lane.b32.xlu0 %v6861, 127
        %v7047 = vpop.permute.xlu0 %7046
        %7048 = vrot.lane.b32.xlu0 %v6862, 127
        %v7049 = vpop.permute.xlu0 %7048
        %7050 = vrot.lane.b32.xlu0 %v6863, 127
        %v7051 = vpop.permute.xlu0 %7050
        %7052 = vrot.lane.b32.xlu0 %v6864, 127
        %v7053 = vpop.permute.xlu0 %7052
        %7054 = vrot.lane.b32.xlu0 %v6865, 127
        %v7055 = vpop.permute.xlu0 %7054
        %7056 = vrot.lane.b32.xlu0 %v6866, 127
        %v7057 = vpop.permute.xlu0 %7056
        %7058 = vrot.lane.b32.xlu0 %v6867, 127
        %v7059 = vpop.permute.xlu0 %7058
        %v7068 = vsel %vm782, %v7045, 0.0
        %v7069 = vsel %vm782, %v7047, 0.0
        %v7070 = vsel %vm782, %v7049, 0.0
        %v7071 = vsel %vm782, %v7051, 0.0
        %v7072 = vsel %vm782, %v7053, 0.0
        %v7073 = vsel %vm782, %v7055, 0.0
        %v7074 = vsel %vm782, %v7057, 0.0
        %v7075 = vsel %vm782, %v7059, 0.0
        %v7076 = vmul.f32 %v7068, %v4117
        %v7077 = vmul.f32 %v7069, %v4117
        %v7078 = vmul.f32 %v7070, %v4117
        %v7079 = vmul.f32 %v7071, %v4117
        %v7080 = vmul.f32 %v7072, %v4117
        %v7081 = vmul.f32 %v7073, %v4117
        %v7082 = vmul.f32 %v7074, %v4117
        %v7083 = vmul.f32 %v7075, %v4117
        %7084 = vrot.lane.b32.xlu0 %v6860, 125
        %v7085 = vpop.permute.xlu0 %7084
        %7086 = vrot.lane.b32.xlu0 %v6861, 125
        %v7087 = vpop.permute.xlu0 %7086
        %7088 = vrot.lane.b32.xlu0 %v6862, 125
        %v7089 = vpop.permute.xlu0 %7088
        %7090 = vrot.lane.b32.xlu0 %v6863, 125
        %v7091 = vpop.permute.xlu0 %7090
        %7092 = vrot.lane.b32.xlu0 %v6864, 125
        %v7093 = vpop.permute.xlu0 %7092
        %7094 = vrot.lane.b32.xlu0 %v6865, 125
        %v7095 = vpop.permute.xlu0 %7094
        %7096 = vrot.lane.b32.xlu0 %v6866, 125
        %v7097 = vpop.permute.xlu0 %7096
        %7098 = vrot.lane.b32.xlu0 %v6867, 125
        %v7099 = vpop.permute.xlu0 %7098
        %v7108 = vsel %vm4183, %v7085, 0.0
        %v7109 = vsel %vm4183, %v7087, 0.0
        %v7110 = vsel %vm4183, %v7089, 0.0
        %v7111 = vsel %vm4183, %v7091, 0.0
        %v7112 = vsel %vm4183, %v7093, 0.0
        %v7113 = vsel %vm4183, %v7095, 0.0
        %v7114 = vsel %vm4183, %v7097, 0.0
        %v7115 = vsel %vm4183, %v7099, 0.0
        %v7116 = vmul.f32 %v7108, %v4206
        %v7117 = vmul.f32 %v7109, %v4206
        %v7118 = vmul.f32 %v7110, %v4206
        %v7119 = vmul.f32 %v7111, %v4206
        %v7120 = vmul.f32 %v7112, %v4206
        %v7121 = vmul.f32 %v7113, %v4206
        %v7122 = vmul.f32 %v7114, %v4206
        %v7123 = vmul.f32 %v7115, %v4206
        %7124 = vrot.lane.b32.xlu0 %v6860, 124
        %v7125 = vpop.permute.xlu0 %7124
        %7126 = vrot.lane.b32.xlu0 %v6861, 124
        %v7127 = vpop.permute.xlu0 %7126
        %7128 = vrot.lane.b32.xlu0 %v6862, 124
        %v7129 = vpop.permute.xlu0 %7128
        %7130 = vrot.lane.b32.xlu0 %v6863, 124
        %v7131 = vpop.permute.xlu0 %7130
        %7132 = vrot.lane.b32.xlu0 %v6864, 124
        %v7133 = vpop.permute.xlu0 %7132
        %7134 = vrot.lane.b32.xlu0 %v6865, 124
        %v7135 = vpop.permute.xlu0 %7134
        %7136 = vrot.lane.b32.xlu0 %v6866, 124
        %v7137 = vpop.permute.xlu0 %7136
        %7138 = vrot.lane.b32.xlu0 %v6867, 124
        %v7139 = vpop.permute.xlu0 %7138
        %v7148 = vsel %vm4272, %v7125, 0.0
        %v7149 = vsel %vm4272, %v7127, 0.0
        %v7150 = vsel %vm4272, %v7129, 0.0
        %v7151 = vsel %vm4272, %v7131, 0.0
        %v7152 = vsel %vm4272, %v7133, 0.0
        %v7153 = vsel %vm4272, %v7135, 0.0
        %v7154 = vsel %vm4272, %v7137, 0.0
        %v7155 = vsel %vm4272, %v7139, 0.0
        %v7156 = vmul.f32 %v7148, %v4295
        %v7157 = vmul.f32 %v7149, %v4295
        %v7158 = vmul.f32 %v7150, %v4295
        %v7159 = vmul.f32 %v7151, %v4295
        %v7160 = vmul.f32 %v7152, %v4295
        %v7161 = vmul.f32 %v7153, %v4295
        %v7162 = vmul.f32 %v7154, %v4295
        %v7163 = vmul.f32 %v7155, %v4295
        %7164 = vrot.lane.b32.xlu0 %v6860, 123
        %v7165 = vpop.permute.xlu0 %7164
        %7166 = vrot.lane.b32.xlu0 %v6861, 123
        %v7167 = vpop.permute.xlu0 %7166
        %7168 = vrot.lane.b32.xlu0 %v6862, 123
        %v7169 = vpop.permute.xlu0 %7168
        %7170 = vrot.lane.b32.xlu0 %v6863, 123
        %v7171 = vpop.permute.xlu0 %7170
        %7172 = vrot.lane.b32.xlu0 %v6864, 123
        %v7173 = vpop.permute.xlu0 %7172
        %7174 = vrot.lane.b32.xlu0 %v6865, 123
        %v7175 = vpop.permute.xlu0 %7174
        %7176 = vrot.lane.b32.xlu0 %v6866, 123
        %v7177 = vpop.permute.xlu0 %7176
        %7178 = vrot.lane.b32.xlu0 %v6867, 123
        %v7179 = vpop.permute.xlu0 %7178
        %v7188 = vsel %vm4361, %v7165, 0.0
        %v7189 = vsel %vm4361, %v7167, 0.0
        %v7190 = vsel %vm4361, %v7169, 0.0
        %v7191 = vsel %vm4361, %v7171, 0.0
        %v7192 = vsel %vm4361, %v7173, 0.0
        %v7193 = vsel %vm4361, %v7175, 0.0
        %v7194 = vsel %vm4361, %v7177, 0.0
        %v7195 = vsel %vm4361, %v7179, 0.0
        %v7196 = vmul.f32 %v7188, %v4384
        %v7197 = vmul.f32 %v7189, %v4384
        %v7198 = vmul.f32 %v7190, %v4384
        %v7199 = vmul.f32 %v7191, %v4384
        %v7200 = vmul.f32 %v7192, %v4384
        %v7201 = vmul.f32 %v7193, %v4384
        %v7202 = vmul.f32 %v7194, %v4384
        %v7203 = vmul.f32 %v7195, %v4384
        %v7204 = vpack.c.bf16 %v6909, %v6908
        %v7205 = vpack.c.bf16 %v6911, %v6910
        %v7206 = vpack.c.bf16 %v6913, %v6912
        %v7207 = vpack.c.bf16 %v6915, %v6914
        %v7208 = vpack.c.bf16 %v6949, %v6948
        %v7209 = vpack.c.bf16 %v6951, %v6950
        %v7210 = vpack.c.bf16 %v6953, %v6952
        %v7211 = vpack.c.bf16 %v6955, %v6954
        %v7212 = vpack.c.bf16 %v6989, %v6988
        %v7213 = vpack.c.bf16 %v6991, %v6990
        %v7214 = vpack.c.bf16 %v6993, %v6992
        %v7215 = vpack.c.bf16 %v6995, %v6994
        %v7216 = vpack.c.bf16 %v7029, %v7028
        %v7217 = vpack.c.bf16 %v7031, %v7030
        %v7218 = vpack.c.bf16 %v7033, %v7032
        %v7219 = vpack.c.bf16 %v7035, %v7034
        %v7220 = vpack.c.bf16 %v7037, %v7036
        %v7221 = vpack.c.bf16 %v7039, %v7038
        %v7222 = vpack.c.bf16 %v7041, %v7040
        %v7223 = vpack.c.bf16 %v7043, %v7042
        %v7224 = vpack.c.bf16 %v7077, %v7076
        %v7225 = vpack.c.bf16 %v7079, %v7078
        %v7226 = vpack.c.bf16 %v7081, %v7080
        %v7227 = vpack.c.bf16 %v7083, %v7082
        %v7228 = vpack.c.bf16 %v7117, %v7116
        %v7229 = vpack.c.bf16 %v7119, %v7118
        %v7230 = vpack.c.bf16 %v7121, %v7120
        %v7231 = vpack.c.bf16 %v7123, %v7122
        %v7232 = vpack.c.bf16 %v7157, %v7156
        %v7233 = vpack.c.bf16 %v7159, %v7158
        %v7234 = vpack.c.bf16 %v7161, %v7160
        %v7235 = vpack.c.bf16 %v7163, %v7162
        %v7236 = vpack.c.bf16 %v7197, %v7196
        %v7237 = vpack.c.bf16 %v7199, %v7198
        %v7238 = vpack.c.bf16 %v7201, %v7200
        %v7239 = vpack.c.bf16 %v7203, %v7202
        %v7240 = vld [vmem:[%s17] sm:$0xff]
        %v7241 = vld [vmem:[%s17 + $0x8] sm:$0xff]
        %v7242 = vld [vmem:[%s17 + $0x10] sm:$0xf]
        %v7243 = vld [vmem:[%s17 + $0x14] sm:$0xff]
        %v7244 = vld [vmem:[%s17 + $0x1c] sm:$0xff]
        %v7245 = vld [vmem:[%s17 + $0x24] sm:$0xf]
        %v7246 = vld [vmem:[%s17 + $0x28] sm:$0xff]
        %v7247 = vld [vmem:[%s17 + $0x30] sm:$0xff]
        %v7248 = vld [vmem:[%s17 + $0x38] sm:$0xf]
        %v7249 = vld [vmem:[%s17 + $0x3c] sm:$0xff]
        %v7250 = vld [vmem:[%s17 + $0x44] sm:$0xff]
        %v7251 = vld [vmem:[%s17 + $0x4c] sm:$0xf]
        %v7252 = vld [vmem:[%s18] sm:$0xff]
        %v7253 = vld [vmem:[%s18 + $0x8] sm:$0xff]
        %v7254 = vld [vmem:[%s18 + $0x10] sm:$0xff]
        %v7255 = vld [vmem:[%s18 + $0x18] sm:$0xff]
        %7257 = vset.pattern.permute.xlu0 0
        %7258 = vperm.xlu0 %7257, %v7252
        %v7259 = vpop.permute.xlu0 %7258
        %7262 = vset.pattern.permute.xlu0 0
        %7263 = vperm.xlu0 %7262, %v7253
        %v7264 = vpop.permute.xlu0 %7263
        %7267 = vset.pattern.permute.xlu0 0
        %7268 = vperm.xlu0 %7267, %v7254
        %v7269 = vpop.permute.xlu0 %7268
        %7272 = vset.pattern.permute.xlu0 0
        %7273 = vperm.xlu0 %7272, %v7255
        %v7274 = vpop.permute.xlu0 %7273
        %v7288 = vunpack.c.l.b16 %v7240
        %v7289 = vunpack.c.h.b16 %v7240
        %v7290 = vunpack.c.l.b16 %v7241
        %v7291 = vunpack.c.h.b16 %v7241
        %v7292 = vunpack.c.l.b16 %v7242
        %v7293 = vunpack.c.l.b16 %v7243
        %v7294 = vunpack.c.h.b16 %v7243
        %v7295 = vunpack.c.l.b16 %v7244
        %v7296 = vunpack.c.h.b16 %v7244
        %v7297 = vunpack.c.l.b16 %v7245
        %v7298 = vunpack.c.l.b16 %v7246
        %v7299 = vunpack.c.h.b16 %v7246
        %v7300 = vunpack.c.l.b16 %v7247
        %v7301 = vunpack.c.h.b16 %v7247
        %v7302 = vunpack.c.l.b16 %v7248
        %v7303 = vunpack.c.l.b16 %v7249
        %v7304 = vunpack.c.h.b16 %v7249
        %v7305 = vunpack.c.l.b16 %v7250
        %v7306 = vunpack.c.h.b16 %v7250
        %v7307 = vunpack.c.l.b16 %v7251
        %v7308 = vpack.c.b16 %v7293, %v7288
        %v7309 = vpack.c.b16 %v7294, %v7289
        %v7310 = vpack.c.b16 %v7295, %v7290
        %v7311 = vpack.c.b16 %v7296, %v7291
        %v7312 = vpack.c.b16 %v7297, %v7292
        %v7313 = vpack.c.b16 %v7303, %v7298
        %v7314 = vpack.c.b16 %v7304, %v7299
        %v7315 = vpack.c.b16 %v7305, %v7300
        %v7316 = vpack.c.b16 %v7306, %v7301
        %v7317 = vpack.c.b16 %v7307, %v7302
        %v7327 = vsel %vm2512, %v7312, 0
        %v7330 = vsel %vm2512, %v7317, 0
        %7332 = vmatprep.subr.bf16.mxu0 0
        %7333 = vmatpush1.bf16.msra.mxu0 %v7204
        %7334 = vmatprep.subr.bf16.mxu0 0
        %7335 = vmatpush1.bf16.msra.mxu0 %v7205
        %7336 = vmatprep.subr.bf16.mxu0 0
        %7337 = vmatpush1.bf16.msra.mxu0 %v7206
        %7338 = vmatprep.subr.bf16.mxu0 0
        %7339 = vmatpush1.bf16.msra.mxu0 %v7207
        %7340 = vmatprep.subr.bf16.mxu0 0
        %7341 = vmatpush1.bf16.msra.mxu0 %v7208
        %7342 = vmatprep.subr.bf16.mxu0 0
        %7343 = vmatpush1.bf16.msra.mxu0 %v7209
        %7344 = vmatprep.subr.bf16.mxu0 0
        %7345 = vmatpush1.bf16.msra.mxu0 %v7210
        %7346 = vmatprep.subr.bf16.mxu0 0
        %7347 = vmatpush1.bf16.msra.mxu0 %v7211
        %7348 = vmatprep.subr.bf16.mxu0 0
        %7349 = vmatpush1.bf16.msra.mxu0 %v7212
        %7350 = vmatprep.subr.bf16.mxu0 0
        %7351 = vmatpush1.bf16.msra.mxu0 %v7213
        %7352 = vmatprep.subr.bf16.mxu0 0
        %7353 = vmatpush1.bf16.msra.mxu0 %v7214
        %7354 = vmatprep.subr.bf16.mxu0 0
        %7355 = vmatpush1.bf16.msra.mxu0 %v7215
        %7356 = vmatprep.subr.bf16.mxu0 0
        %7357 = vmatpush1.bf16.msra.mxu0 %v7216
        %7358 = vmatprep.subr.bf16.mxu0 0
        %7359 = vmatpush1.bf16.msra.mxu0 %v7217
        %7360 = vmatprep.subr.bf16.mxu0 0
        %7361 = vmatpush1.bf16.msra.mxu0 %v7218
        %7362 = vmatprep.subr.bf16.mxu0 0
        %7363 = vmatpush1.bf16.msra.mxu0 %v7219
        %7364 = vmatprep.mubr.bf16.mxu0 %v7309
        %7365 = vmatmul.mubr.bf16.gmra.mrb[0].mxu0 %v7308
        %v7366 = vpop.f32.mrb[0].mxu0
        %v7367 = vadd.f32 %v7259, %v7366
        %v7368 = vpop.f32.mrb[0].mxu0
        %v7369 = vpop.f32.mrb[0].mxu0
        %v7370 = vadd.f32 %v7264, %v7369
        %v7371 = vpop.f32.mrb[0].mxu0
        %7372 = vmatprep.mubr.bf16.mxu0 %v7314
        %7373 = vmatmul.mubr.bf16.gmra.mrb[0].mxu0 %v7313
        %v7374 = vpop.f32.mrb[0].mxu0
        %v7375 = vadd.f32 %v7269, %v7374
        %v7376 = vpop.f32.mrb[0].mxu0
        %v7377 = vpop.f32.mrb[0].mxu0
        %v7378 = vadd.f32 %v7274, %v7377
        %v7379 = vpop.f32.mrb[0].mxu0
        %7380 = vdwg.mxu0
        %7381 = vmatprep.subr.bf16.mxu0 0
        %7382 = vmatpush1.bf16.msra.mxu0 %v7220
        %7383 = vmatprep.subr.bf16.mxu0 0
        %7384 = vmatpush1.bf16.msra.mxu0 %v7221
        %7385 = vmatprep.subr.bf16.mxu0 0
        %7386 = vmatpush1.bf16.msra.mxu0 %v7222
        %7387 = vmatprep.subr.bf16.mxu0 0
        %7388 = vmatpush1.bf16.msra.mxu0 %v7223
        %7389 = vmatprep.subr.bf16.mxu0 0
        %7390 = vmatpush1.bf16.msra.mxu0 %v7224
        %7391 = vmatprep.subr.bf16.mxu0 0
        %7392 = vmatpush1.bf16.msra.mxu0 %v7225
        %7393 = vmatprep.subr.bf16.mxu0 0
        %7394 = vmatpush1.bf16.msra.mxu0 %v7226
        %7395 = vmatprep.subr.bf16.mxu0 0
        %7396 = vmatpush1.bf16.msra.mxu0 %v7227
        %7397 = vmatprep.subr.bf16.mxu0 0
        %7398 = vmatpush1.bf16.msra.mxu0 %v7228
        %7399 = vmatprep.subr.bf16.mxu0 0
        %7400 = vmatpush1.bf16.msra.mxu0 %v7229
        %7401 = vmatprep.subr.bf16.mxu0 0
        %7402 = vmatpush1.bf16.msra.mxu0 %v7230
        %7403 = vmatprep.subr.bf16.mxu0 0
        %7404 = vmatpush1.bf16.msra.mxu0 %v7231
        %7405 = vmatprep.subr.bf16.mxu0 0
        %7406 = vmatpush1.bf16.msra.mxu0 %v7232
        %7407 = vmatprep.subr.bf16.mxu0 0
        %7408 = vmatpush1.bf16.msra.mxu0 %v7233
        %7409 = vmatprep.subr.bf16.mxu0 0
        %7410 = vmatpush1.bf16.msra.mxu0 %v7234
        %7411 = vmatprep.subr.bf16.mxu0 0
        %7412 = vmatpush1.bf16.msra.mxu0 %v7235
        %7413 = vmatprep.mubr.bf16.mxu0 %v7311
        %7414 = vmatmul.mubr.bf16.gmra.mrb[0].mxu0 %v7310
        %v7415 = vpop.f32.mrb[0].mxu0
        %v7416 = vadd.f32 %v7367, %v7415
        %v7417 = vpop.f32.mrb[0].mxu0
        %v7418 = vpop.f32.mrb[0].mxu0
        %v7419 = vadd.f32 %v7370, %v7418
        %v7420 = vpop.f32.mrb[0].mxu0
        %7421 = vmatprep.mubr.bf16.mxu0 %v7316
        %7422 = vmatmul.mubr.bf16.gmra.mrb[0].mxu0 %v7315
        %v7423 = vpop.f32.mrb[0].mxu0
        %v7424 = vadd.f32 %v7375, %v7423
        %v7425 = vpop.f32.mrb[0].mxu0
        %v7426 = vpop.f32.mrb[0].mxu0
        %v7427 = vadd.f32 %v7378, %v7426
        %v7428 = vpop.f32.mrb[0].mxu0
        %7429 = vdwg.mxu0
        %7430 = vmatprep.subr.bf16.mxu0 0
        %7431 = vmatpush1.bf16.msra.mxu0 %v7236
        %7432 = vmatprep.subr.bf16.mxu0 0
        %7433 = vmatpush1.bf16.msra.mxu0 %v7237
        %7434 = vmatprep.subr.bf16.mxu0 0
        %7435 = vmatpush1.bf16.msra.mxu0 %v7238
        %7436 = vmatprep.subr.bf16.mxu0 0
        %7437 = vmatpush1.bf16.msra.mxu0 %v7239
        %7438 = vmatprep.subr.bf16.mxu0 0
        %7439 = vmatpush1.bf16.msra.mxu0 0
        %7440 = vmatprep.subr.bf16.mxu0 0
        %7441 = vmatpush1.bf16.msra.mxu0 0
        %7442 = vmatprep.subr.bf16.mxu0 0
        %7443 = vmatpush1.bf16.msra.mxu0 0
        %7444 = vmatprep.subr.bf16.mxu0 0
        %7445 = vmatpush1.bf16.msra.mxu0 0
        %7446 = vmatprep.subr.bf16.mxu0 0
        %7447 = vmatpush1.bf16.msra.mxu0 0
        %7448 = vmatprep.subr.bf16.mxu0 0
        %7449 = vmatpush1.bf16.msra.mxu0 0
        %7450 = vmatprep.subr.bf16.mxu0 0
        %7451 = vmatpush1.bf16.msra.mxu0 0
        %7452 = vmatprep.subr.bf16.mxu0 0
        %7453 = vmatpush1.bf16.msra.mxu0 0
        %7454 = vmatprep.subr.bf16.mxu0 0
        %7455 = vmatpush1.bf16.msra.mxu0 0
        %7456 = vmatprep.subr.bf16.mxu0 0
        %7457 = vmatpush1.bf16.msra.mxu0 0
        %7458 = vmatprep.subr.bf16.mxu0 0
        %7459 = vmatpush1.bf16.msra.mxu0 0
        %7460 = vmatprep.subr.bf16.mxu0 0
        %7461 = vmatpush1.bf16.msra.mxu0 0
        %7462 = vmatprep.mubr.bf16.mxu0 0
        %7463 = vmatmul.mubr.bf16.gmra.mrb[0].mxu0 %v7327
        %v7464 = vpop.f32.mrb[0].mxu0
        %v7465 = vadd.f32 %v7416, %v7464
        %v7466 = vpop.f32.mrb[0].mxu0
        %v7467 = vpop.f32.mrb[0].mxu0
        %v7468 = vadd.f32 %v7419, %v7467
        %v7469 = vpop.f32.mrb[0].mxu0
        %7470 = vmatprep.mubr.bf16.mxu0 0
        %7471 = vmatmul.mubr.bf16.gmra.mrb[0].mxu0 %v7330
        %v7472 = vpop.f32.mrb[0].mxu0
        %v7473 = vadd.f32 %v7424, %v7472
        %v7474 = vpop.f32.mrb[0].mxu0
        %v7475 = vpop.f32.mrb[0].mxu0
        %v7476 = vadd.f32 %v7427, %v7475
        %v7477 = vpop.f32.mrb[0].mxu0
        %7478 = vdwg.mxu0
        %v7479 = vmax.f32 %v7465, 0.0
        %v7480 = vmax.f32 %v7468, 0.0
        %v7481 = vmax.f32 %v7473, 0.0
        %v7482 = vmax.f32 %v7476, 0.0
        %v7483 = vpack.c.bf16 %v7480, %v7479
        %v7484 = vpack.c.bf16 %v7482, %v7481
        %v7485 = vld [vmem:[%s6] sm:$0xff]
        %v7486 = vld [vmem:[%s6 + $0x8] sm:$0xff]
        %v7489 = vunpack.c.l.b16 %v7485
        %v7490 = vunpack.c.h.b16 %v7485
        %v7491 = vunpack.c.l.b16 %v7486
        %v7492 = vunpack.c.h.b16 %v7486
        %v7493 = vpack.c.b16 %v7491, %v7489
        %v7494 = vpack.c.b16 %v7492, %v7490
        %v7498 = vsel %vm758, %v7483, 0
        %v7501 = vsel %vm758, %v7484, 0
        %7503 = vmatprep.subr.bf16.mxu0 %v7494
        %7504 = vmatpush1.bf16.msra.mxu0 %v7493
        %7505 = vmatprep.subr.bf16.mxu0 0
        %7506 = vmatpush1.bf16.msra.mxu0 0
        %7507 = vmatprep.subr.bf16.mxu0 0
        %7508 = vmatpush1.bf16.msra.mxu0 0
        %7509 = vmatprep.subr.bf16.mxu0 0
        %7510 = vmatpush1.bf16.msra.mxu0 0
        %7511 = vmatprep.subr.bf16.mxu0 0
        %7512 = vmatpush1.bf16.msra.mxu0 0
        %7513 = vmatprep.subr.bf16.mxu0 0
        %7514 = vmatpush1.bf16.msra.mxu0 0
        %7515 = vmatprep.subr.bf16.mxu0 0
        %7516 = vmatpush1.bf16.msra.mxu0 0
        %7517 = vmatprep.subr.bf16.mxu0 0
        %7518 = vmatpush1.bf16.msra.mxu0 0
        %7519 = vmatprep.subr.bf16.mxu0 0
        %7520 = vmatpush1.bf16.msra.mxu0 0
        %7521 = vmatprep.subr.bf16.mxu0 0
        %7522 = vmatpush1.bf16.msra.mxu0 0
        %7523 = vmatprep.subr.bf16.mxu0 0
        %7524 = vmatpush1.bf16.msra.mxu0 0
        %7525 = vmatprep.subr.bf16.mxu0 0
        %7526 = vmatpush1.bf16.msra.mxu0 0
        %7527 = vmatprep.subr.bf16.mxu0 0
        %7528 = vmatpush1.bf16.msra.mxu0 0
        %7529 = vmatprep.subr.bf16.mxu0 0
        %7530 = vmatpush1.bf16.msra.mxu0 0
        %7531 = vmatprep.subr.bf16.mxu0 0
        %7532 = vmatpush1.bf16.msra.mxu0 0
        %7533 = vmatprep.subr.bf16.mxu0 0
        %7534 = vmatpush1.bf16.msra.mxu0 0
        %7535 = vmatprep.mubr.bf16.mxu0 0
        %7536 = vmatmul.mubr.bf16.gmra.mrb[0].mxu0 %v7498
        %v7537 = vpop.f32.mrb[0].mxu0
        %v7538 = vadd.f32 0.0, %v7537
        %v7539 = vpop.f32.mrb[0].mxu0
        %v7540 = vadd.f32 0.0, %v7539
        %v7541 = vpop.f32.mrb[0].mxu0
        %v7542 = vadd.f32 0.0, %v7541
        %v7543 = vpop.f32.mrb[0].mxu0
        %v7544 = vadd.f32 0.0, %v7543
        %7545 = vmatprep.mubr.bf16.mxu0 0
        %7546 = vmatmul.mubr.bf16.gmra.mrb[0].mxu0 %v7501
        %v7547 = vpop.f32.mrb[0].mxu0
        %v7548 = vadd.f32 0.0, %v7547
        %v7549 = vpop.f32.mrb[0].mxu0
        %v7550 = vadd.f32 0.0, %v7549
        %v7551 = vpop.f32.mrb[0].mxu0
        %v7552 = vadd.f32 0.0, %v7551
        %v7553 = vpop.f32.mrb[0].mxu0
        %v7554 = vadd.f32 0.0, %v7553
        %7555 = vdwg.mxu0
        %7564 = vrot.lane.b32.xlu0 %v7538, 17
        %v7565 = vpop.permute.xlu0 %7564
        %7566 = vrot.lane.b32.xlu0 %v7540, 17
        %v7567 = vpop.permute.xlu0 %7566
        %7568 = vrot.lane.b32.xlu0 %v7542, 17
        %v7569 = vpop.permute.xlu0 %7568
        %7570 = vrot.lane.b32.xlu0 %v7544, 17
        %v7571 = vpop.permute.xlu0 %7570
        %7572 = vrot.lane.b32.xlu0 %v7548, 17
        %v7573 = vpop.permute.xlu0 %7572
        %7574 = vrot.lane.b32.xlu0 %v7550, 17
        %v7575 = vpop.permute.xlu0 %7574
        %7576 = vrot.lane.b32.xlu0 %v7552, 17
        %v7577 = vpop.permute.xlu0 %7576
        %7578 = vrot.lane.b32.xlu0 %v7554, 17
        %v7579 = vpop.permute.xlu0 %7578
        %v7580 = vsel %vm735, %v7565, %v7567
        %v7581 = vsel %vm735, %v7569, %v7571
        %v7582 = vsel %vm735, %v7573, %v7575
        %v7583 = vsel %vm735, %v7577, %v7579
        %v7592 = vsel %vm735, 0.0, %v7565
        %v7593 = vsel %vm735, 0.0, %v7569
        %v7594 = vsel %vm735, 0.0, %v7573
        %v7595 = vsel %vm735, 0.0, %v7577
        %v7596 = vmul.f32 %v7592, %v745
        %v7597 = vmul.f32 %v7580, %v749
        %v7598 = vmul.f32 %v7593, %v745
        %v7599 = vmul.f32 %v7581, %v749
        %v7600 = vmul.f32 %v7594, %v745
        %v7601 = vmul.f32 %v7582, %v749
        %v7602 = vmul.f32 %v7595, %v745
        %v7603 = vmul.f32 %v7583, %v749
        %7604 = vrot.lane.b32.xlu0 %v7538, 16
        %v7605 = vpop.permute.xlu0 %7604
        %7606 = vrot.lane.b32.xlu0 %v7540, 16
        %v7607 = vpop.permute.xlu0 %7606
        %7608 = vrot.lane.b32.xlu0 %v7542, 16
        %v7609 = vpop.permute.xlu0 %7608
        %7610 = vrot.lane.b32.xlu0 %v7544, 16
        %v7611 = vpop.permute.xlu0 %7610
        %7612 = vrot.lane.b32.xlu0 %v7548, 16
        %v7613 = vpop.permute.xlu0 %7612
        %7614 = vrot.lane.b32.xlu0 %v7550, 16
        %v7615 = vpop.permute.xlu0 %7614
        %7616 = vrot.lane.b32.xlu0 %v7552, 16
        %v7617 = vpop.permute.xlu0 %7616
        %7618 = vrot.lane.b32.xlu0 %v7554, 16
        %v7619 = vpop.permute.xlu0 %7618
        %v7620 = vsel %vm758, %v7605, %v7607
        %v7621 = vsel %vm758, %v7609, %v7611
        %v7622 = vsel %vm758, %v7613, %v7615
        %v7623 = vsel %vm758, %v7617, %v7619
        %v7632 = vsel %vm758, 0.0, %v7605
        %v7633 = vsel %vm758, 0.0, %v7609
        %v7634 = vsel %vm758, 0.0, %v7613
        %v7635 = vsel %vm758, 0.0, %v7617
        %v7636 = vmul.f32 %v7632, %v769
        %v7637 = vmul.f32 %v7620, %v773
        %v7638 = vmul.f32 %v7633, %v769
        %v7639 = vmul.f32 %v7621, %v773
        %v7640 = vmul.f32 %v7634, %v769
        %v7641 = vmul.f32 %v7622, %v773
        %v7642 = vmul.f32 %v7635, %v769
        %v7643 = vmul.f32 %v7623, %v773
        %7644 = vrot.lane.b32.xlu0 %v7538, 15
        %v7645 = vpop.permute.xlu0 %7644
        %7646 = vrot.lane.b32.xlu0 %v7540, 15
        %v7647 = vpop.permute.xlu0 %7646
        %7648 = vrot.lane.b32.xlu0 %v7542, 15
        %v7649 = vpop.permute.xlu0 %7648
        %7650 = vrot.lane.b32.xlu0 %v7544, 15
        %v7651 = vpop.permute.xlu0 %7650
        %7652 = vrot.lane.b32.xlu0 %v7548, 15
        %v7653 = vpop.permute.xlu0 %7652
        %7654 = vrot.lane.b32.xlu0 %v7550, 15
        %v7655 = vpop.permute.xlu0 %7654
        %7656 = vrot.lane.b32.xlu0 %v7552, 15
        %v7657 = vpop.permute.xlu0 %7656
        %7658 = vrot.lane.b32.xlu0 %v7554, 15
        %v7659 = vpop.permute.xlu0 %7658
        %v7660 = vsel %vm782, %v7645, %v7647
        %v7661 = vsel %vm782, %v7649, %v7651
        %v7662 = vsel %vm782, %v7653, %v7655
        %v7663 = vsel %vm782, %v7657, %v7659
        %v7672 = vsel %vm782, 0.0, %v7645
        %v7673 = vsel %vm782, 0.0, %v7649
        %v7674 = vsel %vm782, 0.0, %v7653
        %v7675 = vsel %vm782, 0.0, %v7657
        %v7676 = vmul.f32 %v7672, %v793
        %v7677 = vmul.f32 %v7660, %v797
        %v7678 = vmul.f32 %v7673, %v793
        %v7679 = vmul.f32 %v7661, %v797
        %v7680 = vmul.f32 %v7674, %v793
        %v7681 = vmul.f32 %v7662, %v797
        %v7682 = vmul.f32 %v7675, %v793
        %v7683 = vmul.f32 %v7663, %v797
        %7684 = vrot.lane.b32.xlu0 %v7538, 1
        %v7685 = vpop.permute.xlu0 %7684
        %7686 = vrot.lane.b32.xlu0 %v7540, 1
        %v7687 = vpop.permute.xlu0 %7686
        %7688 = vrot.lane.b32.xlu0 %v7542, 1
        %v7689 = vpop.permute.xlu0 %7688
        %7690 = vrot.lane.b32.xlu0 %v7544, 1
        %v7691 = vpop.permute.xlu0 %7690
        %7692 = vrot.lane.b32.xlu0 %v7548, 1
        %v7693 = vpop.permute.xlu0 %7692
        %7694 = vrot.lane.b32.xlu0 %v7550, 1
        %v7695 = vpop.permute.xlu0 %7694
        %7696 = vrot.lane.b32.xlu0 %v7552, 1
        %v7697 = vpop.permute.xlu0 %7696
        %7698 = vrot.lane.b32.xlu0 %v7554, 1
        %v7699 = vpop.permute.xlu0 %7698
        %v7700 = vsel %vm806, %v7685, %v7687
        %v7701 = vsel %vm806, %v7689, %v7691
        %v7702 = vsel %vm806, %v7693, %v7695
        %v7703 = vsel %vm806, %v7697, %v7699
        %v7712 = vsel %vm806, 0.0, %v7685
        %v7713 = vsel %vm806, 0.0, %v7689
        %v7714 = vsel %vm806, 0.0, %v7693
        %v7715 = vsel %vm806, 0.0, %v7697
        %v7716 = vmul.f32 %v7712, %v817
        %v7717 = vmul.f32 %v7700, %v821
        %v7718 = vmul.f32 %v7713, %v817
        %v7719 = vmul.f32 %v7701, %v821
        %v7720 = vmul.f32 %v7714, %v817
        %v7721 = vmul.f32 %v7702, %v821
        %v7722 = vmul.f32 %v7715, %v817
        %v7723 = vmul.f32 %v7703, %v821
        %v7724 = vmul.f32 %v7538, %v832
        %v7725 = vmul.f32 %v7540, %v836
        %v7726 = vmul.f32 %v7542, %v832
        %v7727 = vmul.f32 %v7544, %v836
        %v7728 = vmul.f32 %v7548, %v832
        %v7729 = vmul.f32 %v7550, %v836
        %v7730 = vmul.f32 %v7552, %v832
        %v7731 = vmul.f32 %v7554, %v836
        %7732 = vrot.lane.b32.xlu0 %v7538, 127
        %v7733 = vpop.permute.xlu0 %7732
        %7734 = vrot.lane.b32.xlu0 %v7540, 127
        %v7735 = vpop.permute.xlu0 %7734
        %7736 = vrot.lane.b32.xlu0 %v7542, 127
        %v7737 = vpop.permute.xlu0 %7736
        %7738 = vrot.lane.b32.xlu0 %v7544, 127
        %v7739 = vpop.permute.xlu0 %7738
        %7740 = vrot.lane.b32.xlu0 %v7548, 127
        %v7741 = vpop.permute.xlu0 %7740
        %7742 = vrot.lane.b32.xlu0 %v7550, 127
        %v7743 = vpop.permute.xlu0 %7742
        %7744 = vrot.lane.b32.xlu0 %v7552, 127
        %v7745 = vpop.permute.xlu0 %7744
        %7746 = vrot.lane.b32.xlu0 %v7554, 127
        %v7747 = vpop.permute.xlu0 %7746
        %v7748 = vsel %vm845, %v7733, %v7735
        %v7749 = vsel %vm845, %v7737, %v7739
        %v7750 = vsel %vm845, %v7741, %v7743
        %v7751 = vsel %vm845, %v7745, %v7747
        %v7760 = vsel %vm845, %v7735, 0.0
        %v7761 = vsel %vm845, %v7739, 0.0
        %v7762 = vsel %vm845, %v7743, 0.0
        %v7763 = vsel %vm845, %v7747, 0.0
        %v7764 = vmul.f32 %v7748, %v856
        %v7765 = vmul.f32 %v7760, %v860
        %v7766 = vmul.f32 %v7749, %v856
        %v7767 = vmul.f32 %v7761, %v860
        %v7768 = vmul.f32 %v7750, %v856
        %v7769 = vmul.f32 %v7762, %v860
        %v7770 = vmul.f32 %v7751, %v856
        %v7771 = vmul.f32 %v7763, %v860
        %7772 = vrot.lane.b32.xlu0 %v7538, 113
        %v7773 = vpop.permute.xlu0 %7772
        %7774 = vrot.lane.b32.xlu0 %v7540, 113
        %v7775 = vpop.permute.xlu0 %7774
        %7776 = vrot.lane.b32.xlu0 %v7542, 113
        %v7777 = vpop.permute.xlu0 %7776
        %7778 = vrot.lane.b32.xlu0 %v7544, 113
        %v7779 = vpop.permute.xlu0 %7778
        %7780 = vrot.lane.b32.xlu0 %v7548, 113
        %v7781 = vpop.permute.xlu0 %7780
        %7782 = vrot.lane.b32.xlu0 %v7550, 113
        %v7783 = vpop.permute.xlu0 %7782
        %7784 = vrot.lane.b32.xlu0 %v7552, 113
        %v7785 = vpop.permute.xlu0 %7784
        %7786 = vrot.lane.b32.xlu0 %v7554, 113
        %v7787 = vpop.permute.xlu0 %7786
        %v7788 = vsel %vm869, %v7773, %v7775
        %v7789 = vsel %vm869, %v7777, %v7779
        %v7790 = vsel %vm869, %v7781, %v7783
        %v7791 = vsel %vm869, %v7785, %v7787
        %v7800 = vsel %vm869, %v7775, 0.0
        %v7801 = vsel %vm869, %v7779, 0.0
        %v7802 = vsel %vm869, %v7783, 0.0
        %v7803 = vsel %vm869, %v7787, 0.0
        %v7804 = vmul.f32 %v7788, %v880
        %v7805 = vmul.f32 %v7800, %v884
        %v7806 = vmul.f32 %v7789, %v880
        %v7807 = vmul.f32 %v7801, %v884
        %v7808 = vmul.f32 %v7790, %v880
        %v7809 = vmul.f32 %v7802, %v884
        %v7810 = vmul.f32 %v7791, %v880
        %v7811 = vmul.f32 %v7803, %v884
        %7812 = vrot.lane.b32.xlu0 %v7538, 112
        %v7813 = vpop.permute.xlu0 %7812
        %7814 = vrot.lane.b32.xlu0 %v7540, 112
        %v7815 = vpop.permute.xlu0 %7814
        %7816 = vrot.lane.b32.xlu0 %v7542, 112
        %v7817 = vpop.permute.xlu0 %7816
        %7818 = vrot.lane.b32.xlu0 %v7544, 112
        %v7819 = vpop.permute.xlu0 %7818
        %7820 = vrot.lane.b32.xlu0 %v7548, 112
        %v7821 = vpop.permute.xlu0 %7820
        %7822 = vrot.lane.b32.xlu0 %v7550, 112
        %v7823 = vpop.permute.xlu0 %7822
        %7824 = vrot.lane.b32.xlu0 %v7552, 112
        %v7825 = vpop.permute.xlu0 %7824
        %7826 = vrot.lane.b32.xlu0 %v7554, 112
        %v7827 = vpop.permute.xlu0 %7826
        %v7828 = vsel %vm893, %v7813, %v7815
        %v7829 = vsel %vm893, %v7817, %v7819
        %v7830 = vsel %vm893, %v7821, %v7823
        %v7831 = vsel %vm893, %v7825, %v7827
        %v7840 = vsel %vm893, %v7815, 0.0
        %v7841 = vsel %vm893, %v7819, 0.0
        %v7842 = vsel %vm893, %v7823, 0.0
        %v7843 = vsel %vm893, %v7827, 0.0
        %v7844 = vmul.f32 %v7828, %v904
        %v7845 = vmul.f32 %v7840, %v908
        %v7846 = vmul.f32 %v7829, %v904
        %v7847 = vmul.f32 %v7841, %v908
        %v7848 = vmul.f32 %v7830, %v904
        %v7849 = vmul.f32 %v7842, %v908
        %v7850 = vmul.f32 %v7831, %v904
        %v7851 = vmul.f32 %v7843, %v908
        %7852 = vrot.lane.b32.xlu0 %v7538, 111
        %v7853 = vpop.permute.xlu0 %7852
        %7854 = vrot.lane.b32.xlu0 %v7540, 111
        %v7855 = vpop.permute.xlu0 %7854
        %7856 = vrot.lane.b32.xlu0 %v7542, 111
        %v7857 = vpop.permute.xlu0 %7856
        %7858 = vrot.lane.b32.xlu0 %v7544, 111
        %v7859 = vpop.permute.xlu0 %7858
        %7860 = vrot.lane.b32.xlu0 %v7548, 111
        %v7861 = vpop.permute.xlu0 %7860
        %7862 = vrot.lane.b32.xlu0 %v7550, 111
        %v7863 = vpop.permute.xlu0 %7862
        %7864 = vrot.lane.b32.xlu0 %v7552, 111
        %v7865 = vpop.permute.xlu0 %7864
        %7866 = vrot.lane.b32.xlu0 %v7554, 111
        %v7867 = vpop.permute.xlu0 %7866
        %v7868 = vsel %vm917, %v7853, %v7855
        %v7869 = vsel %vm917, %v7857, %v7859
        %v7870 = vsel %vm917, %v7861, %v7863
        %v7871 = vsel %vm917, %v7865, %v7867
        %v7880 = vsel %vm917, %v7855, 0.0
        %v7881 = vsel %vm917, %v7859, 0.0
        %v7882 = vsel %vm917, %v7863, 0.0
        %v7883 = vsel %vm917, %v7867, 0.0
        %v7884 = vmul.f32 %v7868, %v928
        %v7885 = vmul.f32 %v7880, %v932
        %v7886 = vmul.f32 %v7869, %v928
        %v7887 = vmul.f32 %v7881, %v932
        %v7888 = vmul.f32 %v7870, %v928
        %v7889 = vmul.f32 %v7882, %v932
        %v7890 = vmul.f32 %v7871, %v928
        %v7891 = vmul.f32 %v7883, %v932
        %v7892 = vpack.c.bf16 %v7598, %v7596
        %v7893 = vpack.c.bf16 %v7599, %v7597
        %v7894 = vpack.c.bf16 %v7602, %v7600
        %v7895 = vpack.c.bf16 %v7603, %v7601
        %v7896 = vpack.c.bf16 %v7638, %v7636
        %v7897 = vpack.c.bf16 %v7639, %v7637
        %v7898 = vpack.c.bf16 %v7642, %v7640
        %v7899 = vpack.c.bf16 %v7643, %v7641
        %v7900 = vpack.c.bf16 %v7678, %v7676
        %v7901 = vpack.c.bf16 %v7679, %v7677
        %v7902 = vpack.c.bf16 %v7682, %v7680
        %v7903 = vpack.c.bf16 %v7683, %v7681
        %v7904 = vpack.c.bf16 %v7718, %v7716
        %v7905 = vpack.c.bf16 %v7719, %v7717
        %v7906 = vpack.c.bf16 %v7722, %v7720
        %v7907 = vpack.c.bf16 %v7723, %v7721
        %v7908 = vpack.c.bf16 %v7726, %v7724
        %v7909 = vpack.c.bf16 %v7727, %v7725
        %v7910 = vpack.c.bf16 %v7730, %v7728
        %v7911 = vpack.c.bf16 %v7731, %v7729
        %v7912 = vpack.c.bf16 %v7766, %v7764
        %v7913 = vpack.c.bf16 %v7767, %v7765
        %v7914 = vpack.c.bf16 %v7770, %v7768
        %v7915 = vpack.c.bf16 %v7771, %v7769
        %v7916 = vpack.c.bf16 %v7806, %v7804
        %v7917 = vpack.c.bf16 %v7807, %v7805
        %v7918 = vpack.c.bf16 %v7810, %v7808
        %v7919 = vpack.c.bf16 %v7811, %v7809
        %v7920 = vpack.c.bf16 %v7846, %v7844
        %v7921 = vpack.c.bf16 %v7847, %v7845
        %v7922 = vpack.c.bf16 %v7850, %v7848
        %v7923 = vpack.c.bf16 %v7851, %v7849
        %v7924 = vpack.c.bf16 %v7886, %v7884
        %v7925 = vpack.c.bf16 %v7887, %v7885
        %v7926 = vpack.c.bf16 %v7890, %v7888
        %v7927 = vpack.c.bf16 %v7891, %v7889
        %v7928 = vld [vmem:[%s19] sm:$0xff]
        %v7929 = vld [vmem:[%s19 + $0x8] sm:$0xf]
        %v7930 = vld [vmem:[%s19 + $0xc] sm:$0xff]
        %v7931 = vld [vmem:[%s19 + $0x14] sm:$0xf]
        %v7932 = vld [vmem:[%s20] sm:$0xff]
        %v7933 = vld [vmem:[%s20 + $0x8] sm:$0xff]
        %7935 = vset.pattern.permute.xlu0 0
        %7936 = vperm.xlu0 %7935, %v7932
        %v7937 = vpop.permute.xlu0 %7936
        %7940 = vset.pattern.permute.xlu0 0
        %7941 = vperm.xlu0 %7940, %v7933
        %v7942 = vpop.permute.xlu0 %7941
        %v7948 = vunpack.c.l.b16 %v7928
        %v7949 = vunpack.c.h.b16 %v7928
        %v7950 = vunpack.c.l.b16 %v7929
        %v7951 = vunpack.c.l.b16 %v7930
        %v7952 = vunpack.c.h.b16 %v7930
        %v7953 = vunpack.c.l.b16 %v7931
        %v7954 = vpack.c.b16 %v7951, %v7948
        %v7955 = vpack.c.b16 %v7952, %v7949
        %v7956 = vpack.c.b16 %v7953, %v7950
        %v7960 = vsel %vm1879, %v7956, 0
        %7962 = vmatprep.subr.bf16.mxu0 %v7893
        %7963 = vmatpush1.bf16.msra.mxu0 %v7892
        %7964 = vmatprep.subr.bf16.mxu0 %v7895
        %7965 = vmatpush1.bf16.msra.mxu0 %v7894
        %7966 = vmatprep.subr.bf16.mxu0 %v7897
        %7967 = vmatpush1.bf16.msra.mxu0 %v7896
        %7968 = vmatprep.subr.bf16.mxu0 %v7899
        %7969 = vmatpush1.bf16.msra.mxu0 %v7898
        %7970 = vmatprep.subr.bf16.mxu0 %v7901
        %7971 = vmatpush1.bf16.msra.mxu0 %v7900
        %7972 = vmatprep.subr.bf16.mxu0 %v7903
        %7973 = vmatpush1.bf16.msra.mxu0 %v7902
        %7974 = vmatprep.subr.bf16.mxu0 %v7905
        %7975 = vmatpush1.bf16.msra.mxu0 %v7904
        %7976 = vmatprep.subr.bf16.mxu0 %v7907
        %7977 = vmatpush1.bf16.msra.mxu0 %v7906
        %7978 = vmatprep.subr.bf16.mxu0 %v7909
        %7979 = vmatpush1.bf16.msra.mxu0 %v7908
        %7980 = vmatprep.subr.bf16.mxu0 %v7911
        %7981 = vmatpush1.bf16.msra.mxu0 %v7910
        %7982 = vmatprep.subr.bf16.mxu0 %v7913
        %7983 = vmatpush1.bf16.msra.mxu0 %v7912
        %7984 = vmatprep.subr.bf16.mxu0 %v7915
        %7985 = vmatpush1.bf16.msra.mxu0 %v7914
        %7986 = vmatprep.subr.bf16.mxu0 %v7917
        %7987 = vmatpush1.bf16.msra.mxu0 %v7916
        %7988 = vmatprep.subr.bf16.mxu0 %v7919
        %7989 = vmatpush1.bf16.msra.mxu0 %v7918
        %7990 = vmatprep.subr.bf16.mxu0 %v7921
        %7991 = vmatpush1.bf16.msra.mxu0 %v7920
        %7992 = vmatprep.subr.bf16.mxu0 %v7923
        %7993 = vmatpush1.bf16.msra.mxu0 %v7922
        %7994 = vmatprep.mubr.bf16.mxu0 %v7955
        %7995 = vmatmul.mubr.bf16.gmra.mrb[0].mxu0 %v7954
        %v7996 = vpop.f32.mrb[0].mxu0
        %v7997 = vadd.f32 %v7937, %v7996
        %v7998 = vpop.f32.mrb[0].mxu0
        %v7999 = vadd.f32 %v7937, %v7998
        %v8000 = vpop.f32.mrb[0].mxu0
        %v8001 = vadd.f32 %v7942, %v8000
        %v8002 = vpop.f32.mrb[0].mxu0
        %v8003 = vadd.f32 %v7942, %v8002
        %8004 = vdwg.mxu0
        %8005 = vmatprep.subr.bf16.mxu0 %v7925
        %8006 = vmatpush1.bf16.msra.mxu0 %v7924
        %8007 = vmatprep.subr.bf16.mxu0 %v7927
        %8008 = vmatpush1.bf16.msra.mxu0 %v7926
        %8009 = vmatprep.subr.bf16.mxu0 0
        %8010 = vmatpush1.bf16.msra.mxu0 0
        %8011 = vmatprep.subr.bf16.mxu0 0
        %8012 = vmatpush1.bf16.msra.mxu0 0
        %8013 = vmatprep.subr.bf16.mxu0 0
        %8014 = vmatpush1.bf16.msra.mxu0 0
        %8015 = vmatprep.subr.bf16.mxu0 0
        %8016 = vmatpush1.bf16.msra.mxu0 0
        %8017 = vmatprep.subr.bf16.mxu0 0
        %8018 = vmatpush1.bf16.msra.mxu0 0
        %8019 = vmatprep.subr.bf16.mxu0 0
        %8020 = vmatpush1.bf16.msra.mxu0 0
        %8021 = vmatprep.subr.bf16.mxu0 0
        %8022 = vmatpush1.bf16.msra.mxu0 0
        %8023 = vmatprep.subr.bf16.mxu0 0
        %8024 = vmatpush1.bf16.msra.mxu0 0
        %8025 = vmatprep.subr.bf16.mxu0 0
        %8026 = vmatpush1.bf16.msra.mxu0 0
        %8027 = vmatprep.subr.bf16.mxu0 0
        %8028 = vmatpush1.bf16.msra.mxu0 0
        %8029 = vmatprep.subr.bf16.mxu0 0
        %8030 = vmatpush1.bf16.msra.mxu0 0
        %8031 = vmatprep.subr.bf16.mxu0 0
        %8032 = vmatpush1.bf16.msra.mxu0 0
        %8033 = vmatprep.subr.bf16.mxu0 0
        %8034 = vmatpush1.bf16.msra.mxu0 0
        %8035 = vmatprep.subr.bf16.mxu0 0
        %8036 = vmatpush1.bf16.msra.mxu0 0
        %8037 = vmatprep.mubr.bf16.mxu0 0
        %8038 = vmatmul.mubr.bf16.gmra.mrb[0].mxu0 %v7960
        %v8039 = vpop.f32.mrb[0].mxu0
        %v8040 = vadd.f32 %v7997, %v8039
        %v8041 = vpop.f32.mrb[0].mxu0
        %v8042 = vadd.f32 %v7999, %v8041
        %v8043 = vpop.f32.mrb[0].mxu0
        %v8044 = vadd.f32 %v8001, %v8043
        %v8045 = vpop.f32.mrb[0].mxu0
        %v8046 = vadd.f32 %v8003, %v8045
        %8047 = vdwg.mxu0
        %v8048 = vmax.f32 %v8040, 0.0
        %v8049 = vmax.f32 %v8042, 0.0
        %v8050 = vmax.f32 %v8044, 0.0
        %v8051 = vmax.f32 %v8046, 0.0
        %v8052 = vld [vmem:[%s21] sm:$0x3]
        %v8053 = vpack.c.bf16 %v8050, %v8048
        %v8054 = vpack.c.bf16 %v8051, %v8049
        %v8055 = vld [vmem:[%s22] sm:$0xf]
        %8057 = vset.pattern.permute.xlu0 0
        %8058 = vperm.xlu0 %8057, %v8055
        %v8059 = vpop.permute.xlu0 %8058
        %v8062 = vsel %vm758, %v8052, 0
        %8064 = vmatprep.subr.bf16.mxu0 %v8054
        %8065 = vmatpush1.bf16.msra.mxu0 %v8053
        %8066 = vmatprep.subr.bf16.mxu0 0
        %8067 = vmatpush1.bf16.msra.mxu0 0
        %8068 = vmatprep.subr.bf16.mxu0 0
        %8069 = vmatpush1.bf16.msra.mxu0 0
        %8070 = vmatprep.subr.bf16.mxu0 0
        %8071 = vmatpush1.bf16.msra.mxu0 0
        %8072 = vmatprep.subr.bf16.mxu0 0
        %8073 = vmatpush1.bf16.msra.mxu0 0
        %8074 = vmatprep.subr.bf16.mxu0 0
        %8075 = vmatpush1.bf16.msra.mxu0 0
        %8076 = vmatprep.subr.bf16.mxu0 0
        %8077 = vmatpush1.bf16.msra.mxu0 0
        %8078 = vmatprep.subr.bf16.mxu0 0
        %8079 = vmatpush1.bf16.msra.mxu0 0
        %8080 = vmatprep.subr.bf16.mxu0 0
        %8081 = vmatpush1.bf16.msra.mxu0 0
        %8082 = vmatprep.subr.bf16.mxu0 0
        %8083 = vmatpush1.bf16.msra.mxu0 0
        %8084 = vmatprep.subr.bf16.mxu0 0
        %8085 = vmatpush1.bf16.msra.mxu0 0
        %8086 = vmatprep.subr.bf16.mxu0 0
        %8087 = vmatpush1.bf16.msra.mxu0 0
        %8088 = vmatprep.subr.bf16.mxu0 0
        %8089 = vmatpush1.bf16.msra.mxu0 0
        %8090 = vmatprep.subr.bf16.mxu0 0
        %8091 = vmatpush1.bf16.msra.mxu0 0
        %8092 = vmatprep.subr.bf16.mxu0 0
        %8093 = vmatpush1.bf16.msra.mxu0 0
        %8094 = vmatprep.subr.bf16.mxu0 0
        %8095 = vmatpush1.bf16.msra.mxu0 0
        %8096 = vmatprep.mubr.bf16.mxu0 0
        %8097 = vmatmul.mubr.bf16.gmra.mrb[0].mxu0 %v8062
        %v8098 = vpop.f32.mrb[0].mxu0
        %v8099 = vadd.f32 %v8059, %v8098
        %v8100 = vpop.f32.mrb[0].mxu0
        %v8101 = vadd.f32 %v8059, %v8100
        %v8102 = vpop.f32.mrb[0].mxu0
        %v8103 = vpop.f32.mrb[0].mxu0
        %8104 = vdwg.mxu0
        %v8107 = vcombine.low %v8099, %v8101
        %8109 = vst [vmem:[%s725] sm:$0xff] %v8107
        %p8110 = scmp.lt.s32.totalorder %s35, 1
        %s8111 = scalar_select %p8110, %s35, 1
        %s8112 = smul.addr %s8111, 2
        %s8113 = smul.addr %s8112, 4
        %s8114 = scalar_lea.vmem %s23, %s8113
        // Predicated region
        $region117: #{bisenet_forward.1} parent=111 // pred_check
          %p8115 = pneg %p541
        $region118: #{bisenet_forward.1} parent=111 // pred_check_branch
          %8117 = sbr.rel (%p8115) target = $region120
        $region119: #{bisenet_forward.1} parent=111 // pred_region
          _
        $region120: #{bisenet_forward.1} parent=111 // pred_fallthru
          _
      $region112: #{bisenet_forward.1} parent=5 // pred_fallthru
        _
      %p8118 = scmp.le.s32.totalorder 2, %s30
      // Predicated region
      $region121: #{bisenet_forward.1} parent=5 // pred_check
        %p8119 = pneg %p8118
      $region122: #{bisenet_forward.1} parent=5 // pred_check_branch
        %8121 = sbr.rel (%p8119) target = $region124
      $region123: #{bisenet_forward.1} parent=5 // pred_region
        %s8122 = ssub.s32 %s30, 2
        // Predicated region
        $region125: #{bisenet_forward.1} parent=123 // pred_check
          %p8123 = pneg %p547
        $region126: #{bisenet_forward.1} parent=123 // pred_check_branch
          %8125 = sbr.rel (%p8123) target = $region128
        $region127: #{bisenet_forward.1} parent=123 // pred_region
          %p8126 = scmp.lt.s32.totalorder %s36, 1
          %s8127 = scalar_select %p8126, %s36, 1
          %s8128 = smul.addr %s8127, 2
          %s8129 = smul.addr %s8128, 4
          %s8130 = scalar_lea.vmem %s23, %s8129
        $region128: #{bisenet_forward.1} parent=123 // pred_fallthru
          _
      $region124: #{bisenet_forward.1} parent=5 // pred_fallthru
        _
    $region6: #{bisenet_forward.1} parent=1 // loop_footer
      %s34 = sadd.s32 1, %s30
    $region7: #{bisenet_forward.1} parent=1 // loop_footer_branch
      %29 = sbr.rel target = $region3
    $region8: #{bisenet_forward.1} parent=1 // loop_exit
      _
    %8131 = vsyncpa [#allocation3], 1
    %s8132 = scalar_lea.sflag [#allocation3], 1
    %8133 = vsyncpa %s8132, 1

</llo_original>
